<compile_context>
chip_gen: v7x
topology: tpu7x:2x2x1
jax: 0.10.0
libtpu: 0.0.40
codegen_flags: <defaults>
</compile_context>

<pallas_src>
import functools

import jax
import jax.numpy as jnp
from jax import lax
from jax.experimental import pallas as pl
from jax.experimental.pallas import tpu as pltpu

LANE = 128


# --------------------------------------------------------------------------- fused kernel
def _fused_cnn_kernel(patch_ref, w1_ref, b1_ref, w2_ref, b2_ref,
                      wf1_ref, bf1_ref, g_ref, bt_ref, wf2_ref, bf2_ref,
                      o_ref, h1_scr,
                      *, B, Ho1, Wo1, Ho2, Wo2, Hp, Wp):
    f32 = jnp.float32
    K1P = w1_ref.shape[0]
    C1P = w1_ref.shape[1]
    C2P = w2_ref.shape[2]
    H1P = wf1_ref.shape[2]

    w1 = w1_ref[...]                                               # (K1P, C1P) hoisted
    b1 = b1_ref[...]                                               # (1, C1P)
    bias2 = jnp.broadcast_to(b2_ref[...], (Ho2 * Wo2, C2P)).astype(f32)

    pooled = []                                                    # per-sample pooled maps (values)
    for b in range(B):
        # ---- conv1 + ReLU (im2col matmul).  The input image is the center pixel broadcast
        #      over space, so every output position shares the same im2col row; broadcasting
        #      it to all Ho1*Wo1 rows reproduces the full valid convolution.
        row = patch_ref[pl.ds(b, 1), :]                            # (1, K1P)
        a1 = jnp.broadcast_to(row, (Ho1 * Wo1, K1P))               # (Ho1*Wo1, K1P)
        h1 = jnp.maximum(jnp.dot(a1, w1, preferred_element_type=f32) + b1, 0.0)
        for y in range(Ho1):                                       # keep conv1 activation
            h1_scr[b, y] = h1[y * Wo1:(y + 1) * Wo1, :]            # resident in VMEM (NHWC)

        # ---- conv2 + ReLU: accumulate 25 shifted-window matmuls (K = 128) in f32.
        acc = bias2
        for ki in range(5):
            for kj in range(5):
                win = h1_scr[b, pl.ds(ki, Ho2), pl.ds(kj, Wo2), :]  # (Ho2, Wo2, C1P)
                a2 = win.reshape(Ho2 * Wo2, C1P)
                acc = acc + jnp.dot(a2, w2_ref[ki * 5 + kj],
                                    preferred_element_type=f32)
        h2 = jnp.maximum(acc, 0.0)                                 # (Ho2*Wo2, C2P)

        # ---- fused 2x2 max-pool (floor mode), fully vectorized (no per-element stores).
        h2s = h2.reshape(Ho2, Wo2, C2P)
        h2y = h2s[:2 * Hp].reshape(Hp, 2, Wo2, C2P)
        ymax = jnp.maximum(h2y[:, 0], h2y[:, 1])                   # (Hp, Wo2, C2P)
        # column 2*px of xmax holds the pooled value of output column px
        xmax = jnp.maximum(ymax[:, :2 * Wp - 1, :], ymax[:, 1:2 * Wp, :])
        pooled.append(xmax)                                        # (Hp, 2*Wp-1, C2P)

    pooled = jnp.stack(pooled, axis=0)                             # (B, Hp, 2*Wp-1, C2P)

    # ---- fc1 (NCHW flatten folded into wf1's per-position blocks) ...
    acc1 = jnp.broadcast_to(bf1_ref[...], (B, H1P)).astype(f32)
    for py in range(Hp):
        for px in range(Wp):
            rows = pooled[:, py, 2 * px, :]                        # (B, C2P)
            acc1 = acc1 + jnp.dot(rows, wf1_ref[py * Wp + px],
                                  preferred_element_type=f32)

    # ---- BatchNorm1d (training-mode batch statistics, biased variance, eps=1e-5) + ReLU
    mean = jnp.mean(acc1, axis=0, keepdims=True)
    cen = acc1 - mean
    var = jnp.mean(cen * cen, axis=0, keepdims=True)
    hn = cen * lax.rsqrt(var + 1e-5)
    hn = hn * g_ref[...] + bt_ref[...]
    hn = jnp.maximum(hn, 0.0)

    # ---- fc2 (lane-dense padded logits; real classes are the first columns)
    out = jnp.dot(hn, wf2_ref[...], preferred_element_type=f32) + bf2_ref[...]
    o_ref[...] = out.astype(o_ref.dtype)


# --------------------------------------------------------------------------- pallas wrapper
def _full_spec(arr):
    nd = arr.ndim
    return pl.BlockSpec(arr.shape, lambda i, _nd=nd: (0,) * _nd)


def fused_forward(patch, w1, b1, w2, b2, wf1, bf1, g, bt, wf2, bf2, *, image_size):
    B = patch.shape[0]
    Ho1 = image_size - 4
    Ho2 = Ho1 - 4
    Hp = Ho2 // 2
    C1P = w1.shape[1]
    NCP = wf2.shape[1]

    kernel = functools.partial(_fused_cnn_kernel, B=B, Ho1=Ho1, Wo1=Ho1,
                               Ho2=Ho2, Wo2=Ho2, Hp=Hp, Wp=Hp)
    args = (patch, w1, b1, w2, b2, wf1, bf1, g, bt, wf2, bf2)
    return pl.pallas_call(
        kernel,
        out_shape=jax.ShapeDtypeStruct((B, NCP), jnp.float32),
        grid=(1,),
        in_specs=[_full_spec(a) for a in args],
        out_specs=pl.BlockSpec((B, NCP), lambda i: (0, 0)),
        scratch_shapes=[pltpu.VMEM((B, Ho1, Ho1, C1P), jnp.float32)],
        compiler_params=pltpu.CompilerParams(dimension_semantics=("arbitrary",)),
    )(*args)


# --------------------------------------------------------------------------- params
def _round_up(n, m):
    return ((n + m - 1) // m) * m


def _pad_to(a, shape):
    return jnp.pad(a, [(0, t - s) for s, t in zip(a.shape, shape)])


def pack_params(w_c1, b_c1, w_c2, b_c2, w_f1, b_f1, gamma, beta, w_f2, b_f2,
                *, num_channels, image_size):
    """Convert PyTorch-layout weights to the padded, lane-dense kernel layout."""
    hp = (image_size - 8) // 2
    c1, c2, h1 = w_c1.shape[0], w_c2.shape[0], w_f1.shape[0]
    nc = w_f2.shape[0]
    k1 = 25 * num_channels
    K1P, C1P, C2P, H1P, NCP = (_round_up(d, LANE) for d in (k1, c1, c2, h1, nc))

    # conv1: (Cout, Cin, kh, kw) -> rows ordered (kh, kw, cin) to match the im2col patch
    w1 = jnp.transpose(w_c1, (2, 3, 1, 0)).reshape(k1, c1)
    # conv2: (Cout, Cin, kh, kw) -> (kernel position, cin, cout)
    w2 = jnp.transpose(w_c2, (2, 3, 1, 0)).reshape(25, w_c2.shape[1], c2)
    # fc1: fold the NCHW flatten (c, py, px) into per-spatial-position (s=py*Wp+px, c, h)
    #      weight blocks, so the kernel consumes NHWC pooled activations directly.
    wf1 = jnp.transpose(w_f1.reshape(h1, c2, hp, hp), (2, 3, 1, 0)).reshape(hp * hp, c2, h1)
    wf2 = jnp.transpose(w_f2)                                        # (h1, nc)

    return dict(
        w_conv1=_pad_to(w1, (K1P, C1P)),
        b_conv1=_pad_to(b_c1.reshape(1, c1), (1, C1P)),
        w_conv2=_pad_to(w2, (25, C1P, C2P)),
        b_conv2=_pad_to(b_c2.reshape(1, c2), (1, C2P)),
        w_fc1=_pad_to(wf1, (hp * hp, C2P, H1P)),
        b_fc1=_pad_to(b_f1.reshape(1, h1), (1, H1P)),
        bn_gamma=_pad_to(gamma.reshape(1, h1), (1, H1P)),
        bn_beta=_pad_to(beta.reshape(1, h1), (1, H1P)),
        w_fc2=_pad_to(wf2, (H1P, NCP)),
        b_fc2=_pad_to(b_f2.reshape(1, nc), (1, NCP)),
    )


def init_params(key, num_channels, image_size, num_classes):
    hp = (image_size - 8) // 2
    flat = hp * hp * 100
    ks = jax.random.split(key, 8)
    f32 = jnp.float32
    # Deterministic stand-ins for the PyTorch parameters, in PyTorch layout.
    w_c1 = jax.random.normal(ks[0], (50, num_channels, 5, 5), f32) * 0.10
    b_c1 = jax.random.normal(ks[1], (50,), f32) * 0.01
    w_c2 = jax.random.normal(ks[2], (100, 50, 5, 5), f32) * 0.02
    b_c2 = jax.random.normal(ks[3], (100,), f32) * 0.01
    w_f1 = jax.random.normal(ks[4], (100, flat), f32) * 0.02
    b_f1 = jax.random.normal(ks[5], (100,), f32) * 0.01
    gamma = jnp.ones((100,), f32)        # PyTorch BatchNorm1d default init
    beta = jnp.zeros((100,), f32)
    w_f2 = jax.random.normal(ks[6], (num_classes, 100), f32) * 0.10
    b_f2 = jax.random.normal(ks[7], (num_classes,), f32) * 0.01
    return pack_params(w_c1, b_c1, w_c2, b_c2, w_f1, b_f1, gamma, beta, w_f2, b_f2,
                       num_channels=num_channels, image_size=image_size)


# --------------------------------------------------------------------------- forward
@functools.partial(jax.jit, static_argnames=("image_size", "num_classes"))
def cnn2d_spectral_forward(x, params, *, image_size, num_classes):
    """x: (B, C, H, W) float32 (NCHW, PyTorch convention).  Returns (B, num_classes)."""
    B, C, H, W = x.shape
    # CNN2DSpectral.forward keeps only the center pixel and broadcasts it to an
    # image_size x image_size spatially-constant image.  Because that image is constant,
    # conv1's im2col row is identical at every output position: we ship just that row
    # (kernel-position-major, cin-minor ordering, zero-padded to 128) and the kernel
    # broadcasts it over all (image_size-4)^2 positions — bit-identical to the full conv.
    xc = x[:, :, H // 2, W // 2]                                   # (B, C)
    patch = jnp.tile(xc, (1, 25))                                  # (B, 25*C)
    k1p = params["w_conv1"].shape[0]
    patch = jnp.pad(patch, ((0, 0), (0, k1p - patch.shape[1])))

    out_padded = fused_forward(
        patch,
        params["w_conv1"], params["b_conv1"],
        params["w_conv2"], params["b_conv2"],
        params["w_fc1"], params["b_fc1"],
        params["bn_gamma"], params["bn_beta"],
        params["w_fc2"], params["b_fc2"],
        image_size=image_size,
    )
    return out_padded[:, :num_classes]


# --------------------------------------------------------------------------- main
if __name__ == "__main__":
    IMAGE_SIZE = 16       # -> flat = ((16 - 4 - 4) // 2)**2 * 100 = 1600
    NUM_CHANNELS = 4
    NUM_CLASSES = 10

    key = jax.random.PRNGKey(0)
    kx, kp = jax.random.split(key)
    x = jax.random.normal(kx, (2, NUM_CHANNELS, 16, 16), jnp.float32)
    params = init_params(kp, NUM_CHANNELS, IMAGE_SIZE, NUM_CLASSES)

    out = cnn2d_spectral_forward(x, params, image_size=IMAGE_SIZE, num_classes=NUM_CLASSES)
    out = jax.block_until_ready(out)
    assert out.shape == (2, NUM_CLASSES)
    assert out.dtype == jnp.float32
    assert bool(jnp.all(jnp.isfinite(out)))
    print("KERNEL_OK")
</pallas_src>

<mosaic_0001>
module attributes {stable_mosaic.version = 11 : i64} {
  func.func @_fused_cnn_kernel(%arg0: i32, %arg1: memref<2x128xf32, #tpu.memory_space<vmem>>, %arg2: memref<128x128xf32, #tpu.memory_space<vmem>>, %arg3: memref<1x128xf32, #tpu.memory_space<vmem>>, %arg4: memref<25x128x128xf32, #tpu.memory_space<vmem>>, %arg5: memref<1x128xf32, #tpu.memory_space<vmem>>, %arg6: memref<16x128x128xf32, #tpu.memory_space<vmem>>, %arg7: memref<1x128xf32, #tpu.memory_space<vmem>>, %arg8: memref<1x128xf32, #tpu.memory_space<vmem>>, %arg9: memref<1x128xf32, #tpu.memory_space<vmem>>, %arg10: memref<128x128xf32, #tpu.memory_space<vmem>>, %arg11: memref<1x128xf32, #tpu.memory_space<vmem>>, %arg12: memref<2x128xf32, #tpu.memory_space<vmem>>, %arg13: memref<2x12x12x128xf32, #tpu.memory_space<vmem>>) attributes {dimension_semantics = [#tpu.dimension_semantics<arbitrary>], iteration_bounds = array<i64: 1>, scalar_prefetch = 0 : i64, scratch_operands = 1 : i64, tpu.core_type = #tpu.core_type<tc>, window_params = [{pipeline_mode = #tpu.pipeline_mode<synchronous>, transform_indices = @transform_0, window_bounds = array<i64: 2, 128>}, {pipeline_mode = #tpu.pipeline_mode<synchronous>, transform_indices = @transform_1, window_bounds = array<i64: 128, 128>}, {pipeline_mode = #tpu.pipeline_mode<synchronous>, transform_indices = @transform_2, window_bounds = array<i64: 1, 128>}, {pipeline_mode = #tpu.pipeline_mode<synchronous>, transform_indices = @transform_3, window_bounds = array<i64: 25, 128, 128>}, {pipeline_mode = #tpu.pipeline_mode<synchronous>, transform_indices = @transform_4, window_bounds = array<i64: 1, 128>}, {pipeline_mode = #tpu.pipeline_mode<synchronous>, transform_indices = @transform_5, window_bounds = array<i64: 16, 128, 128>}, {pipeline_mode = #tpu.pipeline_mode<synchronous>, transform_indices = @transform_6, window_bounds = array<i64: 1, 128>}, {pipeline_mode = #tpu.pipeline_mode<synchronous>, transform_indices = @transform_7, window_bounds = array<i64: 1, 128>}, {pipeline_mode = #tpu.pipeline_mode<synchronous>, transform_indices = @transform_8, window_bounds = array<i64: 1, 128>}, {pipeline_mode = #tpu.pipeline_mode<synchronous>, transform_indices = @transform_9, window_bounds = array<i64: 128, 128>}, {pipeline_mode = #tpu.pipeline_mode<synchronous>, transform_indices = @transform_10, window_bounds = array<i64: 1, 128>}, {pipeline_mode = #tpu.pipeline_mode<synchronous>, transform_indices = @transform_11, window_bounds = array<i64: 2, 128>}]} {
    %c0 = arith.constant 0 : index
    %c0_0 = arith.constant 0 : index
    %0 = vector.load %arg2[%c0, %c0_0] : memref<128x128xf32, #tpu.memory_space<vmem>>, vector<128x128xf32>
    %c0_1 = arith.constant 0 : index
    %c0_2 = arith.constant 0 : index
    %1 = vector.load %arg3[%c0_1, %c0_2] : memref<1x128xf32, #tpu.memory_space<vmem>>, vector<1x128xf32>
    %c0_3 = arith.constant 0 : index
    %c0_4 = arith.constant 0 : index
    %2 = vector.load %arg5[%c0_3, %c0_4] : memref<1x128xf32, #tpu.memory_space<vmem>>, vector<1x128xf32>
    %3 = vector.shape_cast %2 : vector<1x128xf32> to vector<1x128xf32>
    %4 = vector.broadcast %3 : vector<1x128xf32> to vector<64x128xf32>
    %c0_5 = arith.constant 0 : index
    %c0_6 = arith.constant 0 : index
    %5 = vector.load %arg1[%c0_5, %c0_6] : memref<2x128xf32, #tpu.memory_space<vmem>>, vector<1x128xf32>
    %6 = vector.shape_cast %5 : vector<1x128xf32> to vector<1x128xf32>
    %7 = vector.broadcast %6 : vector<1x128xf32> to vector<144x128xf32>
    %cst = arith.constant dense<0.000000e+00> : vector<144x128xf32>
    %8 = tpu.matmul %7, %0, %cst {dimension_numbers = #tpu.dot_dimension_numbers<[1], [0], [0], [1], [0, 0, 1, 1], [], []>} : vector<144x128xf32>, vector<128x128xf32>, vector<144x128xf32> -> vector<144x128xf32>
    %9 = vector.broadcast %1 : vector<1x128xf32> to vector<144x128xf32>
    %10 = arith.addf %8, %9 : vector<144x128xf32>
    %cst_7 = arith.constant 0.000000e+00 : f32
    %11 = vector.broadcast %cst_7 : f32 to vector<144x128xf32>
    %12 = arith.maximumf %10, %11 : vector<144x128xf32>
    %13 = vector.extract_strided_slice %12 {offsets = [0, 0], sizes = [12, 128], strides = [1, 1]} : vector<144x128xf32> to vector<12x128xf32>
    %c0_8 = arith.constant 0 : index
    %c0_9 = arith.constant 0 : index
    %c0_10 = arith.constant 0 : index
    %c0_11 = arith.constant 0 : index
    %14 = vector.load %arg13[%c0_8, %c0_9, %c0_10, %c0_11] : memref<2x12x12x128xf32, #tpu.memory_space<vmem>>, vector<1x1x12x128xf32>
    %15 = vector.shape_cast %14 : vector<1x1x12x128xf32> to vector<12x128xf32>
    %16 = vector.shape_cast %13 : vector<12x128xf32> to vector<1x1x12x128xf32>
    tpu.vector_store %arg13[%c0_8, %c0_9, %c0_10, %c0_11], %16 {strides = array<i32>} : memref<2x12x12x128xf32, #tpu.memory_space<vmem>>, vector<1x1x12x128xf32>,
    %17 = vector.extract_strided_slice %12 {offsets = [12, 0], sizes = [12, 128], strides = [1, 1]} : vector<144x128xf32> to vector<12x128xf32>
    %c0_12 = arith.constant 0 : index
    %c1 = arith.constant 1 : index
    %c0_13 = arith.constant 0 : index
    %c0_14 = arith.constant 0 : index
    %18 = vector.load %arg13[%c0_12, %c1, %c0_13, %c0_14] : memref<2x12x12x128xf32, #tpu.memory_space<vmem>>, vector<1x1x12x128xf32>
    %19 = vector.shape_cast %18 : vector<1x1x12x128xf32> to vector<12x128xf32>
    %20 = vector.shape_cast %17 : vector<12x128xf32> to vector<1x1x12x128xf32>
    tpu.vector_store %arg13[%c0_12, %c1, %c0_13, %c0_14], %20 {strides = array<i32>} : memref<2x12x12x128xf32, #tpu.memory_space<vmem>>, vector<1x1x12x128xf32>,
    %21 = vector.extract_strided_slice %12 {offsets = [24, 0], sizes = [12, 128], strides = [1, 1]} : vector<144x128xf32> to vector<12x128xf32>
    %c0_15 = arith.constant 0 : index
    %c2 = arith.constant 2 : index
    %c0_16 = arith.constant 0 : index
    %c0_17 = arith.constant 0 : index
    %22 = vector.load %arg13[%c0_15, %c2, %c0_16, %c0_17] : memref<2x12x12x128xf32, #tpu.memory_space<vmem>>, vector<1x1x12x128xf32>
    %23 = vector.shape_cast %22 : vector<1x1x12x128xf32> to vector<12x128xf32>
    %24 = vector.shape_cast %21 : vector<12x128xf32> to vector<1x1x12x128xf32>
    tpu.vector_store %arg13[%c0_15, %c2, %c0_16, %c0_17], %24 {strides = array<i32>} : memref<2x12x12x128xf32, #tpu.memory_space<vmem>>, vector<1x1x12x128xf32>,
    %25 = vector.extract_strided_slice %12 {offsets = [36, 0], sizes = [12, 128], strides = [1, 1]} : vector<144x128xf32> to vector<12x128xf32>
    %c0_18 = arith.constant 0 : index
    %c3 = arith.constant 3 : index
    %c0_19 = arith.constant 0 : index
    %c0_20 = arith.constant 0 : index
    %26 = vector.load %arg13[%c0_18, %c3, %c0_19, %c0_20] : memref<2x12x12x128xf32, #tpu.memory_space<vmem>>, vector<1x1x12x128xf32>
    %27 = vector.shape_cast %26 : vector<1x1x12x128xf32> to vector<12x128xf32>
    %28 = vector.shape_cast %25 : vector<12x128xf32> to vector<1x1x12x128xf32>
    tpu.vector_store %arg13[%c0_18, %c3, %c0_19, %c0_20], %28 {strides = array<i32>} : memref<2x12x12x128xf32, #tpu.memory_space<vmem>>, vector<1x1x12x128xf32>,
    %29 = vector.extract_strided_slice %12 {offsets = [48, 0], sizes = [12, 128], strides = [1, 1]} : vector<144x128xf32> to vector<12x128xf32>
    %c0_21 = arith.constant 0 : index
    %c4 = arith.constant 4 : index
    %c0_22 = arith.constant 0 : index
    %c0_23 = arith.constant 0 : index
    %30 = vector.load %arg13[%c0_21, %c4, %c0_22, %c0_23] : memref<2x12x12x128xf32, #tpu.memory_space<vmem>>, vector<1x1x12x128xf32>
    %31 = vector.shape_cast %30 : vector<1x1x12x128xf32> to vector<12x128xf32>
    %32 = vector.shape_cast %29 : vector<12x128xf32> to vector<1x1x12x128xf32>
    tpu.vector_store %arg13[%c0_21, %c4, %c0_22, %c0_23], %32 {strides = array<i32>} : memref<2x12x12x128xf32, #tpu.memory_space<vmem>>, vector<1x1x12x128xf32>,
    %33 = vector.extract_strided_slice %12 {offsets = [60, 0], sizes = [12, 128], strides = [1, 1]} : vector<144x128xf32> to vector<12x128xf32>
    %c0_24 = arith.constant 0 : index
    %c5 = arith.constant 5 : index
    %c0_25 = arith.constant 0 : index
    %c0_26 = arith.constant 0 : index
    %34 = vector.load %arg13[%c0_24, %c5, %c0_25, %c0_26] : memref<2x12x12x128xf32, #tpu.memory_space<vmem>>, vector<1x1x12x128xf32>
    %35 = vector.shape_cast %34 : vector<1x1x12x128xf32> to vector<12x128xf32>
    %36 = vector.shape_cast %33 : vector<12x128xf32> to vector<1x1x12x128xf32>
    tpu.vector_store %arg13[%c0_24, %c5, %c0_25, %c0_26], %36 {strides = array<i32>} : memref<2x12x12x128xf32, #tpu.memory_space<vmem>>, vector<1x1x12x128xf32>,
    %37 = vector.extract_strided_slice %12 {offsets = [72, 0], sizes = [12, 128], strides = [1, 1]} : vector<144x128xf32> to vector<12x128xf32>
    %c0_27 = arith.constant 0 : index
    %c6 = arith.constant 6 : index
    %c0_28 = arith.constant 0 : index
    %c0_29 = arith.constant 0 : index
    %38 = vector.load %arg13[%c0_27, %c6, %c0_28, %c0_29] : memref<2x12x12x128xf32, #tpu.memory_space<vmem>>, vector<1x1x12x128xf32>
    %39 = vector.shape_cast %38 : vector<1x1x12x128xf32> to vector<12x128xf32>
    %40 = vector.shape_cast %37 : vector<12x128xf32> to vector<1x1x12x128xf32>
    tpu.vector_store %arg13[%c0_27, %c6, %c0_28, %c0_29], %40 {strides = array<i32>} : memref<2x12x12x128xf32, #tpu.memory_space<vmem>>, vector<1x1x12x128xf32>,
    %41 = vector.extract_strided_slice %12 {offsets = [84, 0], sizes = [12, 128], strides = [1, 1]} : vector<144x128xf32> to vector<12x128xf32>
    %c0_30 = arith.constant 0 : index
    %c7 = arith.constant 7 : index
    %c0_31 = arith.constant 0 : index
    %c0_32 = arith.constant 0 : index
    %42 = vector.load %arg13[%c0_30, %c7, %c0_31, %c0_32] : memref<2x12x12x128xf32, #tpu.memory_space<vmem>>, vector<1x1x12x128xf32>
    %43 = vector.shape_cast %42 : vector<1x1x12x128xf32> to vector<12x128xf32>
    %44 = vector.shape_cast %41 : vector<12x128xf32> to vector<1x1x12x128xf32>
    tpu.vector_store %arg13[%c0_30, %c7, %c0_31, %c0_32], %44 {strides = array<i32>} : memref<2x12x12x128xf32, #tpu.memory_space<vmem>>, vector<1x1x12x128xf32>,
    %45 = vector.extract_strided_slice %12 {offsets = [96, 0], sizes = [12, 128], strides = [1, 1]} : vector<144x128xf32> to vector<12x128xf32>
    %c0_33 = arith.constant 0 : index
    %c8 = arith.constant 8 : index
    %c0_34 = arith.constant 0 : index
    %c0_35 = arith.constant 0 : index
    %46 = vector.load %arg13[%c0_33, %c8, %c0_34, %c0_35] : memref<2x12x12x128xf32, #tpu.memory_space<vmem>>, vector<1x1x12x128xf32>
    %47 = vector.shape_cast %46 : vector<1x1x12x128xf32> to vector<12x128xf32>
    %48 = vector.shape_cast %45 : vector<12x128xf32> to vector<1x1x12x128xf32>
    tpu.vector_store %arg13[%c0_33, %c8, %c0_34, %c0_35], %48 {strides = array<i32>} : memref<2x12x12x128xf32, #tpu.memory_space<vmem>>, vector<1x1x12x128xf32>,
    %49 = vector.extract_strided_slice %12 {offsets = [108, 0], sizes = [12, 128], strides = [1, 1]} : vector<144x128xf32> to vector<12x128xf32>
    %c0_36 = arith.constant 0 : index
    %c9 = arith.constant 9 : index
    %c0_37 = arith.constant 0 : index
    %c0_38 = arith.constant 0 : index
    %50 = vector.load %arg13[%c0_36, %c9, %c0_37, %c0_38] : memref<2x12x12x128xf32, #tpu.memory_space<vmem>>, vector<1x1x12x128xf32>
    %51 = vector.shape_cast %50 : vector<1x1x12x128xf32> to vector<12x128xf32>
    %52 = vector.shape_cast %49 : vector<12x128xf32> to vector<1x1x12x128xf32>
    tpu.vector_store %arg13[%c0_36, %c9, %c0_37, %c0_38], %52 {strides = array<i32>} : memref<2x12x12x128xf32, #tpu.memory_space<vmem>>, vector<1x1x12x128xf32>,
    %53 = vector.extract_strided_slice %12 {offsets = [120, 0], sizes = [12, 128], strides = [1, 1]} : vector<144x128xf32> to vector<12x128xf32>
    %c0_39 = arith.constant 0 : index
    %c10 = arith.constant 10 : index
    %c0_40 = arith.constant 0 : index
    %c0_41 = arith.constant 0 : index
    %54 = vector.load %arg13[%c0_39, %c10, %c0_40, %c0_41] : memref<2x12x12x128xf32, #tpu.memory_space<vmem>>, vector<1x1x12x128xf32>
    %55 = vector.shape_cast %54 : vector<1x1x12x128xf32> to vector<12x128xf32>
    %56 = vector.shape_cast %53 : vector<12x128xf32> to vector<1x1x12x128xf32>
    tpu.vector_store %arg13[%c0_39, %c10, %c0_40, %c0_41], %56 {strides = array<i32>} : memref<2x12x12x128xf32, #tpu.memory_space<vmem>>, vector<1x1x12x128xf32>,
    %57 = vector.extract_strided_slice %12 {offsets = [132, 0], sizes = [12, 128], strides = [1, 1]} : vector<144x128xf32> to vector<12x128xf32>
    %c0_42 = arith.constant 0 : index
    %c11 = arith.constant 11 : index
    %c0_43 = arith.constant 0 : index
    %c0_44 = arith.constant 0 : index
    %58 = vector.load %arg13[%c0_42, %c11, %c0_43, %c0_44] : memref<2x12x12x128xf32, #tpu.memory_space<vmem>>, vector<1x1x12x128xf32>
    %59 = vector.shape_cast %58 : vector<1x1x12x128xf32> to vector<12x128xf32>
    %60 = vector.shape_cast %57 : vector<12x128xf32> to vector<1x1x12x128xf32>
    tpu.vector_store %arg13[%c0_42, %c11, %c0_43, %c0_44], %60 {strides = array<i32>} : memref<2x12x12x128xf32, #tpu.memory_space<vmem>>, vector<1x1x12x128xf32>,
    %c0_45 = arith.constant 0 : index
    %c0_46 = arith.constant 0 : index
    %c0_47 = arith.constant 0 : index
    %c0_48 = arith.constant 0 : index
    %61 = vector.load %arg13[%c0_45, %c0_46, %c0_47, %c0_48] : memref<2x12x12x128xf32, #tpu.memory_space<vmem>>, vector<1x8x8x128xf32>
    %62 = vector.shape_cast %61 : vector<1x8x8x128xf32> to vector<8x8x128xf32>
    %63 = vector.shape_cast %62 : vector<8x8x128xf32> to vector<64x128xf32>
    %c0_49 = arith.constant 0 : index
    %c0_50 = arith.constant 0 : index
    %c0_51 = arith.constant 0 : index
    %64 = vector.load %arg4[%c0_49, %c0_50, %c0_51] : memref<25x128x128xf32, #tpu.memory_space<vmem>>, vector<1x128x128xf32>
    %65 = vector.shape_cast %64 : vector<1x128x128xf32> to vector<128x128xf32>
    %cst_52 = arith.constant dense<0.000000e+00> : vector<64x128xf32>
    %66 = tpu.matmul %63, %65, %cst_52 {dimension_numbers = #tpu.dot_dimension_numbers<[1], [0], [0], [1], [0, 0, 1, 1], [], []>} : vector<64x128xf32>, vector<128x128xf32>, vector<64x128xf32> -> vector<64x128xf32>
    %67 = arith.addf %4, %66 : vector<64x128xf32>
    %c0_53 = arith.constant 0 : index
    %c0_54 = arith.constant 0 : index
    %c1_55 = arith.constant 1 : index
    %c0_56 = arith.constant 0 : index
    %68 = vector.load %arg13[%c0_53, %c0_54, %c1_55, %c0_56] : memref<2x12x12x128xf32, #tpu.memory_space<vmem>>, vector<1x8x8x128xf32>
    %69 = vector.shape_cast %68 : vector<1x8x8x128xf32> to vector<8x8x128xf32>
    %70 = vector.shape_cast %69 : vector<8x8x128xf32> to vector<64x128xf32>
    %c1_57 = arith.constant 1 : index
    %c0_58 = arith.constant 0 : index
    %c0_59 = arith.constant 0 : index
    %71 = vector.load %arg4[%c1_57, %c0_58, %c0_59] : memref<25x128x128xf32, #tpu.memory_space<vmem>>, vector<1x128x128xf32>
    %72 = vector.shape_cast %71 : vector<1x128x128xf32> to vector<128x128xf32>
    %cst_60 = arith.constant dense<0.000000e+00> : vector<64x128xf32>
    %73 = tpu.matmul %70, %72, %cst_60 {dimension_numbers = #tpu.dot_dimension_numbers<[1], [0], [0], [1], [0, 0, 1, 1], [], []>} : vector<64x128xf32>, vector<128x128xf32>, vector<64x128xf32> -> vector<64x128xf32>
    %74 = arith.addf %67, %73 : vector<64x128xf32>
    %c0_61 = arith.constant 0 : index
    %c0_62 = arith.constant 0 : index
    %c2_63 = arith.constant 2 : index
    %c0_64 = arith.constant 0 : index
    %75 = vector.load %arg13[%c0_61, %c0_62, %c2_63, %c0_64] : memref<2x12x12x128xf32, #tpu.memory_space<vmem>>, vector<1x8x8x128xf32>
    %76 = vector.shape_cast %75 : vector<1x8x8x128xf32> to vector<8x8x128xf32>
    %77 = vector.shape_cast %76 : vector<8x8x128xf32> to vector<64x128xf32>
    %c2_65 = arith.constant 2 : index
    %c0_66 = arith.constant 0 : index
    %c0_67 = arith.constant 0 : index
    %78 = vector.load %arg4[%c2_65, %c0_66, %c0_67] : memref<25x128x128xf32, #tpu.memory_space<vmem>>, vector<1x128x128xf32>
    %79 = vector.shape_cast %78 : vector<1x128x128xf32> to vector<128x128xf32>
    %cst_68 = arith.constant dense<0.000000e+00> : vector<64x128xf32>
    %80 = tpu.matmul %77, %79, %cst_68 {dimension_numbers = #tpu.dot_dimension_numbers<[1], [0], [0], [1], [0, 0, 1, 1], [], []>} : vector<64x128xf32>, vector<128x128xf32>, vector<64x128xf32> -> vector<64x128xf32>
    %81 = arith.addf %74, %80 : vector<64x128xf32>
    %c0_69 = arith.constant 0 : index
    %c0_70 = arith.constant 0 : index
    %c3_71 = arith.constant 3 : index
    %c0_72 = arith.constant 0 : index
    %82 = vector.load %arg13[%c0_69, %c0_70, %c3_71, %c0_72] : memref<2x12x12x128xf32, #tpu.memory_space<vmem>>, vector<1x8x8x128xf32>
    %83 = vector.shape_cast %82 : vector<1x8x8x128xf32> to vector<8x8x128xf32>
    %84 = vector.shape_cast %83 : vector<8x8x128xf32> to vector<64x128xf32>
    %c3_73 = arith.constant 3 : index
    %c0_74 = arith.constant 0 : index
    %c0_75 = arith.constant 0 : index
    %85 = vector.load %arg4[%c3_73, %c0_74, %c0_75] : memref<25x128x128xf32, #tpu.memory_space<vmem>>, vector<1x128x128xf32>
    %86 = vector.shape_cast %85 : vector<1x128x128xf32> to vector<128x128xf32>
    %cst_76 = arith.constant dense<0.000000e+00> : vector<64x128xf32>
    %87 = tpu.matmul %84, %86, %cst_76 {dimension_numbers = #tpu.dot_dimension_numbers<[1], [0], [0], [1], [0, 0, 1, 1], [], []>} : vector<64x128xf32>, vector<128x128xf32>, vector<64x128xf32> -> vector<64x128xf32>
    %88 = arith.addf %81, %87 : vector<64x128xf32>
    %c0_77 = arith.constant 0 : index
    %c0_78 = arith.constant 0 : index
    %c4_79 = arith.constant 4 : index
    %c0_80 = arith.constant 0 : index
    %89 = vector.load %arg13[%c0_77, %c0_78, %c4_79, %c0_80] : memref<2x12x12x128xf32, #tpu.memory_space<vmem>>, vector<1x8x8x128xf32>
    %90 = vector.shape_cast %89 : vector<1x8x8x128xf32> to vector<8x8x128xf32>
    %91 = vector.shape_cast %90 : vector<8x8x128xf32> to vector<64x128xf32>
    %c4_81 = arith.constant 4 : index
    %c0_82 = arith.constant 0 : index
    %c0_83 = arith.constant 0 : index
    %92 = vector.load %arg4[%c4_81, %c0_82, %c0_83] : memref<25x128x128xf32, #tpu.memory_space<vmem>>, vector<1x128x128xf32>
    %93 = vector.shape_cast %92 : vector<1x128x128xf32> to vector<128x128xf32>
    %cst_84 = arith.constant dense<0.000000e+00> : vector<64x128xf32>
    %94 = tpu.matmul %91, %93, %cst_84 {dimension_numbers = #tpu.dot_dimension_numbers<[1], [0], [0], [1], [0, 0, 1, 1], [], []>} : vector<64x128xf32>, vector<128x128xf32>, vector<64x128xf32> -> vector<64x128xf32>
    %95 = arith.addf %88, %94 : vector<64x128xf32>
    %c0_85 = arith.constant 0 : index
    %c1_86 = arith.constant 1 : index
    %c0_87 = arith.constant 0 : index
    %c0_88 = arith.constant 0 : index
    %96 = vector.load %arg13[%c0_85, %c1_86, %c0_87, %c0_88] : memref<2x12x12x128xf32, #tpu.memory_space<vmem>>, vector<1x8x8x128xf32>
    %97 = vector.shape_cast %96 : vector<1x8x8x128xf32> to vector<8x8x128xf32>
    %98 = vector.shape_cast %97 : vector<8x8x128xf32> to vector<64x128xf32>
    %c5_89 = arith.constant 5 : index
    %c0_90 = arith.constant 0 : index
    %c0_91 = arith.constant 0 : index
    %99 = vector.load %arg4[%c5_89, %c0_90, %c0_91] : memref<25x128x128xf32, #tpu.memory_space<vmem>>, vector<1x128x128xf32>
    %100 = vector.shape_cast %99 : vector<1x128x128xf32> to vector<128x128xf32>
    %cst_92 = arith.constant dense<0.000000e+00> : vector<64x128xf32>
    %101 = tpu.matmul %98, %100, %cst_92 {dimension_numbers = #tpu.dot_dimension_numbers<[1], [0], [0], [1], [0, 0, 1, 1], [], []>} : vector<64x128xf32>, vector<128x128xf32>, vector<64x128xf32> -> vector<64x128xf32>
    %102 = arith.addf %95, %101 : vector<64x128xf32>
    %c0_93 = arith.constant 0 : index
    %c1_94 = arith.constant 1 : index
    %c1_95 = arith.constant 1 : index
    %c0_96 = arith.constant 0 : index
    %103 = vector.load %arg13[%c0_93, %c1_94, %c1_95, %c0_96] : memref<2x12x12x128xf32, #tpu.memory_space<vmem>>, vector<1x8x8x128xf32>
    %104 = vector.shape_cast %103 : vector<1x8x8x128xf32> to vector<8x8x128xf32>
    %105 = vector.shape_cast %104 : vector<8x8x128xf32> to vector<64x128xf32>
    %c6_97 = arith.constant 6 : index
    %c0_98 = arith.constant 0 : index
    %c0_99 = arith.constant 0 : index
    %106 = vector.load %arg4[%c6_97, %c0_98, %c0_99] : memref<25x128x128xf32, #tpu.memory_space<vmem>>, vector<1x128x128xf32>
    %107 = vector.shape_cast %106 : vector<1x128x128xf32> to vector<128x128xf32>
    %cst_100 = arith.constant dense<0.000000e+00> : vector<64x128xf32>
    %108 = tpu.matmul %105, %107, %cst_100 {dimension_numbers = #tpu.dot_dimension_numbers<[1], [0], [0], [1], [0, 0, 1, 1], [], []>} : vector<64x128xf32>, vector<128x128xf32>, vector<64x128xf32> -> vector<64x128xf32>
    %109 = arith.addf %102, %108 : vector<64x128xf32>
    %c0_101 = arith.constant 0 : index
    %c1_102 = arith.constant 1 : index
    %c2_103 = arith.constant 2 : index
    %c0_104 = arith.constant 0 : index
    %110 = vector.load %arg13[%c0_101, %c1_102, %c2_103, %c0_104] : memref<2x12x12x128xf32, #tpu.memory_space<vmem>>, vector<1x8x8x128xf32>
    %111 = vector.shape_cast %110 : vector<1x8x8x128xf32> to vector<8x8x128xf32>
    %112 = vector.shape_cast %111 : vector<8x8x128xf32> to vector<64x128xf32>
    %c7_105 = arith.constant 7 : index
    %c0_106 = arith.constant 0 : index
    %c0_107 = arith.constant 0 : index
    %113 = vector.load %arg4[%c7_105, %c0_106, %c0_107] : memref<25x128x128xf32, #tpu.memory_space<vmem>>, vector<1x128x128xf32>
    %114 = vector.shape_cast %113 : vector<1x128x128xf32> to vector<128x128xf32>
    %cst_108 = arith.constant dense<0.000000e+00> : vector<64x128xf32>
    %115 = tpu.matmul %112, %114, %cst_108 {dimension_numbers = #tpu.dot_dimension_numbers<[1], [0], [0], [1], [0, 0, 1, 1], [], []>} : vector<64x128xf32>, vector<128x128xf32>, vector<64x128xf32> -> vector<64x128xf32>
    %116 = arith.addf %109, %115 : vector<64x128xf32>
    %c0_109 = arith.constant 0 : index
    %c1_110 = arith.constant 1 : index
    %c3_111 = arith.constant 3 : index
    %c0_112 = arith.constant 0 : index
    %117 = vector.load %arg13[%c0_109, %c1_110, %c3_111, %c0_112] : memref<2x12x12x128xf32, #tpu.memory_space<vmem>>, vector<1x8x8x128xf32>
    %118 = vector.shape_cast %117 : vector<1x8x8x128xf32> to vector<8x8x128xf32>
    %119 = vector.shape_cast %118 : vector<8x8x128xf32> to vector<64x128xf32>
    %c8_113 = arith.constant 8 : index
    %c0_114 = arith.constant 0 : index
    %c0_115 = arith.constant 0 : index
    %120 = vector.load %arg4[%c8_113, %c0_114, %c0_115] : memref<25x128x128xf32, #tpu.memory_space<vmem>>, vector<1x128x128xf32>
    %121 = vector.shape_cast %120 : vector<1x128x128xf32> to vector<128x128xf32>
    %cst_116 = arith.constant dense<0.000000e+00> : vector<64x128xf32>
    %122 = tpu.matmul %119, %121, %cst_116 {dimension_numbers = #tpu.dot_dimension_numbers<[1], [0], [0], [1], [0, 0, 1, 1], [], []>} : vector<64x128xf32>, vector<128x128xf32>, vector<64x128xf32> -> vector<64x128xf32>
    %123 = arith.addf %116, %122 : vector<64x128xf32>
    %c0_117 = arith.constant 0 : index
    %c1_118 = arith.constant 1 : index
    %c4_119 = arith.constant 4 : index
    %c0_120 = arith.constant 0 : index
    %124 = vector.load %arg13[%c0_117, %c1_118, %c4_119, %c0_120] : memref<2x12x12x128xf32, #tpu.memory_space<vmem>>, vector<1x8x8x128xf32>
    %125 = vector.shape_cast %124 : vector<1x8x8x128xf32> to vector<8x8x128xf32>
    %126 = vector.shape_cast %125 : vector<8x8x128xf32> to vector<64x128xf32>
    %c9_121 = arith.constant 9 : index
    %c0_122 = arith.constant 0 : index
    %c0_123 = arith.constant 0 : index
    %127 = vector.load %arg4[%c9_121, %c0_122, %c0_123] : memref<25x128x128xf32, #tpu.memory_space<vmem>>, vector<1x128x128xf32>
    %128 = vector.shape_cast %127 : vector<1x128x128xf32> to vector<128x128xf32>
    %cst_124 = arith.constant dense<0.000000e+00> : vector<64x128xf32>
    %129 = tpu.matmul %126, %128, %cst_124 {dimension_numbers = #tpu.dot_dimension_numbers<[1], [0], [0], [1], [0, 0, 1, 1], [], []>} : vector<64x128xf32>, vector<128x128xf32>, vector<64x128xf32> -> vector<64x128xf32>
    %130 = arith.addf %123, %129 : vector<64x128xf32>
    %c0_125 = arith.constant 0 : index
    %c2_126 = arith.constant 2 : index
    %c0_127 = arith.constant 0 : index
    %c0_128 = arith.constant 0 : index
    %131 = vector.load %arg13[%c0_125, %c2_126, %c0_127, %c0_128] : memref<2x12x12x128xf32, #tpu.memory_space<vmem>>, vector<1x8x8x128xf32>
    %132 = vector.shape_cast %131 : vector<1x8x8x128xf32> to vector<8x8x128xf32>
    %133 = vector.shape_cast %132 : vector<8x8x128xf32> to vector<64x128xf32>
    %c10_129 = arith.constant 10 : index
    %c0_130 = arith.constant 0 : index
    %c0_131 = arith.constant 0 : index
    %134 = vector.load %arg4[%c10_129, %c0_130, %c0_131] : memref<25x128x128xf32, #tpu.memory_space<vmem>>, vector<1x128x128xf32>
    %135 = vector.shape_cast %134 : vector<1x128x128xf32> to vector<128x128xf32>
    %cst_132 = arith.constant dense<0.000000e+00> : vector<64x128xf32>
    %136 = tpu.matmul %133, %135, %cst_132 {dimension_numbers = #tpu.dot_dimension_numbers<[1], [0], [0], [1], [0, 0, 1, 1], [], []>} : vector<64x128xf32>, vector<128x128xf32>, vector<64x128xf32> -> vector<64x128xf32>
    %137 = arith.addf %130, %136 : vector<64x128xf32>
    %c0_133 = arith.constant 0 : index
    %c2_134 = arith.constant 2 : index
    %c1_135 = arith.constant 1 : index
    %c0_136 = arith.constant 0 : index
    %138 = vector.load %arg13[%c0_133, %c2_134, %c1_135, %c0_136] : memref<2x12x12x128xf32, #tpu.memory_space<vmem>>, vector<1x8x8x128xf32>
    %139 = vector.shape_cast %138 : vector<1x8x8x128xf32> to vector<8x8x128xf32>
    %140 = vector.shape_cast %139 : vector<8x8x128xf32> to vector<64x128xf32>
    %c11_137 = arith.constant 11 : index
    %c0_138 = arith.constant 0 : index
    %c0_139 = arith.constant 0 : index
    %141 = vector.load %arg4[%c11_137, %c0_138, %c0_139] : memref<25x128x128xf32, #tpu.memory_space<vmem>>, vector<1x128x128xf32>
    %142 = vector.shape_cast %141 : vector<1x128x128xf32> to vector<128x128xf32>
    %cst_140 = arith.constant dense<0.000000e+00> : vector<64x128xf32>
    %143 = tpu.matmul %140, %142, %cst_140 {dimension_numbers = #tpu.dot_dimension_numbers<[1], [0], [0], [1], [0, 0, 1, 1], [], []>} : vector<64x128xf32>, vector<128x128xf32>, vector<64x128xf32> -> vector<64x128xf32>
    %144 = arith.addf %137, %143 : vector<64x128xf32>
    %c0_141 = arith.constant 0 : index
    %c2_142 = arith.constant 2 : index
    %c2_143 = arith.constant 2 : index
    %c0_144 = arith.constant 0 : index
    %145 = vector.load %arg13[%c0_141, %c2_142, %c2_143, %c0_144] : memref<2x12x12x128xf32, #tpu.memory_space<vmem>>, vector<1x8x8x128xf32>
    %146 = vector.shape_cast %145 : vector<1x8x8x128xf32> to vector<8x8x128xf32>
    %147 = vector.shape_cast %146 : vector<8x8x128xf32> to vector<64x128xf32>
    %c12 = arith.constant 12 : index
    %c0_145 = arith.constant 0 : index
    %c0_146 = arith.constant 0 : index
    %148 = vector.load %arg4[%c12, %c0_145, %c0_146] : memref<25x128x128xf32, #tpu.memory_space<vmem>>, vector<1x128x128xf32>
    %149 = vector.shape_cast %148 : vector<1x128x128xf32> to vector<128x128xf32>
    %cst_147 = arith.constant dense<0.000000e+00> : vector<64x128xf32>
    %150 = tpu.matmul %147, %149, %cst_147 {dimension_numbers = #tpu.dot_dimension_numbers<[1], [0], [0], [1], [0, 0, 1, 1], [], []>} : vector<64x128xf32>, vector<128x128xf32>, vector<64x128xf32> -> vector<64x128xf32>
    %151 = arith.addf %144, %150 : vector<64x128xf32>
    %c0_148 = arith.constant 0 : index
    %c2_149 = arith.constant 2 : index
    %c3_150 = arith.constant 3 : index
    %c0_151 = arith.constant 0 : index
    %152 = vector.load %arg13[%c0_148, %c2_149, %c3_150, %c0_151] : memref<2x12x12x128xf32, #tpu.memory_space<vmem>>, vector<1x8x8x128xf32>
    %153 = vector.shape_cast %152 : vector<1x8x8x128xf32> to vector<8x8x128xf32>
    %154 = vector.shape_cast %153 : vector<8x8x128xf32> to vector<64x128xf32>
    %c13 = arith.constant 13 : index
    %c0_152 = arith.constant 0 : index
    %c0_153 = arith.constant 0 : index
    %155 = vector.load %arg4[%c13, %c0_152, %c0_153] : memref<25x128x128xf32, #tpu.memory_space<vmem>>, vector<1x128x128xf32>
    %156 = vector.shape_cast %155 : vector<1x128x128xf32> to vector<128x128xf32>
    %cst_154 = arith.constant dense<0.000000e+00> : vector<64x128xf32>
    %157 = tpu.matmul %154, %156, %cst_154 {dimension_numbers = #tpu.dot_dimension_numbers<[1], [0], [0], [1], [0, 0, 1, 1], [], []>} : vector<64x128xf32>, vector<128x128xf32>, vector<64x128xf32> -> vector<64x128xf32>
    %158 = arith.addf %151, %157 : vector<64x128xf32>
    %c0_155 = arith.constant 0 : index
    %c2_156 = arith.constant 2 : index
    %c4_157 = arith.constant 4 : index
    %c0_158 = arith.constant 0 : index
    %159 = vector.load %arg13[%c0_155, %c2_156, %c4_157, %c0_158] : memref<2x12x12x128xf32, #tpu.memory_space<vmem>>, vector<1x8x8x128xf32>
    %160 = vector.shape_cast %159 : vector<1x8x8x128xf32> to vector<8x8x128xf32>
    %161 = vector.shape_cast %160 : vector<8x8x128xf32> to vector<64x128xf32>
    %c14 = arith.constant 14 : index
    %c0_159 = arith.constant 0 : index
    %c0_160 = arith.constant 0 : index
    %162 = vector.load %arg4[%c14, %c0_159, %c0_160] : memref<25x128x128xf32, #tpu.memory_space<vmem>>, vector<1x128x128xf32>
    %163 = vector.shape_cast %162 : vector<1x128x128xf32> to vector<128x128xf32>
    %cst_161 = arith.constant dense<0.000000e+00> : vector<64x128xf32>
    %164 = tpu.matmul %161, %163, %cst_161 {dimension_numbers = #tpu.dot_dimension_numbers<[1], [0], [0], [1], [0, 0, 1, 1], [], []>} : vector<64x128xf32>, vector<128x128xf32>, vector<64x128xf32> -> vector<64x128xf32>
    %165 = arith.addf %158, %164 : vector<64x128xf32>
    %c0_162 = arith.constant 0 : index
    %c3_163 = arith.constant 3 : index
    %c0_164 = arith.constant 0 : index
    %c0_165 = arith.constant 0 : index
    %166 = vector.load %arg13[%c0_162, %c3_163, %c0_164, %c0_165] : memref<2x12x12x128xf32, #tpu.memory_space<vmem>>, vector<1x8x8x128xf32>
    %167 = vector.shape_cast %166 : vector<1x8x8x128xf32> to vector<8x8x128xf32>
    %168 = vector.shape_cast %167 : vector<8x8x128xf32> to vector<64x128xf32>
    %c15 = arith.constant 15 : index
    %c0_166 = arith.constant 0 : index
    %c0_167 = arith.constant 0 : index
    %169 = vector.load %arg4[%c15, %c0_166, %c0_167] : memref<25x128x128xf32, #tpu.memory_space<vmem>>, vector<1x128x128xf32>
    %170 = vector.shape_cast %169 : vector<1x128x128xf32> to vector<128x128xf32>
    %cst_168 = arith.constant dense<0.000000e+00> : vector<64x128xf32>
    %171 = tpu.matmul %168, %170, %cst_168 {dimension_numbers = #tpu.dot_dimension_numbers<[1], [0], [0], [1], [0, 0, 1, 1], [], []>} : vector<64x128xf32>, vector<128x128xf32>, vector<64x128xf32> -> vector<64x128xf32>
    %172 = arith.addf %165, %171 : vector<64x128xf32>
    %c0_169 = arith.constant 0 : index
    %c3_170 = arith.constant 3 : index
    %c1_171 = arith.constant 1 : index
    %c0_172 = arith.constant 0 : index
    %173 = vector.load %arg13[%c0_169, %c3_170, %c1_171, %c0_172] : memref<2x12x12x128xf32, #tpu.memory_space<vmem>>, vector<1x8x8x128xf32>
    %174 = vector.shape_cast %173 : vector<1x8x8x128xf32> to vector<8x8x128xf32>
    %175 = vector.shape_cast %174 : vector<8x8x128xf32> to vector<64x128xf32>
    %c16 = arith.constant 16 : index
    %c0_173 = arith.constant 0 : index
    %c0_174 = arith.constant 0 : index
    %176 = vector.load %arg4[%c16, %c0_173, %c0_174] : memref<25x128x128xf32, #tpu.memory_space<vmem>>, vector<1x128x128xf32>
    %177 = vector.shape_cast %176 : vector<1x128x128xf32> to vector<128x128xf32>
    %cst_175 = arith.constant dense<0.000000e+00> : vector<64x128xf32>
    %178 = tpu.matmul %175, %177, %cst_175 {dimension_numbers = #tpu.dot_dimension_numbers<[1], [0], [0], [1], [0, 0, 1, 1], [], []>} : vector<64x128xf32>, vector<128x128xf32>, vector<64x128xf32> -> vector<64x128xf32>
    %179 = arith.addf %172, %178 : vector<64x128xf32>
    %c0_176 = arith.constant 0 : index
    %c3_177 = arith.constant 3 : index
    %c2_178 = arith.constant 2 : index
    %c0_179 = arith.constant 0 : index
    %180 = vector.load %arg13[%c0_176, %c3_177, %c2_178, %c0_179] : memref<2x12x12x128xf32, #tpu.memory_space<vmem>>, vector<1x8x8x128xf32>
    %181 = vector.shape_cast %180 : vector<1x8x8x128xf32> to vector<8x8x128xf32>
    %182 = vector.shape_cast %181 : vector<8x8x128xf32> to vector<64x128xf32>
    %c17 = arith.constant 17 : index
    %c0_180 = arith.constant 0 : index
    %c0_181 = arith.constant 0 : index
    %183 = vector.load %arg4[%c17, %c0_180, %c0_181] : memref<25x128x128xf32, #tpu.memory_space<vmem>>, vector<1x128x128xf32>
    %184 = vector.shape_cast %183 : vector<1x128x128xf32> to vector<128x128xf32>
    %cst_182 = arith.constant dense<0.000000e+00> : vector<64x128xf32>
    %185 = tpu.matmul %182, %184, %cst_182 {dimension_numbers = #tpu.dot_dimension_numbers<[1], [0], [0], [1], [0, 0, 1, 1], [], []>} : vector<64x128xf32>, vector<128x128xf32>, vector<64x128xf32> -> vector<64x128xf32>
    %186 = arith.addf %179, %185 : vector<64x128xf32>
    %c0_183 = arith.constant 0 : index
    %c3_184 = arith.constant 3 : index
    %c3_185 = arith.constant 3 : index
    %c0_186 = arith.constant 0 : index
    %187 = vector.load %arg13[%c0_183, %c3_184, %c3_185, %c0_186] : memref<2x12x12x128xf32, #tpu.memory_space<vmem>>, vector<1x8x8x128xf32>
    %188 = vector.shape_cast %187 : vector<1x8x8x128xf32> to vector<8x8x128xf32>
    %189 = vector.shape_cast %188 : vector<8x8x128xf32> to vector<64x128xf32>
    %c18 = arith.constant 18 : index
    %c0_187 = arith.constant 0 : index
    %c0_188 = arith.constant 0 : index
    %190 = vector.load %arg4[%c18, %c0_187, %c0_188] : memref<25x128x128xf32, #tpu.memory_space<vmem>>, vector<1x128x128xf32>
    %191 = vector.shape_cast %190 : vector<1x128x128xf32> to vector<128x128xf32>
    %cst_189 = arith.constant dense<0.000000e+00> : vector<64x128xf32>
    %192 = tpu.matmul %189, %191, %cst_189 {dimension_numbers = #tpu.dot_dimension_numbers<[1], [0], [0], [1], [0, 0, 1, 1], [], []>} : vector<64x128xf32>, vector<128x128xf32>, vector<64x128xf32> -> vector<64x128xf32>
    %193 = arith.addf %186, %192 : vector<64x128xf32>
    %c0_190 = arith.constant 0 : index
    %c3_191 = arith.constant 3 : index
    %c4_192 = arith.constant 4 : index
    %c0_193 = arith.constant 0 : index
    %194 = vector.load %arg13[%c0_190, %c3_191, %c4_192, %c0_193] : memref<2x12x12x128xf32, #tpu.memory_space<vmem>>, vector<1x8x8x128xf32>
    %195 = vector.shape_cast %194 : vector<1x8x8x128xf32> to vector<8x8x128xf32>
    %196 = vector.shape_cast %195 : vector<8x8x128xf32> to vector<64x128xf32>
    %c19 = arith.constant 19 : index
    %c0_194 = arith.constant 0 : index
    %c0_195 = arith.constant 0 : index
    %197 = vector.load %arg4[%c19, %c0_194, %c0_195] : memref<25x128x128xf32, #tpu.memory_space<vmem>>, vector<1x128x128xf32>
    %198 = vector.shape_cast %197 : vector<1x128x128xf32> to vector<128x128xf32>
    %cst_196 = arith.constant dense<0.000000e+00> : vector<64x128xf32>
    %199 = tpu.matmul %196, %198, %cst_196 {dimension_numbers = #tpu.dot_dimension_numbers<[1], [0], [0], [1], [0, 0, 1, 1], [], []>} : vector<64x128xf32>, vector<128x128xf32>, vector<64x128xf32> -> vector<64x128xf32>
    %200 = arith.addf %193, %199 : vector<64x128xf32>
    %c0_197 = arith.constant 0 : index
    %c4_198 = arith.constant 4 : index
    %c0_199 = arith.constant 0 : index
    %c0_200 = arith.constant 0 : index
    %201 = vector.load %arg13[%c0_197, %c4_198, %c0_199, %c0_200] : memref<2x12x12x128xf32, #tpu.memory_space<vmem>>, vector<1x8x8x128xf32>
    %202 = vector.shape_cast %201 : vector<1x8x8x128xf32> to vector<8x8x128xf32>
    %203 = vector.shape_cast %202 : vector<8x8x128xf32> to vector<64x128xf32>
    %c20 = arith.constant 20 : index
    %c0_201 = arith.constant 0 : index
    %c0_202 = arith.constant 0 : index
    %204 = vector.load %arg4[%c20, %c0_201, %c0_202] : memref<25x128x128xf32, #tpu.memory_space<vmem>>, vector<1x128x128xf32>
    %205 = vector.shape_cast %204 : vector<1x128x128xf32> to vector<128x128xf32>
    %cst_203 = arith.constant dense<0.000000e+00> : vector<64x128xf32>
    %206 = tpu.matmul %203, %205, %cst_203 {dimension_numbers = #tpu.dot_dimension_numbers<[1], [0], [0], [1], [0, 0, 1, 1], [], []>} : vector<64x128xf32>, vector<128x128xf32>, vector<64x128xf32> -> vector<64x128xf32>
    %207 = arith.addf %200, %206 : vector<64x128xf32>
    %c0_204 = arith.constant 0 : index
    %c4_205 = arith.constant 4 : index
    %c1_206 = arith.constant 1 : index
    %c0_207 = arith.constant 0 : index
    %208 = vector.load %arg13[%c0_204, %c4_205, %c1_206, %c0_207] : memref<2x12x12x128xf32, #tpu.memory_space<vmem>>, vector<1x8x8x128xf32>
    %209 = vector.shape_cast %208 : vector<1x8x8x128xf32> to vector<8x8x128xf32>
    %210 = vector.shape_cast %209 : vector<8x8x128xf32> to vector<64x128xf32>
    %c21 = arith.constant 21 : index
    %c0_208 = arith.constant 0 : index
    %c0_209 = arith.constant 0 : index
    %211 = vector.load %arg4[%c21, %c0_208, %c0_209] : memref<25x128x128xf32, #tpu.memory_space<vmem>>, vector<1x128x128xf32>
    %212 = vector.shape_cast %211 : vector<1x128x128xf32> to vector<128x128xf32>
    %cst_210 = arith.constant dense<0.000000e+00> : vector<64x128xf32>
    %213 = tpu.matmul %210, %212, %cst_210 {dimension_numbers = #tpu.dot_dimension_numbers<[1], [0], [0], [1], [0, 0, 1, 1], [], []>} : vector<64x128xf32>, vector<128x128xf32>, vector<64x128xf32> -> vector<64x128xf32>
    %214 = arith.addf %207, %213 : vector<64x128xf32>
    %c0_211 = arith.constant 0 : index
    %c4_212 = arith.constant 4 : index
    %c2_213 = arith.constant 2 : index
    %c0_214 = arith.constant 0 : index
    %215 = vector.load %arg13[%c0_211, %c4_212, %c2_213, %c0_214] : memref<2x12x12x128xf32, #tpu.memory_space<vmem>>, vector<1x8x8x128xf32>
    %216 = vector.shape_cast %215 : vector<1x8x8x128xf32> to vector<8x8x128xf32>
    %217 = vector.shape_cast %216 : vector<8x8x128xf32> to vector<64x128xf32>
    %c22 = arith.constant 22 : index
    %c0_215 = arith.constant 0 : index
    %c0_216 = arith.constant 0 : index
    %218 = vector.load %arg4[%c22, %c0_215, %c0_216] : memref<25x128x128xf32, #tpu.memory_space<vmem>>, vector<1x128x128xf32>
    %219 = vector.shape_cast %218 : vector<1x128x128xf32> to vector<128x128xf32>
    %cst_217 = arith.constant dense<0.000000e+00> : vector<64x128xf32>
    %220 = tpu.matmul %217, %219, %cst_217 {dimension_numbers = #tpu.dot_dimension_numbers<[1], [0], [0], [1], [0, 0, 1, 1], [], []>} : vector<64x128xf32>, vector<128x128xf32>, vector<64x128xf32> -> vector<64x128xf32>
    %221 = arith.addf %214, %220 : vector<64x128xf32>
    %c0_218 = arith.constant 0 : index
    %c4_219 = arith.constant 4 : index
    %c3_220 = arith.constant 3 : index
    %c0_221 = arith.constant 0 : index
    %222 = vector.load %arg13[%c0_218, %c4_219, %c3_220, %c0_221] : memref<2x12x12x128xf32, #tpu.memory_space<vmem>>, vector<1x8x8x128xf32>
    %223 = vector.shape_cast %222 : vector<1x8x8x128xf32> to vector<8x8x128xf32>
    %224 = vector.shape_cast %223 : vector<8x8x128xf32> to vector<64x128xf32>
    %c23 = arith.constant 23 : index
    %c0_222 = arith.constant 0 : index
    %c0_223 = arith.constant 0 : index
    %225 = vector.load %arg4[%c23, %c0_222, %c0_223] : memref<25x128x128xf32, #tpu.memory_space<vmem>>, vector<1x128x128xf32>
    %226 = vector.shape_cast %225 : vector<1x128x128xf32> to vector<128x128xf32>
    %cst_224 = arith.constant dense<0.000000e+00> : vector<64x128xf32>
    %227 = tpu.matmul %224, %226, %cst_224 {dimension_numbers = #tpu.dot_dimension_numbers<[1], [0], [0], [1], [0, 0, 1, 1], [], []>} : vector<64x128xf32>, vector<128x128xf32>, vector<64x128xf32> -> vector<64x128xf32>
    %228 = arith.addf %221, %227 : vector<64x128xf32>
    %c0_225 = arith.constant 0 : index
    %c4_226 = arith.constant 4 : index
    %c4_227 = arith.constant 4 : index
    %c0_228 = arith.constant 0 : index
    %229 = vector.load %arg13[%c0_225, %c4_226, %c4_227, %c0_228] : memref<2x12x12x128xf32, #tpu.memory_space<vmem>>, vector<1x8x8x128xf32>
    %230 = vector.shape_cast %229 : vector<1x8x8x128xf32> to vector<8x8x128xf32>
    %231 = vector.shape_cast %230 : vector<8x8x128xf32> to vector<64x128xf32>
    %c24 = arith.constant 24 : index
    %c0_229 = arith.constant 0 : index
    %c0_230 = arith.constant 0 : index
    %232 = vector.load %arg4[%c24, %c0_229, %c0_230] : memref<25x128x128xf32, #tpu.memory_space<vmem>>, vector<1x128x128xf32>
    %233 = vector.shape_cast %232 : vector<1x128x128xf32> to vector<128x128xf32>
    %cst_231 = arith.constant dense<0.000000e+00> : vector<64x128xf32>
    %234 = tpu.matmul %231, %233, %cst_231 {dimension_numbers = #tpu.dot_dimension_numbers<[1], [0], [0], [1], [0, 0, 1, 1], [], []>} : vector<64x128xf32>, vector<128x128xf32>, vector<64x128xf32> -> vector<64x128xf32>
    %235 = arith.addf %228, %234 : vector<64x128xf32>
    %cst_232 = arith.constant 0.000000e+00 : f32
    %236 = vector.broadcast %cst_232 : f32 to vector<64x128xf32>
    %237 = arith.maximumf %235, %236 : vector<64x128xf32>
    %238 = vector.shape_cast %237 : vector<64x128xf32> to vector<8x8x128xf32>
    %239 = vector.shape_cast %238 : vector<8x8x128xf32> to vector<4x2x8x128xf32>
    %240 = vector.extract_strided_slice %239 {offsets = [0, 0, 0, 0], sizes = [4, 1, 8, 128], strides = [1, 1, 1, 1]} : vector<4x2x8x128xf32> to vector<4x1x8x128xf32>
    %241 = vector.shape_cast %240 : vector<4x1x8x128xf32> to vector<4x8x128xf32>
    %242 = vector.extract_strided_slice %239 {offsets = [0, 1, 0, 0], sizes = [4, 1, 8, 128], strides = [1, 1, 1, 1]} : vector<4x2x8x128xf32> to vector<4x1x8x128xf32>
    %243 = vector.shape_cast %242 : vector<4x1x8x128xf32> to vector<4x8x128xf32>
    %244 = arith.maximumf %241, %243 : vector<4x8x128xf32>
    %245 = vector.extract_strided_slice %244 {offsets = [0, 0, 0], sizes = [4, 7, 128], strides = [1, 1, 1]} : vector<4x8x128xf32> to vector<4x7x128xf32>
    %246 = vector.extract_strided_slice %244 {offsets = [0, 1, 0], sizes = [4, 7, 128], strides = [1, 1, 1]} : vector<4x8x128xf32> to vector<4x7x128xf32>
    %247 = arith.maximumf %245, %246 : vector<4x7x128xf32>
    %c1_233 = arith.constant 1 : index
    %c0_234 = arith.constant 0 : index
    %248 = vector.load %arg1[%c1_233, %c0_234] : memref<2x128xf32, #tpu.memory_space<vmem>>, vector<1x128xf32>
    %249 = vector.shape_cast %248 : vector<1x128xf32> to vector<1x128xf32>
    %250 = vector.broadcast %249 : vector<1x128xf32> to vector<144x128xf32>
    %cst_235 = arith.constant dense<0.000000e+00> : vector<144x128xf32>
    %251 = tpu.matmul %250, %0, %cst_235 {dimension_numbers = #tpu.dot_dimension_numbers<[1], [0], [0], [1], [0, 0, 1, 1], [], []>} : vector<144x128xf32>, vector<128x128xf32>, vector<144x128xf32> -> vector<144x128xf32>
    %252 = vector.broadcast %1 : vector<1x128xf32> to vector<144x128xf32>
    %253 = arith.addf %251, %252 : vector<144x128xf32>
    %cst_236 = arith.constant 0.000000e+00 : f32
    %254 = vector.broadcast %cst_236 : f32 to vector<144x128xf32>
    %255 = arith.maximumf %253, %254 : vector<144x128xf32>
    %256 = vector.extract_strided_slice %255 {offsets = [0, 0], sizes = [12, 128], strides = [1, 1]} : vector<144x128xf32> to vector<12x128xf32>
    %c1_237 = arith.constant 1 : index
    %c0_238 = arith.constant 0 : index
    %c0_239 = arith.constant 0 : index
    %c0_240 = arith.constant 0 : index
    %257 = vector.load %arg13[%c1_237, %c0_238, %c0_239, %c0_240] : memref<2x12x12x128xf32, #tpu.memory_space<vmem>>, vector<1x1x12x128xf32>
    %258 = vector.shape_cast %257 : vector<1x1x12x128xf32> to vector<12x128xf32>
    %259 = vector.shape_cast %256 : vector<12x128xf32> to vector<1x1x12x128xf32>
    tpu.vector_store %arg13[%c1_237, %c0_238, %c0_239, %c0_240], %259 {strides = array<i32>} : memref<2x12x12x128xf32, #tpu.memory_space<vmem>>, vector<1x1x12x128xf32>,
    %260 = vector.extract_strided_slice %255 {offsets = [12, 0], sizes = [12, 128], strides = [1, 1]} : vector<144x128xf32> to vector<12x128xf32>
    %c1_241 = arith.constant 1 : index
    %c1_242 = arith.constant 1 : index
    %c0_243 = arith.constant 0 : index
    %c0_244 = arith.constant 0 : index
    %261 = vector.load %arg13[%c1_241, %c1_242, %c0_243, %c0_244] : memref<2x12x12x128xf32, #tpu.memory_space<vmem>>, vector<1x1x12x128xf32>
    %262 = vector.shape_cast %261 : vector<1x1x12x128xf32> to vector<12x128xf32>
    %263 = vector.shape_cast %260 : vector<12x128xf32> to vector<1x1x12x128xf32>
    tpu.vector_store %arg13[%c1_241, %c1_242, %c0_243, %c0_244], %263 {strides = array<i32>} : memref<2x12x12x128xf32, #tpu.memory_space<vmem>>, vector<1x1x12x128xf32>,
    %264 = vector.extract_strided_slice %255 {offsets = [24, 0], sizes = [12, 128], strides = [1, 1]} : vector<144x128xf32> to vector<12x128xf32>
    %c1_245 = arith.constant 1 : index
    %c2_246 = arith.constant 2 : index
    %c0_247 = arith.constant 0 : index
    %c0_248 = arith.constant 0 : index
    %265 = vector.load %arg13[%c1_245, %c2_246, %c0_247, %c0_248] : memref<2x12x12x128xf32, #tpu.memory_space<vmem>>, vector<1x1x12x128xf32>
    %266 = vector.shape_cast %265 : vector<1x1x12x128xf32> to vector<12x128xf32>
    %267 = vector.shape_cast %264 : vector<12x128xf32> to vector<1x1x12x128xf32>
    tpu.vector_store %arg13[%c1_245, %c2_246, %c0_247, %c0_248], %267 {strides = array<i32>} : memref<2x12x12x128xf32, #tpu.memory_space<vmem>>, vector<1x1x12x128xf32>,
    %268 = vector.extract_strided_slice %255 {offsets = [36, 0], sizes = [12, 128], strides = [1, 1]} : vector<144x128xf32> to vector<12x128xf32>
    %c1_249 = arith.constant 1 : index
    %c3_250 = arith.constant 3 : index
    %c0_251 = arith.constant 0 : index
    %c0_252 = arith.constant 0 : index
    %269 = vector.load %arg13[%c1_249, %c3_250, %c0_251, %c0_252] : memref<2x12x12x128xf32, #tpu.memory_space<vmem>>, vector<1x1x12x128xf32>
    %270 = vector.shape_cast %269 : vector<1x1x12x128xf32> to vector<12x128xf32>
    %271 = vector.shape_cast %268 : vector<12x128xf32> to vector<1x1x12x128xf32>
    tpu.vector_store %arg13[%c1_249, %c3_250, %c0_251, %c0_252], %271 {strides = array<i32>} : memref<2x12x12x128xf32, #tpu.memory_space<vmem>>, vector<1x1x12x128xf32>,
    %272 = vector.extract_strided_slice %255 {offsets = [48, 0], sizes = [12, 128], strides = [1, 1]} : vector<144x128xf32> to vector<12x128xf32>
    %c1_253 = arith.constant 1 : index
    %c4_254 = arith.constant 4 : index
    %c0_255 = arith.constant 0 : index
    %c0_256 = arith.constant 0 : index
    %273 = vector.load %arg13[%c1_253, %c4_254, %c0_255, %c0_256] : memref<2x12x12x128xf32, #tpu.memory_space<vmem>>, vector<1x1x12x128xf32>
    %274 = vector.shape_cast %273 : vector<1x1x12x128xf32> to vector<12x128xf32>
    %275 = vector.shape_cast %272 : vector<12x128xf32> to vector<1x1x12x128xf32>
    tpu.vector_store %arg13[%c1_253, %c4_254, %c0_255, %c0_256], %275 {strides = array<i32>} : memref<2x12x12x128xf32, #tpu.memory_space<vmem>>, vector<1x1x12x128xf32>,
    %276 = vector.extract_strided_slice %255 {offsets = [60, 0], sizes = [12, 128], strides = [1, 1]} : vector<144x128xf32> to vector<12x128xf32>
    %c1_257 = arith.constant 1 : index
    %c5_258 = arith.constant 5 : index
    %c0_259 = arith.constant 0 : index
    %c0_260 = arith.constant 0 : index
    %277 = vector.load %arg13[%c1_257, %c5_258, %c0_259, %c0_260] : memref<2x12x12x128xf32, #tpu.memory_space<vmem>>, vector<1x1x12x128xf32>
    %278 = vector.shape_cast %277 : vector<1x1x12x128xf32> to vector<12x128xf32>
    %279 = vector.shape_cast %276 : vector<12x128xf32> to vector<1x1x12x128xf32>
    tpu.vector_store %arg13[%c1_257, %c5_258, %c0_259, %c0_260], %279 {strides = array<i32>} : memref<2x12x12x128xf32, #tpu.memory_space<vmem>>, vector<1x1x12x128xf32>,
    %280 = vector.extract_strided_slice %255 {offsets = [72, 0], sizes = [12, 128], strides = [1, 1]} : vector<144x128xf32> to vector<12x128xf32>
    %c1_261 = arith.constant 1 : index
    %c6_262 = arith.constant 6 : index
    %c0_263 = arith.constant 0 : index
    %c0_264 = arith.constant 0 : index
    %281 = vector.load %arg13[%c1_261, %c6_262, %c0_263, %c0_264] : memref<2x12x12x128xf32, #tpu.memory_space<vmem>>, vector<1x1x12x128xf32>
    %282 = vector.shape_cast %281 : vector<1x1x12x128xf32> to vector<12x128xf32>
    %283 = vector.shape_cast %280 : vector<12x128xf32> to vector<1x1x12x128xf32>
    tpu.vector_store %arg13[%c1_261, %c6_262, %c0_263, %c0_264], %283 {strides = array<i32>} : memref<2x12x12x128xf32, #tpu.memory_space<vmem>>, vector<1x1x12x128xf32>,
    %284 = vector.extract_strided_slice %255 {offsets = [84, 0], sizes = [12, 128], strides = [1, 1]} : vector<144x128xf32> to vector<12x128xf32>
    %c1_265 = arith.constant 1 : index
    %c7_266 = arith.constant 7 : index
    %c0_267 = arith.constant 0 : index
    %c0_268 = arith.constant 0 : index
    %285 = vector.load %arg13[%c1_265, %c7_266, %c0_267, %c0_268] : memref<2x12x12x128xf32, #tpu.memory_space<vmem>>, vector<1x1x12x128xf32>
    %286 = vector.shape_cast %285 : vector<1x1x12x128xf32> to vector<12x128xf32>
    %287 = vector.shape_cast %284 : vector<12x128xf32> to vector<1x1x12x128xf32>
    tpu.vector_store %arg13[%c1_265, %c7_266, %c0_267, %c0_268], %287 {strides = array<i32>} : memref<2x12x12x128xf32, #tpu.memory_space<vmem>>, vector<1x1x12x128xf32>,
    %288 = vector.extract_strided_slice %255 {offsets = [96, 0], sizes = [12, 128], strides = [1, 1]} : vector<144x128xf32> to vector<12x128xf32>
    %c1_269 = arith.constant 1 : index
    %c8_270 = arith.constant 8 : index
    %c0_271 = arith.constant 0 : index
    %c0_272 = arith.constant 0 : index
    %289 = vector.load %arg13[%c1_269, %c8_270, %c0_271, %c0_272] : memref<2x12x12x128xf32, #tpu.memory_space<vmem>>, vector<1x1x12x128xf32>
    %290 = vector.shape_cast %289 : vector<1x1x12x128xf32> to vector<12x128xf32>
    %291 = vector.shape_cast %288 : vector<12x128xf32> to vector<1x1x12x128xf32>
    tpu.vector_store %arg13[%c1_269, %c8_270, %c0_271, %c0_272], %291 {strides = array<i32>} : memref<2x12x12x128xf32, #tpu.memory_space<vmem>>, vector<1x1x12x128xf32>,
    %292 = vector.extract_strided_slice %255 {offsets = [108, 0], sizes = [12, 128], strides = [1, 1]} : vector<144x128xf32> to vector<12x128xf32>
    %c1_273 = arith.constant 1 : index
    %c9_274 = arith.constant 9 : index
    %c0_275 = arith.constant 0 : index
    %c0_276 = arith.constant 0 : index
    %293 = vector.load %arg13[%c1_273, %c9_274, %c0_275, %c0_276] : memref<2x12x12x128xf32, #tpu.memory_space<vmem>>, vector<1x1x12x128xf32>
    %294 = vector.shape_cast %293 : vector<1x1x12x128xf32> to vector<12x128xf32>
    %295 = vector.shape_cast %292 : vector<12x128xf32> to vector<1x1x12x128xf32>
    tpu.vector_store %arg13[%c1_273, %c9_274, %c0_275, %c0_276], %295 {strides = array<i32>} : memref<2x12x12x128xf32, #tpu.memory_space<vmem>>, vector<1x1x12x128xf32>,
    %296 = vector.extract_strided_slice %255 {offsets = [120, 0], sizes = [12, 128], strides = [1, 1]} : vector<144x128xf32> to vector<12x128xf32>
    %c1_277 = arith.constant 1 : index
    %c10_278 = arith.constant 10 : index
    %c0_279 = arith.constant 0 : index
    %c0_280 = arith.constant 0 : index
    %297 = vector.load %arg13[%c1_277, %c10_278, %c0_279, %c0_280] : memref<2x12x12x128xf32, #tpu.memory_space<vmem>>, vector<1x1x12x128xf32>
    %298 = vector.shape_cast %297 : vector<1x1x12x128xf32> to vector<12x128xf32>
    %299 = vector.shape_cast %296 : vector<12x128xf32> to vector<1x1x12x128xf32>
    tpu.vector_store %arg13[%c1_277, %c10_278, %c0_279, %c0_280], %299 {strides = array<i32>} : memref<2x12x12x128xf32, #tpu.memory_space<vmem>>, vector<1x1x12x128xf32>,
    %300 = vector.extract_strided_slice %255 {offsets = [132, 0], sizes = [12, 128], strides = [1, 1]} : vector<144x128xf32> to vector<12x128xf32>
    %c1_281 = arith.constant 1 : index
    %c11_282 = arith.constant 11 : index
    %c0_283 = arith.constant 0 : index
    %c0_284 = arith.constant 0 : index
    %301 = vector.load %arg13[%c1_281, %c11_282, %c0_283, %c0_284] : memref<2x12x12x128xf32, #tpu.memory_space<vmem>>, vector<1x1x12x128xf32>
    %302 = vector.shape_cast %301 : vector<1x1x12x128xf32> to vector<12x128xf32>
    %303 = vector.shape_cast %300 : vector<12x128xf32> to vector<1x1x12x128xf32>
    tpu.vector_store %arg13[%c1_281, %c11_282, %c0_283, %c0_284], %303 {strides = array<i32>} : memref<2x12x12x128xf32, #tpu.memory_space<vmem>>, vector<1x1x12x128xf32>,
    %c1_285 = arith.constant 1 : index
    %c0_286 = arith.constant 0 : index
    %c0_287 = arith.constant 0 : index
    %c0_288 = arith.constant 0 : index
    %304 = vector.load %arg13[%c1_285, %c0_286, %c0_287, %c0_288] : memref<2x12x12x128xf32, #tpu.memory_space<vmem>>, vector<1x8x8x128xf32>
    %305 = vector.shape_cast %304 : vector<1x8x8x128xf32> to vector<8x8x128xf32>
    %306 = vector.shape_cast %305 : vector<8x8x128xf32> to vector<64x128xf32>
    %c0_289 = arith.constant 0 : index
    %c0_290 = arith.constant 0 : index
    %c0_291 = arith.constant 0 : index
    %307 = vector.load %arg4[%c0_289, %c0_290, %c0_291] : memref<25x128x128xf32, #tpu.memory_space<vmem>>, vector<1x128x128xf32>
    %308 = vector.shape_cast %307 : vector<1x128x128xf32> to vector<128x128xf32>
    %cst_292 = arith.constant dense<0.000000e+00> : vector<64x128xf32>
    %309 = tpu.matmul %306, %308, %cst_292 {dimension_numbers = #tpu.dot_dimension_numbers<[1], [0], [0], [1], [0, 0, 1, 1], [], []>} : vector<64x128xf32>, vector<128x128xf32>, vector<64x128xf32> -> vector<64x128xf32>
    %310 = arith.addf %4, %309 : vector<64x128xf32>
    %c1_293 = arith.constant 1 : index
    %c0_294 = arith.constant 0 : index
    %c1_295 = arith.constant 1 : index
    %c0_296 = arith.constant 0 : index
    %311 = vector.load %arg13[%c1_293, %c0_294, %c1_295, %c0_296] : memref<2x12x12x128xf32, #tpu.memory_space<vmem>>, vector<1x8x8x128xf32>
    %312 = vector.shape_cast %311 : vector<1x8x8x128xf32> to vector<8x8x128xf32>
    %313 = vector.shape_cast %312 : vector<8x8x128xf32> to vector<64x128xf32>
    %c1_297 = arith.constant 1 : index
    %c0_298 = arith.constant 0 : index
    %c0_299 = arith.constant 0 : index
    %314 = vector.load %arg4[%c1_297, %c0_298, %c0_299] : memref<25x128x128xf32, #tpu.memory_space<vmem>>, vector<1x128x128xf32>
    %315 = vector.shape_cast %314 : vector<1x128x128xf32> to vector<128x128xf32>
    %cst_300 = arith.constant dense<0.000000e+00> : vector<64x128xf32>
    %316 = tpu.matmul %313, %315, %cst_300 {dimension_numbers = #tpu.dot_dimension_numbers<[1], [0], [0], [1], [0, 0, 1, 1], [], []>} : vector<64x128xf32>, vector<128x128xf32>, vector<64x128xf32> -> vector<64x128xf32>
    %317 = arith.addf %310, %316 : vector<64x128xf32>
    %c1_301 = arith.constant 1 : index
    %c0_302 = arith.constant 0 : index
    %c2_303 = arith.constant 2 : index
    %c0_304 = arith.constant 0 : index
    %318 = vector.load %arg13[%c1_301, %c0_302, %c2_303, %c0_304] : memref<2x12x12x128xf32, #tpu.memory_space<vmem>>, vector<1x8x8x128xf32>
    %319 = vector.shape_cast %318 : vector<1x8x8x128xf32> to vector<8x8x128xf32>
    %320 = vector.shape_cast %319 : vector<8x8x128xf32> to vector<64x128xf32>
    %c2_305 = arith.constant 2 : index
    %c0_306 = arith.constant 0 : index
    %c0_307 = arith.constant 0 : index
    %321 = vector.load %arg4[%c2_305, %c0_306, %c0_307] : memref<25x128x128xf32, #tpu.memory_space<vmem>>, vector<1x128x128xf32>
    %322 = vector.shape_cast %321 : vector<1x128x128xf32> to vector<128x128xf32>
    %cst_308 = arith.constant dense<0.000000e+00> : vector<64x128xf32>
    %323 = tpu.matmul %320, %322, %cst_308 {dimension_numbers = #tpu.dot_dimension_numbers<[1], [0], [0], [1], [0, 0, 1, 1], [], []>} : vector<64x128xf32>, vector<128x128xf32>, vector<64x128xf32> -> vector<64x128xf32>
    %324 = arith.addf %317, %323 : vector<64x128xf32>
    %c1_309 = arith.constant 1 : index
    %c0_310 = arith.constant 0 : index
    %c3_311 = arith.constant 3 : index
    %c0_312 = arith.constant 0 : index
    %325 = vector.load %arg13[%c1_309, %c0_310, %c3_311, %c0_312] : memref<2x12x12x128xf32, #tpu.memory_space<vmem>>, vector<1x8x8x128xf32>
    %326 = vector.shape_cast %325 : vector<1x8x8x128xf32> to vector<8x8x128xf32>
    %327 = vector.shape_cast %326 : vector<8x8x128xf32> to vector<64x128xf32>
    %c3_313 = arith.constant 3 : index
    %c0_314 = arith.constant 0 : index
    %c0_315 = arith.constant 0 : index
    %328 = vector.load %arg4[%c3_313, %c0_314, %c0_315] : memref<25x128x128xf32, #tpu.memory_space<vmem>>, vector<1x128x128xf32>
    %329 = vector.shape_cast %328 : vector<1x128x128xf32> to vector<128x128xf32>
    %cst_316 = arith.constant dense<0.000000e+00> : vector<64x128xf32>
    %330 = tpu.matmul %327, %329, %cst_316 {dimension_numbers = #tpu.dot_dimension_numbers<[1], [0], [0], [1], [0, 0, 1, 1], [], []>} : vector<64x128xf32>, vector<128x128xf32>, vector<64x128xf32> -> vector<64x128xf32>
    %331 = arith.addf %324, %330 : vector<64x128xf32>
    %c1_317 = arith.constant 1 : index
    %c0_318 = arith.constant 0 : index
    %c4_319 = arith.constant 4 : index
    %c0_320 = arith.constant 0 : index
    %332 = vector.load %arg13[%c1_317, %c0_318, %c4_319, %c0_320] : memref<2x12x12x128xf32, #tpu.memory_space<vmem>>, vector<1x8x8x128xf32>
    %333 = vector.shape_cast %332 : vector<1x8x8x128xf32> to vector<8x8x128xf32>
    %334 = vector.shape_cast %333 : vector<8x8x128xf32> to vector<64x128xf32>
    %c4_321 = arith.constant 4 : index
    %c0_322 = arith.constant 0 : index
    %c0_323 = arith.constant 0 : index
    %335 = vector.load %arg4[%c4_321, %c0_322, %c0_323] : memref<25x128x128xf32, #tpu.memory_space<vmem>>, vector<1x128x128xf32>
    %336 = vector.shape_cast %335 : vector<1x128x128xf32> to vector<128x128xf32>
    %cst_324 = arith.constant dense<0.000000e+00> : vector<64x128xf32>
    %337 = tpu.matmul %334, %336, %cst_324 {dimension_numbers = #tpu.dot_dimension_numbers<[1], [0], [0], [1], [0, 0, 1, 1], [], []>} : vector<64x128xf32>, vector<128x128xf32>, vector<64x128xf32> -> vector<64x128xf32>
    %338 = arith.addf %331, %337 : vector<64x128xf32>
    %c1_325 = arith.constant 1 : index
    %c1_326 = arith.constant 1 : index
    %c0_327 = arith.constant 0 : index
    %c0_328 = arith.constant 0 : index
    %339 = vector.load %arg13[%c1_325, %c1_326, %c0_327, %c0_328] : memref<2x12x12x128xf32, #tpu.memory_space<vmem>>, vector<1x8x8x128xf32>
    %340 = vector.shape_cast %339 : vector<1x8x8x128xf32> to vector<8x8x128xf32>
    %341 = vector.shape_cast %340 : vector<8x8x128xf32> to vector<64x128xf32>
    %c5_329 = arith.constant 5 : index
    %c0_330 = arith.constant 0 : index
    %c0_331 = arith.constant 0 : index
    %342 = vector.load %arg4[%c5_329, %c0_330, %c0_331] : memref<25x128x128xf32, #tpu.memory_space<vmem>>, vector<1x128x128xf32>
    %343 = vector.shape_cast %342 : vector<1x128x128xf32> to vector<128x128xf32>
    %cst_332 = arith.constant dense<0.000000e+00> : vector<64x128xf32>
    %344 = tpu.matmul %341, %343, %cst_332 {dimension_numbers = #tpu.dot_dimension_numbers<[1], [0], [0], [1], [0, 0, 1, 1], [], []>} : vector<64x128xf32>, vector<128x128xf32>, vector<64x128xf32> -> vector<64x128xf32>
    %345 = arith.addf %338, %344 : vector<64x128xf32>
    %c1_333 = arith.constant 1 : index
    %c1_334 = arith.constant 1 : index
    %c1_335 = arith.constant 1 : index
    %c0_336 = arith.constant 0 : index
    %346 = vector.load %arg13[%c1_333, %c1_334, %c1_335, %c0_336] : memref<2x12x12x128xf32, #tpu.memory_space<vmem>>, vector<1x8x8x128xf32>
    %347 = vector.shape_cast %346 : vector<1x8x8x128xf32> to vector<8x8x128xf32>
    %348 = vector.shape_cast %347 : vector<8x8x128xf32> to vector<64x128xf32>
    %c6_337 = arith.constant 6 : index
    %c0_338 = arith.constant 0 : index
    %c0_339 = arith.constant 0 : index
    %349 = vector.load %arg4[%c6_337, %c0_338, %c0_339] : memref<25x128x128xf32, #tpu.memory_space<vmem>>, vector<1x128x128xf32>
    %350 = vector.shape_cast %349 : vector<1x128x128xf32> to vector<128x128xf32>
    %cst_340 = arith.constant dense<0.000000e+00> : vector<64x128xf32>
    %351 = tpu.matmul %348, %350, %cst_340 {dimension_numbers = #tpu.dot_dimension_numbers<[1], [0], [0], [1], [0, 0, 1, 1], [], []>} : vector<64x128xf32>, vector<128x128xf32>, vector<64x128xf32> -> vector<64x128xf32>
    %352 = arith.addf %345, %351 : vector<64x128xf32>
    %c1_341 = arith.constant 1 : index
    %c1_342 = arith.constant 1 : index
    %c2_343 = arith.constant 2 : index
    %c0_344 = arith.constant 0 : index
    %353 = vector.load %arg13[%c1_341, %c1_342, %c2_343, %c0_344] : memref<2x12x12x128xf32, #tpu.memory_space<vmem>>, vector<1x8x8x128xf32>
    %354 = vector.shape_cast %353 : vector<1x8x8x128xf32> to vector<8x8x128xf32>
    %355 = vector.shape_cast %354 : vector<8x8x128xf32> to vector<64x128xf32>
    %c7_345 = arith.constant 7 : index
    %c0_346 = arith.constant 0 : index
    %c0_347 = arith.constant 0 : index
    %356 = vector.load %arg4[%c7_345, %c0_346, %c0_347] : memref<25x128x128xf32, #tpu.memory_space<vmem>>, vector<1x128x128xf32>
    %357 = vector.shape_cast %356 : vector<1x128x128xf32> to vector<128x128xf32>
    %cst_348 = arith.constant dense<0.000000e+00> : vector<64x128xf32>
    %358 = tpu.matmul %355, %357, %cst_348 {dimension_numbers = #tpu.dot_dimension_numbers<[1], [0], [0], [1], [0, 0, 1, 1], [], []>} : vector<64x128xf32>, vector<128x128xf32>, vector<64x128xf32> -> vector<64x128xf32>
    %359 = arith.addf %352, %358 : vector<64x128xf32>
    %c1_349 = arith.constant 1 : index
    %c1_350 = arith.constant 1 : index
    %c3_351 = arith.constant 3 : index
    %c0_352 = arith.constant 0 : index
    %360 = vector.load %arg13[%c1_349, %c1_350, %c3_351, %c0_352] : memref<2x12x12x128xf32, #tpu.memory_space<vmem>>, vector<1x8x8x128xf32>
    %361 = vector.shape_cast %360 : vector<1x8x8x128xf32> to vector<8x8x128xf32>
    %362 = vector.shape_cast %361 : vector<8x8x128xf32> to vector<64x128xf32>
    %c8_353 = arith.constant 8 : index
    %c0_354 = arith.constant 0 : index
    %c0_355 = arith.constant 0 : index
    %363 = vector.load %arg4[%c8_353, %c0_354, %c0_355] : memref<25x128x128xf32, #tpu.memory_space<vmem>>, vector<1x128x128xf32>
    %364 = vector.shape_cast %363 : vector<1x128x128xf32> to vector<128x128xf32>
    %cst_356 = arith.constant dense<0.000000e+00> : vector<64x128xf32>
    %365 = tpu.matmul %362, %364, %cst_356 {dimension_numbers = #tpu.dot_dimension_numbers<[1], [0], [0], [1], [0, 0, 1, 1], [], []>} : vector<64x128xf32>, vector<128x128xf32>, vector<64x128xf32> -> vector<64x128xf32>
    %366 = arith.addf %359, %365 : vector<64x128xf32>
    %c1_357 = arith.constant 1 : index
    %c1_358 = arith.constant 1 : index
    %c4_359 = arith.constant 4 : index
    %c0_360 = arith.constant 0 : index
    %367 = vector.load %arg13[%c1_357, %c1_358, %c4_359, %c0_360] : memref<2x12x12x128xf32, #tpu.memory_space<vmem>>, vector<1x8x8x128xf32>
    %368 = vector.shape_cast %367 : vector<1x8x8x128xf32> to vector<8x8x128xf32>
    %369 = vector.shape_cast %368 : vector<8x8x128xf32> to vector<64x128xf32>
    %c9_361 = arith.constant 9 : index
    %c0_362 = arith.constant 0 : index
    %c0_363 = arith.constant 0 : index
    %370 = vector.load %arg4[%c9_361, %c0_362, %c0_363] : memref<25x128x128xf32, #tpu.memory_space<vmem>>, vector<1x128x128xf32>
    %371 = vector.shape_cast %370 : vector<1x128x128xf32> to vector<128x128xf32>
    %cst_364 = arith.constant dense<0.000000e+00> : vector<64x128xf32>
    %372 = tpu.matmul %369, %371, %cst_364 {dimension_numbers = #tpu.dot_dimension_numbers<[1], [0], [0], [1], [0, 0, 1, 1], [], []>} : vector<64x128xf32>, vector<128x128xf32>, vector<64x128xf32> -> vector<64x128xf32>
    %373 = arith.addf %366, %372 : vector<64x128xf32>
    %c1_365 = arith.constant 1 : index
    %c2_366 = arith.constant 2 : index
    %c0_367 = arith.constant 0 : index
    %c0_368 = arith.constant 0 : index
    %374 = vector.load %arg13[%c1_365, %c2_366, %c0_367, %c0_368] : memref<2x12x12x128xf32, #tpu.memory_space<vmem>>, vector<1x8x8x128xf32>
    %375 = vector.shape_cast %374 : vector<1x8x8x128xf32> to vector<8x8x128xf32>
    %376 = vector.shape_cast %375 : vector<8x8x128xf32> to vector<64x128xf32>
    %c10_369 = arith.constant 10 : index
    %c0_370 = arith.constant 0 : index
    %c0_371 = arith.constant 0 : index
    %377 = vector.load %arg4[%c10_369, %c0_370, %c0_371] : memref<25x128x128xf32, #tpu.memory_space<vmem>>, vector<1x128x128xf32>
    %378 = vector.shape_cast %377 : vector<1x128x128xf32> to vector<128x128xf32>
    %cst_372 = arith.constant dense<0.000000e+00> : vector<64x128xf32>
    %379 = tpu.matmul %376, %378, %cst_372 {dimension_numbers = #tpu.dot_dimension_numbers<[1], [0], [0], [1], [0, 0, 1, 1], [], []>} : vector<64x128xf32>, vector<128x128xf32>, vector<64x128xf32> -> vector<64x128xf32>
    %380 = arith.addf %373, %379 : vector<64x128xf32>
    %c1_373 = arith.constant 1 : index
    %c2_374 = arith.constant 2 : index
    %c1_375 = arith.constant 1 : index
    %c0_376 = arith.constant 0 : index
    %381 = vector.load %arg13[%c1_373, %c2_374, %c1_375, %c0_376] : memref<2x12x12x128xf32, #tpu.memory_space<vmem>>, vector<1x8x8x128xf32>
    %382 = vector.shape_cast %381 : vector<1x8x8x128xf32> to vector<8x8x128xf32>
    %383 = vector.shape_cast %382 : vector<8x8x128xf32> to vector<64x128xf32>
    %c11_377 = arith.constant 11 : index
    %c0_378 = arith.constant 0 : index
    %c0_379 = arith.constant 0 : index
    %384 = vector.load %arg4[%c11_377, %c0_378, %c0_379] : memref<25x128x128xf32, #tpu.memory_space<vmem>>, vector<1x128x128xf32>
    %385 = vector.shape_cast %384 : vector<1x128x128xf32> to vector<128x128xf32>
    %cst_380 = arith.constant dense<0.000000e+00> : vector<64x128xf32>
    %386 = tpu.matmul %383, %385, %cst_380 {dimension_numbers = #tpu.dot_dimension_numbers<[1], [0], [0], [1], [0, 0, 1, 1], [], []>} : vector<64x128xf32>, vector<128x128xf32>, vector<64x128xf32> -> vector<64x128xf32>
    %387 = arith.addf %380, %386 : vector<64x128xf32>
    %c1_381 = arith.constant 1 : index
    %c2_382 = arith.constant 2 : index
    %c2_383 = arith.constant 2 : index
    %c0_384 = arith.constant 0 : index
    %388 = vector.load %arg13[%c1_381, %c2_382, %c2_383, %c0_384] : memref<2x12x12x128xf32, #tpu.memory_space<vmem>>, vector<1x8x8x128xf32>
    %389 = vector.shape_cast %388 : vector<1x8x8x128xf32> to vector<8x8x128xf32>
    %390 = vector.shape_cast %389 : vector<8x8x128xf32> to vector<64x128xf32>
    %c12_385 = arith.constant 12 : index
    %c0_386 = arith.constant 0 : index
    %c0_387 = arith.constant 0 : index
    %391 = vector.load %arg4[%c12_385, %c0_386, %c0_387] : memref<25x128x128xf32, #tpu.memory_space<vmem>>, vector<1x128x128xf32>
    %392 = vector.shape_cast %391 : vector<1x128x128xf32> to vector<128x128xf32>
    %cst_388 = arith.constant dense<0.000000e+00> : vector<64x128xf32>
    %393 = tpu.matmul %390, %392, %cst_388 {dimension_numbers = #tpu.dot_dimension_numbers<[1], [0], [0], [1], [0, 0, 1, 1], [], []>} : vector<64x128xf32>, vector<128x128xf32>, vector<64x128xf32> -> vector<64x128xf32>
    %394 = arith.addf %387, %393 : vector<64x128xf32>
    %c1_389 = arith.constant 1 : index
    %c2_390 = arith.constant 2 : index
    %c3_391 = arith.constant 3 : index
    %c0_392 = arith.constant 0 : index
    %395 = vector.load %arg13[%c1_389, %c2_390, %c3_391, %c0_392] : memref<2x12x12x128xf32, #tpu.memory_space<vmem>>, vector<1x8x8x128xf32>
    %396 = vector.shape_cast %395 : vector<1x8x8x128xf32> to vector<8x8x128xf32>
    %397 = vector.shape_cast %396 : vector<8x8x128xf32> to vector<64x128xf32>
    %c13_393 = arith.constant 13 : index
    %c0_394 = arith.constant 0 : index
    %c0_395 = arith.constant 0 : index
    %398 = vector.load %arg4[%c13_393, %c0_394, %c0_395] : memref<25x128x128xf32, #tpu.memory_space<vmem>>, vector<1x128x128xf32>
    %399 = vector.shape_cast %398 : vector<1x128x128xf32> to vector<128x128xf32>
    %cst_396 = arith.constant dense<0.000000e+00> : vector<64x128xf32>
    %400 = tpu.matmul %397, %399, %cst_396 {dimension_numbers = #tpu.dot_dimension_numbers<[1], [0], [0], [1], [0, 0, 1, 1], [], []>} : vector<64x128xf32>, vector<128x128xf32>, vector<64x128xf32> -> vector<64x128xf32>
    %401 = arith.addf %394, %400 : vector<64x128xf32>
    %c1_397 = arith.constant 1 : index
    %c2_398 = arith.constant 2 : index
    %c4_399 = arith.constant 4 : index
    %c0_400 = arith.constant 0 : index
    %402 = vector.load %arg13[%c1_397, %c2_398, %c4_399, %c0_400] : memref<2x12x12x128xf32, #tpu.memory_space<vmem>>, vector<1x8x8x128xf32>
    %403 = vector.shape_cast %402 : vector<1x8x8x128xf32> to vector<8x8x128xf32>
    %404 = vector.shape_cast %403 : vector<8x8x128xf32> to vector<64x128xf32>
    %c14_401 = arith.constant 14 : index
    %c0_402 = arith.constant 0 : index
    %c0_403 = arith.constant 0 : index
    %405 = vector.load %arg4[%c14_401, %c0_402, %c0_403] : memref<25x128x128xf32, #tpu.memory_space<vmem>>, vector<1x128x128xf32>
    %406 = vector.shape_cast %405 : vector<1x128x128xf32> to vector<128x128xf32>
    %cst_404 = arith.constant dense<0.000000e+00> : vector<64x128xf32>
    %407 = tpu.matmul %404, %406, %cst_404 {dimension_numbers = #tpu.dot_dimension_numbers<[1], [0], [0], [1], [0, 0, 1, 1], [], []>} : vector<64x128xf32>, vector<128x128xf32>, vector<64x128xf32> -> vector<64x128xf32>
    %408 = arith.addf %401, %407 : vector<64x128xf32>
    %c1_405 = arith.constant 1 : index
    %c3_406 = arith.constant 3 : index
    %c0_407 = arith.constant 0 : index
    %c0_408 = arith.constant 0 : index
    %409 = vector.load %arg13[%c1_405, %c3_406, %c0_407, %c0_408] : memref<2x12x12x128xf32, #tpu.memory_space<vmem>>, vector<1x8x8x128xf32>
    %410 = vector.shape_cast %409 : vector<1x8x8x128xf32> to vector<8x8x128xf32>
    %411 = vector.shape_cast %410 : vector<8x8x128xf32> to vector<64x128xf32>
    %c15_409 = arith.constant 15 : index
    %c0_410 = arith.constant 0 : index
    %c0_411 = arith.constant 0 : index
    %412 = vector.load %arg4[%c15_409, %c0_410, %c0_411] : memref<25x128x128xf32, #tpu.memory_space<vmem>>, vector<1x128x128xf32>
    %413 = vector.shape_cast %412 : vector<1x128x128xf32> to vector<128x128xf32>
    %cst_412 = arith.constant dense<0.000000e+00> : vector<64x128xf32>
    %414 = tpu.matmul %411, %413, %cst_412 {dimension_numbers = #tpu.dot_dimension_numbers<[1], [0], [0], [1], [0, 0, 1, 1], [], []>} : vector<64x128xf32>, vector<128x128xf32>, vector<64x128xf32> -> vector<64x128xf32>
    %415 = arith.addf %408, %414 : vector<64x128xf32>
    %c1_413 = arith.constant 1 : index
    %c3_414 = arith.constant 3 : index
    %c1_415 = arith.constant 1 : index
    %c0_416 = arith.constant 0 : index
    %416 = vector.load %arg13[%c1_413, %c3_414, %c1_415, %c0_416] : memref<2x12x12x128xf32, #tpu.memory_space<vmem>>, vector<1x8x8x128xf32>
    %417 = vector.shape_cast %416 : vector<1x8x8x128xf32> to vector<8x8x128xf32>
    %418 = vector.shape_cast %417 : vector<8x8x128xf32> to vector<64x128xf32>
    %c16_417 = arith.constant 16 : index
    %c0_418 = arith.constant 0 : index
    %c0_419 = arith.constant 0 : index
    %419 = vector.load %arg4[%c16_417, %c0_418, %c0_419] : memref<25x128x128xf32, #tpu.memory_space<vmem>>, vector<1x128x128xf32>
    %420 = vector.shape_cast %419 : vector<1x128x128xf32> to vector<128x128xf32>
    %cst_420 = arith.constant dense<0.000000e+00> : vector<64x128xf32>
    %421 = tpu.matmul %418, %420, %cst_420 {dimension_numbers = #tpu.dot_dimension_numbers<[1], [0], [0], [1], [0, 0, 1, 1], [], []>} : vector<64x128xf32>, vector<128x128xf32>, vector<64x128xf32> -> vector<64x128xf32>
    %422 = arith.addf %415, %421 : vector<64x128xf32>
    %c1_421 = arith.constant 1 : index
    %c3_422 = arith.constant 3 : index
    %c2_423 = arith.constant 2 : index
    %c0_424 = arith.constant 0 : index
    %423 = vector.load %arg13[%c1_421, %c3_422, %c2_423, %c0_424] : memref<2x12x12x128xf32, #tpu.memory_space<vmem>>, vector<1x8x8x128xf32>
    %424 = vector.shape_cast %423 : vector<1x8x8x128xf32> to vector<8x8x128xf32>
    %425 = vector.shape_cast %424 : vector<8x8x128xf32> to vector<64x128xf32>
    %c17_425 = arith.constant 17 : index
    %c0_426 = arith.constant 0 : index
    %c0_427 = arith.constant 0 : index
    %426 = vector.load %arg4[%c17_425, %c0_426, %c0_427] : memref<25x128x128xf32, #tpu.memory_space<vmem>>, vector<1x128x128xf32>
    %427 = vector.shape_cast %426 : vector<1x128x128xf32> to vector<128x128xf32>
    %cst_428 = arith.constant dense<0.000000e+00> : vector<64x128xf32>
    %428 = tpu.matmul %425, %427, %cst_428 {dimension_numbers = #tpu.dot_dimension_numbers<[1], [0], [0], [1], [0, 0, 1, 1], [], []>} : vector<64x128xf32>, vector<128x128xf32>, vector<64x128xf32> -> vector<64x128xf32>
    %429 = arith.addf %422, %428 : vector<64x128xf32>
    %c1_429 = arith.constant 1 : index
    %c3_430 = arith.constant 3 : index
    %c3_431 = arith.constant 3 : index
    %c0_432 = arith.constant 0 : index
    %430 = vector.load %arg13[%c1_429, %c3_430, %c3_431, %c0_432] : memref<2x12x12x128xf32, #tpu.memory_space<vmem>>, vector<1x8x8x128xf32>
    %431 = vector.shape_cast %430 : vector<1x8x8x128xf32> to vector<8x8x128xf32>
    %432 = vector.shape_cast %431 : vector<8x8x128xf32> to vector<64x128xf32>
    %c18_433 = arith.constant 18 : index
    %c0_434 = arith.constant 0 : index
    %c0_435 = arith.constant 0 : index
    %433 = vector.load %arg4[%c18_433, %c0_434, %c0_435] : memref<25x128x128xf32, #tpu.memory_space<vmem>>, vector<1x128x128xf32>
    %434 = vector.shape_cast %433 : vector<1x128x128xf32> to vector<128x128xf32>
    %cst_436 = arith.constant dense<0.000000e+00> : vector<64x128xf32>
    %435 = tpu.matmul %432, %434, %cst_436 {dimension_numbers = #tpu.dot_dimension_numbers<[1], [0], [0], [1], [0, 0, 1, 1], [], []>} : vector<64x128xf32>, vector<128x128xf32>, vector<64x128xf32> -> vector<64x128xf32>
    %436 = arith.addf %429, %435 : vector<64x128xf32>
    %c1_437 = arith.constant 1 : index
    %c3_438 = arith.constant 3 : index
    %c4_439 = arith.constant 4 : index
    %c0_440 = arith.constant 0 : index
    %437 = vector.load %arg13[%c1_437, %c3_438, %c4_439, %c0_440] : memref<2x12x12x128xf32, #tpu.memory_space<vmem>>, vector<1x8x8x128xf32>
    %438 = vector.shape_cast %437 : vector<1x8x8x128xf32> to vector<8x8x128xf32>
    %439 = vector.shape_cast %438 : vector<8x8x128xf32> to vector<64x128xf32>
    %c19_441 = arith.constant 19 : index
    %c0_442 = arith.constant 0 : index
    %c0_443 = arith.constant 0 : index
    %440 = vector.load %arg4[%c19_441, %c0_442, %c0_443] : memref<25x128x128xf32, #tpu.memory_space<vmem>>, vector<1x128x128xf32>
    %441 = vector.shape_cast %440 : vector<1x128x128xf32> to vector<128x128xf32>
    %cst_444 = arith.constant dense<0.000000e+00> : vector<64x128xf32>
    %442 = tpu.matmul %439, %441, %cst_444 {dimension_numbers = #tpu.dot_dimension_numbers<[1], [0], [0], [1], [0, 0, 1, 1], [], []>} : vector<64x128xf32>, vector<128x128xf32>, vector<64x128xf32> -> vector<64x128xf32>
    %443 = arith.addf %436, %442 : vector<64x128xf32>
    %c1_445 = arith.constant 1 : index
    %c4_446 = arith.constant 4 : index
    %c0_447 = arith.constant 0 : index
    %c0_448 = arith.constant 0 : index
    %444 = vector.load %arg13[%c1_445, %c4_446, %c0_447, %c0_448] : memref<2x12x12x128xf32, #tpu.memory_space<vmem>>, vector<1x8x8x128xf32>
    %445 = vector.shape_cast %444 : vector<1x8x8x128xf32> to vector<8x8x128xf32>
    %446 = vector.shape_cast %445 : vector<8x8x128xf32> to vector<64x128xf32>
    %c20_449 = arith.constant 20 : index
    %c0_450 = arith.constant 0 : index
    %c0_451 = arith.constant 0 : index
    %447 = vector.load %arg4[%c20_449, %c0_450, %c0_451] : memref<25x128x128xf32, #tpu.memory_space<vmem>>, vector<1x128x128xf32>
    %448 = vector.shape_cast %447 : vector<1x128x128xf32> to vector<128x128xf32>
    %cst_452 = arith.constant dense<0.000000e+00> : vector<64x128xf32>
    %449 = tpu.matmul %446, %448, %cst_452 {dimension_numbers = #tpu.dot_dimension_numbers<[1], [0], [0], [1], [0, 0, 1, 1], [], []>} : vector<64x128xf32>, vector<128x128xf32>, vector<64x128xf32> -> vector<64x128xf32>
    %450 = arith.addf %443, %449 : vector<64x128xf32>
    %c1_453 = arith.constant 1 : index
    %c4_454 = arith.constant 4 : index
    %c1_455 = arith.constant 1 : index
    %c0_456 = arith.constant 0 : index
    %451 = vector.load %arg13[%c1_453, %c4_454, %c1_455, %c0_456] : memref<2x12x12x128xf32, #tpu.memory_space<vmem>>, vector<1x8x8x128xf32>
    %452 = vector.shape_cast %451 : vector<1x8x8x128xf32> to vector<8x8x128xf32>
    %453 = vector.shape_cast %452 : vector<8x8x128xf32> to vector<64x128xf32>
    %c21_457 = arith.constant 21 : index
    %c0_458 = arith.constant 0 : index
    %c0_459 = arith.constant 0 : index
    %454 = vector.load %arg4[%c21_457, %c0_458, %c0_459] : memref<25x128x128xf32, #tpu.memory_space<vmem>>, vector<1x128x128xf32>
    %455 = vector.shape_cast %454 : vector<1x128x128xf32> to vector<128x128xf32>
    %cst_460 = arith.constant dense<0.000000e+00> : vector<64x128xf32>
    %456 = tpu.matmul %453, %455, %cst_460 {dimension_numbers = #tpu.dot_dimension_numbers<[1], [0], [0], [1], [0, 0, 1, 1], [], []>} : vector<64x128xf32>, vector<128x128xf32>, vector<64x128xf32> -> vector<64x128xf32>
    %457 = arith.addf %450, %456 : vector<64x128xf32>
    %c1_461 = arith.constant 1 : index
    %c4_462 = arith.constant 4 : index
    %c2_463 = arith.constant 2 : index
    %c0_464 = arith.constant 0 : index
    %458 = vector.load %arg13[%c1_461, %c4_462, %c2_463, %c0_464] : memref<2x12x12x128xf32, #tpu.memory_space<vmem>>, vector<1x8x8x128xf32>
    %459 = vector.shape_cast %458 : vector<1x8x8x128xf32> to vector<8x8x128xf32>
    %460 = vector.shape_cast %459 : vector<8x8x128xf32> to vector<64x128xf32>
    %c22_465 = arith.constant 22 : index
    %c0_466 = arith.constant 0 : index
    %c0_467 = arith.constant 0 : index
    %461 = vector.load %arg4[%c22_465, %c0_466, %c0_467] : memref<25x128x128xf32, #tpu.memory_space<vmem>>, vector<1x128x128xf32>
    %462 = vector.shape_cast %461 : vector<1x128x128xf32> to vector<128x128xf32>
    %cst_468 = arith.constant dense<0.000000e+00> : vector<64x128xf32>
    %463 = tpu.matmul %460, %462, %cst_468 {dimension_numbers = #tpu.dot_dimension_numbers<[1], [0], [0], [1], [0, 0, 1, 1], [], []>} : vector<64x128xf32>, vector<128x128xf32>, vector<64x128xf32> -> vector<64x128xf32>
    %464 = arith.addf %457, %463 : vector<64x128xf32>
    %c1_469 = arith.constant 1 : index
    %c4_470 = arith.constant 4 : index
    %c3_471 = arith.constant 3 : index
    %c0_472 = arith.constant 0 : index
    %465 = vector.load %arg13[%c1_469, %c4_470, %c3_471, %c0_472] : memref<2x12x12x128xf32, #tpu.memory_space<vmem>>, vector<1x8x8x128xf32>
    %466 = vector.shape_cast %465 : vector<1x8x8x128xf32> to vector<8x8x128xf32>
    %467 = vector.shape_cast %466 : vector<8x8x128xf32> to vector<64x128xf32>
    %c23_473 = arith.constant 23 : index
    %c0_474 = arith.constant 0 : index
    %c0_475 = arith.constant 0 : index
    %468 = vector.load %arg4[%c23_473, %c0_474, %c0_475] : memref<25x128x128xf32, #tpu.memory_space<vmem>>, vector<1x128x128xf32>
    %469 = vector.shape_cast %468 : vector<1x128x128xf32> to vector<128x128xf32>
    %cst_476 = arith.constant dense<0.000000e+00> : vector<64x128xf32>
    %470 = tpu.matmul %467, %469, %cst_476 {dimension_numbers = #tpu.dot_dimension_numbers<[1], [0], [0], [1], [0, 0, 1, 1], [], []>} : vector<64x128xf32>, vector<128x128xf32>, vector<64x128xf32> -> vector<64x128xf32>
    %471 = arith.addf %464, %470 : vector<64x128xf32>
    %c1_477 = arith.constant 1 : index
    %c4_478 = arith.constant 4 : index
    %c4_479 = arith.constant 4 : index
    %c0_480 = arith.constant 0 : index
    %472 = vector.load %arg13[%c1_477, %c4_478, %c4_479, %c0_480] : memref<2x12x12x128xf32, #tpu.memory_space<vmem>>, vector<1x8x8x128xf32>
    %473 = vector.shape_cast %472 : vector<1x8x8x128xf32> to vector<8x8x128xf32>
    %474 = vector.shape_cast %473 : vector<8x8x128xf32> to vector<64x128xf32>
    %c24_481 = arith.constant 24 : index
    %c0_482 = arith.constant 0 : index
    %c0_483 = arith.constant 0 : index
    %475 = vector.load %arg4[%c24_481, %c0_482, %c0_483] : memref<25x128x128xf32, #tpu.memory_space<vmem>>, vector<1x128x128xf32>
    %476 = vector.shape_cast %475 : vector<1x128x128xf32> to vector<128x128xf32>
    %cst_484 = arith.constant dense<0.000000e+00> : vector<64x128xf32>
    %477 = tpu.matmul %474, %476, %cst_484 {dimension_numbers = #tpu.dot_dimension_numbers<[1], [0], [0], [1], [0, 0, 1, 1], [], []>} : vector<64x128xf32>, vector<128x128xf32>, vector<64x128xf32> -> vector<64x128xf32>
    %478 = arith.addf %471, %477 : vector<64x128xf32>
    %cst_485 = arith.constant 0.000000e+00 : f32
    %479 = vector.broadcast %cst_485 : f32 to vector<64x128xf32>
    %480 = arith.maximumf %478, %479 : vector<64x128xf32>
    %481 = vector.shape_cast %480 : vector<64x128xf32> to vector<8x8x128xf32>
    %482 = vector.shape_cast %481 : vector<8x8x128xf32> to vector<4x2x8x128xf32>
    %483 = vector.extract_strided_slice %482 {offsets = [0, 0, 0, 0], sizes = [4, 1, 8, 128], strides = [1, 1, 1, 1]} : vector<4x2x8x128xf32> to vector<4x1x8x128xf32>
    %484 = vector.shape_cast %483 : vector<4x1x8x128xf32> to vector<4x8x128xf32>
    %485 = vector.extract_strided_slice %482 {offsets = [0, 1, 0, 0], sizes = [4, 1, 8, 128], strides = [1, 1, 1, 1]} : vector<4x2x8x128xf32> to vector<4x1x8x128xf32>
    %486 = vector.shape_cast %485 : vector<4x1x8x128xf32> to vector<4x8x128xf32>
    %487 = arith.maximumf %484, %486 : vector<4x8x128xf32>
    %488 = vector.extract_strided_slice %487 {offsets = [0, 0, 0], sizes = [4, 7, 128], strides = [1, 1, 1]} : vector<4x8x128xf32> to vector<4x7x128xf32>
    %489 = vector.extract_strided_slice %487 {offsets = [0, 1, 0], sizes = [4, 7, 128], strides = [1, 1, 1]} : vector<4x8x128xf32> to vector<4x7x128xf32>
    %490 = arith.maximumf %488, %489 : vector<4x7x128xf32>
    %491 = vector.shape_cast %247 : vector<4x7x128xf32> to vector<1x4x7x128xf32>
    %492 = vector.shape_cast %490 : vector<4x7x128xf32> to vector<1x4x7x128xf32>
    %493 = tpu.concatenate %491, %492 in 0 : vector<1x4x7x128xf32>, vector<1x4x7x128xf32> -> vector<2x4x7x128xf32>
    %c0_486 = arith.constant 0 : index
    %c0_487 = arith.constant 0 : index
    %494 = vector.load %arg7[%c0_486, %c0_487] : memref<1x128xf32, #tpu.memory_space<vmem>>, vector<1x128xf32>
    %495 = vector.shape_cast %494 : vector<1x128xf32> to vector<1x128xf32>
    %496 = vector.broadcast %495 : vector<1x128xf32> to vector<2x128xf32>
    %497 = vector.extract_strided_slice %493 {offsets = [0, 0, 0, 0], sizes = [2, 1, 1, 128], strides = [1, 1, 1, 1]} : vector<2x4x7x128xf32> to vector<2x1x1x128xf32>
    %498 = vector.shape_cast %497 : vector<2x1x1x128xf32> to vector<2x128xf32>
    %c0_488 = arith.constant 0 : index
    %c0_489 = arith.constant 0 : index
    %c0_490 = arith.constant 0 : index
    %499 = vector.load %arg6[%c0_488, %c0_489, %c0_490] : memref<16x128x128xf32, #tpu.memory_space<vmem>>, vector<1x128x128xf32>
    %500 = vector.shape_cast %499 : vector<1x128x128xf32> to vector<128x128xf32>
    %cst_491 = arith.constant dense<0.000000e+00> : vector<2x128xf32>
    %501 = tpu.matmul %498, %500, %cst_491 {dimension_numbers = #tpu.dot_dimension_numbers<[1], [0], [0], [1], [0, 0, 1, 1], [], []>} : vector<2x128xf32>, vector<128x128xf32>, vector<2x128xf32> -> vector<2x128xf32>
    %502 = arith.addf %496, %501 : vector<2x128xf32>
    %503 = vector.extract_strided_slice %493 {offsets = [0, 0, 2, 0], sizes = [2, 1, 1, 128], strides = [1, 1, 1, 1]} : vector<2x4x7x128xf32> to vector<2x1x1x128xf32>
    %504 = vector.shape_cast %503 : vector<2x1x1x128xf32> to vector<2x128xf32>
    %c1_492 = arith.constant 1 : index
    %c0_493 = arith.constant 0 : index
    %c0_494 = arith.constant 0 : index
    %505 = vector.load %arg6[%c1_492, %c0_493, %c0_494] : memref<16x128x128xf32, #tpu.memory_space<vmem>>, vector<1x128x128xf32>
    %506 = vector.shape_cast %505 : vector<1x128x128xf32> to vector<128x128xf32>
    %cst_495 = arith.constant dense<0.000000e+00> : vector<2x128xf32>
    %507 = tpu.matmul %504, %506, %cst_495 {dimension_numbers = #tpu.dot_dimension_numbers<[1], [0], [0], [1], [0, 0, 1, 1], [], []>} : vector<2x128xf32>, vector<128x128xf32>, vector<2x128xf32> -> vector<2x128xf32>
    %508 = arith.addf %502, %507 : vector<2x128xf32>
    %509 = vector.extract_strided_slice %493 {offsets = [0, 0, 4, 0], sizes = [2, 1, 1, 128], strides = [1, 1, 1, 1]} : vector<2x4x7x128xf32> to vector<2x1x1x128xf32>
    %510 = vector.shape_cast %509 : vector<2x1x1x128xf32> to vector<2x128xf32>
    %c2_496 = arith.constant 2 : index
    %c0_497 = arith.constant 0 : index
    %c0_498 = arith.constant 0 : index
    %511 = vector.load %arg6[%c2_496, %c0_497, %c0_498] : memref<16x128x128xf32, #tpu.memory_space<vmem>>, vector<1x128x128xf32>
    %512 = vector.shape_cast %511 : vector<1x128x128xf32> to vector<128x128xf32>
    %cst_499 = arith.constant dense<0.000000e+00> : vector<2x128xf32>
    %513 = tpu.matmul %510, %512, %cst_499 {dimension_numbers = #tpu.dot_dimension_numbers<[1], [0], [0], [1], [0, 0, 1, 1], [], []>} : vector<2x128xf32>, vector<128x128xf32>, vector<2x128xf32> -> vector<2x128xf32>
    %514 = arith.addf %508, %513 : vector<2x128xf32>
    %515 = vector.extract_strided_slice %493 {offsets = [0, 0, 6, 0], sizes = [2, 1, 1, 128], strides = [1, 1, 1, 1]} : vector<2x4x7x128xf32> to vector<2x1x1x128xf32>
    %516 = vector.shape_cast %515 : vector<2x1x1x128xf32> to vector<2x128xf32>
    %c3_500 = arith.constant 3 : index
    %c0_501 = arith.constant 0 : index
    %c0_502 = arith.constant 0 : index
    %517 = vector.load %arg6[%c3_500, %c0_501, %c0_502] : memref<16x128x128xf32, #tpu.memory_space<vmem>>, vector<1x128x128xf32>
    %518 = vector.shape_cast %517 : vector<1x128x128xf32> to vector<128x128xf32>
    %cst_503 = arith.constant dense<0.000000e+00> : vector<2x128xf32>
    %519 = tpu.matmul %516, %518, %cst_503 {dimension_numbers = #tpu.dot_dimension_numbers<[1], [0], [0], [1], [0, 0, 1, 1], [], []>} : vector<2x128xf32>, vector<128x128xf32>, vector<2x128xf32> -> vector<2x128xf32>
    %520 = arith.addf %514, %519 : vector<2x128xf32>
    %521 = vector.extract_strided_slice %493 {offsets = [0, 1, 0, 0], sizes = [2, 1, 1, 128], strides = [1, 1, 1, 1]} : vector<2x4x7x128xf32> to vector<2x1x1x128xf32>
    %522 = vector.shape_cast %521 : vector<2x1x1x128xf32> to vector<2x128xf32>
    %c4_504 = arith.constant 4 : index
    %c0_505 = arith.constant 0 : index
    %c0_506 = arith.constant 0 : index
    %523 = vector.load %arg6[%c4_504, %c0_505, %c0_506] : memref<16x128x128xf32, #tpu.memory_space<vmem>>, vector<1x128x128xf32>
    %524 = vector.shape_cast %523 : vector<1x128x128xf32> to vector<128x128xf32>
    %cst_507 = arith.constant dense<0.000000e+00> : vector<2x128xf32>
    %525 = tpu.matmul %522, %524, %cst_507 {dimension_numbers = #tpu.dot_dimension_numbers<[1], [0], [0], [1], [0, 0, 1, 1], [], []>} : vector<2x128xf32>, vector<128x128xf32>, vector<2x128xf32> -> vector<2x128xf32>
    %526 = arith.addf %520, %525 : vector<2x128xf32>
    %527 = vector.extract_strided_slice %493 {offsets = [0, 1, 2, 0], sizes = [2, 1, 1, 128], strides = [1, 1, 1, 1]} : vector<2x4x7x128xf32> to vector<2x1x1x128xf32>
    %528 = vector.shape_cast %527 : vector<2x1x1x128xf32> to vector<2x128xf32>
    %c5_508 = arith.constant 5 : index
    %c0_509 = arith.constant 0 : index
    %c0_510 = arith.constant 0 : index
    %529 = vector.load %arg6[%c5_508, %c0_509, %c0_510] : memref<16x128x128xf32, #tpu.memory_space<vmem>>, vector<1x128x128xf32>
    %530 = vector.shape_cast %529 : vector<1x128x128xf32> to vector<128x128xf32>
    %cst_511 = arith.constant dense<0.000000e+00> : vector<2x128xf32>
    %531 = tpu.matmul %528, %530, %cst_511 {dimension_numbers = #tpu.dot_dimension_numbers<[1], [0], [0], [1], [0, 0, 1, 1], [], []>} : vector<2x128xf32>, vector<128x128xf32>, vector<2x128xf32> -> vector<2x128xf32>
    %532 = arith.addf %526, %531 : vector<2x128xf32>
    %533 = vector.extract_strided_slice %493 {offsets = [0, 1, 4, 0], sizes = [2, 1, 1, 128], strides = [1, 1, 1, 1]} : vector<2x4x7x128xf32> to vector<2x1x1x128xf32>
    %534 = vector.shape_cast %533 : vector<2x1x1x128xf32> to vector<2x128xf32>
    %c6_512 = arith.constant 6 : index
    %c0_513 = arith.constant 0 : index
    %c0_514 = arith.constant 0 : index
    %535 = vector.load %arg6[%c6_512, %c0_513, %c0_514] : memref<16x128x128xf32, #tpu.memory_space<vmem>>, vector<1x128x128xf32>
    %536 = vector.shape_cast %535 : vector<1x128x128xf32> to vector<128x128xf32>
    %cst_515 = arith.constant dense<0.000000e+00> : vector<2x128xf32>
    %537 = tpu.matmul %534, %536, %cst_515 {dimension_numbers = #tpu.dot_dimension_numbers<[1], [0], [0], [1], [0, 0, 1, 1], [], []>} : vector<2x128xf32>, vector<128x128xf32>, vector<2x128xf32> -> vector<2x128xf32>
    %538 = arith.addf %532, %537 : vector<2x128xf32>
    %539 = vector.extract_strided_slice %493 {offsets = [0, 1, 6, 0], sizes = [2, 1, 1, 128], strides = [1, 1, 1, 1]} : vector<2x4x7x128xf32> to vector<2x1x1x128xf32>
    %540 = vector.shape_cast %539 : vector<2x1x1x128xf32> to vector<2x128xf32>
    %c7_516 = arith.constant 7 : index
    %c0_517 = arith.constant 0 : index
    %c0_518 = arith.constant 0 : index
    %541 = vector.load %arg6[%c7_516, %c0_517, %c0_518] : memref<16x128x128xf32, #tpu.memory_space<vmem>>, vector<1x128x128xf32>
    %542 = vector.shape_cast %541 : vector<1x128x128xf32> to vector<128x128xf32>
    %cst_519 = arith.constant dense<0.000000e+00> : vector<2x128xf32>
    %543 = tpu.matmul %540, %542, %cst_519 {dimension_numbers = #tpu.dot_dimension_numbers<[1], [0], [0], [1], [0, 0, 1, 1], [], []>} : vector<2x128xf32>, vector<128x128xf32>, vector<2x128xf32> -> vector<2x128xf32>
    %544 = arith.addf %538, %543 : vector<2x128xf32>
    %545 = vector.extract_strided_slice %493 {offsets = [0, 2, 0, 0], sizes = [2, 1, 1, 128], strides = [1, 1, 1, 1]} : vector<2x4x7x128xf32> to vector<2x1x1x128xf32>
    %546 = vector.shape_cast %545 : vector<2x1x1x128xf32> to vector<2x128xf32>
    %c8_520 = arith.constant 8 : index
    %c0_521 = arith.constant 0 : index
    %c0_522 = arith.constant 0 : index
    %547 = vector.load %arg6[%c8_520, %c0_521, %c0_522] : memref<16x128x128xf32, #tpu.memory_space<vmem>>, vector<1x128x128xf32>
    %548 = vector.shape_cast %547 : vector<1x128x128xf32> to vector<128x128xf32>
    %cst_523 = arith.constant dense<0.000000e+00> : vector<2x128xf32>
    %549 = tpu.matmul %546, %548, %cst_523 {dimension_numbers = #tpu.dot_dimension_numbers<[1], [0], [0], [1], [0, 0, 1, 1], [], []>} : vector<2x128xf32>, vector<128x128xf32>, vector<2x128xf32> -> vector<2x128xf32>
    %550 = arith.addf %544, %549 : vector<2x128xf32>
    %551 = vector.extract_strided_slice %493 {offsets = [0, 2, 2, 0], sizes = [2, 1, 1, 128], strides = [1, 1, 1, 1]} : vector<2x4x7x128xf32> to vector<2x1x1x128xf32>
    %552 = vector.shape_cast %551 : vector<2x1x1x128xf32> to vector<2x128xf32>
    %c9_524 = arith.constant 9 : index
    %c0_525 = arith.constant 0 : index
    %c0_526 = arith.constant 0 : index
    %553 = vector.load %arg6[%c9_524, %c0_525, %c0_526] : memref<16x128x128xf32, #tpu.memory_space<vmem>>, vector<1x128x128xf32>
    %554 = vector.shape_cast %553 : vector<1x128x128xf32> to vector<128x128xf32>
    %cst_527 = arith.constant dense<0.000000e+00> : vector<2x128xf32>
    %555 = tpu.matmul %552, %554, %cst_527 {dimension_numbers = #tpu.dot_dimension_numbers<[1], [0], [0], [1], [0, 0, 1, 1], [], []>} : vector<2x128xf32>, vector<128x128xf32>, vector<2x128xf32> -> vector<2x128xf32>
    %556 = arith.addf %550, %555 : vector<2x128xf32>
    %557 = vector.extract_strided_slice %493 {offsets = [0, 2, 4, 0], sizes = [2, 1, 1, 128], strides = [1, 1, 1, 1]} : vector<2x4x7x128xf32> to vector<2x1x1x128xf32>
    %558 = vector.shape_cast %557 : vector<2x1x1x128xf32> to vector<2x128xf32>
    %c10_528 = arith.constant 10 : index
    %c0_529 = arith.constant 0 : index
    %c0_530 = arith.constant 0 : index
    %559 = vector.load %arg6[%c10_528, %c0_529, %c0_530] : memref<16x128x128xf32, #tpu.memory_space<vmem>>, vector<1x128x128xf32>
    %560 = vector.shape_cast %559 : vector<1x128x128xf32> to vector<128x128xf32>
    %cst_531 = arith.constant dense<0.000000e+00> : vector<2x128xf32>
    %561 = tpu.matmul %558, %560, %cst_531 {dimension_numbers = #tpu.dot_dimension_numbers<[1], [0], [0], [1], [0, 0, 1, 1], [], []>} : vector<2x128xf32>, vector<128x128xf32>, vector<2x128xf32> -> vector<2x128xf32>
    %562 = arith.addf %556, %561 : vector<2x128xf32>
    %563 = vector.extract_strided_slice %493 {offsets = [0, 2, 6, 0], sizes = [2, 1, 1, 128], strides = [1, 1, 1, 1]} : vector<2x4x7x128xf32> to vector<2x1x1x128xf32>
    %564 = vector.shape_cast %563 : vector<2x1x1x128xf32> to vector<2x128xf32>
    %c11_532 = arith.constant 11 : index
    %c0_533 = arith.constant 0 : index
    %c0_534 = arith.constant 0 : index
    %565 = vector.load %arg6[%c11_532, %c0_533, %c0_534] : memref<16x128x128xf32, #tpu.memory_space<vmem>>, vector<1x128x128xf32>
    %566 = vector.shape_cast %565 : vector<1x128x128xf32> to vector<128x128xf32>
    %cst_535 = arith.constant dense<0.000000e+00> : vector<2x128xf32>
    %567 = tpu.matmul %564, %566, %cst_535 {dimension_numbers = #tpu.dot_dimension_numbers<[1], [0], [0], [1], [0, 0, 1, 1], [], []>} : vector<2x128xf32>, vector<128x128xf32>, vector<2x128xf32> -> vector<2x128xf32>
    %568 = arith.addf %562, %567 : vector<2x128xf32>
    %569 = vector.extract_strided_slice %493 {offsets = [0, 3, 0, 0], sizes = [2, 1, 1, 128], strides = [1, 1, 1, 1]} : vector<2x4x7x128xf32> to vector<2x1x1x128xf32>
    %570 = vector.shape_cast %569 : vector<2x1x1x128xf32> to vector<2x128xf32>
    %c12_536 = arith.constant 12 : index
    %c0_537 = arith.constant 0 : index
    %c0_538 = arith.constant 0 : index
    %571 = vector.load %arg6[%c12_536, %c0_537, %c0_538] : memref<16x128x128xf32, #tpu.memory_space<vmem>>, vector<1x128x128xf32>
    %572 = vector.shape_cast %571 : vector<1x128x128xf32> to vector<128x128xf32>
    %cst_539 = arith.constant dense<0.000000e+00> : vector<2x128xf32>
    %573 = tpu.matmul %570, %572, %cst_539 {dimension_numbers = #tpu.dot_dimension_numbers<[1], [0], [0], [1], [0, 0, 1, 1], [], []>} : vector<2x128xf32>, vector<128x128xf32>, vector<2x128xf32> -> vector<2x128xf32>
    %574 = arith.addf %568, %573 : vector<2x128xf32>
    %575 = vector.extract_strided_slice %493 {offsets = [0, 3, 2, 0], sizes = [2, 1, 1, 128], strides = [1, 1, 1, 1]} : vector<2x4x7x128xf32> to vector<2x1x1x128xf32>
    %576 = vector.shape_cast %575 : vector<2x1x1x128xf32> to vector<2x128xf32>
    %c13_540 = arith.constant 13 : index
    %c0_541 = arith.constant 0 : index
    %c0_542 = arith.constant 0 : index
    %577 = vector.load %arg6[%c13_540, %c0_541, %c0_542] : memref<16x128x128xf32, #tpu.memory_space<vmem>>, vector<1x128x128xf32>
    %578 = vector.shape_cast %577 : vector<1x128x128xf32> to vector<128x128xf32>
    %cst_543 = arith.constant dense<0.000000e+00> : vector<2x128xf32>
    %579 = tpu.matmul %576, %578, %cst_543 {dimension_numbers = #tpu.dot_dimension_numbers<[1], [0], [0], [1], [0, 0, 1, 1], [], []>} : vector<2x128xf32>, vector<128x128xf32>, vector<2x128xf32> -> vector<2x128xf32>
    %580 = arith.addf %574, %579 : vector<2x128xf32>
    %581 = vector.extract_strided_slice %493 {offsets = [0, 3, 4, 0], sizes = [2, 1, 1, 128], strides = [1, 1, 1, 1]} : vector<2x4x7x128xf32> to vector<2x1x1x128xf32>
    %582 = vector.shape_cast %581 : vector<2x1x1x128xf32> to vector<2x128xf32>
    %c14_544 = arith.constant 14 : index
    %c0_545 = arith.constant 0 : index
    %c0_546 = arith.constant 0 : index
    %583 = vector.load %arg6[%c14_544, %c0_545, %c0_546] : memref<16x128x128xf32, #tpu.memory_space<vmem>>, vector<1x128x128xf32>
    %584 = vector.shape_cast %583 : vector<1x128x128xf32> to vector<128x128xf32>
    %cst_547 = arith.constant dense<0.000000e+00> : vector<2x128xf32>
    %585 = tpu.matmul %582, %584, %cst_547 {dimension_numbers = #tpu.dot_dimension_numbers<[1], [0], [0], [1], [0, 0, 1, 1], [], []>} : vector<2x128xf32>, vector<128x128xf32>, vector<2x128xf32> -> vector<2x128xf32>
    %586 = arith.addf %580, %585 : vector<2x128xf32>
    %587 = vector.extract_strided_slice %493 {offsets = [0, 3, 6, 0], sizes = [2, 1, 1, 128], strides = [1, 1, 1, 1]} : vector<2x4x7x128xf32> to vector<2x1x1x128xf32>
    %588 = vector.shape_cast %587 : vector<2x1x1x128xf32> to vector<2x128xf32>
    %c15_548 = arith.constant 15 : index
    %c0_549 = arith.constant 0 : index
    %c0_550 = arith.constant 0 : index
    %589 = vector.load %arg6[%c15_548, %c0_549, %c0_550] : memref<16x128x128xf32, #tpu.memory_space<vmem>>, vector<1x128x128xf32>
    %590 = vector.shape_cast %589 : vector<1x128x128xf32> to vector<128x128xf32>
    %cst_551 = arith.constant dense<0.000000e+00> : vector<2x128xf32>
    %591 = tpu.matmul %588, %590, %cst_551 {dimension_numbers = #tpu.dot_dimension_numbers<[1], [0], [0], [1], [0, 0, 1, 1], [], []>} : vector<2x128xf32>, vector<128x128xf32>, vector<2x128xf32> -> vector<2x128xf32>
    %592 = arith.addf %586, %591 : vector<2x128xf32>
    %cst_552 = arith.constant dense<0.000000e+00> : vector<128xf32>
    %593 = vector.multi_reduction <add>, %592, %cst_552 [0] : vector<2x128xf32> to vector<128xf32>
    %594 = vector.shape_cast %593 : vector<128xf32> to vector<1x128xf32>
    %cst_553 = arith.constant 2.000000e+00 : f32
    %595 = vector.broadcast %cst_553 : f32 to vector<1x128xf32>
    %596 = arith.divf %594, %595 : vector<1x128xf32>
    %597 = vector.broadcast %596 : vector<1x128xf32> to vector<2x128xf32>
    %598 = arith.subf %592, %597 : vector<2x128xf32>
    %599 = arith.mulf %598, %598 : vector<2x128xf32>
    %cst_554 = arith.constant dense<0.000000e+00> : vector<128xf32>
    %600 = vector.multi_reduction <add>, %599, %cst_554 [0] : vector<2x128xf32> to vector<128xf32>
    %601 = vector.shape_cast %600 : vector<128xf32> to vector<1x128xf32>
    %cst_555 = arith.constant 2.000000e+00 : f32
    %602 = vector.broadcast %cst_555 : f32 to vector<1x128xf32>
    %603 = arith.divf %601, %602 : vector<1x128xf32>
    %cst_556 = arith.constant 9.99999974E-6 : f32
    %604 = vector.broadcast %cst_556 : f32 to vector<1x128xf32>
    %605 = arith.addf %603, %604 : vector<1x128xf32>
    %606 = math.rsqrt %605 : vector<1x128xf32>
    %607 = vector.broadcast %606 : vector<1x128xf32> to vector<2x128xf32>
    %608 = arith.mulf %598, %607 : vector<2x128xf32>
    %c0_557 = arith.constant 0 : index
    %c0_558 = arith.constant 0 : index
    %609 = vector.load %arg8[%c0_557, %c0_558] : memref<1x128xf32, #tpu.memory_space<vmem>>, vector<1x128xf32>
    %610 = vector.broadcast %609 : vector<1x128xf32> to vector<2x128xf32>
    %611 = arith.mulf %608, %610 : vector<2x128xf32>
    %c0_559 = arith.constant 0 : index
    %c0_560 = arith.constant 0 : index
    %612 = vector.load %arg9[%c0_559, %c0_560] : memref<1x128xf32, #tpu.memory_space<vmem>>, vector<1x128xf32>
    %613 = vector.broadcast %612 : vector<1x128xf32> to vector<2x128xf32>
    %614 = arith.addf %611, %613 : vector<2x128xf32>
    %cst_561 = arith.constant 0.000000e+00 : f32
    %615 = vector.broadcast %cst_561 : f32 to vector<2x128xf32>
    %616 = arith.maximumf %614, %615 : vector<2x128xf32>
    %c0_562 = arith.constant 0 : index
    %c0_563 = arith.constant 0 : index
    %617 = vector.load %arg10[%c0_562, %c0_563] : memref<128x128xf32, #tpu.memory_space<vmem>>, vector<128x128xf32>
    %cst_564 = arith.constant dense<0.000000e+00> : vector<2x128xf32>
    %618 = tpu.matmul %616, %617, %cst_564 {dimension_numbers = #tpu.dot_dimension_numbers<[1], [0], [0], [1], [0, 0, 1, 1], [], []>} : vector<2x128xf32>, vector<128x128xf32>, vector<2x128xf32> -> vector<2x128xf32>
    %c0_565 = arith.constant 0 : index
    %c0_566 = arith.constant 0 : index
    %619 = vector.load %arg11[%c0_565, %c0_566] : memref<1x128xf32, #tpu.memory_space<vmem>>, vector<1x128xf32>
    %620 = vector.broadcast %619 : vector<1x128xf32> to vector<2x128xf32>
    %621 = arith.addf %618, %620 : vector<2x128xf32>
    %c0_567 = arith.constant 0 : index
    %c0_568 = arith.constant 0 : index
    %622 = vector.load %arg12[%c0_567, %c0_568] : memref<2x128xf32, #tpu.memory_space<vmem>>, vector<2x128xf32>
    tpu.vector_store %arg12[%c0_567, %c0_568], %621 {strides = array<i32>} : memref<2x128xf32, #tpu.memory_space<vmem>>, vector<2x128xf32>,
    return
  }
  func.func @transform_0(%arg0: i32) -> (i32, i32) {
    %c0_i32 = arith.constant 0 : i32
    %c0_i32_0 = arith.constant 0 : i32
    %c0_i32_1 = arith.constant 0 : i32
    return %c0_i32, %c0_i32_0 : i32, i32
  }
  func.func @transform_1(%arg0: i32) -> (i32, i32) {
    %c0_i32 = arith.constant 0 : i32
    %c0_i32_0 = arith.constant 0 : i32
    %c0_i32_1 = arith.constant 0 : i32
    return %c0_i32, %c0_i32_0 : i32, i32
  }
  func.func @transform_2(%arg0: i32) -> (i32, i32) {
    %c0_i32 = arith.constant 0 : i32
    %c0_i32_0 = arith.constant 0 : i32
    %c0_i32_1 = arith.constant 0 : i32
    return %c0_i32, %c0_i32_0 : i32, i32
  }
  func.func @transform_3(%arg0: i32) -> (i32, i32, i32) {
    %c0_i32 = arith.constant 0 : i32
    %c0_i32_0 = arith.constant 0 : i32
    %c0_i32_1 = arith.constant 0 : i32
    %c0_i32_2 = arith.constant 0 : i32
    return %c0_i32, %c0_i32_0, %c0_i32_1 : i32, i32, i32
  }
  func.func @transform_4(%arg0: i32) -> (i32, i32) {
    %c0_i32 = arith.constant 0 : i32
    %c0_i32_0 = arith.constant 0 : i32
    %c0_i32_1 = arith.constant 0 : i32
    return %c0_i32, %c0_i32_0 : i32, i32
  }
  func.func @transform_5(%arg0: i32) -> (i32, i32, i32) {
    %c0_i32 = arith.constant 0 : i32
    %c0_i32_0 = arith.constant 0 : i32
    %c0_i32_1 = arith.constant 0 : i32
    %c0_i32_2 = arith.constant 0 : i32
    return %c0_i32, %c0_i32_0, %c0_i32_1 : i32, i32, i32
  }
  func.func @transform_6(%arg0: i32) -> (i32, i32) {
    %c0_i32 = arith.constant 0 : i32
    %c0_i32_0 = arith.constant 0 : i32
    %c0_i32_1 = arith.constant 0 : i32
    return %c0_i32, %c0_i32_0 : i32, i32
  }
  func.func @transform_7(%arg0: i32) -> (i32, i32) {
    %c0_i32 = arith.constant 0 : i32
    %c0_i32_0 = arith.constant 0 : i32
    %c0_i32_1 = arith.constant 0 : i32
    return %c0_i32, %c0_i32_0 : i32, i32
  }
  func.func @transform_8(%arg0: i32) -> (i32, i32) {
    %c0_i32 = arith.constant 0 : i32
    %c0_i32_0 = arith.constant 0 : i32
    %c0_i32_1 = arith.constant 0 : i32
    return %c0_i32, %c0_i32_0 : i32, i32
  }
  func.func @transform_9(%arg0: i32) -> (i32, i32) {
    %c0_i32 = arith.constant 0 : i32
    %c0_i32_0 = arith.constant 0 : i32
    %c0_i32_1 = arith.constant 0 : i32
    return %c0_i32, %c0_i32_0 : i32, i32
  }
  func.func @transform_10(%arg0: i32) -> (i32, i32) {
    %c0_i32 = arith.constant 0 : i32
    %c0_i32_0 = arith.constant 0 : i32
    %c0_i32_1 = arith.constant 0 : i32
    return %c0_i32, %c0_i32_0 : i32, i32
  }
  func.func @transform_11(%arg0: i32) -> (i32, i32) {
    %c0_i32 = arith.constant 0 : i32
    %c0_i32_0 = arith.constant 0 : i32
    %c0_i32_1 = arith.constant 0 : i32
    return %c0_i32, %c0_i32_0 : i32, i32
  }
}

</mosaic_0001>

<llo_original>
// kernel: tile.7
$region0: #{tile.7}
  %s0 = inlined_call_operand.vmem [shape: f32[2,25,4], index: 0, kind: input, shape index: {}]
  %s1 = inlined_call_operand.vmem [shape: f32[2,100], index: 1, kind: output, shape index: {}]
  $region1: #{tile.7} parent=0
    #allocation0 [shape = 'u8[4096]{0}', space=vmem, size = 0x1000, scoped, tag = 'scoped mem for output reshape']
    %v2 = vld [vmem:[%s0] sm:$0x1]
    %s3 = scalar_lea.vmem %s0, 31
    %v4 = vld [vmem:[%s3] sm:$0x2]
    %vm5 = vcmask 1041409
    %v6 = vsel %vm5, %v4, %v2
    %vm7 = vcmask 31744
    %8 = vst.msk [vmem:[#allocation0] sm:$0x3] %vm7, %v6
    %s9 = scalar_lea.vmem %s0, 24
    %v10 = vld [vmem:[%s9] sm:$0x1]
    %s11 = scalar_lea.vmem %s0, 55
    %v12 = vld [vmem:[%s11] sm:$0x2]
    %vm13 = vcmask 1041409
    %v14 = vsel %vm13, %v12, %v10
    %15 = vrot.lane.b32.xlu0 %v14, 96
    %v16 = vpop.permute.xlu0 %15
    %vm17 = vcmask 818944
    %18 = vst.msk [vmem:[#allocation0] sm:$0x3] %vm17, %v16
    %s19 = scalar_lea.vmem %s0, 23
    %v20 = vld [vmem:[%s19] sm:$0x1]
    %s21 = scalar_lea.vmem %s0, 54
    %v22 = vld [vmem:[%s21] sm:$0x2]
    %vm23 = vcmask 1041409
    %v24 = vsel %vm23, %v22, %v20
    %25 = vrot.lane.b32.xlu0 %v24, 92
    %v26 = vpop.permute.xlu0 %25
    %vm27 = vcmask 786144
    %28 = vst.msk [vmem:[#allocation0] sm:$0x3] %vm27, %v26
    %s29 = scalar_lea.vmem %s0, 22
    %v30 = vld [vmem:[%s29] sm:$0x1]
    %s31 = scalar_lea.vmem %s0, 53
    %v32 = vld [vmem:[%s31] sm:$0x2]
    %vm33 = vcmask 1041409
    %v34 = vsel %vm33, %v32, %v30
    %35 = vrot.lane.b32.xlu0 %v34, 88
    %v36 = vpop.permute.xlu0 %35
    %vm37 = vcmask 753344
    %38 = vst.msk [vmem:[#allocation0] sm:$0x3] %vm37, %v36
    %s39 = scalar_lea.vmem %s0, 21
    %v40 = vld [vmem:[%s39] sm:$0x1]
    %s41 = scalar_lea.vmem %s0, 52
    %v42 = vld [vmem:[%s41] sm:$0x2]
    %vm43 = vcmask 1041409
    %v44 = vsel %vm43, %v42, %v40
    %45 = vrot.lane.b32.xlu0 %v44, 84
    %v46 = vpop.permute.xlu0 %45
    %vm47 = vcmask 720544
    %48 = vst.msk [vmem:[#allocation0] sm:$0x3] %vm47, %v46
    %s49 = scalar_lea.vmem %s0, 20
    %v50 = vld [vmem:[%s49] sm:$0x1]
    %s51 = scalar_lea.vmem %s0, 51
    %v52 = vld [vmem:[%s51] sm:$0x2]
    %vm53 = vcmask 1041409
    %v54 = vsel %vm53, %v52, %v50
    %55 = vrot.lane.b32.xlu0 %v54, 80
    %v56 = vpop.permute.xlu0 %55
    %vm57 = vcmask 687744
    %58 = vst.msk [vmem:[#allocation0] sm:$0x3] %vm57, %v56
    %s59 = scalar_lea.vmem %s0, 19
    %v60 = vld [vmem:[%s59] sm:$0x1]
    %s61 = scalar_lea.vmem %s0, 50
    %v62 = vld [vmem:[%s61] sm:$0x2]
    %vm63 = vcmask 1041409
    %v64 = vsel %vm63, %v62, %v60
    %65 = vrot.lane.b32.xlu0 %v64, 76
    %v66 = vpop.permute.xlu0 %65
    %vm67 = vcmask 654944
    %68 = vst.msk [vmem:[#allocation0] sm:$0x3] %vm67, %v66
    %s69 = scalar_lea.vmem %s0, 18
    %v70 = vld [vmem:[%s69] sm:$0x1]
    %s71 = scalar_lea.vmem %s0, 49
    %v72 = vld [vmem:[%s71] sm:$0x2]
    %vm73 = vcmask 1041409
    %v74 = vsel %vm73, %v72, %v70
    %75 = vrot.lane.b32.xlu0 %v74, 72
    %v76 = vpop.permute.xlu0 %75
    %vm77 = vcmask 622144
    %78 = vst.msk [vmem:[#allocation0] sm:$0x3] %vm77, %v76
    %s79 = scalar_lea.vmem %s0, 17
    %v80 = vld [vmem:[%s79] sm:$0x1]
    %s81 = scalar_lea.vmem %s0, 48
    %v82 = vld [vmem:[%s81] sm:$0x2]
    %vm83 = vcmask 1041409
    %v84 = vsel %vm83, %v82, %v80
    %85 = vrot.lane.b32.xlu0 %v84, 68
    %v86 = vpop.permute.xlu0 %85
    %vm87 = vcmask 589344
    %88 = vst.msk [vmem:[#allocation0] sm:$0x3] %vm87, %v86
    %s89 = scalar_lea.vmem %s0, 16
    %v90 = vld [vmem:[%s89] sm:$0x1]
    %s91 = scalar_lea.vmem %s0, 47
    %v92 = vld [vmem:[%s91] sm:$0x2]
    %vm93 = vcmask 1041409
    %v94 = vsel %vm93, %v92, %v90
    %95 = vrot.lane.b32.xlu0 %v94, 64
    %v96 = vpop.permute.xlu0 %95
    %vm97 = vcmask 556544
    %98 = vst.msk [vmem:[#allocation0] sm:$0x3] %vm97, %v96
    %s99 = scalar_lea.vmem %s0, 15
    %v100 = vld [vmem:[%s99] sm:$0x1]
    %s101 = scalar_lea.vmem %s0, 46
    %v102 = vld [vmem:[%s101] sm:$0x2]
    %vm103 = vcmask 1041409
    %v104 = vsel %vm103, %v102, %v100
    %105 = vrot.lane.b32.xlu0 %v104, 60
    %v106 = vpop.permute.xlu0 %105
    %vm107 = vcmask 523744
    %108 = vst.msk [vmem:[#allocation0] sm:$0x3] %vm107, %v106
    %s109 = scalar_lea.vmem %s0, 14
    %v110 = vld [vmem:[%s109] sm:$0x1]
    %s111 = scalar_lea.vmem %s0, 45
    %v112 = vld [vmem:[%s111] sm:$0x2]
    %vm113 = vcmask 1041409
    %v114 = vsel %vm113, %v112, %v110
    %115 = vrot.lane.b32.xlu0 %v114, 56
    %v116 = vpop.permute.xlu0 %115
    %vm117 = vcmask 490944
    %118 = vst.msk [vmem:[#allocation0] sm:$0x3] %vm117, %v116
    %s119 = scalar_lea.vmem %s0, 13
    %v120 = vld [vmem:[%s119] sm:$0x1]
    %s121 = scalar_lea.vmem %s0, 44
    %v122 = vld [vmem:[%s121] sm:$0x2]
    %vm123 = vcmask 1041409
    %v124 = vsel %vm123, %v122, %v120
    %125 = vrot.lane.b32.xlu0 %v124, 52
    %v126 = vpop.permute.xlu0 %125
    %vm127 = vcmask 458144
    %128 = vst.msk [vmem:[#allocation0] sm:$0x3] %vm127, %v126
    %s129 = scalar_lea.vmem %s0, 12
    %v130 = vld [vmem:[%s129] sm:$0x1]
    %s131 = scalar_lea.vmem %s0, 43
    %v132 = vld [vmem:[%s131] sm:$0x2]
    %vm133 = vcmask 1041409
    %v134 = vsel %vm133, %v132, %v130
    %135 = vrot.lane.b32.xlu0 %v134, 48
    %v136 = vpop.permute.xlu0 %135
    %vm137 = vcmask 425344
    %138 = vst.msk [vmem:[#allocation0] sm:$0x3] %vm137, %v136
    %s139 = scalar_lea.vmem %s0, 11
    %v140 = vld [vmem:[%s139] sm:$0x1]
    %s141 = scalar_lea.vmem %s0, 42
    %v142 = vld [vmem:[%s141] sm:$0x2]
    %vm143 = vcmask 1041409
    %v144 = vsel %vm143, %v142, %v140
    %145 = vrot.lane.b32.xlu0 %v144, 44
    %v146 = vpop.permute.xlu0 %145
    %vm147 = vcmask 392544
    %148 = vst.msk [vmem:[#allocation0] sm:$0x3] %vm147, %v146
    %s149 = scalar_lea.vmem %s0, 10
    %v150 = vld [vmem:[%s149] sm:$0x1]
    %s151 = scalar_lea.vmem %s0, 41
    %v152 = vld [vmem:[%s151] sm:$0x2]
    %vm153 = vcmask 1041409
    %v154 = vsel %vm153, %v152, %v150
    %155 = vrot.lane.b32.xlu0 %v154, 40
    %v156 = vpop.permute.xlu0 %155
    %vm157 = vcmask 359744
    %158 = vst.msk [vmem:[#allocation0] sm:$0x3] %vm157, %v156
    %s159 = scalar_lea.vmem %s0, 9
    %v160 = vld [vmem:[%s159] sm:$0x1]
    %s161 = scalar_lea.vmem %s0, 40
    %v162 = vld [vmem:[%s161] sm:$0x2]
    %vm163 = vcmask 1041409
    %v164 = vsel %vm163, %v162, %v160
    %165 = vrot.lane.b32.xlu0 %v164, 36
    %v166 = vpop.permute.xlu0 %165
    %vm167 = vcmask 326944
    %168 = vst.msk [vmem:[#allocation0] sm:$0x3] %vm167, %v166
    %s169 = scalar_lea.vmem %s0, 8
    %v170 = vld [vmem:[%s169] sm:$0x1]
    %s171 = scalar_lea.vmem %s0, 39
    %v172 = vld [vmem:[%s171] sm:$0x2]
    %vm173 = vcmask 1041409
    %v174 = vsel %vm173, %v172, %v170
    %175 = vrot.lane.b32.xlu0 %v174, 32
    %v176 = vpop.permute.xlu0 %175
    %vm177 = vcmask 294144
    %178 = vst.msk [vmem:[#allocation0] sm:$0x3] %vm177, %v176
    %s179 = scalar_lea.vmem %s0, 7
    %v180 = vld [vmem:[%s179] sm:$0x1]
    %s181 = scalar_lea.vmem %s0, 38
    %v182 = vld [vmem:[%s181] sm:$0x2]
    %vm183 = vcmask 1041409
    %v184 = vsel %vm183, %v182, %v180
    %185 = vrot.lane.b32.xlu0 %v184, 28
    %v186 = vpop.permute.xlu0 %185
    %vm187 = vcmask 261344
    %188 = vst.msk [vmem:[#allocation0] sm:$0x3] %vm187, %v186
    %s189 = scalar_lea.vmem %s0, 6
    %v190 = vld [vmem:[%s189] sm:$0x1]
    %s191 = scalar_lea.vmem %s0, 37
    %v192 = vld [vmem:[%s191] sm:$0x2]
    %vm193 = vcmask 1041409
    %v194 = vsel %vm193, %v192, %v190
    %195 = vrot.lane.b32.xlu0 %v194, 24
    %v196 = vpop.permute.xlu0 %195
    %vm197 = vcmask 228544
    %198 = vst.msk [vmem:[#allocation0] sm:$0x3] %vm197, %v196
    %s199 = scalar_lea.vmem %s0, 5
    %v200 = vld [vmem:[%s199] sm:$0x1]
    %s201 = scalar_lea.vmem %s0, 36
    %v202 = vld [vmem:[%s201] sm:$0x2]
    %vm203 = vcmask 1041409
    %v204 = vsel %vm203, %v202, %v200
    %205 = vrot.lane.b32.xlu0 %v204, 20
    %v206 = vpop.permute.xlu0 %205
    %vm207 = vcmask 195744
    %208 = vst.msk [vmem:[#allocation0] sm:$0x3] %vm207, %v206
    %s209 = scalar_lea.vmem %s0, 4
    %v210 = vld [vmem:[%s209] sm:$0x1]
    %s211 = scalar_lea.vmem %s0, 35
    %v212 = vld [vmem:[%s211] sm:$0x2]
    %vm213 = vcmask 1041409
    %v214 = vsel %vm213, %v212, %v210
    %215 = vrot.lane.b32.xlu0 %v214, 16
    %v216 = vpop.permute.xlu0 %215
    %vm217 = vcmask 162944
    %218 = vst.msk [vmem:[#allocation0] sm:$0x3] %vm217, %v216
    %s219 = scalar_lea.vmem %s0, 3
    %v220 = vld [vmem:[%s219] sm:$0x1]
    %s221 = scalar_lea.vmem %s0, 34
    %v222 = vld [vmem:[%s221] sm:$0x2]
    %vm223 = vcmask 1041409
    %v224 = vsel %vm223, %v222, %v220
    %225 = vrot.lane.b32.xlu0 %v224, 12
    %v226 = vpop.permute.xlu0 %225
    %vm227 = vcmask 130144
    %228 = vst.msk [vmem:[#allocation0] sm:$0x3] %vm227, %v226
    %s229 = scalar_lea.vmem %s0, 2
    %v230 = vld [vmem:[%s229] sm:$0x1]
    %s231 = scalar_lea.vmem %s0, 33
    %v232 = vld [vmem:[%s231] sm:$0x2]
    %vm233 = vcmask 1041409
    %v234 = vsel %vm233, %v232, %v230
    %235 = vrot.lane.b32.xlu0 %v234, 8
    %v236 = vpop.permute.xlu0 %235
    %vm237 = vcmask 97344
    %238 = vst.msk [vmem:[#allocation0] sm:$0x3] %vm237, %v236
    %s239 = scalar_lea.vmem %s0, 1
    %v240 = vld [vmem:[%s239] sm:$0x1]
    %s241 = scalar_lea.vmem %s0, 32
    %v242 = vld [vmem:[%s241] sm:$0x2]
    %vm243 = vcmask 1041409
    %v244 = vsel %vm243, %v242, %v240
    %245 = vrot.lane.b32.xlu0 %v244, 4
    %v246 = vpop.permute.xlu0 %245
    %vm247 = vcmask 64544
    %248 = vst.msk [vmem:[#allocation0] sm:$0x3] %vm247, %v246
    %s250 = sshllo.u32 0, 2
    %v252 = vld [vmem:[#allocation0] sm:%s250]
    %s253 = sshllo.u32 0, 2
    %254 = vst [vmem:[%s1] sm:%s253] %v252

// kernel: cnn2d_spectral_forward.1
$region0: #{cnn2d_spectral_forward.1}
  #allocation0 [shape = 'u32[]', space=smem, size = 0x4, offset = 0x4, fixed_abs, tag = 'smem constant byte address 0x4 - core index']
  #allocation1 [shape = 'u32[144,128]{1,0:T(1,128)}', space=vmem, size = 0x12000, scoped, tag = 'internal scratch']
  #allocation2 [shape = 'f32[2,12,12,128]{3,2,1,0:T(8,128)}', space=vmem, size = 0x30000, scoped, tag = 'scratch operand']
  %s0 = inlined_call_operand.vmem [shape: f32[2,128], index: 0, kind: input, shape index: {}]
  %s1 = inlined_call_operand.hbm [shape: f32[128,128], index: 1, kind: input, shape index: {}]
  %s2 = inlined_call_operand.hbm [shape: f32[1,128], index: 2, kind: input, shape index: {}]
  %s3 = inlined_call_operand.hbm [shape: f32[25,128,128], index: 3, kind: input, shape index: {}]
  %s4 = inlined_call_operand.hbm [shape: f32[1,128], index: 4, kind: input, shape index: {}]
  %s5 = inlined_call_operand.hbm [shape: f32[16,128,128], index: 5, kind: input, shape index: {}]
  %s6 = inlined_call_operand.hbm [shape: f32[1,128], index: 6, kind: input, shape index: {}]
  %s7 = inlined_call_operand.hbm [shape: f32[1,128], index: 7, kind: input, shape index: {}]
  %s8 = inlined_call_operand.hbm [shape: f32[1,128], index: 8, kind: input, shape index: {}]
  %s9 = inlined_call_operand.hbm [shape: f32[128,128], index: 9, kind: input, shape index: {}]
  %s10 = inlined_call_operand.hbm [shape: f32[1,128], index: 10, kind: input, shape index: {}]
  %s11 = inlined_call_operand.hbm [shape: f32[2,128], index: 11, kind: output, shape index: {}]
  %s12 = sld [smem:[#allocation0]]
  $region94: #{cnn2d_spectral_forward.1} parent=0
    _
  %s14 = ssub.s32 1, %s12
  %s15 = scalar_select 0, %s14, %s12
  $region1: #{cnn2d_spectral_forward.1} parent=0
    #allocation3 [shape = 'u8[65536]{0}', space=vmem, size = 0x10000, scoped, tag = 'input window, operand 1, single buffered']
    #allocation4 [shape = 's32[1]{0}', space=sflag, size = 0x4, scoped, tag = 'scoped memory for cnn2d_spectral_forward.1']
    #allocation5 [shape = 's32[1]{0}', space=sflag, size = 0x4, scoped, tag = 'scoped memory for cnn2d_spectral_forward.1']
    #allocation6 [shape = 'u8[512]{0}', space=vmem, size = 0x400, scoped, tag = 'input window, operand 2, single buffered']
    #allocation7 [shape = 's32[1]{0}', space=sflag, size = 0x4, scoped, tag = 'scoped memory for cnn2d_spectral_forward.1']
    #allocation8 [shape = 'u8[1638400]{0}', space=vmem, size = 0x190000, scoped, tag = 'input window, operand 3, single buffered']
    #allocation9 [shape = 'u8[512]{0}', space=vmem, size = 0x400, scoped, tag = 'input window, operand 4, single buffered']
    #allocation10 [shape = 's32[1]{0}', space=sflag, size = 0x4, scoped, tag = 'scoped memory for cnn2d_spectral_forward.1']
    #allocation11 [shape = 'u8[1048576]{0}', space=vmem, size = 0x100000, scoped, tag = 'input window, operand 5, single buffered']
    #allocation12 [shape = 'u8[512]{0}', space=vmem, size = 0x400, scoped, tag = 'input window, operand 6, single buffered']
    #allocation13 [shape = 's32[1]{0}', space=sflag, size = 0x4, scoped, tag = 'scoped memory for cnn2d_spectral_forward.1']
    #allocation14 [shape = 'u8[512]{0}', space=vmem, size = 0x400, scoped, tag = 'input window, operand 7, single buffered']
    #allocation15 [shape = 'u8[512]{0}', space=vmem, size = 0x400, scoped, tag = 'input window, operand 8, single buffered']
    #allocation16 [shape = 's32[1]{0}', space=sflag, size = 0x4, scoped, tag = 'scoped memory for cnn2d_spectral_forward.1']
    #allocation17 [shape = 'u8[65536]{0}', space=vmem, size = 0x10000, scoped, tag = 'input window, operand 9, single buffered']
    #allocation18 [shape = 'u8[512]{0}', space=vmem, size = 0x400, scoped, tag = 'input window, operand 10, single buffered']
    #allocation19 [shape = 's32[1]{0}', space=sflag, size = 0x4, scoped, tag = 'scoped memory for cnn2d_spectral_forward.1']
    #allocation20 [shape = 'u8[1024]{0}', space=vmem, size = 0x400, scoped, tag = 'output window, operand 0, single buffered']
    %16 = vsyncpa [#allocation4], 0
    %17 = vsyncpa [#allocation7], 0
    %18 = vsyncpa [#allocation10], 0
    %19 = vsyncpa [#allocation13], 0
    %20 = vsyncpa [#allocation16], 0
    %21 = vsyncpa [#allocation19], 0
    %22 = vsyncpa [#allocation5], 0
    // Predicated region
    $region2: #{cnn2d_spectral_forward.1} parent=1 // pred_check
      _
    $region3: #{cnn2d_spectral_forward.1} parent=1 // pred_check_branch
      %24 = sbr.rel (0) target = $region5
    $region4: #{cnn2d_spectral_forward.1} parent=1 // pred_region
      _
    $region5: #{cnn2d_spectral_forward.1} parent=1 // pred_fallthru
      _
    // Predicated region
    $region6: #{cnn2d_spectral_forward.1} parent=1 // pred_check
      _
    $region7: #{cnn2d_spectral_forward.1} parent=1 // pred_check_branch
      %26 = sbr.rel (0) target = $region9
    $region8: #{cnn2d_spectral_forward.1} parent=1 // pred_region
      %s28 = ssub.s32 2048, 2048
      %29 = vsyncadd [#allocation4], %s28
      %s30 = sshll.u32 [#allocation3], 4
      %s31 = int_to_ptr.vmem [resolvable:$true] %s30
      %36 = dma.hbm_to_vmem [thread:$0]  %s1, 2048, %s31, [#allocation4], 128, 128, 8
    $region9: #{cnn2d_spectral_forward.1} parent=1 // pred_fallthru
      _
    // Predicated region
    $region10: #{cnn2d_spectral_forward.1} parent=1 // pred_check
      _
    $region11: #{cnn2d_spectral_forward.1} parent=1 // pred_check_branch
      %38 = sbr.rel (0) target = $region13
    $region12: #{cnn2d_spectral_forward.1} parent=1 // pred_region
      %s40 = ssub.s32 16, 16
      %41 = vsyncadd [#allocation7], %s40
      %s43 = sshll.u32 [#allocation6], 4
      %s44 = int_to_ptr.vmem [resolvable:$true] %s43
      %46 = dma.hbm_to_vmem [thread:$0]  %s2, 16, %s44, [#allocation7]
    $region13: #{cnn2d_spectral_forward.1} parent=1 // pred_fallthru
      _
    // Predicated region
    $region14: #{cnn2d_spectral_forward.1} parent=1 // pred_check
      _
    $region15: #{cnn2d_spectral_forward.1} parent=1 // pred_check_branch
      %48 = sbr.rel (0) target = $region17
    $region16: #{cnn2d_spectral_forward.1} parent=1 // pred_region
      %s50 = ssub.s32 51200, 51200
      %51 = vsyncadd [#allocation7], %s50
      %s52 = sshll.u32 [#allocation8], 4
      %s53 = int_to_ptr.vmem [resolvable:$true] %s52
      %58 = dma.hbm_to_vmem [thread:$0]  %s3, 51200, %s53, [#allocation7], 128, 128, 8
    $region17: #{cnn2d_spectral_forward.1} parent=1 // pred_fallthru
      _
    // Predicated region
    $region18: #{cnn2d_spectral_forward.1} parent=1 // pred_check
      _
    $region19: #{cnn2d_spectral_forward.1} parent=1 // pred_check_branch
      %60 = sbr.rel (0) target = $region21
    $region20: #{cnn2d_spectral_forward.1} parent=1 // pred_region
      %s62 = ssub.s32 16, 16
      %63 = vsyncadd [#allocation10], %s62
      %s65 = sshll.u32 [#allocation9], 4
      %s66 = int_to_ptr.vmem [resolvable:$true] %s65
      %68 = dma.hbm_to_vmem [thread:$0]  %s4, 16, %s66, [#allocation10]
    $region21: #{cnn2d_spectral_forward.1} parent=1 // pred_fallthru
      _
    // Predicated region
    $region22: #{cnn2d_spectral_forward.1} parent=1 // pred_check
      _
    $region23: #{cnn2d_spectral_forward.1} parent=1 // pred_check_branch
      %70 = sbr.rel (0) target = $region25
    $region24: #{cnn2d_spectral_forward.1} parent=1 // pred_region
      %s72 = ssub.s32 32768, 32768
      %73 = vsyncadd [#allocation10], %s72
      %s74 = sshll.u32 [#allocation11], 4
      %s75 = int_to_ptr.vmem [resolvable:$true] %s74
      %80 = dma.hbm_to_vmem [thread:$0]  %s5, 32768, %s75, [#allocation10], 128, 128, 8
    $region25: #{cnn2d_spectral_forward.1} parent=1 // pred_fallthru
      _
    // Predicated region
    $region26: #{cnn2d_spectral_forward.1} parent=1 // pred_check
      _
    $region27: #{cnn2d_spectral_forward.1} parent=1 // pred_check_branch
      %82 = sbr.rel (0) target = $region29
    $region28: #{cnn2d_spectral_forward.1} parent=1 // pred_region
      %s84 = ssub.s32 16, 16
      %85 = vsyncadd [#allocation13], %s84
      %s87 = sshll.u32 [#allocation12], 4
      %s88 = int_to_ptr.vmem [resolvable:$true] %s87
      %90 = dma.hbm_to_vmem [thread:$0]  %s6, 16, %s88, [#allocation13]
    $region29: #{cnn2d_spectral_forward.1} parent=1 // pred_fallthru
      _
    // Predicated region
    $region30: #{cnn2d_spectral_forward.1} parent=1 // pred_check
      _
    $region31: #{cnn2d_spectral_forward.1} parent=1 // pred_check_branch
      %92 = sbr.rel (0) target = $region33
    $region32: #{cnn2d_spectral_forward.1} parent=1 // pred_region
      %s94 = ssub.s32 16, 16
      %95 = vsyncadd [#allocation13], %s94
      %s97 = sshll.u32 [#allocation14], 4
      %s98 = int_to_ptr.vmem [resolvable:$true] %s97
      %100 = dma.hbm_to_vmem [thread:$0]  %s7, 16, %s98, [#allocation13]
    $region33: #{cnn2d_spectral_forward.1} parent=1 // pred_fallthru
      _
    // Predicated region
    $region34: #{cnn2d_spectral_forward.1} parent=1 // pred_check
      _
    $region35: #{cnn2d_spectral_forward.1} parent=1 // pred_check_branch
      %102 = sbr.rel (0) target = $region37
    $region36: #{cnn2d_spectral_forward.1} parent=1 // pred_region
      %s104 = ssub.s32 16, 16
      %105 = vsyncadd [#allocation16], %s104
      %s107 = sshll.u32 [#allocation15], 4
      %s108 = int_to_ptr.vmem [resolvable:$true] %s107
      %110 = dma.hbm_to_vmem [thread:$0]  %s8, 16, %s108, [#allocation16]
    $region37: #{cnn2d_spectral_forward.1} parent=1 // pred_fallthru
      _
    // Predicated region
    $region38: #{cnn2d_spectral_forward.1} parent=1 // pred_check
      _
    $region39: #{cnn2d_spectral_forward.1} parent=1 // pred_check_branch
      %112 = sbr.rel (0) target = $region41
    $region40: #{cnn2d_spectral_forward.1} parent=1 // pred_region
      %s114 = ssub.s32 2048, 2048
      %115 = vsyncadd [#allocation16], %s114
      %s116 = sshll.u32 [#allocation17], 4
      %s117 = int_to_ptr.vmem [resolvable:$true] %s116
      %122 = dma.hbm_to_vmem [thread:$0]  %s9, 2048, %s117, [#allocation16], 128, 128, 8
    $region41: #{cnn2d_spectral_forward.1} parent=1 // pred_fallthru
      _
    // Predicated region
    $region42: #{cnn2d_spectral_forward.1} parent=1 // pred_check
      _
    $region43: #{cnn2d_spectral_forward.1} parent=1 // pred_check_branch
      %124 = sbr.rel (0) target = $region45
    $region44: #{cnn2d_spectral_forward.1} parent=1 // pred_region
      %s126 = ssub.s32 16, 16
      %127 = vsyncadd [#allocation19], %s126
      %s129 = sshll.u32 [#allocation18], 4
      %s130 = int_to_ptr.vmem [resolvable:$true] %s129
      %132 = dma.hbm_to_vmem [thread:$0]  %s10, 16, %s130, [#allocation19]
    $region45: #{cnn2d_spectral_forward.1} parent=1 // pred_fallthru
      _
    // Predicated region
    $region46: #{cnn2d_spectral_forward.1} parent=1 // pred_check
      _
    $region47: #{cnn2d_spectral_forward.1} parent=1 // pred_check_branch
      %134 = sbr.rel (0) target = $region49
    $region48: #{cnn2d_spectral_forward.1} parent=1 // pred_region
      %135 = dma.done [#allocation4], 2048
    $region49: #{cnn2d_spectral_forward.1} parent=1 // pred_fallthru
      _
    // Predicated region
    $region50: #{cnn2d_spectral_forward.1} parent=1 // pred_check
      _
    $region51: #{cnn2d_spectral_forward.1} parent=1 // pred_check_branch
      %137 = sbr.rel (0) target = $region53
    $region52: #{cnn2d_spectral_forward.1} parent=1 // pred_region
      %138 = dma.done [#allocation7], 16
    $region53: #{cnn2d_spectral_forward.1} parent=1 // pred_fallthru
      _
    // Predicated region
    $region54: #{cnn2d_spectral_forward.1} parent=1 // pred_check
      _
    $region55: #{cnn2d_spectral_forward.1} parent=1 // pred_check_branch
      %140 = sbr.rel (0) target = $region57
    $region56: #{cnn2d_spectral_forward.1} parent=1 // pred_region
      %141 = dma.done [#allocation7], 51200
    $region57: #{cnn2d_spectral_forward.1} parent=1 // pred_fallthru
      _
    // Predicated region
    $region58: #{cnn2d_spectral_forward.1} parent=1 // pred_check
      _
    $region59: #{cnn2d_spectral_forward.1} parent=1 // pred_check_branch
      %143 = sbr.rel (0) target = $region61
    $region60: #{cnn2d_spectral_forward.1} parent=1 // pred_region
      %144 = dma.done [#allocation10], 16
    $region61: #{cnn2d_spectral_forward.1} parent=1 // pred_fallthru
      _
    // Predicated region
    $region62: #{cnn2d_spectral_forward.1} parent=1 // pred_check
      _
    $region63: #{cnn2d_spectral_forward.1} parent=1 // pred_check_branch
      %146 = sbr.rel (0) target = $region65
    $region64: #{cnn2d_spectral_forward.1} parent=1 // pred_region
      %147 = dma.done [#allocation10], 32768
    $region65: #{cnn2d_spectral_forward.1} parent=1 // pred_fallthru
      _
    // Predicated region
    $region66: #{cnn2d_spectral_forward.1} parent=1 // pred_check
      _
    $region67: #{cnn2d_spectral_forward.1} parent=1 // pred_check_branch
      %149 = sbr.rel (0) target = $region69
    $region68: #{cnn2d_spectral_forward.1} parent=1 // pred_region
      %150 = dma.done [#allocation13], 16
    $region69: #{cnn2d_spectral_forward.1} parent=1 // pred_fallthru
      _
    // Predicated region
    $region70: #{cnn2d_spectral_forward.1} parent=1 // pred_check
      _
    $region71: #{cnn2d_spectral_forward.1} parent=1 // pred_check_branch
      %152 = sbr.rel (0) target = $region73
    $region72: #{cnn2d_spectral_forward.1} parent=1 // pred_region
      %153 = dma.done [#allocation13], 16
    $region73: #{cnn2d_spectral_forward.1} parent=1 // pred_fallthru
      _
    // Predicated region
    $region74: #{cnn2d_spectral_forward.1} parent=1 // pred_check
      _
    $region75: #{cnn2d_spectral_forward.1} parent=1 // pred_check_branch
      %155 = sbr.rel (0) target = $region77
    $region76: #{cnn2d_spectral_forward.1} parent=1 // pred_region
      %156 = dma.done [#allocation16], 16
    $region77: #{cnn2d_spectral_forward.1} parent=1 // pred_fallthru
      _
    // Predicated region
    $region78: #{cnn2d_spectral_forward.1} parent=1 // pred_check
      _
    $region79: #{cnn2d_spectral_forward.1} parent=1 // pred_check_branch
      %158 = sbr.rel (0) target = $region81
    $region80: #{cnn2d_spectral_forward.1} parent=1 // pred_region
      %159 = dma.done [#allocation16], 2048
    $region81: #{cnn2d_spectral_forward.1} parent=1 // pred_fallthru
      _
    // Predicated region
    $region82: #{cnn2d_spectral_forward.1} parent=1 // pred_check
      _
    $region83: #{cnn2d_spectral_forward.1} parent=1 // pred_check_branch
      %161 = sbr.rel (0) target = $region85
    $region84: #{cnn2d_spectral_forward.1} parent=1 // pred_region
      %162 = dma.done [#allocation19], 16
    $region85: #{cnn2d_spectral_forward.1} parent=1 // pred_fallthru
      _
    %v163 = vld [vmem:[#allocation3] sm:$0xff]
    %v164 = vld [vmem:[#allocation3 + $0x8] sm:$0xff]
    %v165 = vld [vmem:[#allocation3 + $0x10] sm:$0xff]
    %v166 = vld [vmem:[#allocation3 + $0x18] sm:$0xff]
    %v167 = vld [vmem:[#allocation3 + $0x20] sm:$0xff]
    %v168 = vld [vmem:[#allocation3 + $0x28] sm:$0xff]
    %v169 = vld [vmem:[#allocation3 + $0x30] sm:$0xff]
    %v170 = vld [vmem:[#allocation3 + $0x38] sm:$0xff]
    %v171 = vld [vmem:[#allocation3 + $0x40] sm:$0xff]
    %v172 = vld [vmem:[#allocation3 + $0x48] sm:$0xff]
    %v173 = vld [vmem:[#allocation3 + $0x50] sm:$0xff]
    %v174 = vld [vmem:[#allocation3 + $0x58] sm:$0xff]
    %v175 = vld [vmem:[#allocation3 + $0x60] sm:$0xff]
    %v176 = vld [vmem:[#allocation3 + $0x68] sm:$0xff]
    %v177 = vld [vmem:[#allocation3 + $0x70] sm:$0xff]
    %v178 = vld [vmem:[#allocation3 + $0x78] sm:$0xff]
    %v179 = vld [vmem:[#allocation6] sm:$0x1]
    %v180 = vld [vmem:[#allocation9] sm:$0x1]
    %v182 = vlaneseq
    %v183 = vshrl.u32 %v182, 7
    %v184 = vsub.s32 0, %v183
    %v185 = vrot.slane %v180, %v184
    %v187 = vld [vmem:[%s0] sm:$0x1]
    %v188 = vlaneseq
    %v189 = vshrl.u32 %v188, 7
    %v190 = vsub.s32 0, %v189
    %v191 = vrot.slane %v187, %v190
    %v193 = vlaneseq
    %v194 = vshrl.u32 %v193, 7
    %v195 = vsub.s32 0, %v194
    %v196 = vrot.slane %v179, %v195
    %198 = vmatprep.subr.mxu0 0.0
    %199 = vmatpush1.msra.mxu0 %v163
    %200 = vmatprep.subr.mxu0 0.0
    %201 = vmatpush1.msra.mxu0 %v164
    %202 = vmatprep.subr.mxu0 0.0
    %203 = vmatpush1.msra.mxu0 %v165
    %204 = vmatprep.subr.mxu0 0.0
    %205 = vmatpush1.msra.mxu0 %v166
    %206 = vmatprep.subr.mxu0 0.0
    %207 = vmatpush1.msra.mxu0 %v167
    %208 = vmatprep.subr.mxu0 0.0
    %209 = vmatpush1.msra.mxu0 %v168
    %210 = vmatprep.subr.mxu0 0.0
    %211 = vmatpush1.msra.mxu0 %v169
    %212 = vmatprep.subr.mxu0 0.0
    %213 = vmatpush1.msra.mxu0 %v170
    %214 = vmatprep.subr.mxu0 0.0
    %215 = vmatpush1.msra.mxu0 %v171
    %216 = vmatprep.subr.mxu0 0.0
    %217 = vmatpush1.msra.mxu0 %v172
    %218 = vmatprep.subr.mxu0 0.0
    %219 = vmatpush1.msra.mxu0 %v173
    %220 = vmatprep.subr.mxu0 0.0
    %221 = vmatpush1.msra.mxu0 %v174
    %222 = vmatprep.subr.mxu0 0.0
    %223 = vmatpush1.msra.mxu0 %v175
    %224 = vmatprep.subr.mxu0 0.0
    %225 = vmatpush1.msra.mxu0 %v176
    %226 = vmatprep.subr.mxu0 0.0
    %227 = vmatpush1.msra.mxu0 %v177
    %228 = vmatprep.subr.mxu0 0.0
    %229 = vmatpush1.msra.mxu0 %v178
    %230 = vmatprep.subr.mxu0 0.0
    %231 = vmatpush1.msra.mxu0 0.0
    %232 = vmatprep.subr.mxu0 0.0
    %233 = vmatpush1.msra.mxu0 0.0
    %234 = vmatprep.subr.mxu0 0.0
    %235 = vmatpush1.msra.mxu0 0.0
    %236 = vmatprep.subr.mxu0 0.0
    %237 = vmatpush1.msra.mxu0 0.0
    %238 = vmatprep.subr.mxu0 0.0
    %239 = vmatpush1.msra.mxu0 0.0
    %240 = vmatprep.subr.mxu0 0.0
    %241 = vmatpush1.msra.mxu0 0.0
    %242 = vmatprep.subr.mxu0 0.0
    %243 = vmatpush1.msra.mxu0 0.0
    %244 = vmatprep.subr.mxu0 0.0
    %245 = vmatpush1.msra.mxu0 0.0
    %246 = vmatprep.subr.mxu0 0.0
    %247 = vmatpush1.msra.mxu0 0.0
    %248 = vmatprep.subr.mxu0 0.0
    %249 = vmatpush1.msra.mxu0 0.0
    %250 = vmatprep.subr.mxu0 0.0
    %251 = vmatpush1.msra.mxu0 0.0
    %252 = vmatprep.subr.mxu0 0.0
    %253 = vmatpush1.msra.mxu0 0.0
    %254 = vmatprep.subr.mxu0 0.0
    %255 = vmatpush1.msra.mxu0 0.0
    %256 = vmatprep.subr.mxu0 0.0
    %257 = vmatpush1.msra.mxu0 0.0
    %258 = vmatprep.subr.mxu0 0.0
    %259 = vmatpush1.msra.mxu0 0.0
    %260 = vmatprep.subr.mxu0 0.0
    %261 = vmatpush1.msra.mxu0 0.0
    %262 = vmatprep.mubr.f32.mxu0 0.0
    %263 = vmatmul.mubr.f32.gmra.mrb[0].mxu0 %v191
    %v264 = vpop.f32.mrb[0].mxu0
    %v265 = vadd.f32 %v196, %v264
    %v266 = vpop.f32.mrb[0].mxu0
    %267 = vmatprep.mubr.f32.mxu0 0.0
    %268 = vmatmul.mubr.f32.gmra.mrb[0].mxu0 %v191
    %v269 = vpop.f32.mrb[0].mxu0
    %v270 = vadd.f32 %v196, %v269
    %v271 = vpop.f32.mrb[0].mxu0
    %272 = vmatprep.mubr.f32.mxu0 0.0
    %273 = vmatmul.mubr.f32.gmra.mrb[0].mxu0 %v191
    %v274 = vpop.f32.mrb[0].mxu0
    %v275 = vadd.f32 %v196, %v274
    %v276 = vpop.f32.mrb[0].mxu0
    %277 = vmatprep.mubr.f32.mxu0 0.0
    %278 = vmatmul.mubr.f32.gmra.mrb[0].mxu0 %v191
    %v279 = vpop.f32.mrb[0].mxu0
    %v280 = vadd.f32 %v196, %v279
    %v281 = vpop.f32.mrb[0].mxu0
    %282 = vmatprep.mubr.f32.mxu0 0.0
    %283 = vmatmul.mubr.f32.gmra.mrb[0].mxu0 %v191
    %v284 = vpop.f32.mrb[0].mxu0
    %v285 = vadd.f32 %v196, %v284
    %v286 = vpop.f32.mrb[0].mxu0
    %287 = vmatprep.mubr.f32.mxu0 0.0
    %288 = vmatmul.mubr.f32.gmra.mrb[0].mxu0 %v191
    %v289 = vpop.f32.mrb[0].mxu0
    %v290 = vadd.f32 %v196, %v289
    %v291 = vpop.f32.mrb[0].mxu0
    %292 = vmatprep.mubr.f32.mxu0 0.0
    %293 = vmatmul.mubr.f32.gmra.mrb[0].mxu0 %v191
    %v294 = vpop.f32.mrb[0].mxu0
    %v295 = vadd.f32 %v196, %v294
    %v296 = vpop.f32.mrb[0].mxu0
    %297 = vmatprep.mubr.f32.mxu0 0.0
    %298 = vmatmul.mubr.f32.gmra.mrb[0].mxu0 %v191
    %v299 = vpop.f32.mrb[0].mxu0
    %v300 = vadd.f32 %v196, %v299
    %v301 = vpop.f32.mrb[0].mxu0
    %302 = vmatprep.mubr.f32.mxu0 0.0
    %303 = vmatmul.mubr.f32.gmra.mrb[0].mxu0 %v191
    %v304 = vpop.f32.mrb[0].mxu0
    %v305 = vadd.f32 %v196, %v304
    %v306 = vpop.f32.mrb[0].mxu0
    %307 = vmatprep.mubr.f32.mxu0 0.0
    %308 = vmatmul.mubr.f32.gmra.mrb[0].mxu0 %v191
    %v309 = vpop.f32.mrb[0].mxu0
    %v310 = vadd.f32 %v196, %v309
    %v311 = vpop.f32.mrb[0].mxu0
    %312 = vmatprep.mubr.f32.mxu0 0.0
    %313 = vmatmul.mubr.f32.gmra.mrb[0].mxu0 %v191
    %v314 = vpop.f32.mrb[0].mxu0
    %v315 = vadd.f32 %v196, %v314
    %v316 = vpop.f32.mrb[0].mxu0
    %317 = vmatprep.mubr.f32.mxu0 0.0
    %318 = vmatmul.mubr.f32.gmra.mrb[0].mxu0 %v191
    %v319 = vpop.f32.mrb[0].mxu0
    %v320 = vadd.f32 %v196, %v319
    %v321 = vpop.f32.mrb[0].mxu0
    %322 = vmatprep.mubr.f32.mxu0 0.0
    %323 = vmatmul.mubr.f32.gmra.mrb[0].mxu0 %v191
    %v324 = vpop.f32.mrb[0].mxu0
    %v325 = vadd.f32 %v196, %v324
    %v326 = vpop.f32.mrb[0].mxu0
    %327 = vmatprep.mubr.f32.mxu0 0.0
    %328 = vmatmul.mubr.f32.gmra.mrb[0].mxu0 %v191
    %v329 = vpop.f32.mrb[0].mxu0
    %v330 = vadd.f32 %v196, %v329
    %v331 = vpop.f32.mrb[0].mxu0
    %332 = vmatprep.mubr.f32.mxu0 0.0
    %333 = vmatmul.mubr.f32.gmra.mrb[0].mxu0 %v191
    %v334 = vpop.f32.mrb[0].mxu0
    %v335 = vadd.f32 %v196, %v334
    %v336 = vpop.f32.mrb[0].mxu0
    %337 = vmatprep.mubr.f32.mxu0 0.0
    %338 = vmatmul.mubr.f32.gmra.mrb[0].mxu0 %v191
    %v339 = vpop.f32.mrb[0].mxu0
    %v340 = vadd.f32 %v196, %v339
    %v341 = vpop.f32.mrb[0].mxu0
    %342 = vmatprep.mubr.f32.mxu0 0.0
    %343 = vmatmul.mubr.f32.gmra.mrb[0].mxu0 %v191
    %v344 = vpop.f32.mrb[0].mxu0
    %v345 = vadd.f32 %v196, %v344
    %v346 = vpop.f32.mrb[0].mxu0
    %347 = vmatprep.mubr.f32.mxu0 0.0
    %348 = vmatmul.mubr.f32.gmra.mrb[0].mxu0 %v191
    %v349 = vpop.f32.mrb[0].mxu0
    %v350 = vadd.f32 %v196, %v349
    %v351 = vpop.f32.mrb[0].mxu0
    %352 = vdwg.mxu0
    %v353 = vmax.f32 %v265, 0.0
    %v354 = vmax.f32 %v270, 0.0
    %v355 = vmax.f32 %v275, 0.0
    %v356 = vmax.f32 %v280, 0.0
    %v357 = vmax.f32 %v285, 0.0
    %v358 = vmax.f32 %v290, 0.0
    %v359 = vmax.f32 %v295, 0.0
    %v360 = vmax.f32 %v300, 0.0
    %v361 = vmax.f32 %v305, 0.0
    %v362 = vmax.f32 %v310, 0.0
    %v363 = vmax.f32 %v315, 0.0
    %v364 = vmax.f32 %v320, 0.0
    %v365 = vmax.f32 %v325, 0.0
    %v366 = vmax.f32 %v330, 0.0
    %v367 = vmax.f32 %v335, 0.0
    %v368 = vmax.f32 %v340, 0.0
    %v369 = vmax.f32 %v345, 0.0
    %v370 = vmax.f32 %v350, 0.0
    %371 = vst [vmem:[#allocation2] sm:$0xff] %v353
    %372 = vst [vmem:[#allocation2 + $0x8] sm:$0xf] %v354
    %s373 = scalar_lea.vmem [#allocation2], 16
    %374 = vst [vmem:[%s373 - $0x4] sm:$0xf0] %v354
    %375 = vst [vmem:[%s373 + $0x4] sm:$0xff] %v355
    %s376 = scalar_lea.vmem [#allocation2], 32
    %377 = vst [vmem:[%s376] sm:$0xff] %v356
    %378 = vst [vmem:[%s376 + $0x8] sm:$0xf] %v357
    %s379 = scalar_lea.vmem [#allocation2], 48
    %380 = vst [vmem:[%s379 - $0x4] sm:$0xf0] %v357
    %381 = vst [vmem:[%s379 + $0x4] sm:$0xff] %v358
    %s382 = scalar_lea.vmem [#allocation2], 64
    %383 = vst [vmem:[%s382] sm:$0xff] %v359
    %384 = vst [vmem:[%s382 + $0x8] sm:$0xf] %v360
    %s385 = scalar_lea.vmem [#allocation2], 80
    %386 = vst [vmem:[%s385 - $0x4] sm:$0xf0] %v360
    %387 = vst [vmem:[%s385 + $0x4] sm:$0xff] %v361
    %s388 = scalar_lea.vmem [#allocation2], 96
    %389 = vst [vmem:[%s388] sm:$0xff] %v362
    %390 = vst [vmem:[%s388 + $0x8] sm:$0xf] %v363
    %s391 = scalar_lea.vmem [#allocation2], 112
    %392 = vst [vmem:[%s391 - $0x4] sm:$0xf0] %v363
    %393 = vst [vmem:[%s391 + $0x4] sm:$0xff] %v364
    %s394 = scalar_lea.vmem [#allocation2], 128
    %395 = vst [vmem:[%s394] sm:$0xff] %v365
    %396 = vst [vmem:[%s394 + $0x8] sm:$0xf] %v366
    %s397 = scalar_lea.vmem [#allocation2], 144
    %398 = vst [vmem:[%s397 - $0x4] sm:$0xf0] %v366
    %399 = vst [vmem:[%s397 + $0x4] sm:$0xff] %v367
    %s400 = scalar_lea.vmem [#allocation2], 160
    %401 = vst [vmem:[%s400] sm:$0xff] %v368
    %402 = vst [vmem:[%s400 + $0x8] sm:$0xf] %v369
    %s403 = scalar_lea.vmem [#allocation2], 176
    %404 = vst [vmem:[%s403 - $0x4] sm:$0xf0] %v369
    %405 = vst [vmem:[%s403 + $0x4] sm:$0xff] %v370
    %v406 = vld [vmem:[#allocation2] sm:$0xff]
    %v407 = vld [vmem:[#allocation2 + $0x10] sm:$0xff]
    %v408 = vld [vmem:[#allocation2 + $0x20] sm:$0xff]
    %v409 = vld [vmem:[#allocation2 + $0x30] sm:$0xff]
    %v410 = vld [vmem:[#allocation2 + $0x40] sm:$0xff]
    %v411 = vld [vmem:[#allocation2 + $0x50] sm:$0xff]
    %v412 = vld [vmem:[#allocation2 + $0x60] sm:$0xff]
    %v413 = vld [vmem:[#allocation2 + $0x70] sm:$0xff]
    %v414 = vld [vmem:[#allocation8] sm:$0xff]
    %v415 = vld [vmem:[#allocation8 + $0x8] sm:$0xff]
    %v416 = vld [vmem:[#allocation8 + $0x10] sm:$0xff]
    %v417 = vld [vmem:[#allocation8 + $0x18] sm:$0xff]
    %v418 = vld [vmem:[#allocation8 + $0x20] sm:$0xff]
    %v419 = vld [vmem:[#allocation8 + $0x28] sm:$0xff]
    %v420 = vld [vmem:[#allocation8 + $0x30] sm:$0xff]
    %v421 = vld [vmem:[#allocation8 + $0x38] sm:$0xff]
    %v422 = vld [vmem:[#allocation8 + $0x40] sm:$0xff]
    %v423 = vld [vmem:[#allocation8 + $0x48] sm:$0xff]
    %v424 = vld [vmem:[#allocation8 + $0x50] sm:$0xff]
    %v425 = vld [vmem:[#allocation8 + $0x58] sm:$0xff]
    %v426 = vld [vmem:[#allocation8 + $0x60] sm:$0xff]
    %v427 = vld [vmem:[#allocation8 + $0x68] sm:$0xff]
    %v428 = vld [vmem:[#allocation8 + $0x70] sm:$0xff]
    %v429 = vld [vmem:[#allocation8 + $0x78] sm:$0xff]
    %430 = vmatprep.subr.mxu0 0.0
    %431 = vmatpush1.msra.mxu0 %v414
    %432 = vmatprep.subr.mxu0 0.0
    %433 = vmatpush1.msra.mxu0 %v415
    %434 = vmatprep.subr.mxu0 0.0
    %435 = vmatpush1.msra.mxu0 %v416
    %436 = vmatprep.subr.mxu0 0.0
    %437 = vmatpush1.msra.mxu0 %v417
    %438 = vmatprep.subr.mxu0 0.0
    %439 = vmatpush1.msra.mxu0 %v418
    %440 = vmatprep.subr.mxu0 0.0
    %441 = vmatpush1.msra.mxu0 %v419
    %442 = vmatprep.subr.mxu0 0.0
    %443 = vmatpush1.msra.mxu0 %v420
    %444 = vmatprep.subr.mxu0 0.0
    %445 = vmatpush1.msra.mxu0 %v421
    %446 = vmatprep.subr.mxu0 0.0
    %447 = vmatpush1.msra.mxu0 %v422
    %448 = vmatprep.subr.mxu0 0.0
    %449 = vmatpush1.msra.mxu0 %v423
    %450 = vmatprep.subr.mxu0 0.0
    %451 = vmatpush1.msra.mxu0 %v424
    %452 = vmatprep.subr.mxu0 0.0
    %453 = vmatpush1.msra.mxu0 %v425
    %454 = vmatprep.subr.mxu0 0.0
    %455 = vmatpush1.msra.mxu0 %v426
    %456 = vmatprep.subr.mxu0 0.0
    %457 = vmatpush1.msra.mxu0 %v427
    %458 = vmatprep.subr.mxu0 0.0
    %459 = vmatpush1.msra.mxu0 %v428
    %460 = vmatprep.subr.mxu0 0.0
    %461 = vmatpush1.msra.mxu0 %v429
    %462 = vmatprep.subr.mxu0 0.0
    %463 = vmatpush1.msra.mxu0 0.0
    %464 = vmatprep.subr.mxu0 0.0
    %465 = vmatpush1.msra.mxu0 0.0
    %466 = vmatprep.subr.mxu0 0.0
    %467 = vmatpush1.msra.mxu0 0.0
    %468 = vmatprep.subr.mxu0 0.0
    %469 = vmatpush1.msra.mxu0 0.0
    %470 = vmatprep.subr.mxu0 0.0
    %471 = vmatpush1.msra.mxu0 0.0
    %472 = vmatprep.subr.mxu0 0.0
    %473 = vmatpush1.msra.mxu0 0.0
    %474 = vmatprep.subr.mxu0 0.0
    %475 = vmatpush1.msra.mxu0 0.0
    %476 = vmatprep.subr.mxu0 0.0
    %477 = vmatpush1.msra.mxu0 0.0
    %478 = vmatprep.subr.mxu0 0.0
    %479 = vmatpush1.msra.mxu0 0.0
    %480 = vmatprep.subr.mxu0 0.0
    %481 = vmatpush1.msra.mxu0 0.0
    %482 = vmatprep.subr.mxu0 0.0
    %483 = vmatpush1.msra.mxu0 0.0
    %484 = vmatprep.subr.mxu0 0.0
    %485 = vmatpush1.msra.mxu0 0.0
    %486 = vmatprep.subr.mxu0 0.0
    %487 = vmatpush1.msra.mxu0 0.0
    %488 = vmatprep.subr.mxu0 0.0
    %489 = vmatpush1.msra.mxu0 0.0
    %490 = vmatprep.subr.mxu0 0.0
    %491 = vmatpush1.msra.mxu0 0.0
    %492 = vmatprep.subr.mxu0 0.0
    %493 = vmatpush1.msra.mxu0 0.0
    %494 = vmatprep.mubr.f32.mxu0 0.0
    %495 = vmatmul.mubr.f32.gmra.mrb[0].mxu0 %v406
    %v496 = vpop.f32.mrb[0].mxu0
    %v497 = vadd.f32 0.0, %v496
    %v498 = vpop.f32.mrb[0].mxu0
    %499 = vmatprep.mubr.f32.mxu0 0.0
    %500 = vmatmul.mubr.f32.gmra.mrb[0].mxu0 %v407
    %v501 = vpop.f32.mrb[0].mxu0
    %v502 = vadd.f32 0.0, %v501
    %v503 = vpop.f32.mrb[0].mxu0
    %504 = vmatprep.mubr.f32.mxu0 0.0
    %505 = vmatmul.mubr.f32.gmra.mrb[0].mxu0 %v408
    %v506 = vpop.f32.mrb[0].mxu0
    %v507 = vadd.f32 0.0, %v506
    %v508 = vpop.f32.mrb[0].mxu0
    %509 = vmatprep.mubr.f32.mxu0 0.0
    %510 = vmatmul.mubr.f32.gmra.mrb[0].mxu0 %v409
    %v511 = vpop.f32.mrb[0].mxu0
    %v512 = vadd.f32 0.0, %v511
    %v513 = vpop.f32.mrb[0].mxu0
    %514 = vmatprep.mubr.f32.mxu0 0.0
    %515 = vmatmul.mubr.f32.gmra.mrb[0].mxu0 %v410
    %v516 = vpop.f32.mrb[0].mxu0
    %v517 = vadd.f32 0.0, %v516
    %v518 = vpop.f32.mrb[0].mxu0
    %519 = vmatprep.mubr.f32.mxu0 0.0
    %520 = vmatmul.mubr.f32.gmra.mrb[0].mxu0 %v411
    %v521 = vpop.f32.mrb[0].mxu0
    %v522 = vadd.f32 0.0, %v521
    %v523 = vpop.f32.mrb[0].mxu0
    %524 = vmatprep.mubr.f32.mxu0 0.0
    %525 = vmatmul.mubr.f32.gmra.mrb[0].mxu0 %v412
    %v526 = vpop.f32.mrb[0].mxu0
    %v527 = vadd.f32 0.0, %v526
    %v528 = vpop.f32.mrb[0].mxu0
    %529 = vmatprep.mubr.f32.mxu0 0.0
    %530 = vmatmul.mubr.f32.gmra.mrb[0].mxu0 %v413
    %v531 = vpop.f32.mrb[0].mxu0
    %v532 = vadd.f32 0.0, %v531
    %v533 = vpop.f32.mrb[0].mxu0
    %534 = vdwg.mxu0
    %v535 = vadd.f32 %v185, %v497
    %v536 = vadd.f32 %v185, %v502
    %v537 = vadd.f32 %v185, %v507
    %v538 = vadd.f32 %v185, %v512
    %v539 = vadd.f32 %v185, %v517
    %v540 = vadd.f32 %v185, %v522
    %v541 = vadd.f32 %v185, %v527
    %v542 = vadd.f32 %v185, %v532
    %v543 = vld [vmem:[#allocation2 + $0x1] sm:$0xff]
    %v544 = vld [vmem:[#allocation2 + $0x11] sm:$0xff]
    %v545 = vld [vmem:[#allocation2 + $0x21] sm:$0xff]
    %v546 = vld [vmem:[#allocation2 + $0x31] sm:$0xff]
    %v547 = vld [vmem:[#allocation2 + $0x41] sm:$0xff]
    %v548 = vld [vmem:[#allocation2 + $0x51] sm:$0xff]
    %v549 = vld [vmem:[#allocation2 + $0x61] sm:$0xff]
    %v550 = vld [vmem:[#allocation2 + $0x71] sm:$0xff]
    %s551 = scalar_lea.vmem [#allocation8], 128
    %v552 = vld [vmem:[%s551] sm:$0xff]
    %v553 = vld [vmem:[%s551 + $0x8] sm:$0xff]
    %v554 = vld [vmem:[%s551 + $0x10] sm:$0xff]
    %v555 = vld [vmem:[%s551 + $0x18] sm:$0xff]
    %v556 = vld [vmem:[%s551 + $0x20] sm:$0xff]
    %v557 = vld [vmem:[%s551 + $0x28] sm:$0xff]
    %v558 = vld [vmem:[%s551 + $0x30] sm:$0xff]
    %v559 = vld [vmem:[%s551 + $0x38] sm:$0xff]
    %v560 = vld [vmem:[%s551 + $0x40] sm:$0xff]
    %v561 = vld [vmem:[%s551 + $0x48] sm:$0xff]
    %v562 = vld [vmem:[%s551 + $0x50] sm:$0xff]
    %v563 = vld [vmem:[%s551 + $0x58] sm:$0xff]
    %v564 = vld [vmem:[%s551 + $0x60] sm:$0xff]
    %v565 = vld [vmem:[%s551 + $0x68] sm:$0xff]
    %v566 = vld [vmem:[%s551 + $0x70] sm:$0xff]
    %v567 = vld [vmem:[%s551 + $0x78] sm:$0xff]
    %568 = vmatprep.subr.mxu0 0.0
    %569 = vmatpush1.msra.mxu0 %v552
    %570 = vmatprep.subr.mxu0 0.0
    %571 = vmatpush1.msra.mxu0 %v553
    %572 = vmatprep.subr.mxu0 0.0
    %573 = vmatpush1.msra.mxu0 %v554
    %574 = vmatprep.subr.mxu0 0.0
    %575 = vmatpush1.msra.mxu0 %v555
    %576 = vmatprep.subr.mxu0 0.0
    %577 = vmatpush1.msra.mxu0 %v556
    %578 = vmatprep.subr.mxu0 0.0
    %579 = vmatpush1.msra.mxu0 %v557
    %580 = vmatprep.subr.mxu0 0.0
    %581 = vmatpush1.msra.mxu0 %v558
    %582 = vmatprep.subr.mxu0 0.0
    %583 = vmatpush1.msra.mxu0 %v559
    %584 = vmatprep.subr.mxu0 0.0
    %585 = vmatpush1.msra.mxu0 %v560
    %586 = vmatprep.subr.mxu0 0.0
    %587 = vmatpush1.msra.mxu0 %v561
    %588 = vmatprep.subr.mxu0 0.0
    %589 = vmatpush1.msra.mxu0 %v562
    %590 = vmatprep.subr.mxu0 0.0
    %591 = vmatpush1.msra.mxu0 %v563
    %592 = vmatprep.subr.mxu0 0.0
    %593 = vmatpush1.msra.mxu0 %v564
    %594 = vmatprep.subr.mxu0 0.0
    %595 = vmatpush1.msra.mxu0 %v565
    %596 = vmatprep.subr.mxu0 0.0
    %597 = vmatpush1.msra.mxu0 %v566
    %598 = vmatprep.subr.mxu0 0.0
    %599 = vmatpush1.msra.mxu0 %v567
    %600 = vmatprep.subr.mxu0 0.0
    %601 = vmatpush1.msra.mxu0 0.0
    %602 = vmatprep.subr.mxu0 0.0
    %603 = vmatpush1.msra.mxu0 0.0
    %604 = vmatprep.subr.mxu0 0.0
    %605 = vmatpush1.msra.mxu0 0.0
    %606 = vmatprep.subr.mxu0 0.0
    %607 = vmatpush1.msra.mxu0 0.0
    %608 = vmatprep.subr.mxu0 0.0
    %609 = vmatpush1.msra.mxu0 0.0
    %610 = vmatprep.subr.mxu0 0.0
    %611 = vmatpush1.msra.mxu0 0.0
    %612 = vmatprep.subr.mxu0 0.0
    %613 = vmatpush1.msra.mxu0 0.0
    %614 = vmatprep.subr.mxu0 0.0
    %615 = vmatpush1.msra.mxu0 0.0
    %616 = vmatprep.subr.mxu0 0.0
    %617 = vmatpush1.msra.mxu0 0.0
    %618 = vmatprep.subr.mxu0 0.0
    %619 = vmatpush1.msra.mxu0 0.0
    %620 = vmatprep.subr.mxu0 0.0
    %621 = vmatpush1.msra.mxu0 0.0
    %622 = vmatprep.subr.mxu0 0.0
    %623 = vmatpush1.msra.mxu0 0.0
    %624 = vmatprep.subr.mxu0 0.0
    %625 = vmatpush1.msra.mxu0 0.0
    %626 = vmatprep.subr.mxu0 0.0
    %627 = vmatpush1.msra.mxu0 0.0
    %628 = vmatprep.subr.mxu0 0.0
    %629 = vmatpush1.msra.mxu0 0.0
    %630 = vmatprep.subr.mxu0 0.0
    %631 = vmatpush1.msra.mxu0 0.0
    %632 = vmatprep.mubr.f32.mxu0 0.0
    %633 = vmatmul.mubr.f32.gmra.mrb[0].mxu0 %v543
    %v634 = vpop.f32.mrb[0].mxu0
    %v635 = vadd.f32 0.0, %v634
    %v636 = vpop.f32.mrb[0].mxu0
    %637 = vmatprep.mubr.f32.mxu0 0.0
    %638 = vmatmul.mubr.f32.gmra.mrb[0].mxu0 %v544
    %v639 = vpop.f32.mrb[0].mxu0
    %v640 = vadd.f32 0.0, %v639
    %v641 = vpop.f32.mrb[0].mxu0
    %642 = vmatprep.mubr.f32.mxu0 0.0
    %643 = vmatmul.mubr.f32.gmra.mrb[0].mxu0 %v545
    %v644 = vpop.f32.mrb[0].mxu0
    %v645 = vadd.f32 0.0, %v644
    %v646 = vpop.f32.mrb[0].mxu0
    %647 = vmatprep.mubr.f32.mxu0 0.0
    %648 = vmatmul.mubr.f32.gmra.mrb[0].mxu0 %v546
    %v649 = vpop.f32.mrb[0].mxu0
    %v650 = vadd.f32 0.0, %v649
    %v651 = vpop.f32.mrb[0].mxu0
    %652 = vmatprep.mubr.f32.mxu0 0.0
    %653 = vmatmul.mubr.f32.gmra.mrb[0].mxu0 %v547
    %v654 = vpop.f32.mrb[0].mxu0
    %v655 = vadd.f32 0.0, %v654
    %v656 = vpop.f32.mrb[0].mxu0
    %657 = vmatprep.mubr.f32.mxu0 0.0
    %658 = vmatmul.mubr.f32.gmra.mrb[0].mxu0 %v548
    %v659 = vpop.f32.mrb[0].mxu0
    %v660 = vadd.f32 0.0, %v659
    %v661 = vpop.f32.mrb[0].mxu0
    %662 = vmatprep.mubr.f32.mxu0 0.0
    %663 = vmatmul.mubr.f32.gmra.mrb[0].mxu0 %v549
    %v664 = vpop.f32.mrb[0].mxu0
    %v665 = vadd.f32 0.0, %v664
    %v666 = vpop.f32.mrb[0].mxu0
    %667 = vmatprep.mubr.f32.mxu0 0.0
    %668 = vmatmul.mubr.f32.gmra.mrb[0].mxu0 %v550
    %v669 = vpop.f32.mrb[0].mxu0
    %v670 = vadd.f32 0.0, %v669
    %v671 = vpop.f32.mrb[0].mxu0
    %672 = vdwg.mxu0
    %v673 = vadd.f32 %v535, %v635
    %v674 = vadd.f32 %v536, %v640
    %v675 = vadd.f32 %v537, %v645
    %v676 = vadd.f32 %v538, %v650
    %v677 = vadd.f32 %v539, %v655
    %v678 = vadd.f32 %v540, %v660
    %v679 = vadd.f32 %v541, %v665
    %v680 = vadd.f32 %v542, %v670
    %v681 = vld [vmem:[#allocation2 + $0x2] sm:$0xff]
    %v682 = vld [vmem:[#allocation2 + $0x12] sm:$0xff]
    %v683 = vld [vmem:[#allocation2 + $0x22] sm:$0xff]
    %v684 = vld [vmem:[#allocation2 + $0x32] sm:$0xff]
    %v685 = vld [vmem:[#allocation2 + $0x42] sm:$0xff]
    %v686 = vld [vmem:[#allocation2 + $0x52] sm:$0xff]
    %v687 = vld [vmem:[#allocation2 + $0x62] sm:$0xff]
    %v688 = vld [vmem:[#allocation2 + $0x72] sm:$0xff]
    %s689 = scalar_lea.vmem [#allocation8], 256
    %v690 = vld [vmem:[%s689] sm:$0xff]
    %v691 = vld [vmem:[%s689 + $0x8] sm:$0xff]
    %v692 = vld [vmem:[%s689 + $0x10] sm:$0xff]
    %v693 = vld [vmem:[%s689 + $0x18] sm:$0xff]
    %v694 = vld [vmem:[%s689 + $0x20] sm:$0xff]
    %v695 = vld [vmem:[%s689 + $0x28] sm:$0xff]
    %v696 = vld [vmem:[%s689 + $0x30] sm:$0xff]
    %v697 = vld [vmem:[%s689 + $0x38] sm:$0xff]
    %v698 = vld [vmem:[%s689 + $0x40] sm:$0xff]
    %v699 = vld [vmem:[%s689 + $0x48] sm:$0xff]
    %v700 = vld [vmem:[%s689 + $0x50] sm:$0xff]
    %v701 = vld [vmem:[%s689 + $0x58] sm:$0xff]
    %v702 = vld [vmem:[%s689 + $0x60] sm:$0xff]
    %v703 = vld [vmem:[%s689 + $0x68] sm:$0xff]
    %v704 = vld [vmem:[%s689 + $0x70] sm:$0xff]
    %v705 = vld [vmem:[%s689 + $0x78] sm:$0xff]
    %706 = vmatprep.subr.mxu0 0.0
    %707 = vmatpush1.msra.mxu0 %v690
    %708 = vmatprep.subr.mxu0 0.0
    %709 = vmatpush1.msra.mxu0 %v691
    %710 = vmatprep.subr.mxu0 0.0
    %711 = vmatpush1.msra.mxu0 %v692
    %712 = vmatprep.subr.mxu0 0.0
    %713 = vmatpush1.msra.mxu0 %v693
    %714 = vmatprep.subr.mxu0 0.0
    %715 = vmatpush1.msra.mxu0 %v694
    %716 = vmatprep.subr.mxu0 0.0
    %717 = vmatpush1.msra.mxu0 %v695
    %718 = vmatprep.subr.mxu0 0.0
    %719 = vmatpush1.msra.mxu0 %v696
    %720 = vmatprep.subr.mxu0 0.0
    %721 = vmatpush1.msra.mxu0 %v697
    %722 = vmatprep.subr.mxu0 0.0
    %723 = vmatpush1.msra.mxu0 %v698
    %724 = vmatprep.subr.mxu0 0.0
    %725 = vmatpush1.msra.mxu0 %v699
    %726 = vmatprep.subr.mxu0 0.0
    %727 = vmatpush1.msra.mxu0 %v700
    %728 = vmatprep.subr.mxu0 0.0
    %729 = vmatpush1.msra.mxu0 %v701
    %730 = vmatprep.subr.mxu0 0.0
    %731 = vmatpush1.msra.mxu0 %v702
    %732 = vmatprep.subr.mxu0 0.0
    %733 = vmatpush1.msra.mxu0 %v703
    %734 = vmatprep.subr.mxu0 0.0
    %735 = vmatpush1.msra.mxu0 %v704
    %736 = vmatprep.subr.mxu0 0.0
    %737 = vmatpush1.msra.mxu0 %v705
    %738 = vmatprep.subr.mxu0 0.0
    %739 = vmatpush1.msra.mxu0 0.0
    %740 = vmatprep.subr.mxu0 0.0
    %741 = vmatpush1.msra.mxu0 0.0
    %742 = vmatprep.subr.mxu0 0.0
    %743 = vmatpush1.msra.mxu0 0.0
    %744 = vmatprep.subr.mxu0 0.0
    %745 = vmatpush1.msra.mxu0 0.0
    %746 = vmatprep.subr.mxu0 0.0
    %747 = vmatpush1.msra.mxu0 0.0
    %748 = vmatprep.subr.mxu0 0.0
    %749 = vmatpush1.msra.mxu0 0.0
    %750 = vmatprep.subr.mxu0 0.0
    %751 = vmatpush1.msra.mxu0 0.0
    %752 = vmatprep.subr.mxu0 0.0
    %753 = vmatpush1.msra.mxu0 0.0
    %754 = vmatprep.subr.mxu0 0.0
    %755 = vmatpush1.msra.mxu0 0.0
    %756 = vmatprep.subr.mxu0 0.0
    %757 = vmatpush1.msra.mxu0 0.0
    %758 = vmatprep.subr.mxu0 0.0
    %759 = vmatpush1.msra.mxu0 0.0
    %760 = vmatprep.subr.mxu0 0.0
    %761 = vmatpush1.msra.mxu0 0.0
    %762 = vmatprep.subr.mxu0 0.0
    %763 = vmatpush1.msra.mxu0 0.0
    %764 = vmatprep.subr.mxu0 0.0
    %765 = vmatpush1.msra.mxu0 0.0
    %766 = vmatprep.subr.mxu0 0.0
    %767 = vmatpush1.msra.mxu0 0.0
    %768 = vmatprep.subr.mxu0 0.0
    %769 = vmatpush1.msra.mxu0 0.0
    %770 = vmatprep.mubr.f32.mxu0 0.0
    %771 = vmatmul.mubr.f32.gmra.mrb[0].mxu0 %v681
    %v772 = vpop.f32.mrb[0].mxu0
    %v773 = vadd.f32 0.0, %v772
    %v774 = vpop.f32.mrb[0].mxu0
    %775 = vmatprep.mubr.f32.mxu0 0.0
    %776 = vmatmul.mubr.f32.gmra.mrb[0].mxu0 %v682
    %v777 = vpop.f32.mrb[0].mxu0
    %v778 = vadd.f32 0.0, %v777
    %v779 = vpop.f32.mrb[0].mxu0
    %780 = vmatprep.mubr.f32.mxu0 0.0
    %781 = vmatmul.mubr.f32.gmra.mrb[0].mxu0 %v683
    %v782 = vpop.f32.mrb[0].mxu0
    %v783 = vadd.f32 0.0, %v782
    %v784 = vpop.f32.mrb[0].mxu0
    %785 = vmatprep.mubr.f32.mxu0 0.0
    %786 = vmatmul.mubr.f32.gmra.mrb[0].mxu0 %v684
    %v787 = vpop.f32.mrb[0].mxu0
    %v788 = vadd.f32 0.0, %v787
    %v789 = vpop.f32.mrb[0].mxu0
    %790 = vmatprep.mubr.f32.mxu0 0.0
    %791 = vmatmul.mubr.f32.gmra.mrb[0].mxu0 %v685
    %v792 = vpop.f32.mrb[0].mxu0
    %v793 = vadd.f32 0.0, %v792
    %v794 = vpop.f32.mrb[0].mxu0
    %795 = vmatprep.mubr.f32.mxu0 0.0
    %796 = vmatmul.mubr.f32.gmra.mrb[0].mxu0 %v686
    %v797 = vpop.f32.mrb[0].mxu0
    %v798 = vadd.f32 0.0, %v797
    %v799 = vpop.f32.mrb[0].mxu0
    %800 = vmatprep.mubr.f32.mxu0 0.0
    %801 = vmatmul.mubr.f32.gmra.mrb[0].mxu0 %v687
    %v802 = vpop.f32.mrb[0].mxu0
    %v803 = vadd.f32 0.0, %v802
    %v804 = vpop.f32.mrb[0].mxu0
    %805 = vmatprep.mubr.f32.mxu0 0.0
    %806 = vmatmul.mubr.f32.gmra.mrb[0].mxu0 %v688
    %v807 = vpop.f32.mrb[0].mxu0
    %v808 = vadd.f32 0.0, %v807
    %v809 = vpop.f32.mrb[0].mxu0
    %810 = vdwg.mxu0
    %v811 = vadd.f32 %v673, %v773
    %v812 = vadd.f32 %v674, %v778
    %v813 = vadd.f32 %v675, %v783
    %v814 = vadd.f32 %v676, %v788
    %v815 = vadd.f32 %v677, %v793
    %v816 = vadd.f32 %v678, %v798
    %v817 = vadd.f32 %v679, %v803
    %v818 = vadd.f32 %v680, %v808
    %v819 = vld [vmem:[#allocation2 + $0x3] sm:$0xff]
    %v820 = vld [vmem:[#allocation2 + $0x13] sm:$0xff]
    %v821 = vld [vmem:[#allocation2 + $0x23] sm:$0xff]
    %v822 = vld [vmem:[#allocation2 + $0x33] sm:$0xff]
    %v823 = vld [vmem:[#allocation2 + $0x43] sm:$0xff]
    %v824 = vld [vmem:[#allocation2 + $0x53] sm:$0xff]
    %v825 = vld [vmem:[#allocation2 + $0x63] sm:$0xff]
    %v826 = vld [vmem:[#allocation2 + $0x73] sm:$0xff]
    %s827 = scalar_lea.vmem [#allocation8], 384
    %v828 = vld [vmem:[%s827] sm:$0xff]
    %v829 = vld [vmem:[%s827 + $0x8] sm:$0xff]
    %v830 = vld [vmem:[%s827 + $0x10] sm:$0xff]
    %v831 = vld [vmem:[%s827 + $0x18] sm:$0xff]
    %v832 = vld [vmem:[%s827 + $0x20] sm:$0xff]
    %v833 = vld [vmem:[%s827 + $0x28] sm:$0xff]
    %v834 = vld [vmem:[%s827 + $0x30] sm:$0xff]
    %v835 = vld [vmem:[%s827 + $0x38] sm:$0xff]
    %v836 = vld [vmem:[%s827 + $0x40] sm:$0xff]
    %v837 = vld [vmem:[%s827 + $0x48] sm:$0xff]
    %v838 = vld [vmem:[%s827 + $0x50] sm:$0xff]
    %v839 = vld [vmem:[%s827 + $0x58] sm:$0xff]
    %v840 = vld [vmem:[%s827 + $0x60] sm:$0xff]
    %v841 = vld [vmem:[%s827 + $0x68] sm:$0xff]
    %v842 = vld [vmem:[%s827 + $0x70] sm:$0xff]
    %v843 = vld [vmem:[%s827 + $0x78] sm:$0xff]
    %844 = vmatprep.subr.mxu0 0.0
    %845 = vmatpush1.msra.mxu0 %v828
    %846 = vmatprep.subr.mxu0 0.0
    %847 = vmatpush1.msra.mxu0 %v829
    %848 = vmatprep.subr.mxu0 0.0
    %849 = vmatpush1.msra.mxu0 %v830
    %850 = vmatprep.subr.mxu0 0.0
    %851 = vmatpush1.msra.mxu0 %v831
    %852 = vmatprep.subr.mxu0 0.0
    %853 = vmatpush1.msra.mxu0 %v832
    %854 = vmatprep.subr.mxu0 0.0
    %855 = vmatpush1.msra.mxu0 %v833
    %856 = vmatprep.subr.mxu0 0.0
    %857 = vmatpush1.msra.mxu0 %v834
    %858 = vmatprep.subr.mxu0 0.0
    %859 = vmatpush1.msra.mxu0 %v835
    %860 = vmatprep.subr.mxu0 0.0
    %861 = vmatpush1.msra.mxu0 %v836
    %862 = vmatprep.subr.mxu0 0.0
    %863 = vmatpush1.msra.mxu0 %v837
    %864 = vmatprep.subr.mxu0 0.0
    %865 = vmatpush1.msra.mxu0 %v838
    %866 = vmatprep.subr.mxu0 0.0
    %867 = vmatpush1.msra.mxu0 %v839
    %868 = vmatprep.subr.mxu0 0.0
    %869 = vmatpush1.msra.mxu0 %v840
    %870 = vmatprep.subr.mxu0 0.0
    %871 = vmatpush1.msra.mxu0 %v841
    %872 = vmatprep.subr.mxu0 0.0
    %873 = vmatpush1.msra.mxu0 %v842
    %874 = vmatprep.subr.mxu0 0.0
    %875 = vmatpush1.msra.mxu0 %v843
    %876 = vmatprep.subr.mxu0 0.0
    %877 = vmatpush1.msra.mxu0 0.0
    %878 = vmatprep.subr.mxu0 0.0
    %879 = vmatpush1.msra.mxu0 0.0
    %880 = vmatprep.subr.mxu0 0.0
    %881 = vmatpush1.msra.mxu0 0.0
    %882 = vmatprep.subr.mxu0 0.0
    %883 = vmatpush1.msra.mxu0 0.0
    %884 = vmatprep.subr.mxu0 0.0
    %885 = vmatpush1.msra.mxu0 0.0
    %886 = vmatprep.subr.mxu0 0.0
    %887 = vmatpush1.msra.mxu0 0.0
    %888 = vmatprep.subr.mxu0 0.0
    %889 = vmatpush1.msra.mxu0 0.0
    %890 = vmatprep.subr.mxu0 0.0
    %891 = vmatpush1.msra.mxu0 0.0
    %892 = vmatprep.subr.mxu0 0.0
    %893 = vmatpush1.msra.mxu0 0.0
    %894 = vmatprep.subr.mxu0 0.0
    %895 = vmatpush1.msra.mxu0 0.0
    %896 = vmatprep.subr.mxu0 0.0
    %897 = vmatpush1.msra.mxu0 0.0
    %898 = vmatprep.subr.mxu0 0.0
    %899 = vmatpush1.msra.mxu0 0.0
    %900 = vmatprep.subr.mxu0 0.0
    %901 = vmatpush1.msra.mxu0 0.0
    %902 = vmatprep.subr.mxu0 0.0
    %903 = vmatpush1.msra.mxu0 0.0
    %904 = vmatprep.subr.mxu0 0.0
    %905 = vmatpush1.msra.mxu0 0.0
    %906 = vmatprep.subr.mxu0 0.0
    %907 = vmatpush1.msra.mxu0 0.0
    %908 = vmatprep.mubr.f32.mxu0 0.0
    %909 = vmatmul.mubr.f32.gmra.mrb[0].mxu0 %v819
    %v910 = vpop.f32.mrb[0].mxu0
    %v911 = vadd.f32 0.0, %v910
    %v912 = vpop.f32.mrb[0].mxu0
    %913 = vmatprep.mubr.f32.mxu0 0.0
    %914 = vmatmul.mubr.f32.gmra.mrb[0].mxu0 %v820
    %v915 = vpop.f32.mrb[0].mxu0
    %v916 = vadd.f32 0.0, %v915
    %v917 = vpop.f32.mrb[0].mxu0
    %918 = vmatprep.mubr.f32.mxu0 0.0
    %919 = vmatmul.mubr.f32.gmra.mrb[0].mxu0 %v821
    %v920 = vpop.f32.mrb[0].mxu0
    %v921 = vadd.f32 0.0, %v920
    %v922 = vpop.f32.mrb[0].mxu0
    %923 = vmatprep.mubr.f32.mxu0 0.0
    %924 = vmatmul.mubr.f32.gmra.mrb[0].mxu0 %v822
    %v925 = vpop.f32.mrb[0].mxu0
    %v926 = vadd.f32 0.0, %v925
    %v927 = vpop.f32.mrb[0].mxu0
    %928 = vmatprep.mubr.f32.mxu0 0.0
    %929 = vmatmul.mubr.f32.gmra.mrb[0].mxu0 %v823
    %v930 = vpop.f32.mrb[0].mxu0
    %v931 = vadd.f32 0.0, %v930
    %v932 = vpop.f32.mrb[0].mxu0
    %933 = vmatprep.mubr.f32.mxu0 0.0
    %934 = vmatmul.mubr.f32.gmra.mrb[0].mxu0 %v824
    %v935 = vpop.f32.mrb[0].mxu0
    %v936 = vadd.f32 0.0, %v935
    %v937 = vpop.f32.mrb[0].mxu0
    %938 = vmatprep.mubr.f32.mxu0 0.0
    %939 = vmatmul.mubr.f32.gmra.mrb[0].mxu0 %v825
    %v940 = vpop.f32.mrb[0].mxu0
    %v941 = vadd.f32 0.0, %v940
    %v942 = vpop.f32.mrb[0].mxu0
    %943 = vmatprep.mubr.f32.mxu0 0.0
    %944 = vmatmul.mubr.f32.gmra.mrb[0].mxu0 %v826
    %v945 = vpop.f32.mrb[0].mxu0
    %v946 = vadd.f32 0.0, %v945
    %v947 = vpop.f32.mrb[0].mxu0
    %948 = vdwg.mxu0
    %v949 = vadd.f32 %v811, %v911
    %v950 = vadd.f32 %v812, %v916
    %v951 = vadd.f32 %v813, %v921
    %v952 = vadd.f32 %v814, %v926
    %v953 = vadd.f32 %v815, %v931
    %v954 = vadd.f32 %v816, %v936
    %v955 = vadd.f32 %v817, %v941
    %v956 = vadd.f32 %v818, %v946
    %v957 = vld [vmem:[#allocation2 + $0x4] sm:$0xff]
    %v958 = vld [vmem:[#allocation2 + $0x14] sm:$0xff]
    %v959 = vld [vmem:[#allocation2 + $0x24] sm:$0xff]
    %v960 = vld [vmem:[#allocation2 + $0x34] sm:$0xff]
    %v961 = vld [vmem:[#allocation2 + $0x44] sm:$0xff]
    %v962 = vld [vmem:[#allocation2 + $0x54] sm:$0xff]
    %v963 = vld [vmem:[#allocation2 + $0x64] sm:$0xff]
    %v964 = vld [vmem:[#allocation2 + $0x74] sm:$0xff]
    %s965 = scalar_lea.vmem [#allocation8], 512
    %v966 = vld [vmem:[%s965] sm:$0xff]
    %v967 = vld [vmem:[%s965 + $0x8] sm:$0xff]
    %v968 = vld [vmem:[%s965 + $0x10] sm:$0xff]
    %v969 = vld [vmem:[%s965 + $0x18] sm:$0xff]
    %v970 = vld [vmem:[%s965 + $0x20] sm:$0xff]
    %v971 = vld [vmem:[%s965 + $0x28] sm:$0xff]
    %v972 = vld [vmem:[%s965 + $0x30] sm:$0xff]
    %v973 = vld [vmem:[%s965 + $0x38] sm:$0xff]
    %v974 = vld [vmem:[%s965 + $0x40] sm:$0xff]
    %v975 = vld [vmem:[%s965 + $0x48] sm:$0xff]
    %v976 = vld [vmem:[%s965 + $0x50] sm:$0xff]
    %v977 = vld [vmem:[%s965 + $0x58] sm:$0xff]
    %v978 = vld [vmem:[%s965 + $0x60] sm:$0xff]
    %v979 = vld [vmem:[%s965 + $0x68] sm:$0xff]
    %v980 = vld [vmem:[%s965 + $0x70] sm:$0xff]
    %v981 = vld [vmem:[%s965 + $0x78] sm:$0xff]
    %982 = vmatprep.subr.mxu0 0.0
    %983 = vmatpush1.msra.mxu0 %v966
    %984 = vmatprep.subr.mxu0 0.0
    %985 = vmatpush1.msra.mxu0 %v967
    %986 = vmatprep.subr.mxu0 0.0
    %987 = vmatpush1.msra.mxu0 %v968
    %988 = vmatprep.subr.mxu0 0.0
    %989 = vmatpush1.msra.mxu0 %v969
    %990 = vmatprep.subr.mxu0 0.0
    %991 = vmatpush1.msra.mxu0 %v970
    %992 = vmatprep.subr.mxu0 0.0
    %993 = vmatpush1.msra.mxu0 %v971
    %994 = vmatprep.subr.mxu0 0.0
    %995 = vmatpush1.msra.mxu0 %v972
    %996 = vmatprep.subr.mxu0 0.0
    %997 = vmatpush1.msra.mxu0 %v973
    %998 = vmatprep.subr.mxu0 0.0
    %999 = vmatpush1.msra.mxu0 %v974
    %1000 = vmatprep.subr.mxu0 0.0
    %1001 = vmatpush1.msra.mxu0 %v975
    %1002 = vmatprep.subr.mxu0 0.0
    %1003 = vmatpush1.msra.mxu0 %v976
    %1004 = vmatprep.subr.mxu0 0.0
    %1005 = vmatpush1.msra.mxu0 %v977
    %1006 = vmatprep.subr.mxu0 0.0
    %1007 = vmatpush1.msra.mxu0 %v978
    %1008 = vmatprep.subr.mxu0 0.0
    %1009 = vmatpush1.msra.mxu0 %v979
    %1010 = vmatprep.subr.mxu0 0.0
    %1011 = vmatpush1.msra.mxu0 %v980
    %1012 = vmatprep.subr.mxu0 0.0
    %1013 = vmatpush1.msra.mxu0 %v981
    %1014 = vmatprep.subr.mxu0 0.0
    %1015 = vmatpush1.msra.mxu0 0.0
    %1016 = vmatprep.subr.mxu0 0.0
    %1017 = vmatpush1.msra.mxu0 0.0
    %1018 = vmatprep.subr.mxu0 0.0
    %1019 = vmatpush1.msra.mxu0 0.0
    %1020 = vmatprep.subr.mxu0 0.0
    %1021 = vmatpush1.msra.mxu0 0.0
    %1022 = vmatprep.subr.mxu0 0.0
    %1023 = vmatpush1.msra.mxu0 0.0
    %1024 = vmatprep.subr.mxu0 0.0
    %1025 = vmatpush1.msra.mxu0 0.0
    %1026 = vmatprep.subr.mxu0 0.0
    %1027 = vmatpush1.msra.mxu0 0.0
    %1028 = vmatprep.subr.mxu0 0.0
    %1029 = vmatpush1.msra.mxu0 0.0
    %1030 = vmatprep.subr.mxu0 0.0
    %1031 = vmatpush1.msra.mxu0 0.0
    %1032 = vmatprep.subr.mxu0 0.0
    %1033 = vmatpush1.msra.mxu0 0.0
    %1034 = vmatprep.subr.mxu0 0.0
    %1035 = vmatpush1.msra.mxu0 0.0
    %1036 = vmatprep.subr.mxu0 0.0
    %1037 = vmatpush1.msra.mxu0 0.0
    %1038 = vmatprep.subr.mxu0 0.0
    %1039 = vmatpush1.msra.mxu0 0.0
    %1040 = vmatprep.subr.mxu0 0.0
    %1041 = vmatpush1.msra.mxu0 0.0
    %1042 = vmatprep.subr.mxu0 0.0
    %1043 = vmatpush1.msra.mxu0 0.0
    %1044 = vmatprep.subr.mxu0 0.0
    %1045 = vmatpush1.msra.mxu0 0.0
    %1046 = vmatprep.mubr.f32.mxu0 0.0
    %1047 = vmatmul.mubr.f32.gmra.mrb[0].mxu0 %v957
    %v1048 = vpop.f32.mrb[0].mxu0
    %v1049 = vadd.f32 0.0, %v1048
    %v1050 = vpop.f32.mrb[0].mxu0
    %1051 = vmatprep.mubr.f32.mxu0 0.0
    %1052 = vmatmul.mubr.f32.gmra.mrb[0].mxu0 %v958
    %v1053 = vpop.f32.mrb[0].mxu0
    %v1054 = vadd.f32 0.0, %v1053
    %v1055 = vpop.f32.mrb[0].mxu0
    %1056 = vmatprep.mubr.f32.mxu0 0.0
    %1057 = vmatmul.mubr.f32.gmra.mrb[0].mxu0 %v959
    %v1058 = vpop.f32.mrb[0].mxu0
    %v1059 = vadd.f32 0.0, %v1058
    %v1060 = vpop.f32.mrb[0].mxu0
    %1061 = vmatprep.mubr.f32.mxu0 0.0
    %1062 = vmatmul.mubr.f32.gmra.mrb[0].mxu0 %v960
    %v1063 = vpop.f32.mrb[0].mxu0
    %v1064 = vadd.f32 0.0, %v1063
    %v1065 = vpop.f32.mrb[0].mxu0
    %1066 = vmatprep.mubr.f32.mxu0 0.0
    %1067 = vmatmul.mubr.f32.gmra.mrb[0].mxu0 %v961
    %v1068 = vpop.f32.mrb[0].mxu0
    %v1069 = vadd.f32 0.0, %v1068
    %v1070 = vpop.f32.mrb[0].mxu0
    %1071 = vmatprep.mubr.f32.mxu0 0.0
    %1072 = vmatmul.mubr.f32.gmra.mrb[0].mxu0 %v962
    %v1073 = vpop.f32.mrb[0].mxu0
    %v1074 = vadd.f32 0.0, %v1073
    %v1075 = vpop.f32.mrb[0].mxu0
    %1076 = vmatprep.mubr.f32.mxu0 0.0
    %1077 = vmatmul.mubr.f32.gmra.mrb[0].mxu0 %v963
    %v1078 = vpop.f32.mrb[0].mxu0
    %v1079 = vadd.f32 0.0, %v1078
    %v1080 = vpop.f32.mrb[0].mxu0
    %1081 = vmatprep.mubr.f32.mxu0 0.0
    %1082 = vmatmul.mubr.f32.gmra.mrb[0].mxu0 %v964
    %v1083 = vpop.f32.mrb[0].mxu0
    %v1084 = vadd.f32 0.0, %v1083
    %v1085 = vpop.f32.mrb[0].mxu0
    %1086 = vdwg.mxu0
    %v1087 = vadd.f32 %v949, %v1049
    %v1088 = vadd.f32 %v950, %v1054
    %v1089 = vadd.f32 %v951, %v1059
    %v1090 = vadd.f32 %v952, %v1064
    %v1091 = vadd.f32 %v953, %v1069
    %v1092 = vadd.f32 %v954, %v1074
    %v1093 = vadd.f32 %v955, %v1079
    %v1094 = vadd.f32 %v956, %v1084
    %v1095 = vld [vmem:[%s373] sm:$0xff]
    %v1096 = vld [vmem:[%s373 + $0x10] sm:$0xff]
    %v1097 = vld [vmem:[%s373 + $0x20] sm:$0xff]
    %v1098 = vld [vmem:[%s373 + $0x30] sm:$0xff]
    %v1099 = vld [vmem:[%s373 + $0x40] sm:$0xff]
    %v1100 = vld [vmem:[%s373 + $0x50] sm:$0xff]
    %v1101 = vld [vmem:[%s373 + $0x60] sm:$0xff]
    %v1102 = vld [vmem:[%s373 + $0x70] sm:$0xff]
    %s1103 = scalar_lea.vmem [#allocation8], 640
    %v1104 = vld [vmem:[%s1103] sm:$0xff]
    %v1105 = vld [vmem:[%s1103 + $0x8] sm:$0xff]
    %v1106 = vld [vmem:[%s1103 + $0x10] sm:$0xff]
    %v1107 = vld [vmem:[%s1103 + $0x18] sm:$0xff]
    %v1108 = vld [vmem:[%s1103 + $0x20] sm:$0xff]
    %v1109 = vld [vmem:[%s1103 + $0x28] sm:$0xff]
    %v1110 = vld [vmem:[%s1103 + $0x30] sm:$0xff]
    %v1111 = vld [vmem:[%s1103 + $0x38] sm:$0xff]
    %v1112 = vld [vmem:[%s1103 + $0x40] sm:$0xff]
    %v1113 = vld [vmem:[%s1103 + $0x48] sm:$0xff]
    %v1114 = vld [vmem:[%s1103 + $0x50] sm:$0xff]
    %v1115 = vld [vmem:[%s1103 + $0x58] sm:$0xff]
    %v1116 = vld [vmem:[%s1103 + $0x60] sm:$0xff]
    %v1117 = vld [vmem:[%s1103 + $0x68] sm:$0xff]
    %v1118 = vld [vmem:[%s1103 + $0x70] sm:$0xff]
    %v1119 = vld [vmem:[%s1103 + $0x78] sm:$0xff]
    %1120 = vmatprep.subr.mxu0 0.0
    %1121 = vmatpush1.msra.mxu0 %v1104
    %1122 = vmatprep.subr.mxu0 0.0
    %1123 = vmatpush1.msra.mxu0 %v1105
    %1124 = vmatprep.subr.mxu0 0.0
    %1125 = vmatpush1.msra.mxu0 %v1106
    %1126 = vmatprep.subr.mxu0 0.0
    %1127 = vmatpush1.msra.mxu0 %v1107
    %1128 = vmatprep.subr.mxu0 0.0
    %1129 = vmatpush1.msra.mxu0 %v1108
    %1130 = vmatprep.subr.mxu0 0.0
    %1131 = vmatpush1.msra.mxu0 %v1109
    %1132 = vmatprep.subr.mxu0 0.0
    %1133 = vmatpush1.msra.mxu0 %v1110
    %1134 = vmatprep.subr.mxu0 0.0
    %1135 = vmatpush1.msra.mxu0 %v1111
    %1136 = vmatprep.subr.mxu0 0.0
    %1137 = vmatpush1.msra.mxu0 %v1112
    %1138 = vmatprep.subr.mxu0 0.0
    %1139 = vmatpush1.msra.mxu0 %v1113
    %1140 = vmatprep.subr.mxu0 0.0
    %1141 = vmatpush1.msra.mxu0 %v1114
    %1142 = vmatprep.subr.mxu0 0.0
    %1143 = vmatpush1.msra.mxu0 %v1115
    %1144 = vmatprep.subr.mxu0 0.0
    %1145 = vmatpush1.msra.mxu0 %v1116
    %1146 = vmatprep.subr.mxu0 0.0
    %1147 = vmatpush1.msra.mxu0 %v1117
    %1148 = vmatprep.subr.mxu0 0.0
    %1149 = vmatpush1.msra.mxu0 %v1118
    %1150 = vmatprep.subr.mxu0 0.0
    %1151 = vmatpush1.msra.mxu0 %v1119
    %1152 = vmatprep.subr.mxu0 0.0
    %1153 = vmatpush1.msra.mxu0 0.0
    %1154 = vmatprep.subr.mxu0 0.0
    %1155 = vmatpush1.msra.mxu0 0.0
    %1156 = vmatprep.subr.mxu0 0.0
    %1157 = vmatpush1.msra.mxu0 0.0
    %1158 = vmatprep.subr.mxu0 0.0
    %1159 = vmatpush1.msra.mxu0 0.0
    %1160 = vmatprep.subr.mxu0 0.0
    %1161 = vmatpush1.msra.mxu0 0.0
    %1162 = vmatprep.subr.mxu0 0.0
    %1163 = vmatpush1.msra.mxu0 0.0
    %1164 = vmatprep.subr.mxu0 0.0
    %1165 = vmatpush1.msra.mxu0 0.0
    %1166 = vmatprep.subr.mxu0 0.0
    %1167 = vmatpush1.msra.mxu0 0.0
    %1168 = vmatprep.subr.mxu0 0.0
    %1169 = vmatpush1.msra.mxu0 0.0
    %1170 = vmatprep.subr.mxu0 0.0
    %1171 = vmatpush1.msra.mxu0 0.0
    %1172 = vmatprep.subr.mxu0 0.0
    %1173 = vmatpush1.msra.mxu0 0.0
    %1174 = vmatprep.subr.mxu0 0.0
    %1175 = vmatpush1.msra.mxu0 0.0
    %1176 = vmatprep.subr.mxu0 0.0
    %1177 = vmatpush1.msra.mxu0 0.0
    %1178 = vmatprep.subr.mxu0 0.0
    %1179 = vmatpush1.msra.mxu0 0.0
    %1180 = vmatprep.subr.mxu0 0.0
    %1181 = vmatpush1.msra.mxu0 0.0
    %1182 = vmatprep.subr.mxu0 0.0
    %1183 = vmatpush1.msra.mxu0 0.0
    %1184 = vmatprep.mubr.f32.mxu0 0.0
    %1185 = vmatmul.mubr.f32.gmra.mrb[0].mxu0 %v1095
    %v1186 = vpop.f32.mrb[0].mxu0
    %v1187 = vadd.f32 0.0, %v1186
    %v1188 = vpop.f32.mrb[0].mxu0
    %1189 = vmatprep.mubr.f32.mxu0 0.0
    %1190 = vmatmul.mubr.f32.gmra.mrb[0].mxu0 %v1096
    %v1191 = vpop.f32.mrb[0].mxu0
    %v1192 = vadd.f32 0.0, %v1191
    %v1193 = vpop.f32.mrb[0].mxu0
    %1194 = vmatprep.mubr.f32.mxu0 0.0
    %1195 = vmatmul.mubr.f32.gmra.mrb[0].mxu0 %v1097
    %v1196 = vpop.f32.mrb[0].mxu0
    %v1197 = vadd.f32 0.0, %v1196
    %v1198 = vpop.f32.mrb[0].mxu0
    %1199 = vmatprep.mubr.f32.mxu0 0.0
    %1200 = vmatmul.mubr.f32.gmra.mrb[0].mxu0 %v1098
    %v1201 = vpop.f32.mrb[0].mxu0
    %v1202 = vadd.f32 0.0, %v1201
    %v1203 = vpop.f32.mrb[0].mxu0
    %1204 = vmatprep.mubr.f32.mxu0 0.0
    %1205 = vmatmul.mubr.f32.gmra.mrb[0].mxu0 %v1099
    %v1206 = vpop.f32.mrb[0].mxu0
    %v1207 = vadd.f32 0.0, %v1206
    %v1208 = vpop.f32.mrb[0].mxu0
    %1209 = vmatprep.mubr.f32.mxu0 0.0
    %1210 = vmatmul.mubr.f32.gmra.mrb[0].mxu0 %v1100
    %v1211 = vpop.f32.mrb[0].mxu0
    %v1212 = vadd.f32 0.0, %v1211
    %v1213 = vpop.f32.mrb[0].mxu0
    %1214 = vmatprep.mubr.f32.mxu0 0.0
    %1215 = vmatmul.mubr.f32.gmra.mrb[0].mxu0 %v1101
    %v1216 = vpop.f32.mrb[0].mxu0
    %v1217 = vadd.f32 0.0, %v1216
    %v1218 = vpop.f32.mrb[0].mxu0
    %1219 = vmatprep.mubr.f32.mxu0 0.0
    %1220 = vmatmul.mubr.f32.gmra.mrb[0].mxu0 %v1102
    %v1221 = vpop.f32.mrb[0].mxu0
    %v1222 = vadd.f32 0.0, %v1221
    %v1223 = vpop.f32.mrb[0].mxu0
    %1224 = vdwg.mxu0
    %v1225 = vadd.f32 %v1087, %v1187
    %v1226 = vadd.f32 %v1088, %v1192
    %v1227 = vadd.f32 %v1089, %v1197
    %v1228 = vadd.f32 %v1090, %v1202
    %v1229 = vadd.f32 %v1091, %v1207
    %v1230 = vadd.f32 %v1092, %v1212
    %v1231 = vadd.f32 %v1093, %v1217
    %v1232 = vadd.f32 %v1094, %v1222
    %v1233 = vld [vmem:[%s373 + $0x1] sm:$0xff]
    %v1234 = vld [vmem:[%s373 + $0x11] sm:$0xff]
    %v1235 = vld [vmem:[%s373 + $0x21] sm:$0xff]
    %v1236 = vld [vmem:[%s373 + $0x31] sm:$0xff]
    %v1237 = vld [vmem:[%s373 + $0x41] sm:$0xff]
    %v1238 = vld [vmem:[%s373 + $0x51] sm:$0xff]
    %v1239 = vld [vmem:[%s373 + $0x61] sm:$0xff]
    %v1240 = vld [vmem:[%s373 + $0x71] sm:$0xff]
    %s1241 = scalar_lea.vmem [#allocation8], 768
    %v1242 = vld [vmem:[%s1241] sm:$0xff]
    %v1243 = vld [vmem:[%s1241 + $0x8] sm:$0xff]
    %v1244 = vld [vmem:[%s1241 + $0x10] sm:$0xff]
    %v1245 = vld [vmem:[%s1241 + $0x18] sm:$0xff]
    %v1246 = vld [vmem:[%s1241 + $0x20] sm:$0xff]
    %v1247 = vld [vmem:[%s1241 + $0x28] sm:$0xff]
    %v1248 = vld [vmem:[%s1241 + $0x30] sm:$0xff]
    %v1249 = vld [vmem:[%s1241 + $0x38] sm:$0xff]
    %v1250 = vld [vmem:[%s1241 + $0x40] sm:$0xff]
    %v1251 = vld [vmem:[%s1241 + $0x48] sm:$0xff]
    %v1252 = vld [vmem:[%s1241 + $0x50] sm:$0xff]
    %v1253 = vld [vmem:[%s1241 + $0x58] sm:$0xff]
    %v1254 = vld [vmem:[%s1241 + $0x60] sm:$0xff]
    %v1255 = vld [vmem:[%s1241 + $0x68] sm:$0xff]
    %v1256 = vld [vmem:[%s1241 + $0x70] sm:$0xff]
    %v1257 = vld [vmem:[%s1241 + $0x78] sm:$0xff]
    %1258 = vmatprep.subr.mxu0 0.0
    %1259 = vmatpush1.msra.mxu0 %v1242
    %1260 = vmatprep.subr.mxu0 0.0
    %1261 = vmatpush1.msra.mxu0 %v1243
    %1262 = vmatprep.subr.mxu0 0.0
    %1263 = vmatpush1.msra.mxu0 %v1244
    %1264 = vmatprep.subr.mxu0 0.0
    %1265 = vmatpush1.msra.mxu0 %v1245
    %1266 = vmatprep.subr.mxu0 0.0
    %1267 = vmatpush1.msra.mxu0 %v1246
    %1268 = vmatprep.subr.mxu0 0.0
    %1269 = vmatpush1.msra.mxu0 %v1247
    %1270 = vmatprep.subr.mxu0 0.0
    %1271 = vmatpush1.msra.mxu0 %v1248
    %1272 = vmatprep.subr.mxu0 0.0
    %1273 = vmatpush1.msra.mxu0 %v1249
    %1274 = vmatprep.subr.mxu0 0.0
    %1275 = vmatpush1.msra.mxu0 %v1250
    %1276 = vmatprep.subr.mxu0 0.0
    %1277 = vmatpush1.msra.mxu0 %v1251
    %1278 = vmatprep.subr.mxu0 0.0
    %1279 = vmatpush1.msra.mxu0 %v1252
    %1280 = vmatprep.subr.mxu0 0.0
    %1281 = vmatpush1.msra.mxu0 %v1253
    %1282 = vmatprep.subr.mxu0 0.0
    %1283 = vmatpush1.msra.mxu0 %v1254
    %1284 = vmatprep.subr.mxu0 0.0
    %1285 = vmatpush1.msra.mxu0 %v1255
    %1286 = vmatprep.subr.mxu0 0.0
    %1287 = vmatpush1.msra.mxu0 %v1256
    %1288 = vmatprep.subr.mxu0 0.0
    %1289 = vmatpush1.msra.mxu0 %v1257
    %1290 = vmatprep.subr.mxu0 0.0
    %1291 = vmatpush1.msra.mxu0 0.0
    %1292 = vmatprep.subr.mxu0 0.0
    %1293 = vmatpush1.msra.mxu0 0.0
    %1294 = vmatprep.subr.mxu0 0.0
    %1295 = vmatpush1.msra.mxu0 0.0
    %1296 = vmatprep.subr.mxu0 0.0
    %1297 = vmatpush1.msra.mxu0 0.0
    %1298 = vmatprep.subr.mxu0 0.0
    %1299 = vmatpush1.msra.mxu0 0.0
    %1300 = vmatprep.subr.mxu0 0.0
    %1301 = vmatpush1.msra.mxu0 0.0
    %1302 = vmatprep.subr.mxu0 0.0
    %1303 = vmatpush1.msra.mxu0 0.0
    %1304 = vmatprep.subr.mxu0 0.0
    %1305 = vmatpush1.msra.mxu0 0.0
    %1306 = vmatprep.subr.mxu0 0.0
    %1307 = vmatpush1.msra.mxu0 0.0
    %1308 = vmatprep.subr.mxu0 0.0
    %1309 = vmatpush1.msra.mxu0 0.0
    %1310 = vmatprep.subr.mxu0 0.0
    %1311 = vmatpush1.msra.mxu0 0.0
    %1312 = vmatprep.subr.mxu0 0.0
    %1313 = vmatpush1.msra.mxu0 0.0
    %1314 = vmatprep.subr.mxu0 0.0
    %1315 = vmatpush1.msra.mxu0 0.0
    %1316 = vmatprep.subr.mxu0 0.0
    %1317 = vmatpush1.msra.mxu0 0.0
    %1318 = vmatprep.subr.mxu0 0.0
    %1319 = vmatpush1.msra.mxu0 0.0
    %1320 = vmatprep.subr.mxu0 0.0
    %1321 = vmatpush1.msra.mxu0 0.0
    %1322 = vmatprep.mubr.f32.mxu0 0.0
    %1323 = vmatmul.mubr.f32.gmra.mrb[0].mxu0 %v1233
    %v1324 = vpop.f32.mrb[0].mxu0
    %v1325 = vadd.f32 0.0, %v1324
    %v1326 = vpop.f32.mrb[0].mxu0
    %1327 = vmatprep.mubr.f32.mxu0 0.0
    %1328 = vmatmul.mubr.f32.gmra.mrb[0].mxu0 %v1234
    %v1329 = vpop.f32.mrb[0].mxu0
    %v1330 = vadd.f32 0.0, %v1329
    %v1331 = vpop.f32.mrb[0].mxu0
    %1332 = vmatprep.mubr.f32.mxu0 0.0
    %1333 = vmatmul.mubr.f32.gmra.mrb[0].mxu0 %v1235
    %v1334 = vpop.f32.mrb[0].mxu0
    %v1335 = vadd.f32 0.0, %v1334
    %v1336 = vpop.f32.mrb[0].mxu0
    %1337 = vmatprep.mubr.f32.mxu0 0.0
    %1338 = vmatmul.mubr.f32.gmra.mrb[0].mxu0 %v1236
    %v1339 = vpop.f32.mrb[0].mxu0
    %v1340 = vadd.f32 0.0, %v1339
    %v1341 = vpop.f32.mrb[0].mxu0
    %1342 = vmatprep.mubr.f32.mxu0 0.0
    %1343 = vmatmul.mubr.f32.gmra.mrb[0].mxu0 %v1237
    %v1344 = vpop.f32.mrb[0].mxu0
    %v1345 = vadd.f32 0.0, %v1344
    %v1346 = vpop.f32.mrb[0].mxu0
    %1347 = vmatprep.mubr.f32.mxu0 0.0
    %1348 = vmatmul.mubr.f32.gmra.mrb[0].mxu0 %v1238
    %v1349 = vpop.f32.mrb[0].mxu0
    %v1350 = vadd.f32 0.0, %v1349
    %v1351 = vpop.f32.mrb[0].mxu0
    %1352 = vmatprep.mubr.f32.mxu0 0.0
    %1353 = vmatmul.mubr.f32.gmra.mrb[0].mxu0 %v1239
    %v1354 = vpop.f32.mrb[0].mxu0
    %v1355 = vadd.f32 0.0, %v1354
    %v1356 = vpop.f32.mrb[0].mxu0
    %1357 = vmatprep.mubr.f32.mxu0 0.0
    %1358 = vmatmul.mubr.f32.gmra.mrb[0].mxu0 %v1240
    %v1359 = vpop.f32.mrb[0].mxu0
    %v1360 = vadd.f32 0.0, %v1359
    %v1361 = vpop.f32.mrb[0].mxu0
    %1362 = vdwg.mxu0
    %v1363 = vadd.f32 %v1225, %v1325
    %v1364 = vadd.f32 %v1226, %v1330
    %v1365 = vadd.f32 %v1227, %v1335
    %v1366 = vadd.f32 %v1228, %v1340
    %v1367 = vadd.f32 %v1229, %v1345
    %v1368 = vadd.f32 %v1230, %v1350
    %v1369 = vadd.f32 %v1231, %v1355
    %v1370 = vadd.f32 %v1232, %v1360
    %v1371 = vld [vmem:[%s373 + $0x2] sm:$0xff]
    %v1372 = vld [vmem:[%s373 + $0x12] sm:$0xff]
    %v1373 = vld [vmem:[%s373 + $0x22] sm:$0xff]
    %v1374 = vld [vmem:[%s373 + $0x32] sm:$0xff]
    %v1375 = vld [vmem:[%s373 + $0x42] sm:$0xff]
    %v1376 = vld [vmem:[%s373 + $0x52] sm:$0xff]
    %v1377 = vld [vmem:[%s373 + $0x62] sm:$0xff]
    %v1378 = vld [vmem:[%s373 + $0x72] sm:$0xff]
    %s1379 = scalar_lea.vmem [#allocation8], 896
    %v1380 = vld [vmem:[%s1379] sm:$0xff]
    %v1381 = vld [vmem:[%s1379 + $0x8] sm:$0xff]
    %v1382 = vld [vmem:[%s1379 + $0x10] sm:$0xff]
    %v1383 = vld [vmem:[%s1379 + $0x18] sm:$0xff]
    %v1384 = vld [vmem:[%s1379 + $0x20] sm:$0xff]
    %v1385 = vld [vmem:[%s1379 + $0x28] sm:$0xff]
    %v1386 = vld [vmem:[%s1379 + $0x30] sm:$0xff]
    %v1387 = vld [vmem:[%s1379 + $0x38] sm:$0xff]
    %v1388 = vld [vmem:[%s1379 + $0x40] sm:$0xff]
    %v1389 = vld [vmem:[%s1379 + $0x48] sm:$0xff]
    %v1390 = vld [vmem:[%s1379 + $0x50] sm:$0xff]
    %v1391 = vld [vmem:[%s1379 + $0x58] sm:$0xff]
    %v1392 = vld [vmem:[%s1379 + $0x60] sm:$0xff]
    %v1393 = vld [vmem:[%s1379 + $0x68] sm:$0xff]
    %v1394 = vld [vmem:[%s1379 + $0x70] sm:$0xff]
    %v1395 = vld [vmem:[%s1379 + $0x78] sm:$0xff]
    %1396 = vmatprep.subr.mxu0 0.0
    %1397 = vmatpush1.msra.mxu0 %v1380
    %1398 = vmatprep.subr.mxu0 0.0
    %1399 = vmatpush1.msra.mxu0 %v1381
    %1400 = vmatprep.subr.mxu0 0.0
    %1401 = vmatpush1.msra.mxu0 %v1382
    %1402 = vmatprep.subr.mxu0 0.0
    %1403 = vmatpush1.msra.mxu0 %v1383
    %1404 = vmatprep.subr.mxu0 0.0
    %1405 = vmatpush1.msra.mxu0 %v1384
    %1406 = vmatprep.subr.mxu0 0.0
    %1407 = vmatpush1.msra.mxu0 %v1385
    %1408 = vmatprep.subr.mxu0 0.0
    %1409 = vmatpush1.msra.mxu0 %v1386
    %1410 = vmatprep.subr.mxu0 0.0
    %1411 = vmatpush1.msra.mxu0 %v1387
    %1412 = vmatprep.subr.mxu0 0.0
    %1413 = vmatpush1.msra.mxu0 %v1388
    %1414 = vmatprep.subr.mxu0 0.0
    %1415 = vmatpush1.msra.mxu0 %v1389
    %1416 = vmatprep.subr.mxu0 0.0
    %1417 = vmatpush1.msra.mxu0 %v1390
    %1418 = vmatprep.subr.mxu0 0.0
    %1419 = vmatpush1.msra.mxu0 %v1391
    %1420 = vmatprep.subr.mxu0 0.0
    %1421 = vmatpush1.msra.mxu0 %v1392
    %1422 = vmatprep.subr.mxu0 0.0
    %1423 = vmatpush1.msra.mxu0 %v1393
    %1424 = vmatprep.subr.mxu0 0.0
    %1425 = vmatpush1.msra.mxu0 %v1394
    %1426 = vmatprep.subr.mxu0 0.0
    %1427 = vmatpush1.msra.mxu0 %v1395
    %1428 = vmatprep.subr.mxu0 0.0
    %1429 = vmatpush1.msra.mxu0 0.0
    %1430 = vmatprep.subr.mxu0 0.0
    %1431 = vmatpush1.msra.mxu0 0.0
    %1432 = vmatprep.subr.mxu0 0.0
    %1433 = vmatpush1.msra.mxu0 0.0
    %1434 = vmatprep.subr.mxu0 0.0
    %1435 = vmatpush1.msra.mxu0 0.0
    %1436 = vmatprep.subr.mxu0 0.0
    %1437 = vmatpush1.msra.mxu0 0.0
    %1438 = vmatprep.subr.mxu0 0.0
    %1439 = vmatpush1.msra.mxu0 0.0
    %1440 = vmatprep.subr.mxu0 0.0
    %1441 = vmatpush1.msra.mxu0 0.0
    %1442 = vmatprep.subr.mxu0 0.0
    %1443 = vmatpush1.msra.mxu0 0.0
    %1444 = vmatprep.subr.mxu0 0.0
    %1445 = vmatpush1.msra.mxu0 0.0
    %1446 = vmatprep.subr.mxu0 0.0
    %1447 = vmatpush1.msra.mxu0 0.0
    %1448 = vmatprep.subr.mxu0 0.0
    %1449 = vmatpush1.msra.mxu0 0.0
    %1450 = vmatprep.subr.mxu0 0.0
    %1451 = vmatpush1.msra.mxu0 0.0
    %1452 = vmatprep.subr.mxu0 0.0
    %1453 = vmatpush1.msra.mxu0 0.0
    %1454 = vmatprep.subr.mxu0 0.0
    %1455 = vmatpush1.msra.mxu0 0.0
    %1456 = vmatprep.subr.mxu0 0.0
    %1457 = vmatpush1.msra.mxu0 0.0
    %1458 = vmatprep.subr.mxu0 0.0
    %1459 = vmatpush1.msra.mxu0 0.0
    %1460 = vmatprep.mubr.f32.mxu0 0.0
    %1461 = vmatmul.mubr.f32.gmra.mrb[0].mxu0 %v1371
    %v1462 = vpop.f32.mrb[0].mxu0
    %v1463 = vadd.f32 0.0, %v1462
    %v1464 = vpop.f32.mrb[0].mxu0
    %1465 = vmatprep.mubr.f32.mxu0 0.0
    %1466 = vmatmul.mubr.f32.gmra.mrb[0].mxu0 %v1372
    %v1467 = vpop.f32.mrb[0].mxu0
    %v1468 = vadd.f32 0.0, %v1467
    %v1469 = vpop.f32.mrb[0].mxu0
    %1470 = vmatprep.mubr.f32.mxu0 0.0
    %1471 = vmatmul.mubr.f32.gmra.mrb[0].mxu0 %v1373
    %v1472 = vpop.f32.mrb[0].mxu0
    %v1473 = vadd.f32 0.0, %v1472
    %v1474 = vpop.f32.mrb[0].mxu0
    %1475 = vmatprep.mubr.f32.mxu0 0.0
    %1476 = vmatmul.mubr.f32.gmra.mrb[0].mxu0 %v1374
    %v1477 = vpop.f32.mrb[0].mxu0
    %v1478 = vadd.f32 0.0, %v1477
    %v1479 = vpop.f32.mrb[0].mxu0
    %1480 = vmatprep.mubr.f32.mxu0 0.0
    %1481 = vmatmul.mubr.f32.gmra.mrb[0].mxu0 %v1375
    %v1482 = vpop.f32.mrb[0].mxu0
    %v1483 = vadd.f32 0.0, %v1482
    %v1484 = vpop.f32.mrb[0].mxu0
    %1485 = vmatprep.mubr.f32.mxu0 0.0
    %1486 = vmatmul.mubr.f32.gmra.mrb[0].mxu0 %v1376
    %v1487 = vpop.f32.mrb[0].mxu0
    %v1488 = vadd.f32 0.0, %v1487
    %v1489 = vpop.f32.mrb[0].mxu0
    %1490 = vmatprep.mubr.f32.mxu0 0.0
    %1491 = vmatmul.mubr.f32.gmra.mrb[0].mxu0 %v1377
    %v1492 = vpop.f32.mrb[0].mxu0
    %v1493 = vadd.f32 0.0, %v1492
    %v1494 = vpop.f32.mrb[0].mxu0
    %1495 = vmatprep.mubr.f32.mxu0 0.0
    %1496 = vmatmul.mubr.f32.gmra.mrb[0].mxu0 %v1378
    %v1497 = vpop.f32.mrb[0].mxu0
    %v1498 = vadd.f32 0.0, %v1497
    %v1499 = vpop.f32.mrb[0].mxu0
    %1500 = vdwg.mxu0
    %v1501 = vadd.f32 %v1363, %v1463
    %v1502 = vadd.f32 %v1364, %v1468
    %v1503 = vadd.f32 %v1365, %v1473
    %v1504 = vadd.f32 %v1366, %v1478
    %v1505 = vadd.f32 %v1367, %v1483
    %v1506 = vadd.f32 %v1368, %v1488
    %v1507 = vadd.f32 %v1369, %v1493
    %v1508 = vadd.f32 %v1370, %v1498
    %v1509 = vld [vmem:[%s373 + $0x3] sm:$0xff]
    %v1510 = vld [vmem:[%s373 + $0x13] sm:$0xff]
    %v1511 = vld [vmem:[%s373 + $0x23] sm:$0xff]
    %v1512 = vld [vmem:[%s373 + $0x33] sm:$0xff]
    %v1513 = vld [vmem:[%s373 + $0x43] sm:$0xff]
    %v1514 = vld [vmem:[%s373 + $0x53] sm:$0xff]
    %v1515 = vld [vmem:[%s373 + $0x63] sm:$0xff]
    %v1516 = vld [vmem:[%s373 + $0x73] sm:$0xff]
    %s1517 = scalar_lea.vmem [#allocation8], 1024
    %v1518 = vld [vmem:[%s1517] sm:$0xff]
    %v1519 = vld [vmem:[%s1517 + $0x8] sm:$0xff]
    %v1520 = vld [vmem:[%s1517 + $0x10] sm:$0xff]
    %v1521 = vld [vmem:[%s1517 + $0x18] sm:$0xff]
    %v1522 = vld [vmem:[%s1517 + $0x20] sm:$0xff]
    %v1523 = vld [vmem:[%s1517 + $0x28] sm:$0xff]
    %v1524 = vld [vmem:[%s1517 + $0x30] sm:$0xff]
    %v1525 = vld [vmem:[%s1517 + $0x38] sm:$0xff]
    %v1526 = vld [vmem:[%s1517 + $0x40] sm:$0xff]
    %v1527 = vld [vmem:[%s1517 + $0x48] sm:$0xff]
    %v1528 = vld [vmem:[%s1517 + $0x50] sm:$0xff]
    %v1529 = vld [vmem:[%s1517 + $0x58] sm:$0xff]
    %v1530 = vld [vmem:[%s1517 + $0x60] sm:$0xff]
    %v1531 = vld [vmem:[%s1517 + $0x68] sm:$0xff]
    %v1532 = vld [vmem:[%s1517 + $0x70] sm:$0xff]
    %v1533 = vld [vmem:[%s1517 + $0x78] sm:$0xff]
    %1534 = vmatprep.subr.mxu0 0.0
    %1535 = vmatpush1.msra.mxu0 %v1518
    %1536 = vmatprep.subr.mxu0 0.0
    %1537 = vmatpush1.msra.mxu0 %v1519
    %1538 = vmatprep.subr.mxu0 0.0
    %1539 = vmatpush1.msra.mxu0 %v1520
    %1540 = vmatprep.subr.mxu0 0.0
    %1541 = vmatpush1.msra.mxu0 %v1521
    %1542 = vmatprep.subr.mxu0 0.0
    %1543 = vmatpush1.msra.mxu0 %v1522
    %1544 = vmatprep.subr.mxu0 0.0
    %1545 = vmatpush1.msra.mxu0 %v1523
    %1546 = vmatprep.subr.mxu0 0.0
    %1547 = vmatpush1.msra.mxu0 %v1524
    %1548 = vmatprep.subr.mxu0 0.0
    %1549 = vmatpush1.msra.mxu0 %v1525
    %1550 = vmatprep.subr.mxu0 0.0
    %1551 = vmatpush1.msra.mxu0 %v1526
    %1552 = vmatprep.subr.mxu0 0.0
    %1553 = vmatpush1.msra.mxu0 %v1527
    %1554 = vmatprep.subr.mxu0 0.0
    %1555 = vmatpush1.msra.mxu0 %v1528
    %1556 = vmatprep.subr.mxu0 0.0
    %1557 = vmatpush1.msra.mxu0 %v1529
    %1558 = vmatprep.subr.mxu0 0.0
    %1559 = vmatpush1.msra.mxu0 %v1530
    %1560 = vmatprep.subr.mxu0 0.0
    %1561 = vmatpush1.msra.mxu0 %v1531
    %1562 = vmatprep.subr.mxu0 0.0
    %1563 = vmatpush1.msra.mxu0 %v1532
    %1564 = vmatprep.subr.mxu0 0.0
    %1565 = vmatpush1.msra.mxu0 %v1533
    %1566 = vmatprep.subr.mxu0 0.0
    %1567 = vmatpush1.msra.mxu0 0.0
    %1568 = vmatprep.subr.mxu0 0.0
    %1569 = vmatpush1.msra.mxu0 0.0
    %1570 = vmatprep.subr.mxu0 0.0
    %1571 = vmatpush1.msra.mxu0 0.0
    %1572 = vmatprep.subr.mxu0 0.0
    %1573 = vmatpush1.msra.mxu0 0.0
    %1574 = vmatprep.subr.mxu0 0.0
    %1575 = vmatpush1.msra.mxu0 0.0
    %1576 = vmatprep.subr.mxu0 0.0
    %1577 = vmatpush1.msra.mxu0 0.0
    %1578 = vmatprep.subr.mxu0 0.0
    %1579 = vmatpush1.msra.mxu0 0.0
    %1580 = vmatprep.subr.mxu0 0.0
    %1581 = vmatpush1.msra.mxu0 0.0
    %1582 = vmatprep.subr.mxu0 0.0
    %1583 = vmatpush1.msra.mxu0 0.0
    %1584 = vmatprep.subr.mxu0 0.0
    %1585 = vmatpush1.msra.mxu0 0.0
    %1586 = vmatprep.subr.mxu0 0.0
    %1587 = vmatpush1.msra.mxu0 0.0
    %1588 = vmatprep.subr.mxu0 0.0
    %1589 = vmatpush1.msra.mxu0 0.0
    %1590 = vmatprep.subr.mxu0 0.0
    %1591 = vmatpush1.msra.mxu0 0.0
    %1592 = vmatprep.subr.mxu0 0.0
    %1593 = vmatpush1.msra.mxu0 0.0
    %1594 = vmatprep.subr.mxu0 0.0
    %1595 = vmatpush1.msra.mxu0 0.0
    %1596 = vmatprep.subr.mxu0 0.0
    %1597 = vmatpush1.msra.mxu0 0.0
    %1598 = vmatprep.mubr.f32.mxu0 0.0
    %1599 = vmatmul.mubr.f32.gmra.mrb[0].mxu0 %v1509
    %v1600 = vpop.f32.mrb[0].mxu0
    %v1601 = vadd.f32 0.0, %v1600
    %v1602 = vpop.f32.mrb[0].mxu0
    %1603 = vmatprep.mubr.f32.mxu0 0.0
    %1604 = vmatmul.mubr.f32.gmra.mrb[0].mxu0 %v1510
    %v1605 = vpop.f32.mrb[0].mxu0
    %v1606 = vadd.f32 0.0, %v1605
    %v1607 = vpop.f32.mrb[0].mxu0
    %1608 = vmatprep.mubr.f32.mxu0 0.0
    %1609 = vmatmul.mubr.f32.gmra.mrb[0].mxu0 %v1511
    %v1610 = vpop.f32.mrb[0].mxu0
    %v1611 = vadd.f32 0.0, %v1610
    %v1612 = vpop.f32.mrb[0].mxu0
    %1613 = vmatprep.mubr.f32.mxu0 0.0
    %1614 = vmatmul.mubr.f32.gmra.mrb[0].mxu0 %v1512
    %v1615 = vpop.f32.mrb[0].mxu0
    %v1616 = vadd.f32 0.0, %v1615
    %v1617 = vpop.f32.mrb[0].mxu0
    %1618 = vmatprep.mubr.f32.mxu0 0.0
    %1619 = vmatmul.mubr.f32.gmra.mrb[0].mxu0 %v1513
    %v1620 = vpop.f32.mrb[0].mxu0
    %v1621 = vadd.f32 0.0, %v1620
    %v1622 = vpop.f32.mrb[0].mxu0
    %1623 = vmatprep.mubr.f32.mxu0 0.0
    %1624 = vmatmul.mubr.f32.gmra.mrb[0].mxu0 %v1514
    %v1625 = vpop.f32.mrb[0].mxu0
    %v1626 = vadd.f32 0.0, %v1625
    %v1627 = vpop.f32.mrb[0].mxu0
    %1628 = vmatprep.mubr.f32.mxu0 0.0
    %1629 = vmatmul.mubr.f32.gmra.mrb[0].mxu0 %v1515
    %v1630 = vpop.f32.mrb[0].mxu0
    %v1631 = vadd.f32 0.0, %v1630
    %v1632 = vpop.f32.mrb[0].mxu0
    %1633 = vmatprep.mubr.f32.mxu0 0.0
    %1634 = vmatmul.mubr.f32.gmra.mrb[0].mxu0 %v1516
    %v1635 = vpop.f32.mrb[0].mxu0
    %v1636 = vadd.f32 0.0, %v1635
    %v1637 = vpop.f32.mrb[0].mxu0
    %1638 = vdwg.mxu0
    %v1639 = vadd.f32 %v1501, %v1601
    %v1640 = vadd.f32 %v1502, %v1606
    %v1641 = vadd.f32 %v1503, %v1611
    %v1642 = vadd.f32 %v1504, %v1616
    %v1643 = vadd.f32 %v1505, %v1621
    %v1644 = vadd.f32 %v1506, %v1626
    %v1645 = vadd.f32 %v1507, %v1631
    %v1646 = vadd.f32 %v1508, %v1636
    %v1647 = vld [vmem:[%s373 + $0x4] sm:$0xff]
    %v1648 = vld [vmem:[%s373 + $0x14] sm:$0xff]
    %v1649 = vld [vmem:[%s373 + $0x24] sm:$0xff]
    %v1650 = vld [vmem:[%s373 + $0x34] sm:$0xff]
    %v1651 = vld [vmem:[%s373 + $0x44] sm:$0xff]
    %v1652 = vld [vmem:[%s373 + $0x54] sm:$0xff]
    %v1653 = vld [vmem:[%s373 + $0x64] sm:$0xff]
    %v1654 = vld [vmem:[%s373 + $0x74] sm:$0xff]
    %s1655 = scalar_lea.vmem [#allocation8], 1152
    %v1656 = vld [vmem:[%s1655] sm:$0xff]
    %v1657 = vld [vmem:[%s1655 + $0x8] sm:$0xff]
    %v1658 = vld [vmem:[%s1655 + $0x10] sm:$0xff]
    %v1659 = vld [vmem:[%s1655 + $0x18] sm:$0xff]
    %v1660 = vld [vmem:[%s1655 + $0x20] sm:$0xff]
    %v1661 = vld [vmem:[%s1655 + $0x28] sm:$0xff]
    %v1662 = vld [vmem:[%s1655 + $0x30] sm:$0xff]
    %v1663 = vld [vmem:[%s1655 + $0x38] sm:$0xff]
    %v1664 = vld [vmem:[%s1655 + $0x40] sm:$0xff]
    %v1665 = vld [vmem:[%s1655 + $0x48] sm:$0xff]
    %v1666 = vld [vmem:[%s1655 + $0x50] sm:$0xff]
    %v1667 = vld [vmem:[%s1655 + $0x58] sm:$0xff]
    %v1668 = vld [vmem:[%s1655 + $0x60] sm:$0xff]
    %v1669 = vld [vmem:[%s1655 + $0x68] sm:$0xff]
    %v1670 = vld [vmem:[%s1655 + $0x70] sm:$0xff]
    %v1671 = vld [vmem:[%s1655 + $0x78] sm:$0xff]
    %1672 = vmatprep.subr.mxu0 0.0
    %1673 = vmatpush1.msra.mxu0 %v1656
    %1674 = vmatprep.subr.mxu0 0.0
    %1675 = vmatpush1.msra.mxu0 %v1657
    %1676 = vmatprep.subr.mxu0 0.0
    %1677 = vmatpush1.msra.mxu0 %v1658
    %1678 = vmatprep.subr.mxu0 0.0
    %1679 = vmatpush1.msra.mxu0 %v1659
    %1680 = vmatprep.subr.mxu0 0.0
    %1681 = vmatpush1.msra.mxu0 %v1660
    %1682 = vmatprep.subr.mxu0 0.0
    %1683 = vmatpush1.msra.mxu0 %v1661
    %1684 = vmatprep.subr.mxu0 0.0
    %1685 = vmatpush1.msra.mxu0 %v1662
    %1686 = vmatprep.subr.mxu0 0.0
    %1687 = vmatpush1.msra.mxu0 %v1663
    %1688 = vmatprep.subr.mxu0 0.0
    %1689 = vmatpush1.msra.mxu0 %v1664
    %1690 = vmatprep.subr.mxu0 0.0
    %1691 = vmatpush1.msra.mxu0 %v1665
    %1692 = vmatprep.subr.mxu0 0.0
    %1693 = vmatpush1.msra.mxu0 %v1666
    %1694 = vmatprep.subr.mxu0 0.0
    %1695 = vmatpush1.msra.mxu0 %v1667
    %1696 = vmatprep.subr.mxu0 0.0
    %1697 = vmatpush1.msra.mxu0 %v1668
    %1698 = vmatprep.subr.mxu0 0.0
    %1699 = vmatpush1.msra.mxu0 %v1669
    %1700 = vmatprep.subr.mxu0 0.0
    %1701 = vmatpush1.msra.mxu0 %v1670
    %1702 = vmatprep.subr.mxu0 0.0
    %1703 = vmatpush1.msra.mxu0 %v1671
    %1704 = vmatprep.subr.mxu0 0.0
    %1705 = vmatpush1.msra.mxu0 0.0
    %1706 = vmatprep.subr.mxu0 0.0
    %1707 = vmatpush1.msra.mxu0 0.0
    %1708 = vmatprep.subr.mxu0 0.0
    %1709 = vmatpush1.msra.mxu0 0.0
    %1710 = vmatprep.subr.mxu0 0.0
    %1711 = vmatpush1.msra.mxu0 0.0
    %1712 = vmatprep.subr.mxu0 0.0
    %1713 = vmatpush1.msra.mxu0 0.0
    %1714 = vmatprep.subr.mxu0 0.0
    %1715 = vmatpush1.msra.mxu0 0.0
    %1716 = vmatprep.subr.mxu0 0.0
    %1717 = vmatpush1.msra.mxu0 0.0
    %1718 = vmatprep.subr.mxu0 0.0
    %1719 = vmatpush1.msra.mxu0 0.0
    %1720 = vmatprep.subr.mxu0 0.0
    %1721 = vmatpush1.msra.mxu0 0.0
    %1722 = vmatprep.subr.mxu0 0.0
    %1723 = vmatpush1.msra.mxu0 0.0
    %1724 = vmatprep.subr.mxu0 0.0
    %1725 = vmatpush1.msra.mxu0 0.0
    %1726 = vmatprep.subr.mxu0 0.0
    %1727 = vmatpush1.msra.mxu0 0.0
    %1728 = vmatprep.subr.mxu0 0.0
    %1729 = vmatpush1.msra.mxu0 0.0
    %1730 = vmatprep.subr.mxu0 0.0
    %1731 = vmatpush1.msra.mxu0 0.0
    %1732 = vmatprep.subr.mxu0 0.0
    %1733 = vmatpush1.msra.mxu0 0.0
    %1734 = vmatprep.subr.mxu0 0.0
    %1735 = vmatpush1.msra.mxu0 0.0
    %1736 = vmatprep.mubr.f32.mxu0 0.0
    %1737 = vmatmul.mubr.f32.gmra.mrb[0].mxu0 %v1647
    %v1738 = vpop.f32.mrb[0].mxu0
    %v1739 = vadd.f32 0.0, %v1738
    %v1740 = vpop.f32.mrb[0].mxu0
    %1741 = vmatprep.mubr.f32.mxu0 0.0
    %1742 = vmatmul.mubr.f32.gmra.mrb[0].mxu0 %v1648
    %v1743 = vpop.f32.mrb[0].mxu0
    %v1744 = vadd.f32 0.0, %v1743
    %v1745 = vpop.f32.mrb[0].mxu0
    %1746 = vmatprep.mubr.f32.mxu0 0.0
    %1747 = vmatmul.mubr.f32.gmra.mrb[0].mxu0 %v1649
    %v1748 = vpop.f32.mrb[0].mxu0
    %v1749 = vadd.f32 0.0, %v1748
    %v1750 = vpop.f32.mrb[0].mxu0
    %1751 = vmatprep.mubr.f32.mxu0 0.0
    %1752 = vmatmul.mubr.f32.gmra.mrb[0].mxu0 %v1650
    %v1753 = vpop.f32.mrb[0].mxu0
    %v1754 = vadd.f32 0.0, %v1753
    %v1755 = vpop.f32.mrb[0].mxu0
    %1756 = vmatprep.mubr.f32.mxu0 0.0
    %1757 = vmatmul.mubr.f32.gmra.mrb[0].mxu0 %v1651
    %v1758 = vpop.f32.mrb[0].mxu0
    %v1759 = vadd.f32 0.0, %v1758
    %v1760 = vpop.f32.mrb[0].mxu0
    %1761 = vmatprep.mubr.f32.mxu0 0.0
    %1762 = vmatmul.mubr.f32.gmra.mrb[0].mxu0 %v1652
    %v1763 = vpop.f32.mrb[0].mxu0
    %v1764 = vadd.f32 0.0, %v1763
    %v1765 = vpop.f32.mrb[0].mxu0
    %1766 = vmatprep.mubr.f32.mxu0 0.0
    %1767 = vmatmul.mubr.f32.gmra.mrb[0].mxu0 %v1653
    %v1768 = vpop.f32.mrb[0].mxu0
    %v1769 = vadd.f32 0.0, %v1768
    %v1770 = vpop.f32.mrb[0].mxu0
    %1771 = vmatprep.mubr.f32.mxu0 0.0
    %1772 = vmatmul.mubr.f32.gmra.mrb[0].mxu0 %v1654
    %v1773 = vpop.f32.mrb[0].mxu0
    %v1774 = vadd.f32 0.0, %v1773
    %v1775 = vpop.f32.mrb[0].mxu0
    %1776 = vdwg.mxu0
    %v1777 = vadd.f32 %v1639, %v1739
    %v1778 = vadd.f32 %v1640, %v1744
    %v1779 = vadd.f32 %v1641, %v1749
    %v1780 = vadd.f32 %v1642, %v1754
    %v1781 = vadd.f32 %v1643, %v1759
    %v1782 = vadd.f32 %v1644, %v1764
    %v1783 = vadd.f32 %v1645, %v1769
    %v1784 = vadd.f32 %v1646, %v1774
    %v1785 = vld [vmem:[%s376] sm:$0xff]
    %v1786 = vld [vmem:[%s376 + $0x10] sm:$0xff]
    %v1787 = vld [vmem:[%s376 + $0x20] sm:$0xff]
    %v1788 = vld [vmem:[%s376 + $0x30] sm:$0xff]
    %v1789 = vld [vmem:[%s376 + $0x40] sm:$0xff]
    %v1790 = vld [vmem:[%s376 + $0x50] sm:$0xff]
    %v1791 = vld [vmem:[%s376 + $0x60] sm:$0xff]
    %v1792 = vld [vmem:[%s376 + $0x70] sm:$0xff]
    %s1793 = scalar_lea.vmem [#allocation8], 1280
    %v1794 = vld [vmem:[%s1793] sm:$0xff]
    %v1795 = vld [vmem:[%s1793 + $0x8] sm:$0xff]
    %v1796 = vld [vmem:[%s1793 + $0x10] sm:$0xff]
    %v1797 = vld [vmem:[%s1793 + $0x18] sm:$0xff]
    %v1798 = vld [vmem:[%s1793 + $0x20] sm:$0xff]
    %v1799 = vld [vmem:[%s1793 + $0x28] sm:$0xff]
    %v1800 = vld [vmem:[%s1793 + $0x30] sm:$0xff]
    %v1801 = vld [vmem:[%s1793 + $0x38] sm:$0xff]
    %v1802 = vld [vmem:[%s1793 + $0x40] sm:$0xff]
    %v1803 = vld [vmem:[%s1793 + $0x48] sm:$0xff]
    %v1804 = vld [vmem:[%s1793 + $0x50] sm:$0xff]
    %v1805 = vld [vmem:[%s1793 + $0x58] sm:$0xff]
    %v1806 = vld [vmem:[%s1793 + $0x60] sm:$0xff]
    %v1807 = vld [vmem:[%s1793 + $0x68] sm:$0xff]
    %v1808 = vld [vmem:[%s1793 + $0x70] sm:$0xff]
    %v1809 = vld [vmem:[%s1793 + $0x78] sm:$0xff]
    %1810 = vmatprep.subr.mxu0 0.0
    %1811 = vmatpush1.msra.mxu0 %v1794
    %1812 = vmatprep.subr.mxu0 0.0
    %1813 = vmatpush1.msra.mxu0 %v1795
    %1814 = vmatprep.subr.mxu0 0.0
    %1815 = vmatpush1.msra.mxu0 %v1796
    %1816 = vmatprep.subr.mxu0 0.0
    %1817 = vmatpush1.msra.mxu0 %v1797
    %1818 = vmatprep.subr.mxu0 0.0
    %1819 = vmatpush1.msra.mxu0 %v1798
    %1820 = vmatprep.subr.mxu0 0.0
    %1821 = vmatpush1.msra.mxu0 %v1799
    %1822 = vmatprep.subr.mxu0 0.0
    %1823 = vmatpush1.msra.mxu0 %v1800
    %1824 = vmatprep.subr.mxu0 0.0
    %1825 = vmatpush1.msra.mxu0 %v1801
    %1826 = vmatprep.subr.mxu0 0.0
    %1827 = vmatpush1.msra.mxu0 %v1802
    %1828 = vmatprep.subr.mxu0 0.0
    %1829 = vmatpush1.msra.mxu0 %v1803
    %1830 = vmatprep.subr.mxu0 0.0
    %1831 = vmatpush1.msra.mxu0 %v1804
    %1832 = vmatprep.subr.mxu0 0.0
    %1833 = vmatpush1.msra.mxu0 %v1805
    %1834 = vmatprep.subr.mxu0 0.0
    %1835 = vmatpush1.msra.mxu0 %v1806
    %1836 = vmatprep.subr.mxu0 0.0
    %1837 = vmatpush1.msra.mxu0 %v1807
    %1838 = vmatprep.subr.mxu0 0.0
    %1839 = vmatpush1.msra.mxu0 %v1808
    %1840 = vmatprep.subr.mxu0 0.0
    %1841 = vmatpush1.msra.mxu0 %v1809
    %1842 = vmatprep.subr.mxu0 0.0
    %1843 = vmatpush1.msra.mxu0 0.0
    %1844 = vmatprep.subr.mxu0 0.0
    %1845 = vmatpush1.msra.mxu0 0.0
    %1846 = vmatprep.subr.mxu0 0.0
    %1847 = vmatpush1.msra.mxu0 0.0
    %1848 = vmatprep.subr.mxu0 0.0
    %1849 = vmatpush1.msra.mxu0 0.0
    %1850 = vmatprep.subr.mxu0 0.0
    %1851 = vmatpush1.msra.mxu0 0.0
    %1852 = vmatprep.subr.mxu0 0.0
    %1853 = vmatpush1.msra.mxu0 0.0
    %1854 = vmatprep.subr.mxu0 0.0
    %1855 = vmatpush1.msra.mxu0 0.0
    %1856 = vmatprep.subr.mxu0 0.0
    %1857 = vmatpush1.msra.mxu0 0.0
    %1858 = vmatprep.subr.mxu0 0.0
    %1859 = vmatpush1.msra.mxu0 0.0
    %1860 = vmatprep.subr.mxu0 0.0
    %1861 = vmatpush1.msra.mxu0 0.0
    %1862 = vmatprep.subr.mxu0 0.0
    %1863 = vmatpush1.msra.mxu0 0.0
    %1864 = vmatprep.subr.mxu0 0.0
    %1865 = vmatpush1.msra.mxu0 0.0
    %1866 = vmatprep.subr.mxu0 0.0
    %1867 = vmatpush1.msra.mxu0 0.0
    %1868 = vmatprep.subr.mxu0 0.0
    %1869 = vmatpush1.msra.mxu0 0.0
    %1870 = vmatprep.subr.mxu0 0.0
    %1871 = vmatpush1.msra.mxu0 0.0
    %1872 = vmatprep.subr.mxu0 0.0
    %1873 = vmatpush1.msra.mxu0 0.0
    %1874 = vmatprep.mubr.f32.mxu0 0.0
    %1875 = vmatmul.mubr.f32.gmra.mrb[0].mxu0 %v1785
    %v1876 = vpop.f32.mrb[0].mxu0
    %v1877 = vadd.f32 0.0, %v1876
    %v1878 = vpop.f32.mrb[0].mxu0
    %1879 = vmatprep.mubr.f32.mxu0 0.0
    %1880 = vmatmul.mubr.f32.gmra.mrb[0].mxu0 %v1786
    %v1881 = vpop.f32.mrb[0].mxu0
    %v1882 = vadd.f32 0.0, %v1881
    %v1883 = vpop.f32.mrb[0].mxu0
    %1884 = vmatprep.mubr.f32.mxu0 0.0
    %1885 = vmatmul.mubr.f32.gmra.mrb[0].mxu0 %v1787
    %v1886 = vpop.f32.mrb[0].mxu0
    %v1887 = vadd.f32 0.0, %v1886
    %v1888 = vpop.f32.mrb[0].mxu0
    %1889 = vmatprep.mubr.f32.mxu0 0.0
    %1890 = vmatmul.mubr.f32.gmra.mrb[0].mxu0 %v1788
    %v1891 = vpop.f32.mrb[0].mxu0
    %v1892 = vadd.f32 0.0, %v1891
    %v1893 = vpop.f32.mrb[0].mxu0
    %1894 = vmatprep.mubr.f32.mxu0 0.0
    %1895 = vmatmul.mubr.f32.gmra.mrb[0].mxu0 %v1789
    %v1896 = vpop.f32.mrb[0].mxu0
    %v1897 = vadd.f32 0.0, %v1896
    %v1898 = vpop.f32.mrb[0].mxu0
    %1899 = vmatprep.mubr.f32.mxu0 0.0
    %1900 = vmatmul.mubr.f32.gmra.mrb[0].mxu0 %v1790
    %v1901 = vpop.f32.mrb[0].mxu0
    %v1902 = vadd.f32 0.0, %v1901
    %v1903 = vpop.f32.mrb[0].mxu0
    %1904 = vmatprep.mubr.f32.mxu0 0.0
    %1905 = vmatmul.mubr.f32.gmra.mrb[0].mxu0 %v1791
    %v1906 = vpop.f32.mrb[0].mxu0
    %v1907 = vadd.f32 0.0, %v1906
    %v1908 = vpop.f32.mrb[0].mxu0
    %1909 = vmatprep.mubr.f32.mxu0 0.0
    %1910 = vmatmul.mubr.f32.gmra.mrb[0].mxu0 %v1792
    %v1911 = vpop.f32.mrb[0].mxu0
    %v1912 = vadd.f32 0.0, %v1911
    %v1913 = vpop.f32.mrb[0].mxu0
    %1914 = vdwg.mxu0
    %v1915 = vadd.f32 %v1777, %v1877
    %v1916 = vadd.f32 %v1778, %v1882
    %v1917 = vadd.f32 %v1779, %v1887
    %v1918 = vadd.f32 %v1780, %v1892
    %v1919 = vadd.f32 %v1781, %v1897
    %v1920 = vadd.f32 %v1782, %v1902
    %v1921 = vadd.f32 %v1783, %v1907
    %v1922 = vadd.f32 %v1784, %v1912
    %v1923 = vld [vmem:[%s376 + $0x1] sm:$0xff]
    %v1924 = vld [vmem:[%s376 + $0x11] sm:$0xff]
    %v1925 = vld [vmem:[%s376 + $0x21] sm:$0xff]
    %v1926 = vld [vmem:[%s376 + $0x31] sm:$0xff]
    %v1927 = vld [vmem:[%s376 + $0x41] sm:$0xff]
    %v1928 = vld [vmem:[%s376 + $0x51] sm:$0xff]
    %v1929 = vld [vmem:[%s376 + $0x61] sm:$0xff]
    %v1930 = vld [vmem:[%s376 + $0x71] sm:$0xff]
    %s1931 = scalar_lea.vmem [#allocation8], 1408
    %v1932 = vld [vmem:[%s1931] sm:$0xff]
    %v1933 = vld [vmem:[%s1931 + $0x8] sm:$0xff]
    %v1934 = vld [vmem:[%s1931 + $0x10] sm:$0xff]
    %v1935 = vld [vmem:[%s1931 + $0x18] sm:$0xff]
    %v1936 = vld [vmem:[%s1931 + $0x20] sm:$0xff]
    %v1937 = vld [vmem:[%s1931 + $0x28] sm:$0xff]
    %v1938 = vld [vmem:[%s1931 + $0x30] sm:$0xff]
    %v1939 = vld [vmem:[%s1931 + $0x38] sm:$0xff]
    %v1940 = vld [vmem:[%s1931 + $0x40] sm:$0xff]
    %v1941 = vld [vmem:[%s1931 + $0x48] sm:$0xff]
    %v1942 = vld [vmem:[%s1931 + $0x50] sm:$0xff]
    %v1943 = vld [vmem:[%s1931 + $0x58] sm:$0xff]
    %v1944 = vld [vmem:[%s1931 + $0x60] sm:$0xff]
    %v1945 = vld [vmem:[%s1931 + $0x68] sm:$0xff]
    %v1946 = vld [vmem:[%s1931 + $0x70] sm:$0xff]
    %v1947 = vld [vmem:[%s1931 + $0x78] sm:$0xff]
    %1948 = vmatprep.subr.mxu0 0.0
    %1949 = vmatpush1.msra.mxu0 %v1932
    %1950 = vmatprep.subr.mxu0 0.0
    %1951 = vmatpush1.msra.mxu0 %v1933
    %1952 = vmatprep.subr.mxu0 0.0
    %1953 = vmatpush1.msra.mxu0 %v1934
    %1954 = vmatprep.subr.mxu0 0.0
    %1955 = vmatpush1.msra.mxu0 %v1935
    %1956 = vmatprep.subr.mxu0 0.0
    %1957 = vmatpush1.msra.mxu0 %v1936
    %1958 = vmatprep.subr.mxu0 0.0
    %1959 = vmatpush1.msra.mxu0 %v1937
    %1960 = vmatprep.subr.mxu0 0.0
    %1961 = vmatpush1.msra.mxu0 %v1938
    %1962 = vmatprep.subr.mxu0 0.0
    %1963 = vmatpush1.msra.mxu0 %v1939
    %1964 = vmatprep.subr.mxu0 0.0
    %1965 = vmatpush1.msra.mxu0 %v1940
    %1966 = vmatprep.subr.mxu0 0.0
    %1967 = vmatpush1.msra.mxu0 %v1941
    %1968 = vmatprep.subr.mxu0 0.0
    %1969 = vmatpush1.msra.mxu0 %v1942
    %1970 = vmatprep.subr.mxu0 0.0
    %1971 = vmatpush1.msra.mxu0 %v1943
    %1972 = vmatprep.subr.mxu0 0.0
    %1973 = vmatpush1.msra.mxu0 %v1944
    %1974 = vmatprep.subr.mxu0 0.0
    %1975 = vmatpush1.msra.mxu0 %v1945
    %1976 = vmatprep.subr.mxu0 0.0
    %1977 = vmatpush1.msra.mxu0 %v1946
    %1978 = vmatprep.subr.mxu0 0.0
    %1979 = vmatpush1.msra.mxu0 %v1947
    %1980 = vmatprep.subr.mxu0 0.0
    %1981 = vmatpush1.msra.mxu0 0.0
    %1982 = vmatprep.subr.mxu0 0.0
    %1983 = vmatpush1.msra.mxu0 0.0
    %1984 = vmatprep.subr.mxu0 0.0
    %1985 = vmatpush1.msra.mxu0 0.0
    %1986 = vmatprep.subr.mxu0 0.0
    %1987 = vmatpush1.msra.mxu0 0.0
    %1988 = vmatprep.subr.mxu0 0.0
    %1989 = vmatpush1.msra.mxu0 0.0
    %1990 = vmatprep.subr.mxu0 0.0
    %1991 = vmatpush1.msra.mxu0 0.0
    %1992 = vmatprep.subr.mxu0 0.0
    %1993 = vmatpush1.msra.mxu0 0.0
    %1994 = vmatprep.subr.mxu0 0.0
    %1995 = vmatpush1.msra.mxu0 0.0
    %1996 = vmatprep.subr.mxu0 0.0
    %1997 = vmatpush1.msra.mxu0 0.0
    %1998 = vmatprep.subr.mxu0 0.0
    %1999 = vmatpush1.msra.mxu0 0.0
    %2000 = vmatprep.subr.mxu0 0.0
    %2001 = vmatpush1.msra.mxu0 0.0
    %2002 = vmatprep.subr.mxu0 0.0
    %2003 = vmatpush1.msra.mxu0 0.0
    %2004 = vmatprep.subr.mxu0 0.0
    %2005 = vmatpush1.msra.mxu0 0.0
    %2006 = vmatprep.subr.mxu0 0.0
    %2007 = vmatpush1.msra.mxu0 0.0
    %2008 = vmatprep.subr.mxu0 0.0
    %2009 = vmatpush1.msra.mxu0 0.0
    %2010 = vmatprep.subr.mxu0 0.0
    %2011 = vmatpush1.msra.mxu0 0.0
    %2012 = vmatprep.mubr.f32.mxu0 0.0
    %2013 = vmatmul.mubr.f32.gmra.mrb[0].mxu0 %v1923
    %v2014 = vpop.f32.mrb[0].mxu0
    %v2015 = vadd.f32 0.0, %v2014
    %v2016 = vpop.f32.mrb[0].mxu0
    %2017 = vmatprep.mubr.f32.mxu0 0.0
    %2018 = vmatmul.mubr.f32.gmra.mrb[0].mxu0 %v1924
    %v2019 = vpop.f32.mrb[0].mxu0
    %v2020 = vadd.f32 0.0, %v2019
    %v2021 = vpop.f32.mrb[0].mxu0
    %2022 = vmatprep.mubr.f32.mxu0 0.0
    %2023 = vmatmul.mubr.f32.gmra.mrb[0].mxu0 %v1925
    %v2024 = vpop.f32.mrb[0].mxu0
    %v2025 = vadd.f32 0.0, %v2024
    %v2026 = vpop.f32.mrb[0].mxu0
    %2027 = vmatprep.mubr.f32.mxu0 0.0
    %2028 = vmatmul.mubr.f32.gmra.mrb[0].mxu0 %v1926
    %v2029 = vpop.f32.mrb[0].mxu0
    %v2030 = vadd.f32 0.0, %v2029
    %v2031 = vpop.f32.mrb[0].mxu0
    %2032 = vmatprep.mubr.f32.mxu0 0.0
    %2033 = vmatmul.mubr.f32.gmra.mrb[0].mxu0 %v1927
    %v2034 = vpop.f32.mrb[0].mxu0
    %v2035 = vadd.f32 0.0, %v2034
    %v2036 = vpop.f32.mrb[0].mxu0
    %2037 = vmatprep.mubr.f32.mxu0 0.0
    %2038 = vmatmul.mubr.f32.gmra.mrb[0].mxu0 %v1928
    %v2039 = vpop.f32.mrb[0].mxu0
    %v2040 = vadd.f32 0.0, %v2039
    %v2041 = vpop.f32.mrb[0].mxu0
    %2042 = vmatprep.mubr.f32.mxu0 0.0
    %2043 = vmatmul.mubr.f32.gmra.mrb[0].mxu0 %v1929
    %v2044 = vpop.f32.mrb[0].mxu0
    %v2045 = vadd.f32 0.0, %v2044
    %v2046 = vpop.f32.mrb[0].mxu0
    %2047 = vmatprep.mubr.f32.mxu0 0.0
    %2048 = vmatmul.mubr.f32.gmra.mrb[0].mxu0 %v1930
    %v2049 = vpop.f32.mrb[0].mxu0
    %v2050 = vadd.f32 0.0, %v2049
    %v2051 = vpop.f32.mrb[0].mxu0
    %2052 = vdwg.mxu0
    %v2053 = vadd.f32 %v1915, %v2015
    %v2054 = vadd.f32 %v1916, %v2020
    %v2055 = vadd.f32 %v1917, %v2025
    %v2056 = vadd.f32 %v1918, %v2030
    %v2057 = vadd.f32 %v1919, %v2035
    %v2058 = vadd.f32 %v1920, %v2040
    %v2059 = vadd.f32 %v1921, %v2045
    %v2060 = vadd.f32 %v1922, %v2050
    %v2061 = vld [vmem:[%s376 + $0x2] sm:$0xff]
    %v2062 = vld [vmem:[%s376 + $0x12] sm:$0xff]
    %v2063 = vld [vmem:[%s376 + $0x22] sm:$0xff]
    %v2064 = vld [vmem:[%s376 + $0x32] sm:$0xff]
    %v2065 = vld [vmem:[%s376 + $0x42] sm:$0xff]
    %v2066 = vld [vmem:[%s376 + $0x52] sm:$0xff]
    %v2067 = vld [vmem:[%s376 + $0x62] sm:$0xff]
    %v2068 = vld [vmem:[%s376 + $0x72] sm:$0xff]
    %s2069 = scalar_lea.vmem [#allocation8], 1536
    %v2070 = vld [vmem:[%s2069] sm:$0xff]
    %v2071 = vld [vmem:[%s2069 + $0x8] sm:$0xff]
    %v2072 = vld [vmem:[%s2069 + $0x10] sm:$0xff]
    %v2073 = vld [vmem:[%s2069 + $0x18] sm:$0xff]
    %v2074 = vld [vmem:[%s2069 + $0x20] sm:$0xff]
    %v2075 = vld [vmem:[%s2069 + $0x28] sm:$0xff]
    %v2076 = vld [vmem:[%s2069 + $0x30] sm:$0xff]
    %v2077 = vld [vmem:[%s2069 + $0x38] sm:$0xff]
    %v2078 = vld [vmem:[%s2069 + $0x40] sm:$0xff]
    %v2079 = vld [vmem:[%s2069 + $0x48] sm:$0xff]
    %v2080 = vld [vmem:[%s2069 + $0x50] sm:$0xff]
    %v2081 = vld [vmem:[%s2069 + $0x58] sm:$0xff]
    %v2082 = vld [vmem:[%s2069 + $0x60] sm:$0xff]
    %v2083 = vld [vmem:[%s2069 + $0x68] sm:$0xff]
    %v2084 = vld [vmem:[%s2069 + $0x70] sm:$0xff]
    %v2085 = vld [vmem:[%s2069 + $0x78] sm:$0xff]
    %2086 = vmatprep.subr.mxu0 0.0
    %2087 = vmatpush1.msra.mxu0 %v2070
    %2088 = vmatprep.subr.mxu0 0.0
    %2089 = vmatpush1.msra.mxu0 %v2071
    %2090 = vmatprep.subr.mxu0 0.0
    %2091 = vmatpush1.msra.mxu0 %v2072
    %2092 = vmatprep.subr.mxu0 0.0
    %2093 = vmatpush1.msra.mxu0 %v2073
    %2094 = vmatprep.subr.mxu0 0.0
    %2095 = vmatpush1.msra.mxu0 %v2074
    %2096 = vmatprep.subr.mxu0 0.0
    %2097 = vmatpush1.msra.mxu0 %v2075
    %2098 = vmatprep.subr.mxu0 0.0
    %2099 = vmatpush1.msra.mxu0 %v2076
    %2100 = vmatprep.subr.mxu0 0.0
    %2101 = vmatpush1.msra.mxu0 %v2077
    %2102 = vmatprep.subr.mxu0 0.0
    %2103 = vmatpush1.msra.mxu0 %v2078
    %2104 = vmatprep.subr.mxu0 0.0
    %2105 = vmatpush1.msra.mxu0 %v2079
    %2106 = vmatprep.subr.mxu0 0.0
    %2107 = vmatpush1.msra.mxu0 %v2080
    %2108 = vmatprep.subr.mxu0 0.0
    %2109 = vmatpush1.msra.mxu0 %v2081
    %2110 = vmatprep.subr.mxu0 0.0
    %2111 = vmatpush1.msra.mxu0 %v2082
    %2112 = vmatprep.subr.mxu0 0.0
    %2113 = vmatpush1.msra.mxu0 %v2083
    %2114 = vmatprep.subr.mxu0 0.0
    %2115 = vmatpush1.msra.mxu0 %v2084
    %2116 = vmatprep.subr.mxu0 0.0
    %2117 = vmatpush1.msra.mxu0 %v2085
    %2118 = vmatprep.subr.mxu0 0.0
    %2119 = vmatpush1.msra.mxu0 0.0
    %2120 = vmatprep.subr.mxu0 0.0
    %2121 = vmatpush1.msra.mxu0 0.0
    %2122 = vmatprep.subr.mxu0 0.0
    %2123 = vmatpush1.msra.mxu0 0.0
    %2124 = vmatprep.subr.mxu0 0.0
    %2125 = vmatpush1.msra.mxu0 0.0
    %2126 = vmatprep.subr.mxu0 0.0
    %2127 = vmatpush1.msra.mxu0 0.0
    %2128 = vmatprep.subr.mxu0 0.0
    %2129 = vmatpush1.msra.mxu0 0.0
    %2130 = vmatprep.subr.mxu0 0.0
    %2131 = vmatpush1.msra.mxu0 0.0
    %2132 = vmatprep.subr.mxu0 0.0
    %2133 = vmatpush1.msra.mxu0 0.0
    %2134 = vmatprep.subr.mxu0 0.0
    %2135 = vmatpush1.msra.mxu0 0.0
    %2136 = vmatprep.subr.mxu0 0.0
    %2137 = vmatpush1.msra.mxu0 0.0
    %2138 = vmatprep.subr.mxu0 0.0
    %2139 = vmatpush1.msra.mxu0 0.0
    %2140 = vmatprep.subr.mxu0 0.0
    %2141 = vmatpush1.msra.mxu0 0.0
    %2142 = vmatprep.subr.mxu0 0.0
    %2143 = vmatpush1.msra.mxu0 0.0
    %2144 = vmatprep.subr.mxu0 0.0
    %2145 = vmatpush1.msra.mxu0 0.0
    %2146 = vmatprep.subr.mxu0 0.0
    %2147 = vmatpush1.msra.mxu0 0.0
    %2148 = vmatprep.subr.mxu0 0.0
    %2149 = vmatpush1.msra.mxu0 0.0
    %2150 = vmatprep.mubr.f32.mxu0 0.0
    %2151 = vmatmul.mubr.f32.gmra.mrb[0].mxu0 %v2061
    %v2152 = vpop.f32.mrb[0].mxu0
    %v2153 = vadd.f32 0.0, %v2152
    %v2154 = vpop.f32.mrb[0].mxu0
    %2155 = vmatprep.mubr.f32.mxu0 0.0
    %2156 = vmatmul.mubr.f32.gmra.mrb[0].mxu0 %v2062
    %v2157 = vpop.f32.mrb[0].mxu0
    %v2158 = vadd.f32 0.0, %v2157
    %v2159 = vpop.f32.mrb[0].mxu0
    %2160 = vmatprep.mubr.f32.mxu0 0.0
    %2161 = vmatmul.mubr.f32.gmra.mrb[0].mxu0 %v2063
    %v2162 = vpop.f32.mrb[0].mxu0
    %v2163 = vadd.f32 0.0, %v2162
    %v2164 = vpop.f32.mrb[0].mxu0
    %2165 = vmatprep.mubr.f32.mxu0 0.0
    %2166 = vmatmul.mubr.f32.gmra.mrb[0].mxu0 %v2064
    %v2167 = vpop.f32.mrb[0].mxu0
    %v2168 = vadd.f32 0.0, %v2167
    %v2169 = vpop.f32.mrb[0].mxu0
    %2170 = vmatprep.mubr.f32.mxu0 0.0
    %2171 = vmatmul.mubr.f32.gmra.mrb[0].mxu0 %v2065
    %v2172 = vpop.f32.mrb[0].mxu0
    %v2173 = vadd.f32 0.0, %v2172
    %v2174 = vpop.f32.mrb[0].mxu0
    %2175 = vmatprep.mubr.f32.mxu0 0.0
    %2176 = vmatmul.mubr.f32.gmra.mrb[0].mxu0 %v2066
    %v2177 = vpop.f32.mrb[0].mxu0
    %v2178 = vadd.f32 0.0, %v2177
    %v2179 = vpop.f32.mrb[0].mxu0
    %2180 = vmatprep.mubr.f32.mxu0 0.0
    %2181 = vmatmul.mubr.f32.gmra.mrb[0].mxu0 %v2067
    %v2182 = vpop.f32.mrb[0].mxu0
    %v2183 = vadd.f32 0.0, %v2182
    %v2184 = vpop.f32.mrb[0].mxu0
    %2185 = vmatprep.mubr.f32.mxu0 0.0
    %2186 = vmatmul.mubr.f32.gmra.mrb[0].mxu0 %v2068
    %v2187 = vpop.f32.mrb[0].mxu0
    %v2188 = vadd.f32 0.0, %v2187
    %v2189 = vpop.f32.mrb[0].mxu0
    %2190 = vdwg.mxu0
    %v2191 = vadd.f32 %v2053, %v2153
    %v2192 = vadd.f32 %v2054, %v2158
    %v2193 = vadd.f32 %v2055, %v2163
    %v2194 = vadd.f32 %v2056, %v2168
    %v2195 = vadd.f32 %v2057, %v2173
    %v2196 = vadd.f32 %v2058, %v2178
    %v2197 = vadd.f32 %v2059, %v2183
    %v2198 = vadd.f32 %v2060, %v2188
    %v2199 = vld [vmem:[%s376 + $0x3] sm:$0xff]
    %v2200 = vld [vmem:[%s376 + $0x13] sm:$0xff]
    %v2201 = vld [vmem:[%s376 + $0x23] sm:$0xff]
    %v2202 = vld [vmem:[%s376 + $0x33] sm:$0xff]
    %v2203 = vld [vmem:[%s376 + $0x43] sm:$0xff]
    %v2204 = vld [vmem:[%s376 + $0x53] sm:$0xff]
    %v2205 = vld [vmem:[%s376 + $0x63] sm:$0xff]
    %v2206 = vld [vmem:[%s376 + $0x73] sm:$0xff]
    %s2207 = scalar_lea.vmem [#allocation8], 1664
    %v2208 = vld [vmem:[%s2207] sm:$0xff]
    %v2209 = vld [vmem:[%s2207 + $0x8] sm:$0xff]
    %v2210 = vld [vmem:[%s2207 + $0x10] sm:$0xff]
    %v2211 = vld [vmem:[%s2207 + $0x18] sm:$0xff]
    %v2212 = vld [vmem:[%s2207 + $0x20] sm:$0xff]
    %v2213 = vld [vmem:[%s2207 + $0x28] sm:$0xff]
    %v2214 = vld [vmem:[%s2207 + $0x30] sm:$0xff]
    %v2215 = vld [vmem:[%s2207 + $0x38] sm:$0xff]
    %v2216 = vld [vmem:[%s2207 + $0x40] sm:$0xff]
    %v2217 = vld [vmem:[%s2207 + $0x48] sm:$0xff]
    %v2218 = vld [vmem:[%s2207 + $0x50] sm:$0xff]
    %v2219 = vld [vmem:[%s2207 + $0x58] sm:$0xff]
    %v2220 = vld [vmem:[%s2207 + $0x60] sm:$0xff]
    %v2221 = vld [vmem:[%s2207 + $0x68] sm:$0xff]
    %v2222 = vld [vmem:[%s2207 + $0x70] sm:$0xff]
    %v2223 = vld [vmem:[%s2207 + $0x78] sm:$0xff]
    %2224 = vmatprep.subr.mxu0 0.0
    %2225 = vmatpush1.msra.mxu0 %v2208
    %2226 = vmatprep.subr.mxu0 0.0
    %2227 = vmatpush1.msra.mxu0 %v2209
    %2228 = vmatprep.subr.mxu0 0.0
    %2229 = vmatpush1.msra.mxu0 %v2210
    %2230 = vmatprep.subr.mxu0 0.0
    %2231 = vmatpush1.msra.mxu0 %v2211
    %2232 = vmatprep.subr.mxu0 0.0
    %2233 = vmatpush1.msra.mxu0 %v2212
    %2234 = vmatprep.subr.mxu0 0.0
    %2235 = vmatpush1.msra.mxu0 %v2213
    %2236 = vmatprep.subr.mxu0 0.0
    %2237 = vmatpush1.msra.mxu0 %v2214
    %2238 = vmatprep.subr.mxu0 0.0
    %2239 = vmatpush1.msra.mxu0 %v2215
    %2240 = vmatprep.subr.mxu0 0.0
    %2241 = vmatpush1.msra.mxu0 %v2216
    %2242 = vmatprep.subr.mxu0 0.0
    %2243 = vmatpush1.msra.mxu0 %v2217
    %2244 = vmatprep.subr.mxu0 0.0
    %2245 = vmatpush1.msra.mxu0 %v2218
    %2246 = vmatprep.subr.mxu0 0.0
    %2247 = vmatpush1.msra.mxu0 %v2219
    %2248 = vmatprep.subr.mxu0 0.0
    %2249 = vmatpush1.msra.mxu0 %v2220
    %2250 = vmatprep.subr.mxu0 0.0
    %2251 = vmatpush1.msra.mxu0 %v2221
    %2252 = vmatprep.subr.mxu0 0.0
    %2253 = vmatpush1.msra.mxu0 %v2222
    %2254 = vmatprep.subr.mxu0 0.0
    %2255 = vmatpush1.msra.mxu0 %v2223
    %2256 = vmatprep.subr.mxu0 0.0
    %2257 = vmatpush1.msra.mxu0 0.0
    %2258 = vmatprep.subr.mxu0 0.0
    %2259 = vmatpush1.msra.mxu0 0.0
    %2260 = vmatprep.subr.mxu0 0.0
    %2261 = vmatpush1.msra.mxu0 0.0
    %2262 = vmatprep.subr.mxu0 0.0
    %2263 = vmatpush1.msra.mxu0 0.0
    %2264 = vmatprep.subr.mxu0 0.0
    %2265 = vmatpush1.msra.mxu0 0.0
    %2266 = vmatprep.subr.mxu0 0.0
    %2267 = vmatpush1.msra.mxu0 0.0
    %2268 = vmatprep.subr.mxu0 0.0
    %2269 = vmatpush1.msra.mxu0 0.0
    %2270 = vmatprep.subr.mxu0 0.0
    %2271 = vmatpush1.msra.mxu0 0.0
    %2272 = vmatprep.subr.mxu0 0.0
    %2273 = vmatpush1.msra.mxu0 0.0
    %2274 = vmatprep.subr.mxu0 0.0
    %2275 = vmatpush1.msra.mxu0 0.0
    %2276 = vmatprep.subr.mxu0 0.0
    %2277 = vmatpush1.msra.mxu0 0.0
    %2278 = vmatprep.subr.mxu0 0.0
    %2279 = vmatpush1.msra.mxu0 0.0
    %2280 = vmatprep.subr.mxu0 0.0
    %2281 = vmatpush1.msra.mxu0 0.0
    %2282 = vmatprep.subr.mxu0 0.0
    %2283 = vmatpush1.msra.mxu0 0.0
    %2284 = vmatprep.subr.mxu0 0.0
    %2285 = vmatpush1.msra.mxu0 0.0
    %2286 = vmatprep.subr.mxu0 0.0
    %2287 = vmatpush1.msra.mxu0 0.0
    %2288 = vmatprep.mubr.f32.mxu0 0.0
    %2289 = vmatmul.mubr.f32.gmra.mrb[0].mxu0 %v2199
    %v2290 = vpop.f32.mrb[0].mxu0
    %v2291 = vadd.f32 0.0, %v2290
    %v2292 = vpop.f32.mrb[0].mxu0
    %2293 = vmatprep.mubr.f32.mxu0 0.0
    %2294 = vmatmul.mubr.f32.gmra.mrb[0].mxu0 %v2200
    %v2295 = vpop.f32.mrb[0].mxu0
    %v2296 = vadd.f32 0.0, %v2295
    %v2297 = vpop.f32.mrb[0].mxu0
    %2298 = vmatprep.mubr.f32.mxu0 0.0
    %2299 = vmatmul.mubr.f32.gmra.mrb[0].mxu0 %v2201
    %v2300 = vpop.f32.mrb[0].mxu0
    %v2301 = vadd.f32 0.0, %v2300
    %v2302 = vpop.f32.mrb[0].mxu0
    %2303 = vmatprep.mubr.f32.mxu0 0.0
    %2304 = vmatmul.mubr.f32.gmra.mrb[0].mxu0 %v2202
    %v2305 = vpop.f32.mrb[0].mxu0
    %v2306 = vadd.f32 0.0, %v2305
    %v2307 = vpop.f32.mrb[0].mxu0
    %2308 = vmatprep.mubr.f32.mxu0 0.0
    %2309 = vmatmul.mubr.f32.gmra.mrb[0].mxu0 %v2203
    %v2310 = vpop.f32.mrb[0].mxu0
    %v2311 = vadd.f32 0.0, %v2310
    %v2312 = vpop.f32.mrb[0].mxu0
    %2313 = vmatprep.mubr.f32.mxu0 0.0
    %2314 = vmatmul.mubr.f32.gmra.mrb[0].mxu0 %v2204
    %v2315 = vpop.f32.mrb[0].mxu0
    %v2316 = vadd.f32 0.0, %v2315
    %v2317 = vpop.f32.mrb[0].mxu0
    %2318 = vmatprep.mubr.f32.mxu0 0.0
    %2319 = vmatmul.mubr.f32.gmra.mrb[0].mxu0 %v2205
    %v2320 = vpop.f32.mrb[0].mxu0
    %v2321 = vadd.f32 0.0, %v2320
    %v2322 = vpop.f32.mrb[0].mxu0
    %2323 = vmatprep.mubr.f32.mxu0 0.0
    %2324 = vmatmul.mubr.f32.gmra.mrb[0].mxu0 %v2206
    %v2325 = vpop.f32.mrb[0].mxu0
    %v2326 = vadd.f32 0.0, %v2325
    %v2327 = vpop.f32.mrb[0].mxu0
    %2328 = vdwg.mxu0
    %v2329 = vadd.f32 %v2191, %v2291
    %v2330 = vadd.f32 %v2192, %v2296
    %v2331 = vadd.f32 %v2193, %v2301
    %v2332 = vadd.f32 %v2194, %v2306
    %v2333 = vadd.f32 %v2195, %v2311
    %v2334 = vadd.f32 %v2196, %v2316
    %v2335 = vadd.f32 %v2197, %v2321
    %v2336 = vadd.f32 %v2198, %v2326
    %v2337 = vld [vmem:[%s376 + $0x4] sm:$0xff]
    %v2338 = vld [vmem:[%s376 + $0x14] sm:$0xff]
    %v2339 = vld [vmem:[%s376 + $0x24] sm:$0xff]
    %v2340 = vld [vmem:[%s376 + $0x34] sm:$0xff]
    %v2341 = vld [vmem:[%s376 + $0x44] sm:$0xff]
    %v2342 = vld [vmem:[%s376 + $0x54] sm:$0xff]
    %v2343 = vld [vmem:[%s376 + $0x64] sm:$0xff]
    %v2344 = vld [vmem:[%s376 + $0x74] sm:$0xff]
    %s2345 = scalar_lea.vmem [#allocation8], 1792
    %v2346 = vld [vmem:[%s2345] sm:$0xff]
    %v2347 = vld [vmem:[%s2345 + $0x8] sm:$0xff]
    %v2348 = vld [vmem:[%s2345 + $0x10] sm:$0xff]
    %v2349 = vld [vmem:[%s2345 + $0x18] sm:$0xff]
    %v2350 = vld [vmem:[%s2345 + $0x20] sm:$0xff]
    %v2351 = vld [vmem:[%s2345 + $0x28] sm:$0xff]
    %v2352 = vld [vmem:[%s2345 + $0x30] sm:$0xff]
    %v2353 = vld [vmem:[%s2345 + $0x38] sm:$0xff]
    %v2354 = vld [vmem:[%s2345 + $0x40] sm:$0xff]
    %v2355 = vld [vmem:[%s2345 + $0x48] sm:$0xff]
    %v2356 = vld [vmem:[%s2345 + $0x50] sm:$0xff]
    %v2357 = vld [vmem:[%s2345 + $0x58] sm:$0xff]
    %v2358 = vld [vmem:[%s2345 + $0x60] sm:$0xff]
    %v2359 = vld [vmem:[%s2345 + $0x68] sm:$0xff]
    %v2360 = vld [vmem:[%s2345 + $0x70] sm:$0xff]
    %v2361 = vld [vmem:[%s2345 + $0x78] sm:$0xff]
    %2362 = vmatprep.subr.mxu0 0.0
    %2363 = vmatpush1.msra.mxu0 %v2346
    %2364 = vmatprep.subr.mxu0 0.0
    %2365 = vmatpush1.msra.mxu0 %v2347
    %2366 = vmatprep.subr.mxu0 0.0
    %2367 = vmatpush1.msra.mxu0 %v2348
    %2368 = vmatprep.subr.mxu0 0.0
    %2369 = vmatpush1.msra.mxu0 %v2349
    %2370 = vmatprep.subr.mxu0 0.0
    %2371 = vmatpush1.msra.mxu0 %v2350
    %2372 = vmatprep.subr.mxu0 0.0
    %2373 = vmatpush1.msra.mxu0 %v2351
    %2374 = vmatprep.subr.mxu0 0.0
    %2375 = vmatpush1.msra.mxu0 %v2352
    %2376 = vmatprep.subr.mxu0 0.0
    %2377 = vmatpush1.msra.mxu0 %v2353
    %2378 = vmatprep.subr.mxu0 0.0
    %2379 = vmatpush1.msra.mxu0 %v2354
    %2380 = vmatprep.subr.mxu0 0.0
    %2381 = vmatpush1.msra.mxu0 %v2355
    %2382 = vmatprep.subr.mxu0 0.0
    %2383 = vmatpush1.msra.mxu0 %v2356
    %2384 = vmatprep.subr.mxu0 0.0
    %2385 = vmatpush1.msra.mxu0 %v2357
    %2386 = vmatprep.subr.mxu0 0.0
    %2387 = vmatpush1.msra.mxu0 %v2358
    %2388 = vmatprep.subr.mxu0 0.0
    %2389 = vmatpush1.msra.mxu0 %v2359
    %2390 = vmatprep.subr.mxu0 0.0
    %2391 = vmatpush1.msra.mxu0 %v2360
    %2392 = vmatprep.subr.mxu0 0.0
    %2393 = vmatpush1.msra.mxu0 %v2361
    %2394 = vmatprep.subr.mxu0 0.0
    %2395 = vmatpush1.msra.mxu0 0.0
    %2396 = vmatprep.subr.mxu0 0.0
    %2397 = vmatpush1.msra.mxu0 0.0
    %2398 = vmatprep.subr.mxu0 0.0
    %2399 = vmatpush1.msra.mxu0 0.0
    %2400 = vmatprep.subr.mxu0 0.0
    %2401 = vmatpush1.msra.mxu0 0.0
    %2402 = vmatprep.subr.mxu0 0.0
    %2403 = vmatpush1.msra.mxu0 0.0
    %2404 = vmatprep.subr.mxu0 0.0
    %2405 = vmatpush1.msra.mxu0 0.0
    %2406 = vmatprep.subr.mxu0 0.0
    %2407 = vmatpush1.msra.mxu0 0.0
    %2408 = vmatprep.subr.mxu0 0.0
    %2409 = vmatpush1.msra.mxu0 0.0
    %2410 = vmatprep.subr.mxu0 0.0
    %2411 = vmatpush1.msra.mxu0 0.0
    %2412 = vmatprep.subr.mxu0 0.0
    %2413 = vmatpush1.msra.mxu0 0.0
    %2414 = vmatprep.subr.mxu0 0.0
    %2415 = vmatpush1.msra.mxu0 0.0
    %2416 = vmatprep.subr.mxu0 0.0
    %2417 = vmatpush1.msra.mxu0 0.0
    %2418 = vmatprep.subr.mxu0 0.0
    %2419 = vmatpush1.msra.mxu0 0.0
    %2420 = vmatprep.subr.mxu0 0.0
    %2421 = vmatpush1.msra.mxu0 0.0
    %2422 = vmatprep.subr.mxu0 0.0
    %2423 = vmatpush1.msra.mxu0 0.0
    %2424 = vmatprep.subr.mxu0 0.0
    %2425 = vmatpush1.msra.mxu0 0.0
    %2426 = vmatprep.mubr.f32.mxu0 0.0
    %2427 = vmatmul.mubr.f32.gmra.mrb[0].mxu0 %v2337
    %v2428 = vpop.f32.mrb[0].mxu0
    %v2429 = vadd.f32 0.0, %v2428
    %v2430 = vpop.f32.mrb[0].mxu0
    %2431 = vmatprep.mubr.f32.mxu0 0.0
    %2432 = vmatmul.mubr.f32.gmra.mrb[0].mxu0 %v2338
    %v2433 = vpop.f32.mrb[0].mxu0
    %v2434 = vadd.f32 0.0, %v2433
    %v2435 = vpop.f32.mrb[0].mxu0
    %2436 = vmatprep.mubr.f32.mxu0 0.0
    %2437 = vmatmul.mubr.f32.gmra.mrb[0].mxu0 %v2339
    %v2438 = vpop.f32.mrb[0].mxu0
    %v2439 = vadd.f32 0.0, %v2438
    %v2440 = vpop.f32.mrb[0].mxu0
    %2441 = vmatprep.mubr.f32.mxu0 0.0
    %2442 = vmatmul.mubr.f32.gmra.mrb[0].mxu0 %v2340
    %v2443 = vpop.f32.mrb[0].mxu0
    %v2444 = vadd.f32 0.0, %v2443
    %v2445 = vpop.f32.mrb[0].mxu0
    %2446 = vmatprep.mubr.f32.mxu0 0.0
    %2447 = vmatmul.mubr.f32.gmra.mrb[0].mxu0 %v2341
    %v2448 = vpop.f32.mrb[0].mxu0
    %v2449 = vadd.f32 0.0, %v2448
    %v2450 = vpop.f32.mrb[0].mxu0
    %2451 = vmatprep.mubr.f32.mxu0 0.0
    %2452 = vmatmul.mubr.f32.gmra.mrb[0].mxu0 %v2342
    %v2453 = vpop.f32.mrb[0].mxu0
    %v2454 = vadd.f32 0.0, %v2453
    %v2455 = vpop.f32.mrb[0].mxu0
    %2456 = vmatprep.mubr.f32.mxu0 0.0
    %2457 = vmatmul.mubr.f32.gmra.mrb[0].mxu0 %v2343
    %v2458 = vpop.f32.mrb[0].mxu0
    %v2459 = vadd.f32 0.0, %v2458
    %v2460 = vpop.f32.mrb[0].mxu0
    %2461 = vmatprep.mubr.f32.mxu0 0.0
    %2462 = vmatmul.mubr.f32.gmra.mrb[0].mxu0 %v2344
    %v2463 = vpop.f32.mrb[0].mxu0
    %v2464 = vadd.f32 0.0, %v2463
    %v2465 = vpop.f32.mrb[0].mxu0
    %2466 = vdwg.mxu0
    %v2467 = vadd.f32 %v2329, %v2429
    %v2468 = vadd.f32 %v2330, %v2434
    %v2469 = vadd.f32 %v2331, %v2439
    %v2470 = vadd.f32 %v2332, %v2444
    %v2471 = vadd.f32 %v2333, %v2449
    %v2472 = vadd.f32 %v2334, %v2454
    %v2473 = vadd.f32 %v2335, %v2459
    %v2474 = vadd.f32 %v2336, %v2464
    %v2475 = vld [vmem:[%s379] sm:$0xff]
    %v2476 = vld [vmem:[%s379 + $0x10] sm:$0xff]
    %v2477 = vld [vmem:[%s379 + $0x20] sm:$0xff]
    %v2478 = vld [vmem:[%s379 + $0x30] sm:$0xff]
    %v2479 = vld [vmem:[%s379 + $0x40] sm:$0xff]
    %v2480 = vld [vmem:[%s379 + $0x50] sm:$0xff]
    %v2481 = vld [vmem:[%s379 + $0x60] sm:$0xff]
    %v2482 = vld [vmem:[%s379 + $0x70] sm:$0xff]
    %s2483 = scalar_lea.vmem [#allocation8], 1920
    %v2484 = vld [vmem:[%s2483] sm:$0xff]
    %v2485 = vld [vmem:[%s2483 + $0x8] sm:$0xff]
    %v2486 = vld [vmem:[%s2483 + $0x10] sm:$0xff]
    %v2487 = vld [vmem:[%s2483 + $0x18] sm:$0xff]
    %v2488 = vld [vmem:[%s2483 + $0x20] sm:$0xff]
    %v2489 = vld [vmem:[%s2483 + $0x28] sm:$0xff]
    %v2490 = vld [vmem:[%s2483 + $0x30] sm:$0xff]
    %v2491 = vld [vmem:[%s2483 + $0x38] sm:$0xff]
    %v2492 = vld [vmem:[%s2483 + $0x40] sm:$0xff]
    %v2493 = vld [vmem:[%s2483 + $0x48] sm:$0xff]
    %v2494 = vld [vmem:[%s2483 + $0x50] sm:$0xff]
    %v2495 = vld [vmem:[%s2483 + $0x58] sm:$0xff]
    %v2496 = vld [vmem:[%s2483 + $0x60] sm:$0xff]
    %v2497 = vld [vmem:[%s2483 + $0x68] sm:$0xff]
    %v2498 = vld [vmem:[%s2483 + $0x70] sm:$0xff]
    %v2499 = vld [vmem:[%s2483 + $0x78] sm:$0xff]
    %2500 = vmatprep.subr.mxu0 0.0
    %2501 = vmatpush1.msra.mxu0 %v2484
    %2502 = vmatprep.subr.mxu0 0.0
    %2503 = vmatpush1.msra.mxu0 %v2485
    %2504 = vmatprep.subr.mxu0 0.0
    %2505 = vmatpush1.msra.mxu0 %v2486
    %2506 = vmatprep.subr.mxu0 0.0
    %2507 = vmatpush1.msra.mxu0 %v2487
    %2508 = vmatprep.subr.mxu0 0.0
    %2509 = vmatpush1.msra.mxu0 %v2488
    %2510 = vmatprep.subr.mxu0 0.0
    %2511 = vmatpush1.msra.mxu0 %v2489
    %2512 = vmatprep.subr.mxu0 0.0
    %2513 = vmatpush1.msra.mxu0 %v2490
    %2514 = vmatprep.subr.mxu0 0.0
    %2515 = vmatpush1.msra.mxu0 %v2491
    %2516 = vmatprep.subr.mxu0 0.0
    %2517 = vmatpush1.msra.mxu0 %v2492
    %2518 = vmatprep.subr.mxu0 0.0
    %2519 = vmatpush1.msra.mxu0 %v2493
    %2520 = vmatprep.subr.mxu0 0.0
    %2521 = vmatpush1.msra.mxu0 %v2494
    %2522 = vmatprep.subr.mxu0 0.0
    %2523 = vmatpush1.msra.mxu0 %v2495
    %2524 = vmatprep.subr.mxu0 0.0
    %2525 = vmatpush1.msra.mxu0 %v2496
    %2526 = vmatprep.subr.mxu0 0.0
    %2527 = vmatpush1.msra.mxu0 %v2497
    %2528 = vmatprep.subr.mxu0 0.0
    %2529 = vmatpush1.msra.mxu0 %v2498
    %2530 = vmatprep.subr.mxu0 0.0
    %2531 = vmatpush1.msra.mxu0 %v2499
    %2532 = vmatprep.subr.mxu0 0.0
    %2533 = vmatpush1.msra.mxu0 0.0
    %2534 = vmatprep.subr.mxu0 0.0
    %2535 = vmatpush1.msra.mxu0 0.0
    %2536 = vmatprep.subr.mxu0 0.0
    %2537 = vmatpush1.msra.mxu0 0.0
    %2538 = vmatprep.subr.mxu0 0.0
    %2539 = vmatpush1.msra.mxu0 0.0
    %2540 = vmatprep.subr.mxu0 0.0
    %2541 = vmatpush1.msra.mxu0 0.0
    %2542 = vmatprep.subr.mxu0 0.0
    %2543 = vmatpush1.msra.mxu0 0.0
    %2544 = vmatprep.subr.mxu0 0.0
    %2545 = vmatpush1.msra.mxu0 0.0
    %2546 = vmatprep.subr.mxu0 0.0
    %2547 = vmatpush1.msra.mxu0 0.0
    %2548 = vmatprep.subr.mxu0 0.0
    %2549 = vmatpush1.msra.mxu0 0.0
    %2550 = vmatprep.subr.mxu0 0.0
    %2551 = vmatpush1.msra.mxu0 0.0
    %2552 = vmatprep.subr.mxu0 0.0
    %2553 = vmatpush1.msra.mxu0 0.0
    %2554 = vmatprep.subr.mxu0 0.0
    %2555 = vmatpush1.msra.mxu0 0.0
    %2556 = vmatprep.subr.mxu0 0.0
    %2557 = vmatpush1.msra.mxu0 0.0
    %2558 = vmatprep.subr.mxu0 0.0
    %2559 = vmatpush1.msra.mxu0 0.0
    %2560 = vmatprep.subr.mxu0 0.0
    %2561 = vmatpush1.msra.mxu0 0.0
    %2562 = vmatprep.subr.mxu0 0.0
    %2563 = vmatpush1.msra.mxu0 0.0
    %2564 = vmatprep.mubr.f32.mxu0 0.0
    %2565 = vmatmul.mubr.f32.gmra.mrb[0].mxu0 %v2475
    %v2566 = vpop.f32.mrb[0].mxu0
    %v2567 = vadd.f32 0.0, %v2566
    %v2568 = vpop.f32.mrb[0].mxu0
    %2569 = vmatprep.mubr.f32.mxu0 0.0
    %2570 = vmatmul.mubr.f32.gmra.mrb[0].mxu0 %v2476
    %v2571 = vpop.f32.mrb[0].mxu0
    %v2572 = vadd.f32 0.0, %v2571
    %v2573 = vpop.f32.mrb[0].mxu0
    %2574 = vmatprep.mubr.f32.mxu0 0.0
    %2575 = vmatmul.mubr.f32.gmra.mrb[0].mxu0 %v2477
    %v2576 = vpop.f32.mrb[0].mxu0
    %v2577 = vadd.f32 0.0, %v2576
    %v2578 = vpop.f32.mrb[0].mxu0
    %2579 = vmatprep.mubr.f32.mxu0 0.0
    %2580 = vmatmul.mubr.f32.gmra.mrb[0].mxu0 %v2478
    %v2581 = vpop.f32.mrb[0].mxu0
    %v2582 = vadd.f32 0.0, %v2581
    %v2583 = vpop.f32.mrb[0].mxu0
    %2584 = vmatprep.mubr.f32.mxu0 0.0
    %2585 = vmatmul.mubr.f32.gmra.mrb[0].mxu0 %v2479
    %v2586 = vpop.f32.mrb[0].mxu0
    %v2587 = vadd.f32 0.0, %v2586
    %v2588 = vpop.f32.mrb[0].mxu0
    %2589 = vmatprep.mubr.f32.mxu0 0.0
    %2590 = vmatmul.mubr.f32.gmra.mrb[0].mxu0 %v2480
    %v2591 = vpop.f32.mrb[0].mxu0
    %v2592 = vadd.f32 0.0, %v2591
    %v2593 = vpop.f32.mrb[0].mxu0
    %2594 = vmatprep.mubr.f32.mxu0 0.0
    %2595 = vmatmul.mubr.f32.gmra.mrb[0].mxu0 %v2481
    %v2596 = vpop.f32.mrb[0].mxu0
    %v2597 = vadd.f32 0.0, %v2596
    %v2598 = vpop.f32.mrb[0].mxu0
    %2599 = vmatprep.mubr.f32.mxu0 0.0
    %2600 = vmatmul.mubr.f32.gmra.mrb[0].mxu0 %v2482
    %v2601 = vpop.f32.mrb[0].mxu0
    %v2602 = vadd.f32 0.0, %v2601
    %v2603 = vpop.f32.mrb[0].mxu0
    %2604 = vdwg.mxu0
    %v2605 = vadd.f32 %v2467, %v2567
    %v2606 = vadd.f32 %v2468, %v2572
    %v2607 = vadd.f32 %v2469, %v2577
    %v2608 = vadd.f32 %v2470, %v2582
    %v2609 = vadd.f32 %v2471, %v2587
    %v2610 = vadd.f32 %v2472, %v2592
    %v2611 = vadd.f32 %v2473, %v2597
    %v2612 = vadd.f32 %v2474, %v2602
    %v2613 = vld [vmem:[%s379 + $0x1] sm:$0xff]
    %v2614 = vld [vmem:[%s379 + $0x11] sm:$0xff]
    %v2615 = vld [vmem:[%s379 + $0x21] sm:$0xff]
    %v2616 = vld [vmem:[%s379 + $0x31] sm:$0xff]
    %v2617 = vld [vmem:[%s379 + $0x41] sm:$0xff]
    %v2618 = vld [vmem:[%s379 + $0x51] sm:$0xff]
    %v2619 = vld [vmem:[%s379 + $0x61] sm:$0xff]
    %v2620 = vld [vmem:[%s379 + $0x71] sm:$0xff]
    %s2621 = scalar_lea.vmem [#allocation8], 2048
    %v2622 = vld [vmem:[%s2621] sm:$0xff]
    %v2623 = vld [vmem:[%s2621 + $0x8] sm:$0xff]
    %v2624 = vld [vmem:[%s2621 + $0x10] sm:$0xff]
    %v2625 = vld [vmem:[%s2621 + $0x18] sm:$0xff]
    %v2626 = vld [vmem:[%s2621 + $0x20] sm:$0xff]
    %v2627 = vld [vmem:[%s2621 + $0x28] sm:$0xff]
    %v2628 = vld [vmem:[%s2621 + $0x30] sm:$0xff]
    %v2629 = vld [vmem:[%s2621 + $0x38] sm:$0xff]
    %v2630 = vld [vmem:[%s2621 + $0x40] sm:$0xff]
    %v2631 = vld [vmem:[%s2621 + $0x48] sm:$0xff]
    %v2632 = vld [vmem:[%s2621 + $0x50] sm:$0xff]
    %v2633 = vld [vmem:[%s2621 + $0x58] sm:$0xff]
    %v2634 = vld [vmem:[%s2621 + $0x60] sm:$0xff]
    %v2635 = vld [vmem:[%s2621 + $0x68] sm:$0xff]
    %v2636 = vld [vmem:[%s2621 + $0x70] sm:$0xff]
    %v2637 = vld [vmem:[%s2621 + $0x78] sm:$0xff]
    %2638 = vmatprep.subr.mxu0 0.0
    %2639 = vmatpush1.msra.mxu0 %v2622
    %2640 = vmatprep.subr.mxu0 0.0
    %2641 = vmatpush1.msra.mxu0 %v2623
    %2642 = vmatprep.subr.mxu0 0.0
    %2643 = vmatpush1.msra.mxu0 %v2624
    %2644 = vmatprep.subr.mxu0 0.0
    %2645 = vmatpush1.msra.mxu0 %v2625
    %2646 = vmatprep.subr.mxu0 0.0
    %2647 = vmatpush1.msra.mxu0 %v2626
    %2648 = vmatprep.subr.mxu0 0.0
    %2649 = vmatpush1.msra.mxu0 %v2627
    %2650 = vmatprep.subr.mxu0 0.0
    %2651 = vmatpush1.msra.mxu0 %v2628
    %2652 = vmatprep.subr.mxu0 0.0
    %2653 = vmatpush1.msra.mxu0 %v2629
    %2654 = vmatprep.subr.mxu0 0.0
    %2655 = vmatpush1.msra.mxu0 %v2630
    %2656 = vmatprep.subr.mxu0 0.0
    %2657 = vmatpush1.msra.mxu0 %v2631
    %2658 = vmatprep.subr.mxu0 0.0
    %2659 = vmatpush1.msra.mxu0 %v2632
    %2660 = vmatprep.subr.mxu0 0.0
    %2661 = vmatpush1.msra.mxu0 %v2633
    %2662 = vmatprep.subr.mxu0 0.0
    %2663 = vmatpush1.msra.mxu0 %v2634
    %2664 = vmatprep.subr.mxu0 0.0
    %2665 = vmatpush1.msra.mxu0 %v2635
    %2666 = vmatprep.subr.mxu0 0.0
    %2667 = vmatpush1.msra.mxu0 %v2636
    %2668 = vmatprep.subr.mxu0 0.0
    %2669 = vmatpush1.msra.mxu0 %v2637
    %2670 = vmatprep.subr.mxu0 0.0
    %2671 = vmatpush1.msra.mxu0 0.0
    %2672 = vmatprep.subr.mxu0 0.0
    %2673 = vmatpush1.msra.mxu0 0.0
    %2674 = vmatprep.subr.mxu0 0.0
    %2675 = vmatpush1.msra.mxu0 0.0
    %2676 = vmatprep.subr.mxu0 0.0
    %2677 = vmatpush1.msra.mxu0 0.0
    %2678 = vmatprep.subr.mxu0 0.0
    %2679 = vmatpush1.msra.mxu0 0.0
    %2680 = vmatprep.subr.mxu0 0.0
    %2681 = vmatpush1.msra.mxu0 0.0
    %2682 = vmatprep.subr.mxu0 0.0
    %2683 = vmatpush1.msra.mxu0 0.0
    %2684 = vmatprep.subr.mxu0 0.0
    %2685 = vmatpush1.msra.mxu0 0.0
    %2686 = vmatprep.subr.mxu0 0.0
    %2687 = vmatpush1.msra.mxu0 0.0
    %2688 = vmatprep.subr.mxu0 0.0
    %2689 = vmatpush1.msra.mxu0 0.0
    %2690 = vmatprep.subr.mxu0 0.0
    %2691 = vmatpush1.msra.mxu0 0.0
    %2692 = vmatprep.subr.mxu0 0.0
    %2693 = vmatpush1.msra.mxu0 0.0
    %2694 = vmatprep.subr.mxu0 0.0
    %2695 = vmatpush1.msra.mxu0 0.0
    %2696 = vmatprep.subr.mxu0 0.0
    %2697 = vmatpush1.msra.mxu0 0.0
    %2698 = vmatprep.subr.mxu0 0.0
    %2699 = vmatpush1.msra.mxu0 0.0
    %2700 = vmatprep.subr.mxu0 0.0
    %2701 = vmatpush1.msra.mxu0 0.0
    %2702 = vmatprep.mubr.f32.mxu0 0.0
    %2703 = vmatmul.mubr.f32.gmra.mrb[0].mxu0 %v2613
    %v2704 = vpop.f32.mrb[0].mxu0
    %v2705 = vadd.f32 0.0, %v2704
    %v2706 = vpop.f32.mrb[0].mxu0
    %2707 = vmatprep.mubr.f32.mxu0 0.0
    %2708 = vmatmul.mubr.f32.gmra.mrb[0].mxu0 %v2614
    %v2709 = vpop.f32.mrb[0].mxu0
    %v2710 = vadd.f32 0.0, %v2709
    %v2711 = vpop.f32.mrb[0].mxu0
    %2712 = vmatprep.mubr.f32.mxu0 0.0
    %2713 = vmatmul.mubr.f32.gmra.mrb[0].mxu0 %v2615
    %v2714 = vpop.f32.mrb[0].mxu0
    %v2715 = vadd.f32 0.0, %v2714
    %v2716 = vpop.f32.mrb[0].mxu0
    %2717 = vmatprep.mubr.f32.mxu0 0.0
    %2718 = vmatmul.mubr.f32.gmra.mrb[0].mxu0 %v2616
    %v2719 = vpop.f32.mrb[0].mxu0
    %v2720 = vadd.f32 0.0, %v2719
    %v2721 = vpop.f32.mrb[0].mxu0
    %2722 = vmatprep.mubr.f32.mxu0 0.0
    %2723 = vmatmul.mubr.f32.gmra.mrb[0].mxu0 %v2617
    %v2724 = vpop.f32.mrb[0].mxu0
    %v2725 = vadd.f32 0.0, %v2724
    %v2726 = vpop.f32.mrb[0].mxu0
    %2727 = vmatprep.mubr.f32.mxu0 0.0
    %2728 = vmatmul.mubr.f32.gmra.mrb[0].mxu0 %v2618
    %v2729 = vpop.f32.mrb[0].mxu0
    %v2730 = vadd.f32 0.0, %v2729
    %v2731 = vpop.f32.mrb[0].mxu0
    %2732 = vmatprep.mubr.f32.mxu0 0.0
    %2733 = vmatmul.mubr.f32.gmra.mrb[0].mxu0 %v2619
    %v2734 = vpop.f32.mrb[0].mxu0
    %v2735 = vadd.f32 0.0, %v2734
    %v2736 = vpop.f32.mrb[0].mxu0
    %2737 = vmatprep.mubr.f32.mxu0 0.0
    %2738 = vmatmul.mubr.f32.gmra.mrb[0].mxu0 %v2620
    %v2739 = vpop.f32.mrb[0].mxu0
    %v2740 = vadd.f32 0.0, %v2739
    %v2741 = vpop.f32.mrb[0].mxu0
    %2742 = vdwg.mxu0
    %v2743 = vadd.f32 %v2605, %v2705
    %v2744 = vadd.f32 %v2606, %v2710
    %v2745 = vadd.f32 %v2607, %v2715
    %v2746 = vadd.f32 %v2608, %v2720
    %v2747 = vadd.f32 %v2609, %v2725
    %v2748 = vadd.f32 %v2610, %v2730
    %v2749 = vadd.f32 %v2611, %v2735
    %v2750 = vadd.f32 %v2612, %v2740
    %v2751 = vld [vmem:[%s379 + $0x2] sm:$0xff]
    %v2752 = vld [vmem:[%s379 + $0x12] sm:$0xff]
    %v2753 = vld [vmem:[%s379 + $0x22] sm:$0xff]
    %v2754 = vld [vmem:[%s379 + $0x32] sm:$0xff]
    %v2755 = vld [vmem:[%s379 + $0x42] sm:$0xff]
    %v2756 = vld [vmem:[%s379 + $0x52] sm:$0xff]
    %v2757 = vld [vmem:[%s379 + $0x62] sm:$0xff]
    %v2758 = vld [vmem:[%s379 + $0x72] sm:$0xff]
    %s2759 = scalar_lea.vmem [#allocation8], 2176
    %v2760 = vld [vmem:[%s2759] sm:$0xff]
    %v2761 = vld [vmem:[%s2759 + $0x8] sm:$0xff]
    %v2762 = vld [vmem:[%s2759 + $0x10] sm:$0xff]
    %v2763 = vld [vmem:[%s2759 + $0x18] sm:$0xff]
    %v2764 = vld [vmem:[%s2759 + $0x20] sm:$0xff]
    %v2765 = vld [vmem:[%s2759 + $0x28] sm:$0xff]
    %v2766 = vld [vmem:[%s2759 + $0x30] sm:$0xff]
    %v2767 = vld [vmem:[%s2759 + $0x38] sm:$0xff]
    %v2768 = vld [vmem:[%s2759 + $0x40] sm:$0xff]
    %v2769 = vld [vmem:[%s2759 + $0x48] sm:$0xff]
    %v2770 = vld [vmem:[%s2759 + $0x50] sm:$0xff]
    %v2771 = vld [vmem:[%s2759 + $0x58] sm:$0xff]
    %v2772 = vld [vmem:[%s2759 + $0x60] sm:$0xff]
    %v2773 = vld [vmem:[%s2759 + $0x68] sm:$0xff]
    %v2774 = vld [vmem:[%s2759 + $0x70] sm:$0xff]
    %v2775 = vld [vmem:[%s2759 + $0x78] sm:$0xff]
    %2776 = vmatprep.subr.mxu0 0.0
    %2777 = vmatpush1.msra.mxu0 %v2760
    %2778 = vmatprep.subr.mxu0 0.0
    %2779 = vmatpush1.msra.mxu0 %v2761
    %2780 = vmatprep.subr.mxu0 0.0
    %2781 = vmatpush1.msra.mxu0 %v2762
    %2782 = vmatprep.subr.mxu0 0.0
    %2783 = vmatpush1.msra.mxu0 %v2763
    %2784 = vmatprep.subr.mxu0 0.0
    %2785 = vmatpush1.msra.mxu0 %v2764
    %2786 = vmatprep.subr.mxu0 0.0
    %2787 = vmatpush1.msra.mxu0 %v2765
    %2788 = vmatprep.subr.mxu0 0.0
    %2789 = vmatpush1.msra.mxu0 %v2766
    %2790 = vmatprep.subr.mxu0 0.0
    %2791 = vmatpush1.msra.mxu0 %v2767
    %2792 = vmatprep.subr.mxu0 0.0
    %2793 = vmatpush1.msra.mxu0 %v2768
    %2794 = vmatprep.subr.mxu0 0.0
    %2795 = vmatpush1.msra.mxu0 %v2769
    %2796 = vmatprep.subr.mxu0 0.0
    %2797 = vmatpush1.msra.mxu0 %v2770
    %2798 = vmatprep.subr.mxu0 0.0
    %2799 = vmatpush1.msra.mxu0 %v2771
    %2800 = vmatprep.subr.mxu0 0.0
    %2801 = vmatpush1.msra.mxu0 %v2772
    %2802 = vmatprep.subr.mxu0 0.0
    %2803 = vmatpush1.msra.mxu0 %v2773
    %2804 = vmatprep.subr.mxu0 0.0
    %2805 = vmatpush1.msra.mxu0 %v2774
    %2806 = vmatprep.subr.mxu0 0.0
    %2807 = vmatpush1.msra.mxu0 %v2775
    %2808 = vmatprep.subr.mxu0 0.0
    %2809 = vmatpush1.msra.mxu0 0.0
    %2810 = vmatprep.subr.mxu0 0.0
    %2811 = vmatpush1.msra.mxu0 0.0
    %2812 = vmatprep.subr.mxu0 0.0
    %2813 = vmatpush1.msra.mxu0 0.0
    %2814 = vmatprep.subr.mxu0 0.0
    %2815 = vmatpush1.msra.mxu0 0.0
    %2816 = vmatprep.subr.mxu0 0.0
    %2817 = vmatpush1.msra.mxu0 0.0
    %2818 = vmatprep.subr.mxu0 0.0
    %2819 = vmatpush1.msra.mxu0 0.0
    %2820 = vmatprep.subr.mxu0 0.0
    %2821 = vmatpush1.msra.mxu0 0.0
    %2822 = vmatprep.subr.mxu0 0.0
    %2823 = vmatpush1.msra.mxu0 0.0
    %2824 = vmatprep.subr.mxu0 0.0
    %2825 = vmatpush1.msra.mxu0 0.0
    %2826 = vmatprep.subr.mxu0 0.0
    %2827 = vmatpush1.msra.mxu0 0.0
    %2828 = vmatprep.subr.mxu0 0.0
    %2829 = vmatpush1.msra.mxu0 0.0
    %2830 = vmatprep.subr.mxu0 0.0
    %2831 = vmatpush1.msra.mxu0 0.0
    %2832 = vmatprep.subr.mxu0 0.0
    %2833 = vmatpush1.msra.mxu0 0.0
    %2834 = vmatprep.subr.mxu0 0.0
    %2835 = vmatpush1.msra.mxu0 0.0
    %2836 = vmatprep.subr.mxu0 0.0
    %2837 = vmatpush1.msra.mxu0 0.0
    %2838 = vmatprep.subr.mxu0 0.0
    %2839 = vmatpush1.msra.mxu0 0.0
    %2840 = vmatprep.mubr.f32.mxu0 0.0
    %2841 = vmatmul.mubr.f32.gmra.mrb[0].mxu0 %v2751
    %v2842 = vpop.f32.mrb[0].mxu0
    %v2843 = vadd.f32 0.0, %v2842
    %v2844 = vpop.f32.mrb[0].mxu0
    %2845 = vmatprep.mubr.f32.mxu0 0.0
    %2846 = vmatmul.mubr.f32.gmra.mrb[0].mxu0 %v2752
    %v2847 = vpop.f32.mrb[0].mxu0
    %v2848 = vadd.f32 0.0, %v2847
    %v2849 = vpop.f32.mrb[0].mxu0
    %2850 = vmatprep.mubr.f32.mxu0 0.0
    %2851 = vmatmul.mubr.f32.gmra.mrb[0].mxu0 %v2753
    %v2852 = vpop.f32.mrb[0].mxu0
    %v2853 = vadd.f32 0.0, %v2852
    %v2854 = vpop.f32.mrb[0].mxu0
    %2855 = vmatprep.mubr.f32.mxu0 0.0
    %2856 = vmatmul.mubr.f32.gmra.mrb[0].mxu0 %v2754
    %v2857 = vpop.f32.mrb[0].mxu0
    %v2858 = vadd.f32 0.0, %v2857
    %v2859 = vpop.f32.mrb[0].mxu0
    %2860 = vmatprep.mubr.f32.mxu0 0.0
    %2861 = vmatmul.mubr.f32.gmra.mrb[0].mxu0 %v2755
    %v2862 = vpop.f32.mrb[0].mxu0
    %v2863 = vadd.f32 0.0, %v2862
    %v2864 = vpop.f32.mrb[0].mxu0
    %2865 = vmatprep.mubr.f32.mxu0 0.0
    %2866 = vmatmul.mubr.f32.gmra.mrb[0].mxu0 %v2756
    %v2867 = vpop.f32.mrb[0].mxu0
    %v2868 = vadd.f32 0.0, %v2867
    %v2869 = vpop.f32.mrb[0].mxu0
    %2870 = vmatprep.mubr.f32.mxu0 0.0
    %2871 = vmatmul.mubr.f32.gmra.mrb[0].mxu0 %v2757
    %v2872 = vpop.f32.mrb[0].mxu0
    %v2873 = vadd.f32 0.0, %v2872
    %v2874 = vpop.f32.mrb[0].mxu0
    %2875 = vmatprep.mubr.f32.mxu0 0.0
    %2876 = vmatmul.mubr.f32.gmra.mrb[0].mxu0 %v2758
    %v2877 = vpop.f32.mrb[0].mxu0
    %v2878 = vadd.f32 0.0, %v2877
    %v2879 = vpop.f32.mrb[0].mxu0
    %2880 = vdwg.mxu0
    %v2881 = vadd.f32 %v2743, %v2843
    %v2882 = vadd.f32 %v2744, %v2848
    %v2883 = vadd.f32 %v2745, %v2853
    %v2884 = vadd.f32 %v2746, %v2858
    %v2885 = vadd.f32 %v2747, %v2863
    %v2886 = vadd.f32 %v2748, %v2868
    %v2887 = vadd.f32 %v2749, %v2873
    %v2888 = vadd.f32 %v2750, %v2878
    %v2889 = vld [vmem:[%s379 + $0x3] sm:$0xff]
    %v2890 = vld [vmem:[%s379 + $0x13] sm:$0xff]
    %v2891 = vld [vmem:[%s379 + $0x23] sm:$0xff]
    %v2892 = vld [vmem:[%s379 + $0x33] sm:$0xff]
    %v2893 = vld [vmem:[%s379 + $0x43] sm:$0xff]
    %v2894 = vld [vmem:[%s379 + $0x53] sm:$0xff]
    %v2895 = vld [vmem:[%s379 + $0x63] sm:$0xff]
    %v2896 = vld [vmem:[%s379 + $0x73] sm:$0xff]
    %s2897 = scalar_lea.vmem [#allocation8], 2304
    %v2898 = vld [vmem:[%s2897] sm:$0xff]
    %v2899 = vld [vmem:[%s2897 + $0x8] sm:$0xff]
    %v2900 = vld [vmem:[%s2897 + $0x10] sm:$0xff]
    %v2901 = vld [vmem:[%s2897 + $0x18] sm:$0xff]
    %v2902 = vld [vmem:[%s2897 + $0x20] sm:$0xff]
    %v2903 = vld [vmem:[%s2897 + $0x28] sm:$0xff]
    %v2904 = vld [vmem:[%s2897 + $0x30] sm:$0xff]
    %v2905 = vld [vmem:[%s2897 + $0x38] sm:$0xff]
    %v2906 = vld [vmem:[%s2897 + $0x40] sm:$0xff]
    %v2907 = vld [vmem:[%s2897 + $0x48] sm:$0xff]
    %v2908 = vld [vmem:[%s2897 + $0x50] sm:$0xff]
    %v2909 = vld [vmem:[%s2897 + $0x58] sm:$0xff]
    %v2910 = vld [vmem:[%s2897 + $0x60] sm:$0xff]
    %v2911 = vld [vmem:[%s2897 + $0x68] sm:$0xff]
    %v2912 = vld [vmem:[%s2897 + $0x70] sm:$0xff]
    %v2913 = vld [vmem:[%s2897 + $0x78] sm:$0xff]
    %2914 = vmatprep.subr.mxu0 0.0
    %2915 = vmatpush1.msra.mxu0 %v2898
    %2916 = vmatprep.subr.mxu0 0.0
    %2917 = vmatpush1.msra.mxu0 %v2899
    %2918 = vmatprep.subr.mxu0 0.0
    %2919 = vmatpush1.msra.mxu0 %v2900
    %2920 = vmatprep.subr.mxu0 0.0
    %2921 = vmatpush1.msra.mxu0 %v2901
    %2922 = vmatprep.subr.mxu0 0.0
    %2923 = vmatpush1.msra.mxu0 %v2902
    %2924 = vmatprep.subr.mxu0 0.0
    %2925 = vmatpush1.msra.mxu0 %v2903
    %2926 = vmatprep.subr.mxu0 0.0
    %2927 = vmatpush1.msra.mxu0 %v2904
    %2928 = vmatprep.subr.mxu0 0.0
    %2929 = vmatpush1.msra.mxu0 %v2905
    %2930 = vmatprep.subr.mxu0 0.0
    %2931 = vmatpush1.msra.mxu0 %v2906
    %2932 = vmatprep.subr.mxu0 0.0
    %2933 = vmatpush1.msra.mxu0 %v2907
    %2934 = vmatprep.subr.mxu0 0.0
    %2935 = vmatpush1.msra.mxu0 %v2908
    %2936 = vmatprep.subr.mxu0 0.0
    %2937 = vmatpush1.msra.mxu0 %v2909
    %2938 = vmatprep.subr.mxu0 0.0
    %2939 = vmatpush1.msra.mxu0 %v2910
    %2940 = vmatprep.subr.mxu0 0.0
    %2941 = vmatpush1.msra.mxu0 %v2911
    %2942 = vmatprep.subr.mxu0 0.0
    %2943 = vmatpush1.msra.mxu0 %v2912
    %2944 = vmatprep.subr.mxu0 0.0
    %2945 = vmatpush1.msra.mxu0 %v2913
    %2946 = vmatprep.subr.mxu0 0.0
    %2947 = vmatpush1.msra.mxu0 0.0
    %2948 = vmatprep.subr.mxu0 0.0
    %2949 = vmatpush1.msra.mxu0 0.0
    %2950 = vmatprep.subr.mxu0 0.0
    %2951 = vmatpush1.msra.mxu0 0.0
    %2952 = vmatprep.subr.mxu0 0.0
    %2953 = vmatpush1.msra.mxu0 0.0
    %2954 = vmatprep.subr.mxu0 0.0
    %2955 = vmatpush1.msra.mxu0 0.0
    %2956 = vmatprep.subr.mxu0 0.0
    %2957 = vmatpush1.msra.mxu0 0.0
    %2958 = vmatprep.subr.mxu0 0.0
    %2959 = vmatpush1.msra.mxu0 0.0
    %2960 = vmatprep.subr.mxu0 0.0
    %2961 = vmatpush1.msra.mxu0 0.0
    %2962 = vmatprep.subr.mxu0 0.0
    %2963 = vmatpush1.msra.mxu0 0.0
    %2964 = vmatprep.subr.mxu0 0.0
    %2965 = vmatpush1.msra.mxu0 0.0
    %2966 = vmatprep.subr.mxu0 0.0
    %2967 = vmatpush1.msra.mxu0 0.0
    %2968 = vmatprep.subr.mxu0 0.0
    %2969 = vmatpush1.msra.mxu0 0.0
    %2970 = vmatprep.subr.mxu0 0.0
    %2971 = vmatpush1.msra.mxu0 0.0
    %2972 = vmatprep.subr.mxu0 0.0
    %2973 = vmatpush1.msra.mxu0 0.0
    %2974 = vmatprep.subr.mxu0 0.0
    %2975 = vmatpush1.msra.mxu0 0.0
    %2976 = vmatprep.subr.mxu0 0.0
    %2977 = vmatpush1.msra.mxu0 0.0
    %2978 = vmatprep.mubr.f32.mxu0 0.0
    %2979 = vmatmul.mubr.f32.gmra.mrb[0].mxu0 %v2889
    %v2980 = vpop.f32.mrb[0].mxu0
    %v2981 = vadd.f32 0.0, %v2980
    %v2982 = vpop.f32.mrb[0].mxu0
    %2983 = vmatprep.mubr.f32.mxu0 0.0
    %2984 = vmatmul.mubr.f32.gmra.mrb[0].mxu0 %v2890
    %v2985 = vpop.f32.mrb[0].mxu0
    %v2986 = vadd.f32 0.0, %v2985
    %v2987 = vpop.f32.mrb[0].mxu0
    %2988 = vmatprep.mubr.f32.mxu0 0.0
    %2989 = vmatmul.mubr.f32.gmra.mrb[0].mxu0 %v2891
    %v2990 = vpop.f32.mrb[0].mxu0
    %v2991 = vadd.f32 0.0, %v2990
    %v2992 = vpop.f32.mrb[0].mxu0
    %2993 = vmatprep.mubr.f32.mxu0 0.0
    %2994 = vmatmul.mubr.f32.gmra.mrb[0].mxu0 %v2892
    %v2995 = vpop.f32.mrb[0].mxu0
    %v2996 = vadd.f32 0.0, %v2995
    %v2997 = vpop.f32.mrb[0].mxu0
    %2998 = vmatprep.mubr.f32.mxu0 0.0
    %2999 = vmatmul.mubr.f32.gmra.mrb[0].mxu0 %v2893
    %v3000 = vpop.f32.mrb[0].mxu0
    %v3001 = vadd.f32 0.0, %v3000
    %v3002 = vpop.f32.mrb[0].mxu0
    %3003 = vmatprep.mubr.f32.mxu0 0.0
    %3004 = vmatmul.mubr.f32.gmra.mrb[0].mxu0 %v2894
    %v3005 = vpop.f32.mrb[0].mxu0
    %v3006 = vadd.f32 0.0, %v3005
    %v3007 = vpop.f32.mrb[0].mxu0
    %3008 = vmatprep.mubr.f32.mxu0 0.0
    %3009 = vmatmul.mubr.f32.gmra.mrb[0].mxu0 %v2895
    %v3010 = vpop.f32.mrb[0].mxu0
    %v3011 = vadd.f32 0.0, %v3010
    %v3012 = vpop.f32.mrb[0].mxu0
    %3013 = vmatprep.mubr.f32.mxu0 0.0
    %3014 = vmatmul.mubr.f32.gmra.mrb[0].mxu0 %v2896
    %v3015 = vpop.f32.mrb[0].mxu0
    %v3016 = vadd.f32 0.0, %v3015
    %v3017 = vpop.f32.mrb[0].mxu0
    %3018 = vdwg.mxu0
    %v3019 = vadd.f32 %v2881, %v2981
    %v3020 = vadd.f32 %v2882, %v2986
    %v3021 = vadd.f32 %v2883, %v2991
    %v3022 = vadd.f32 %v2884, %v2996
    %v3023 = vadd.f32 %v2885, %v3001
    %v3024 = vadd.f32 %v2886, %v3006
    %v3025 = vadd.f32 %v2887, %v3011
    %v3026 = vadd.f32 %v2888, %v3016
    %v3027 = vld [vmem:[%s379 + $0x4] sm:$0xff]
    %v3028 = vld [vmem:[%s379 + $0x14] sm:$0xff]
    %v3029 = vld [vmem:[%s379 + $0x24] sm:$0xff]
    %v3030 = vld [vmem:[%s379 + $0x34] sm:$0xff]
    %v3031 = vld [vmem:[%s379 + $0x44] sm:$0xff]
    %v3032 = vld [vmem:[%s379 + $0x54] sm:$0xff]
    %v3033 = vld [vmem:[%s379 + $0x64] sm:$0xff]
    %v3034 = vld [vmem:[%s379 + $0x74] sm:$0xff]
    %s3035 = scalar_lea.vmem [#allocation8], 2432
    %v3036 = vld [vmem:[%s3035] sm:$0xff]
    %v3037 = vld [vmem:[%s3035 + $0x8] sm:$0xff]
    %v3038 = vld [vmem:[%s3035 + $0x10] sm:$0xff]
    %v3039 = vld [vmem:[%s3035 + $0x18] sm:$0xff]
    %v3040 = vld [vmem:[%s3035 + $0x20] sm:$0xff]
    %v3041 = vld [vmem:[%s3035 + $0x28] sm:$0xff]
    %v3042 = vld [vmem:[%s3035 + $0x30] sm:$0xff]
    %v3043 = vld [vmem:[%s3035 + $0x38] sm:$0xff]
    %v3044 = vld [vmem:[%s3035 + $0x40] sm:$0xff]
    %v3045 = vld [vmem:[%s3035 + $0x48] sm:$0xff]
    %v3046 = vld [vmem:[%s3035 + $0x50] sm:$0xff]
    %v3047 = vld [vmem:[%s3035 + $0x58] sm:$0xff]
    %v3048 = vld [vmem:[%s3035 + $0x60] sm:$0xff]
    %v3049 = vld [vmem:[%s3035 + $0x68] sm:$0xff]
    %v3050 = vld [vmem:[%s3035 + $0x70] sm:$0xff]
    %v3051 = vld [vmem:[%s3035 + $0x78] sm:$0xff]
    %3052 = vmatprep.subr.mxu0 0.0
    %3053 = vmatpush1.msra.mxu0 %v3036
    %3054 = vmatprep.subr.mxu0 0.0
    %3055 = vmatpush1.msra.mxu0 %v3037
    %3056 = vmatprep.subr.mxu0 0.0
    %3057 = vmatpush1.msra.mxu0 %v3038
    %3058 = vmatprep.subr.mxu0 0.0
    %3059 = vmatpush1.msra.mxu0 %v3039
    %3060 = vmatprep.subr.mxu0 0.0
    %3061 = vmatpush1.msra.mxu0 %v3040
    %3062 = vmatprep.subr.mxu0 0.0
    %3063 = vmatpush1.msra.mxu0 %v3041
    %3064 = vmatprep.subr.mxu0 0.0
    %3065 = vmatpush1.msra.mxu0 %v3042
    %3066 = vmatprep.subr.mxu0 0.0
    %3067 = vmatpush1.msra.mxu0 %v3043
    %3068 = vmatprep.subr.mxu0 0.0
    %3069 = vmatpush1.msra.mxu0 %v3044
    %3070 = vmatprep.subr.mxu0 0.0
    %3071 = vmatpush1.msra.mxu0 %v3045
    %3072 = vmatprep.subr.mxu0 0.0
    %3073 = vmatpush1.msra.mxu0 %v3046
    %3074 = vmatprep.subr.mxu0 0.0
    %3075 = vmatpush1.msra.mxu0 %v3047
    %3076 = vmatprep.subr.mxu0 0.0
    %3077 = vmatpush1.msra.mxu0 %v3048
    %3078 = vmatprep.subr.mxu0 0.0
    %3079 = vmatpush1.msra.mxu0 %v3049
    %3080 = vmatprep.subr.mxu0 0.0
    %3081 = vmatpush1.msra.mxu0 %v3050
    %3082 = vmatprep.subr.mxu0 0.0
    %3083 = vmatpush1.msra.mxu0 %v3051
    %3084 = vmatprep.subr.mxu0 0.0
    %3085 = vmatpush1.msra.mxu0 0.0
    %3086 = vmatprep.subr.mxu0 0.0
    %3087 = vmatpush1.msra.mxu0 0.0
    %3088 = vmatprep.subr.mxu0 0.0
    %3089 = vmatpush1.msra.mxu0 0.0
    %3090 = vmatprep.subr.mxu0 0.0
    %3091 = vmatpush1.msra.mxu0 0.0
    %3092 = vmatprep.subr.mxu0 0.0
    %3093 = vmatpush1.msra.mxu0 0.0
    %3094 = vmatprep.subr.mxu0 0.0
    %3095 = vmatpush1.msra.mxu0 0.0
    %3096 = vmatprep.subr.mxu0 0.0
    %3097 = vmatpush1.msra.mxu0 0.0
    %3098 = vmatprep.subr.mxu0 0.0
    %3099 = vmatpush1.msra.mxu0 0.0
    %3100 = vmatprep.subr.mxu0 0.0
    %3101 = vmatpush1.msra.mxu0 0.0
    %3102 = vmatprep.subr.mxu0 0.0
    %3103 = vmatpush1.msra.mxu0 0.0
    %3104 = vmatprep.subr.mxu0 0.0
    %3105 = vmatpush1.msra.mxu0 0.0
    %3106 = vmatprep.subr.mxu0 0.0
    %3107 = vmatpush1.msra.mxu0 0.0
    %3108 = vmatprep.subr.mxu0 0.0
    %3109 = vmatpush1.msra.mxu0 0.0
    %3110 = vmatprep.subr.mxu0 0.0
    %3111 = vmatpush1.msra.mxu0 0.0
    %3112 = vmatprep.subr.mxu0 0.0
    %3113 = vmatpush1.msra.mxu0 0.0
    %3114 = vmatprep.subr.mxu0 0.0
    %3115 = vmatpush1.msra.mxu0 0.0
    %3116 = vmatprep.mubr.f32.mxu0 0.0
    %3117 = vmatmul.mubr.f32.gmra.mrb[0].mxu0 %v3027
    %v3118 = vpop.f32.mrb[0].mxu0
    %v3119 = vadd.f32 0.0, %v3118
    %v3120 = vpop.f32.mrb[0].mxu0
    %3121 = vmatprep.mubr.f32.mxu0 0.0
    %3122 = vmatmul.mubr.f32.gmra.mrb[0].mxu0 %v3028
    %v3123 = vpop.f32.mrb[0].mxu0
    %v3124 = vadd.f32 0.0, %v3123
    %v3125 = vpop.f32.mrb[0].mxu0
    %3126 = vmatprep.mubr.f32.mxu0 0.0
    %3127 = vmatmul.mubr.f32.gmra.mrb[0].mxu0 %v3029
    %v3128 = vpop.f32.mrb[0].mxu0
    %v3129 = vadd.f32 0.0, %v3128
    %v3130 = vpop.f32.mrb[0].mxu0
    %3131 = vmatprep.mubr.f32.mxu0 0.0
    %3132 = vmatmul.mubr.f32.gmra.mrb[0].mxu0 %v3030
    %v3133 = vpop.f32.mrb[0].mxu0
    %v3134 = vadd.f32 0.0, %v3133
    %v3135 = vpop.f32.mrb[0].mxu0
    %3136 = vmatprep.mubr.f32.mxu0 0.0
    %3137 = vmatmul.mubr.f32.gmra.mrb[0].mxu0 %v3031
    %v3138 = vpop.f32.mrb[0].mxu0
    %v3139 = vadd.f32 0.0, %v3138
    %v3140 = vpop.f32.mrb[0].mxu0
    %3141 = vmatprep.mubr.f32.mxu0 0.0
    %3142 = vmatmul.mubr.f32.gmra.mrb[0].mxu0 %v3032
    %v3143 = vpop.f32.mrb[0].mxu0
    %v3144 = vadd.f32 0.0, %v3143
    %v3145 = vpop.f32.mrb[0].mxu0
    %3146 = vmatprep.mubr.f32.mxu0 0.0
    %3147 = vmatmul.mubr.f32.gmra.mrb[0].mxu0 %v3033
    %v3148 = vpop.f32.mrb[0].mxu0
    %v3149 = vadd.f32 0.0, %v3148
    %v3150 = vpop.f32.mrb[0].mxu0
    %3151 = vmatprep.mubr.f32.mxu0 0.0
    %3152 = vmatmul.mubr.f32.gmra.mrb[0].mxu0 %v3034
    %v3153 = vpop.f32.mrb[0].mxu0
    %v3154 = vadd.f32 0.0, %v3153
    %v3155 = vpop.f32.mrb[0].mxu0
    %3156 = vdwg.mxu0
    %v3157 = vadd.f32 %v3019, %v3119
    %v3158 = vadd.f32 %v3020, %v3124
    %v3159 = vadd.f32 %v3021, %v3129
    %v3160 = vadd.f32 %v3022, %v3134
    %v3161 = vadd.f32 %v3023, %v3139
    %v3162 = vadd.f32 %v3024, %v3144
    %v3163 = vadd.f32 %v3025, %v3149
    %v3164 = vadd.f32 %v3026, %v3154
    %v3165 = vld [vmem:[%s382] sm:$0xff]
    %v3166 = vld [vmem:[%s382 + $0x10] sm:$0xff]
    %v3167 = vld [vmem:[%s382 + $0x20] sm:$0xff]
    %v3168 = vld [vmem:[%s382 + $0x30] sm:$0xff]
    %v3169 = vld [vmem:[%s382 + $0x40] sm:$0xff]
    %v3170 = vld [vmem:[%s382 + $0x50] sm:$0xff]
    %v3171 = vld [vmem:[%s382 + $0x60] sm:$0xff]
    %v3172 = vld [vmem:[%s382 + $0x70] sm:$0xff]
    %s3173 = scalar_lea.vmem [#allocation8], 2560
    %v3174 = vld [vmem:[%s3173] sm:$0xff]
    %v3175 = vld [vmem:[%s3173 + $0x8] sm:$0xff]
    %v3176 = vld [vmem:[%s3173 + $0x10] sm:$0xff]
    %v3177 = vld [vmem:[%s3173 + $0x18] sm:$0xff]
    %v3178 = vld [vmem:[%s3173 + $0x20] sm:$0xff]
    %v3179 = vld [vmem:[%s3173 + $0x28] sm:$0xff]
    %v3180 = vld [vmem:[%s3173 + $0x30] sm:$0xff]
    %v3181 = vld [vmem:[%s3173 + $0x38] sm:$0xff]
    %v3182 = vld [vmem:[%s3173 + $0x40] sm:$0xff]
    %v3183 = vld [vmem:[%s3173 + $0x48] sm:$0xff]
    %v3184 = vld [vmem:[%s3173 + $0x50] sm:$0xff]
    %v3185 = vld [vmem:[%s3173 + $0x58] sm:$0xff]
    %v3186 = vld [vmem:[%s3173 + $0x60] sm:$0xff]
    %v3187 = vld [vmem:[%s3173 + $0x68] sm:$0xff]
    %v3188 = vld [vmem:[%s3173 + $0x70] sm:$0xff]
    %v3189 = vld [vmem:[%s3173 + $0x78] sm:$0xff]
    %3190 = vmatprep.subr.mxu0 0.0
    %3191 = vmatpush1.msra.mxu0 %v3174
    %3192 = vmatprep.subr.mxu0 0.0
    %3193 = vmatpush1.msra.mxu0 %v3175
    %3194 = vmatprep.subr.mxu0 0.0
    %3195 = vmatpush1.msra.mxu0 %v3176
    %3196 = vmatprep.subr.mxu0 0.0
    %3197 = vmatpush1.msra.mxu0 %v3177
    %3198 = vmatprep.subr.mxu0 0.0
    %3199 = vmatpush1.msra.mxu0 %v3178
    %3200 = vmatprep.subr.mxu0 0.0
    %3201 = vmatpush1.msra.mxu0 %v3179
    %3202 = vmatprep.subr.mxu0 0.0
    %3203 = vmatpush1.msra.mxu0 %v3180
    %3204 = vmatprep.subr.mxu0 0.0
    %3205 = vmatpush1.msra.mxu0 %v3181
    %3206 = vmatprep.subr.mxu0 0.0
    %3207 = vmatpush1.msra.mxu0 %v3182
    %3208 = vmatprep.subr.mxu0 0.0
    %3209 = vmatpush1.msra.mxu0 %v3183
    %3210 = vmatprep.subr.mxu0 0.0
    %3211 = vmatpush1.msra.mxu0 %v3184
    %3212 = vmatprep.subr.mxu0 0.0
    %3213 = vmatpush1.msra.mxu0 %v3185
    %3214 = vmatprep.subr.mxu0 0.0
    %3215 = vmatpush1.msra.mxu0 %v3186
    %3216 = vmatprep.subr.mxu0 0.0
    %3217 = vmatpush1.msra.mxu0 %v3187
    %3218 = vmatprep.subr.mxu0 0.0
    %3219 = vmatpush1.msra.mxu0 %v3188
    %3220 = vmatprep.subr.mxu0 0.0
    %3221 = vmatpush1.msra.mxu0 %v3189
    %3222 = vmatprep.subr.mxu0 0.0
    %3223 = vmatpush1.msra.mxu0 0.0
    %3224 = vmatprep.subr.mxu0 0.0
    %3225 = vmatpush1.msra.mxu0 0.0
    %3226 = vmatprep.subr.mxu0 0.0
    %3227 = vmatpush1.msra.mxu0 0.0
    %3228 = vmatprep.subr.mxu0 0.0
    %3229 = vmatpush1.msra.mxu0 0.0
    %3230 = vmatprep.subr.mxu0 0.0
    %3231 = vmatpush1.msra.mxu0 0.0
    %3232 = vmatprep.subr.mxu0 0.0
    %3233 = vmatpush1.msra.mxu0 0.0
    %3234 = vmatprep.subr.mxu0 0.0
    %3235 = vmatpush1.msra.mxu0 0.0
    %3236 = vmatprep.subr.mxu0 0.0
    %3237 = vmatpush1.msra.mxu0 0.0
    %3238 = vmatprep.subr.mxu0 0.0
    %3239 = vmatpush1.msra.mxu0 0.0
    %3240 = vmatprep.subr.mxu0 0.0
    %3241 = vmatpush1.msra.mxu0 0.0
    %3242 = vmatprep.subr.mxu0 0.0
    %3243 = vmatpush1.msra.mxu0 0.0
    %3244 = vmatprep.subr.mxu0 0.0
    %3245 = vmatpush1.msra.mxu0 0.0
    %3246 = vmatprep.subr.mxu0 0.0
    %3247 = vmatpush1.msra.mxu0 0.0
    %3248 = vmatprep.subr.mxu0 0.0
    %3249 = vmatpush1.msra.mxu0 0.0
    %3250 = vmatprep.subr.mxu0 0.0
    %3251 = vmatpush1.msra.mxu0 0.0
    %3252 = vmatprep.subr.mxu0 0.0
    %3253 = vmatpush1.msra.mxu0 0.0
    %3254 = vmatprep.mubr.f32.mxu0 0.0
    %3255 = vmatmul.mubr.f32.gmra.mrb[0].mxu0 %v3165
    %v3256 = vpop.f32.mrb[0].mxu0
    %v3257 = vadd.f32 0.0, %v3256
    %v3258 = vpop.f32.mrb[0].mxu0
    %3259 = vmatprep.mubr.f32.mxu0 0.0
    %3260 = vmatmul.mubr.f32.gmra.mrb[0].mxu0 %v3166
    %v3261 = vpop.f32.mrb[0].mxu0
    %v3262 = vadd.f32 0.0, %v3261
    %v3263 = vpop.f32.mrb[0].mxu0
    %3264 = vmatprep.mubr.f32.mxu0 0.0
    %3265 = vmatmul.mubr.f32.gmra.mrb[0].mxu0 %v3167
    %v3266 = vpop.f32.mrb[0].mxu0
    %v3267 = vadd.f32 0.0, %v3266
    %v3268 = vpop.f32.mrb[0].mxu0
    %3269 = vmatprep.mubr.f32.mxu0 0.0
    %3270 = vmatmul.mubr.f32.gmra.mrb[0].mxu0 %v3168
    %v3271 = vpop.f32.mrb[0].mxu0
    %v3272 = vadd.f32 0.0, %v3271
    %v3273 = vpop.f32.mrb[0].mxu0
    %3274 = vmatprep.mubr.f32.mxu0 0.0
    %3275 = vmatmul.mubr.f32.gmra.mrb[0].mxu0 %v3169
    %v3276 = vpop.f32.mrb[0].mxu0
    %v3277 = vadd.f32 0.0, %v3276
    %v3278 = vpop.f32.mrb[0].mxu0
    %3279 = vmatprep.mubr.f32.mxu0 0.0
    %3280 = vmatmul.mubr.f32.gmra.mrb[0].mxu0 %v3170
    %v3281 = vpop.f32.mrb[0].mxu0
    %v3282 = vadd.f32 0.0, %v3281
    %v3283 = vpop.f32.mrb[0].mxu0
    %3284 = vmatprep.mubr.f32.mxu0 0.0
    %3285 = vmatmul.mubr.f32.gmra.mrb[0].mxu0 %v3171
    %v3286 = vpop.f32.mrb[0].mxu0
    %v3287 = vadd.f32 0.0, %v3286
    %v3288 = vpop.f32.mrb[0].mxu0
    %3289 = vmatprep.mubr.f32.mxu0 0.0
    %3290 = vmatmul.mubr.f32.gmra.mrb[0].mxu0 %v3172
    %v3291 = vpop.f32.mrb[0].mxu0
    %v3292 = vadd.f32 0.0, %v3291
    %v3293 = vpop.f32.mrb[0].mxu0
    %3294 = vdwg.mxu0
    %v3295 = vadd.f32 %v3157, %v3257
    %v3296 = vadd.f32 %v3158, %v3262
    %v3297 = vadd.f32 %v3159, %v3267
    %v3298 = vadd.f32 %v3160, %v3272
    %v3299 = vadd.f32 %v3161, %v3277
    %v3300 = vadd.f32 %v3162, %v3282
    %v3301 = vadd.f32 %v3163, %v3287
    %v3302 = vadd.f32 %v3164, %v3292
    %v3303 = vld [vmem:[%s382 + $0x1] sm:$0xff]
    %v3304 = vld [vmem:[%s382 + $0x11] sm:$0xff]
    %v3305 = vld [vmem:[%s382 + $0x21] sm:$0xff]
    %v3306 = vld [vmem:[%s382 + $0x31] sm:$0xff]
    %v3307 = vld [vmem:[%s382 + $0x41] sm:$0xff]
    %v3308 = vld [vmem:[%s382 + $0x51] sm:$0xff]
    %v3309 = vld [vmem:[%s382 + $0x61] sm:$0xff]
    %v3310 = vld [vmem:[%s382 + $0x71] sm:$0xff]
    %s3311 = scalar_lea.vmem [#allocation8], 2688
    %v3312 = vld [vmem:[%s3311] sm:$0xff]
    %v3313 = vld [vmem:[%s3311 + $0x8] sm:$0xff]
    %v3314 = vld [vmem:[%s3311 + $0x10] sm:$0xff]
    %v3315 = vld [vmem:[%s3311 + $0x18] sm:$0xff]
    %v3316 = vld [vmem:[%s3311 + $0x20] sm:$0xff]
    %v3317 = vld [vmem:[%s3311 + $0x28] sm:$0xff]
    %v3318 = vld [vmem:[%s3311 + $0x30] sm:$0xff]
    %v3319 = vld [vmem:[%s3311 + $0x38] sm:$0xff]
    %v3320 = vld [vmem:[%s3311 + $0x40] sm:$0xff]
    %v3321 = vld [vmem:[%s3311 + $0x48] sm:$0xff]
    %v3322 = vld [vmem:[%s3311 + $0x50] sm:$0xff]
    %v3323 = vld [vmem:[%s3311 + $0x58] sm:$0xff]
    %v3324 = vld [vmem:[%s3311 + $0x60] sm:$0xff]
    %v3325 = vld [vmem:[%s3311 + $0x68] sm:$0xff]
    %v3326 = vld [vmem:[%s3311 + $0x70] sm:$0xff]
    %v3327 = vld [vmem:[%s3311 + $0x78] sm:$0xff]
    %3328 = vmatprep.subr.mxu0 0.0
    %3329 = vmatpush1.msra.mxu0 %v3312
    %3330 = vmatprep.subr.mxu0 0.0
    %3331 = vmatpush1.msra.mxu0 %v3313
    %3332 = vmatprep.subr.mxu0 0.0
    %3333 = vmatpush1.msra.mxu0 %v3314
    %3334 = vmatprep.subr.mxu0 0.0
    %3335 = vmatpush1.msra.mxu0 %v3315
    %3336 = vmatprep.subr.mxu0 0.0
    %3337 = vmatpush1.msra.mxu0 %v3316
    %3338 = vmatprep.subr.mxu0 0.0
    %3339 = vmatpush1.msra.mxu0 %v3317
    %3340 = vmatprep.subr.mxu0 0.0
    %3341 = vmatpush1.msra.mxu0 %v3318
    %3342 = vmatprep.subr.mxu0 0.0
    %3343 = vmatpush1.msra.mxu0 %v3319
    %3344 = vmatprep.subr.mxu0 0.0
    %3345 = vmatpush1.msra.mxu0 %v3320
    %3346 = vmatprep.subr.mxu0 0.0
    %3347 = vmatpush1.msra.mxu0 %v3321
    %3348 = vmatprep.subr.mxu0 0.0
    %3349 = vmatpush1.msra.mxu0 %v3322
    %3350 = vmatprep.subr.mxu0 0.0
    %3351 = vmatpush1.msra.mxu0 %v3323
    %3352 = vmatprep.subr.mxu0 0.0
    %3353 = vmatpush1.msra.mxu0 %v3324
    %3354 = vmatprep.subr.mxu0 0.0
    %3355 = vmatpush1.msra.mxu0 %v3325
    %3356 = vmatprep.subr.mxu0 0.0
    %3357 = vmatpush1.msra.mxu0 %v3326
    %3358 = vmatprep.subr.mxu0 0.0
    %3359 = vmatpush1.msra.mxu0 %v3327
    %3360 = vmatprep.subr.mxu0 0.0
    %3361 = vmatpush1.msra.mxu0 0.0
    %3362 = vmatprep.subr.mxu0 0.0
    %3363 = vmatpush1.msra.mxu0 0.0
    %3364 = vmatprep.subr.mxu0 0.0
    %3365 = vmatpush1.msra.mxu0 0.0
    %3366 = vmatprep.subr.mxu0 0.0
    %3367 = vmatpush1.msra.mxu0 0.0
    %3368 = vmatprep.subr.mxu0 0.0
    %3369 = vmatpush1.msra.mxu0 0.0
    %3370 = vmatprep.subr.mxu0 0.0
    %3371 = vmatpush1.msra.mxu0 0.0
    %3372 = vmatprep.subr.mxu0 0.0
    %3373 = vmatpush1.msra.mxu0 0.0
    %3374 = vmatprep.subr.mxu0 0.0
    %3375 = vmatpush1.msra.mxu0 0.0
    %3376 = vmatprep.subr.mxu0 0.0
    %3377 = vmatpush1.msra.mxu0 0.0
    %3378 = vmatprep.subr.mxu0 0.0
    %3379 = vmatpush1.msra.mxu0 0.0
    %3380 = vmatprep.subr.mxu0 0.0
    %3381 = vmatpush1.msra.mxu0 0.0
    %3382 = vmatprep.subr.mxu0 0.0
    %3383 = vmatpush1.msra.mxu0 0.0
    %3384 = vmatprep.subr.mxu0 0.0
    %3385 = vmatpush1.msra.mxu0 0.0
    %3386 = vmatprep.subr.mxu0 0.0
    %3387 = vmatpush1.msra.mxu0 0.0
    %3388 = vmatprep.subr.mxu0 0.0
    %3389 = vmatpush1.msra.mxu0 0.0
    %3390 = vmatprep.subr.mxu0 0.0
    %3391 = vmatpush1.msra.mxu0 0.0
    %3392 = vmatprep.mubr.f32.mxu0 0.0
    %3393 = vmatmul.mubr.f32.gmra.mrb[0].mxu0 %v3303
    %v3394 = vpop.f32.mrb[0].mxu0
    %v3395 = vadd.f32 0.0, %v3394
    %v3396 = vpop.f32.mrb[0].mxu0
    %3397 = vmatprep.mubr.f32.mxu0 0.0
    %3398 = vmatmul.mubr.f32.gmra.mrb[0].mxu0 %v3304
    %v3399 = vpop.f32.mrb[0].mxu0
    %v3400 = vadd.f32 0.0, %v3399
    %v3401 = vpop.f32.mrb[0].mxu0
    %3402 = vmatprep.mubr.f32.mxu0 0.0
    %3403 = vmatmul.mubr.f32.gmra.mrb[0].mxu0 %v3305
    %v3404 = vpop.f32.mrb[0].mxu0
    %v3405 = vadd.f32 0.0, %v3404
    %v3406 = vpop.f32.mrb[0].mxu0
    %3407 = vmatprep.mubr.f32.mxu0 0.0
    %3408 = vmatmul.mubr.f32.gmra.mrb[0].mxu0 %v3306
    %v3409 = vpop.f32.mrb[0].mxu0
    %v3410 = vadd.f32 0.0, %v3409
    %v3411 = vpop.f32.mrb[0].mxu0
    %3412 = vmatprep.mubr.f32.mxu0 0.0
    %3413 = vmatmul.mubr.f32.gmra.mrb[0].mxu0 %v3307
    %v3414 = vpop.f32.mrb[0].mxu0
    %v3415 = vadd.f32 0.0, %v3414
    %v3416 = vpop.f32.mrb[0].mxu0
    %3417 = vmatprep.mubr.f32.mxu0 0.0
    %3418 = vmatmul.mubr.f32.gmra.mrb[0].mxu0 %v3308
    %v3419 = vpop.f32.mrb[0].mxu0
    %v3420 = vadd.f32 0.0, %v3419
    %v3421 = vpop.f32.mrb[0].mxu0
    %3422 = vmatprep.mubr.f32.mxu0 0.0
    %3423 = vmatmul.mubr.f32.gmra.mrb[0].mxu0 %v3309
    %v3424 = vpop.f32.mrb[0].mxu0
    %v3425 = vadd.f32 0.0, %v3424
    %v3426 = vpop.f32.mrb[0].mxu0
    %3427 = vmatprep.mubr.f32.mxu0 0.0
    %3428 = vmatmul.mubr.f32.gmra.mrb[0].mxu0 %v3310
    %v3429 = vpop.f32.mrb[0].mxu0
    %v3430 = vadd.f32 0.0, %v3429
    %v3431 = vpop.f32.mrb[0].mxu0
    %3432 = vdwg.mxu0
    %v3433 = vadd.f32 %v3295, %v3395
    %v3434 = vadd.f32 %v3296, %v3400
    %v3435 = vadd.f32 %v3297, %v3405
    %v3436 = vadd.f32 %v3298, %v3410
    %v3437 = vadd.f32 %v3299, %v3415
    %v3438 = vadd.f32 %v3300, %v3420
    %v3439 = vadd.f32 %v3301, %v3425
    %v3440 = vadd.f32 %v3302, %v3430
    %v3441 = vld [vmem:[%s382 + $0x2] sm:$0xff]
    %v3442 = vld [vmem:[%s382 + $0x12] sm:$0xff]
    %v3443 = vld [vmem:[%s382 + $0x22] sm:$0xff]
    %v3444 = vld [vmem:[%s382 + $0x32] sm:$0xff]
    %v3445 = vld [vmem:[%s382 + $0x42] sm:$0xff]
    %v3446 = vld [vmem:[%s382 + $0x52] sm:$0xff]
    %v3447 = vld [vmem:[%s382 + $0x62] sm:$0xff]
    %v3448 = vld [vmem:[%s382 + $0x72] sm:$0xff]
    %s3449 = scalar_lea.vmem [#allocation8], 2816
    %v3450 = vld [vmem:[%s3449] sm:$0xff]
    %v3451 = vld [vmem:[%s3449 + $0x8] sm:$0xff]
    %v3452 = vld [vmem:[%s3449 + $0x10] sm:$0xff]
    %v3453 = vld [vmem:[%s3449 + $0x18] sm:$0xff]
    %v3454 = vld [vmem:[%s3449 + $0x20] sm:$0xff]
    %v3455 = vld [vmem:[%s3449 + $0x28] sm:$0xff]
    %v3456 = vld [vmem:[%s3449 + $0x30] sm:$0xff]
    %v3457 = vld [vmem:[%s3449 + $0x38] sm:$0xff]
    %v3458 = vld [vmem:[%s3449 + $0x40] sm:$0xff]
    %v3459 = vld [vmem:[%s3449 + $0x48] sm:$0xff]
    %v3460 = vld [vmem:[%s3449 + $0x50] sm:$0xff]
    %v3461 = vld [vmem:[%s3449 + $0x58] sm:$0xff]
    %v3462 = vld [vmem:[%s3449 + $0x60] sm:$0xff]
    %v3463 = vld [vmem:[%s3449 + $0x68] sm:$0xff]
    %v3464 = vld [vmem:[%s3449 + $0x70] sm:$0xff]
    %v3465 = vld [vmem:[%s3449 + $0x78] sm:$0xff]
    %3466 = vmatprep.subr.mxu0 0.0
    %3467 = vmatpush1.msra.mxu0 %v3450
    %3468 = vmatprep.subr.mxu0 0.0
    %3469 = vmatpush1.msra.mxu0 %v3451
    %3470 = vmatprep.subr.mxu0 0.0
    %3471 = vmatpush1.msra.mxu0 %v3452
    %3472 = vmatprep.subr.mxu0 0.0
    %3473 = vmatpush1.msra.mxu0 %v3453
    %3474 = vmatprep.subr.mxu0 0.0
    %3475 = vmatpush1.msra.mxu0 %v3454
    %3476 = vmatprep.subr.mxu0 0.0
    %3477 = vmatpush1.msra.mxu0 %v3455
    %3478 = vmatprep.subr.mxu0 0.0
    %3479 = vmatpush1.msra.mxu0 %v3456
    %3480 = vmatprep.subr.mxu0 0.0
    %3481 = vmatpush1.msra.mxu0 %v3457
    %3482 = vmatprep.subr.mxu0 0.0
    %3483 = vmatpush1.msra.mxu0 %v3458
    %3484 = vmatprep.subr.mxu0 0.0
    %3485 = vmatpush1.msra.mxu0 %v3459
    %3486 = vmatprep.subr.mxu0 0.0
    %3487 = vmatpush1.msra.mxu0 %v3460
    %3488 = vmatprep.subr.mxu0 0.0
    %3489 = vmatpush1.msra.mxu0 %v3461
    %3490 = vmatprep.subr.mxu0 0.0
    %3491 = vmatpush1.msra.mxu0 %v3462
    %3492 = vmatprep.subr.mxu0 0.0
    %3493 = vmatpush1.msra.mxu0 %v3463
    %3494 = vmatprep.subr.mxu0 0.0
    %3495 = vmatpush1.msra.mxu0 %v3464
    %3496 = vmatprep.subr.mxu0 0.0
    %3497 = vmatpush1.msra.mxu0 %v3465
    %3498 = vmatprep.subr.mxu0 0.0
    %3499 = vmatpush1.msra.mxu0 0.0
    %3500 = vmatprep.subr.mxu0 0.0
    %3501 = vmatpush1.msra.mxu0 0.0
    %3502 = vmatprep.subr.mxu0 0.0
    %3503 = vmatpush1.msra.mxu0 0.0
    %3504 = vmatprep.subr.mxu0 0.0
    %3505 = vmatpush1.msra.mxu0 0.0
    %3506 = vmatprep.subr.mxu0 0.0
    %3507 = vmatpush1.msra.mxu0 0.0
    %3508 = vmatprep.subr.mxu0 0.0
    %3509 = vmatpush1.msra.mxu0 0.0
    %3510 = vmatprep.subr.mxu0 0.0
    %3511 = vmatpush1.msra.mxu0 0.0
    %3512 = vmatprep.subr.mxu0 0.0
    %3513 = vmatpush1.msra.mxu0 0.0
    %3514 = vmatprep.subr.mxu0 0.0
    %3515 = vmatpush1.msra.mxu0 0.0
    %3516 = vmatprep.subr.mxu0 0.0
    %3517 = vmatpush1.msra.mxu0 0.0
    %3518 = vmatprep.subr.mxu0 0.0
    %3519 = vmatpush1.msra.mxu0 0.0
    %3520 = vmatprep.subr.mxu0 0.0
    %3521 = vmatpush1.msra.mxu0 0.0
    %3522 = vmatprep.subr.mxu0 0.0
    %3523 = vmatpush1.msra.mxu0 0.0
    %3524 = vmatprep.subr.mxu0 0.0
    %3525 = vmatpush1.msra.mxu0 0.0
    %3526 = vmatprep.subr.mxu0 0.0
    %3527 = vmatpush1.msra.mxu0 0.0
    %3528 = vmatprep.subr.mxu0 0.0
    %3529 = vmatpush1.msra.mxu0 0.0
    %3530 = vmatprep.mubr.f32.mxu0 0.0
    %3531 = vmatmul.mubr.f32.gmra.mrb[0].mxu0 %v3441
    %v3532 = vpop.f32.mrb[0].mxu0
    %v3533 = vadd.f32 0.0, %v3532
    %v3534 = vpop.f32.mrb[0].mxu0
    %3535 = vmatprep.mubr.f32.mxu0 0.0
    %3536 = vmatmul.mubr.f32.gmra.mrb[0].mxu0 %v3442
    %v3537 = vpop.f32.mrb[0].mxu0
    %v3538 = vadd.f32 0.0, %v3537
    %v3539 = vpop.f32.mrb[0].mxu0
    %3540 = vmatprep.mubr.f32.mxu0 0.0
    %3541 = vmatmul.mubr.f32.gmra.mrb[0].mxu0 %v3443
    %v3542 = vpop.f32.mrb[0].mxu0
    %v3543 = vadd.f32 0.0, %v3542
    %v3544 = vpop.f32.mrb[0].mxu0
    %3545 = vmatprep.mubr.f32.mxu0 0.0
    %3546 = vmatmul.mubr.f32.gmra.mrb[0].mxu0 %v3444
    %v3547 = vpop.f32.mrb[0].mxu0
    %v3548 = vadd.f32 0.0, %v3547
    %v3549 = vpop.f32.mrb[0].mxu0
    %3550 = vmatprep.mubr.f32.mxu0 0.0
    %3551 = vmatmul.mubr.f32.gmra.mrb[0].mxu0 %v3445
    %v3552 = vpop.f32.mrb[0].mxu0
    %v3553 = vadd.f32 0.0, %v3552
    %v3554 = vpop.f32.mrb[0].mxu0
    %3555 = vmatprep.mubr.f32.mxu0 0.0
    %3556 = vmatmul.mubr.f32.gmra.mrb[0].mxu0 %v3446
    %v3557 = vpop.f32.mrb[0].mxu0
    %v3558 = vadd.f32 0.0, %v3557
    %v3559 = vpop.f32.mrb[0].mxu0
    %3560 = vmatprep.mubr.f32.mxu0 0.0
    %3561 = vmatmul.mubr.f32.gmra.mrb[0].mxu0 %v3447
    %v3562 = vpop.f32.mrb[0].mxu0
    %v3563 = vadd.f32 0.0, %v3562
    %v3564 = vpop.f32.mrb[0].mxu0
    %3565 = vmatprep.mubr.f32.mxu0 0.0
    %3566 = vmatmul.mubr.f32.gmra.mrb[0].mxu0 %v3448
    %v3567 = vpop.f32.mrb[0].mxu0
    %v3568 = vadd.f32 0.0, %v3567
    %v3569 = vpop.f32.mrb[0].mxu0
    %3570 = vdwg.mxu0
    %v3571 = vadd.f32 %v3433, %v3533
    %v3572 = vadd.f32 %v3434, %v3538
    %v3573 = vadd.f32 %v3435, %v3543
    %v3574 = vadd.f32 %v3436, %v3548
    %v3575 = vadd.f32 %v3437, %v3553
    %v3576 = vadd.f32 %v3438, %v3558
    %v3577 = vadd.f32 %v3439, %v3563
    %v3578 = vadd.f32 %v3440, %v3568
    %v3579 = vld [vmem:[%s382 + $0x3] sm:$0xff]
    %v3580 = vld [vmem:[%s382 + $0x13] sm:$0xff]
    %v3581 = vld [vmem:[%s382 + $0x23] sm:$0xff]
    %v3582 = vld [vmem:[%s382 + $0x33] sm:$0xff]
    %v3583 = vld [vmem:[%s382 + $0x43] sm:$0xff]
    %v3584 = vld [vmem:[%s382 + $0x53] sm:$0xff]
    %v3585 = vld [vmem:[%s382 + $0x63] sm:$0xff]
    %v3586 = vld [vmem:[%s382 + $0x73] sm:$0xff]
    %s3587 = scalar_lea.vmem [#allocation8], 2944
    %v3588 = vld [vmem:[%s3587] sm:$0xff]
    %v3589 = vld [vmem:[%s3587 + $0x8] sm:$0xff]
    %v3590 = vld [vmem:[%s3587 + $0x10] sm:$0xff]
    %v3591 = vld [vmem:[%s3587 + $0x18] sm:$0xff]
    %v3592 = vld [vmem:[%s3587 + $0x20] sm:$0xff]
    %v3593 = vld [vmem:[%s3587 + $0x28] sm:$0xff]
    %v3594 = vld [vmem:[%s3587 + $0x30] sm:$0xff]
    %v3595 = vld [vmem:[%s3587 + $0x38] sm:$0xff]
    %v3596 = vld [vmem:[%s3587 + $0x40] sm:$0xff]
    %v3597 = vld [vmem:[%s3587 + $0x48] sm:$0xff]
    %v3598 = vld [vmem:[%s3587 + $0x50] sm:$0xff]
    %v3599 = vld [vmem:[%s3587 + $0x58] sm:$0xff]
    %v3600 = vld [vmem:[%s3587 + $0x60] sm:$0xff]
    %v3601 = vld [vmem:[%s3587 + $0x68] sm:$0xff]
    %v3602 = vld [vmem:[%s3587 + $0x70] sm:$0xff]
    %v3603 = vld [vmem:[%s3587 + $0x78] sm:$0xff]
    %3604 = vmatprep.subr.mxu0 0.0
    %3605 = vmatpush1.msra.mxu0 %v3588
    %3606 = vmatprep.subr.mxu0 0.0
    %3607 = vmatpush1.msra.mxu0 %v3589
    %3608 = vmatprep.subr.mxu0 0.0
    %3609 = vmatpush1.msra.mxu0 %v3590
    %3610 = vmatprep.subr.mxu0 0.0
    %3611 = vmatpush1.msra.mxu0 %v3591
    %3612 = vmatprep.subr.mxu0 0.0
    %3613 = vmatpush1.msra.mxu0 %v3592
    %3614 = vmatprep.subr.mxu0 0.0
    %3615 = vmatpush1.msra.mxu0 %v3593
    %3616 = vmatprep.subr.mxu0 0.0
    %3617 = vmatpush1.msra.mxu0 %v3594
    %3618 = vmatprep.subr.mxu0 0.0
    %3619 = vmatpush1.msra.mxu0 %v3595
    %3620 = vmatprep.subr.mxu0 0.0
    %3621 = vmatpush1.msra.mxu0 %v3596
    %3622 = vmatprep.subr.mxu0 0.0
    %3623 = vmatpush1.msra.mxu0 %v3597
    %3624 = vmatprep.subr.mxu0 0.0
    %3625 = vmatpush1.msra.mxu0 %v3598
    %3626 = vmatprep.subr.mxu0 0.0
    %3627 = vmatpush1.msra.mxu0 %v3599
    %3628 = vmatprep.subr.mxu0 0.0
    %3629 = vmatpush1.msra.mxu0 %v3600
    %3630 = vmatprep.subr.mxu0 0.0
    %3631 = vmatpush1.msra.mxu0 %v3601
    %3632 = vmatprep.subr.mxu0 0.0
    %3633 = vmatpush1.msra.mxu0 %v3602
    %3634 = vmatprep.subr.mxu0 0.0
    %3635 = vmatpush1.msra.mxu0 %v3603
    %3636 = vmatprep.subr.mxu0 0.0
    %3637 = vmatpush1.msra.mxu0 0.0
    %3638 = vmatprep.subr.mxu0 0.0
    %3639 = vmatpush1.msra.mxu0 0.0
    %3640 = vmatprep.subr.mxu0 0.0
    %3641 = vmatpush1.msra.mxu0 0.0
    %3642 = vmatprep.subr.mxu0 0.0
    %3643 = vmatpush1.msra.mxu0 0.0
    %3644 = vmatprep.subr.mxu0 0.0
    %3645 = vmatpush1.msra.mxu0 0.0
    %3646 = vmatprep.subr.mxu0 0.0
    %3647 = vmatpush1.msra.mxu0 0.0
    %3648 = vmatprep.subr.mxu0 0.0
    %3649 = vmatpush1.msra.mxu0 0.0
    %3650 = vmatprep.subr.mxu0 0.0
    %3651 = vmatpush1.msra.mxu0 0.0
    %3652 = vmatprep.subr.mxu0 0.0
    %3653 = vmatpush1.msra.mxu0 0.0
    %3654 = vmatprep.subr.mxu0 0.0
    %3655 = vmatpush1.msra.mxu0 0.0
    %3656 = vmatprep.subr.mxu0 0.0
    %3657 = vmatpush1.msra.mxu0 0.0
    %3658 = vmatprep.subr.mxu0 0.0
    %3659 = vmatpush1.msra.mxu0 0.0
    %3660 = vmatprep.subr.mxu0 0.0
    %3661 = vmatpush1.msra.mxu0 0.0
    %3662 = vmatprep.subr.mxu0 0.0
    %3663 = vmatpush1.msra.mxu0 0.0
    %3664 = vmatprep.subr.mxu0 0.0
    %3665 = vmatpush1.msra.mxu0 0.0
    %3666 = vmatprep.subr.mxu0 0.0
    %3667 = vmatpush1.msra.mxu0 0.0
    %3668 = vmatprep.mubr.f32.mxu0 0.0
    %3669 = vmatmul.mubr.f32.gmra.mrb[0].mxu0 %v3579
    %v3670 = vpop.f32.mrb[0].mxu0
    %v3671 = vadd.f32 0.0, %v3670
    %v3672 = vpop.f32.mrb[0].mxu0
    %3673 = vmatprep.mubr.f32.mxu0 0.0
    %3674 = vmatmul.mubr.f32.gmra.mrb[0].mxu0 %v3580
    %v3675 = vpop.f32.mrb[0].mxu0
    %v3676 = vadd.f32 0.0, %v3675
    %v3677 = vpop.f32.mrb[0].mxu0
    %3678 = vmatprep.mubr.f32.mxu0 0.0
    %3679 = vmatmul.mubr.f32.gmra.mrb[0].mxu0 %v3581
    %v3680 = vpop.f32.mrb[0].mxu0
    %v3681 = vadd.f32 0.0, %v3680
    %v3682 = vpop.f32.mrb[0].mxu0
    %3683 = vmatprep.mubr.f32.mxu0 0.0
    %3684 = vmatmul.mubr.f32.gmra.mrb[0].mxu0 %v3582
    %v3685 = vpop.f32.mrb[0].mxu0
    %v3686 = vadd.f32 0.0, %v3685
    %v3687 = vpop.f32.mrb[0].mxu0
    %3688 = vmatprep.mubr.f32.mxu0 0.0
    %3689 = vmatmul.mubr.f32.gmra.mrb[0].mxu0 %v3583
    %v3690 = vpop.f32.mrb[0].mxu0
    %v3691 = vadd.f32 0.0, %v3690
    %v3692 = vpop.f32.mrb[0].mxu0
    %3693 = vmatprep.mubr.f32.mxu0 0.0
    %3694 = vmatmul.mubr.f32.gmra.mrb[0].mxu0 %v3584
    %v3695 = vpop.f32.mrb[0].mxu0
    %v3696 = vadd.f32 0.0, %v3695
    %v3697 = vpop.f32.mrb[0].mxu0
    %3698 = vmatprep.mubr.f32.mxu0 0.0
    %3699 = vmatmul.mubr.f32.gmra.mrb[0].mxu0 %v3585
    %v3700 = vpop.f32.mrb[0].mxu0
    %v3701 = vadd.f32 0.0, %v3700
    %v3702 = vpop.f32.mrb[0].mxu0
    %3703 = vmatprep.mubr.f32.mxu0 0.0
    %3704 = vmatmul.mubr.f32.gmra.mrb[0].mxu0 %v3586
    %v3705 = vpop.f32.mrb[0].mxu0
    %v3706 = vadd.f32 0.0, %v3705
    %v3707 = vpop.f32.mrb[0].mxu0
    %3708 = vdwg.mxu0
    %v3709 = vadd.f32 %v3571, %v3671
    %v3710 = vadd.f32 %v3572, %v3676
    %v3711 = vadd.f32 %v3573, %v3681
    %v3712 = vadd.f32 %v3574, %v3686
    %v3713 = vadd.f32 %v3575, %v3691
    %v3714 = vadd.f32 %v3576, %v3696
    %v3715 = vadd.f32 %v3577, %v3701
    %v3716 = vadd.f32 %v3578, %v3706
    %v3717 = vld [vmem:[%s382 + $0x4] sm:$0xff]
    %v3718 = vld [vmem:[%s382 + $0x14] sm:$0xff]
    %v3719 = vld [vmem:[%s382 + $0x24] sm:$0xff]
    %v3720 = vld [vmem:[%s382 + $0x34] sm:$0xff]
    %v3721 = vld [vmem:[%s382 + $0x44] sm:$0xff]
    %v3722 = vld [vmem:[%s382 + $0x54] sm:$0xff]
    %v3723 = vld [vmem:[%s382 + $0x64] sm:$0xff]
    %v3724 = vld [vmem:[%s382 + $0x74] sm:$0xff]
    %s3725 = scalar_lea.vmem [#allocation8], 3072
    %v3726 = vld [vmem:[%s3725] sm:$0xff]
    %v3727 = vld [vmem:[%s3725 + $0x8] sm:$0xff]
    %v3728 = vld [vmem:[%s3725 + $0x10] sm:$0xff]
    %v3729 = vld [vmem:[%s3725 + $0x18] sm:$0xff]
    %v3730 = vld [vmem:[%s3725 + $0x20] sm:$0xff]
    %v3731 = vld [vmem:[%s3725 + $0x28] sm:$0xff]
    %v3732 = vld [vmem:[%s3725 + $0x30] sm:$0xff]
    %v3733 = vld [vmem:[%s3725 + $0x38] sm:$0xff]
    %v3734 = vld [vmem:[%s3725 + $0x40] sm:$0xff]
    %v3735 = vld [vmem:[%s3725 + $0x48] sm:$0xff]
    %v3736 = vld [vmem:[%s3725 + $0x50] sm:$0xff]
    %v3737 = vld [vmem:[%s3725 + $0x58] sm:$0xff]
    %v3738 = vld [vmem:[%s3725 + $0x60] sm:$0xff]
    %v3739 = vld [vmem:[%s3725 + $0x68] sm:$0xff]
    %v3740 = vld [vmem:[%s3725 + $0x70] sm:$0xff]
    %v3741 = vld [vmem:[%s3725 + $0x78] sm:$0xff]
    %3742 = vmatprep.subr.mxu0 0.0
    %3743 = vmatpush1.msra.mxu0 %v3726
    %3744 = vmatprep.subr.mxu0 0.0
    %3745 = vmatpush1.msra.mxu0 %v3727
    %3746 = vmatprep.subr.mxu0 0.0
    %3747 = vmatpush1.msra.mxu0 %v3728
    %3748 = vmatprep.subr.mxu0 0.0
    %3749 = vmatpush1.msra.mxu0 %v3729
    %3750 = vmatprep.subr.mxu0 0.0
    %3751 = vmatpush1.msra.mxu0 %v3730
    %3752 = vmatprep.subr.mxu0 0.0
    %3753 = vmatpush1.msra.mxu0 %v3731
    %3754 = vmatprep.subr.mxu0 0.0
    %3755 = vmatpush1.msra.mxu0 %v3732
    %3756 = vmatprep.subr.mxu0 0.0
    %3757 = vmatpush1.msra.mxu0 %v3733
    %3758 = vmatprep.subr.mxu0 0.0
    %3759 = vmatpush1.msra.mxu0 %v3734
    %3760 = vmatprep.subr.mxu0 0.0
    %3761 = vmatpush1.msra.mxu0 %v3735
    %3762 = vmatprep.subr.mxu0 0.0
    %3763 = vmatpush1.msra.mxu0 %v3736
    %3764 = vmatprep.subr.mxu0 0.0
    %3765 = vmatpush1.msra.mxu0 %v3737
    %3766 = vmatprep.subr.mxu0 0.0
    %3767 = vmatpush1.msra.mxu0 %v3738
    %3768 = vmatprep.subr.mxu0 0.0
    %3769 = vmatpush1.msra.mxu0 %v3739
    %3770 = vmatprep.subr.mxu0 0.0
    %3771 = vmatpush1.msra.mxu0 %v3740
    %3772 = vmatprep.subr.mxu0 0.0
    %3773 = vmatpush1.msra.mxu0 %v3741
    %3774 = vmatprep.subr.mxu0 0.0
    %3775 = vmatpush1.msra.mxu0 0.0
    %3776 = vmatprep.subr.mxu0 0.0
    %3777 = vmatpush1.msra.mxu0 0.0
    %3778 = vmatprep.subr.mxu0 0.0
    %3779 = vmatpush1.msra.mxu0 0.0
    %3780 = vmatprep.subr.mxu0 0.0
    %3781 = vmatpush1.msra.mxu0 0.0
    %3782 = vmatprep.subr.mxu0 0.0
    %3783 = vmatpush1.msra.mxu0 0.0
    %3784 = vmatprep.subr.mxu0 0.0
    %3785 = vmatpush1.msra.mxu0 0.0
    %3786 = vmatprep.subr.mxu0 0.0
    %3787 = vmatpush1.msra.mxu0 0.0
    %3788 = vmatprep.subr.mxu0 0.0
    %3789 = vmatpush1.msra.mxu0 0.0
    %3790 = vmatprep.subr.mxu0 0.0
    %3791 = vmatpush1.msra.mxu0 0.0
    %3792 = vmatprep.subr.mxu0 0.0
    %3793 = vmatpush1.msra.mxu0 0.0
    %3794 = vmatprep.subr.mxu0 0.0
    %3795 = vmatpush1.msra.mxu0 0.0
    %3796 = vmatprep.subr.mxu0 0.0
    %3797 = vmatpush1.msra.mxu0 0.0
    %3798 = vmatprep.subr.mxu0 0.0
    %3799 = vmatpush1.msra.mxu0 0.0
    %3800 = vmatprep.subr.mxu0 0.0
    %3801 = vmatpush1.msra.mxu0 0.0
    %3802 = vmatprep.subr.mxu0 0.0
    %3803 = vmatpush1.msra.mxu0 0.0
    %3804 = vmatprep.subr.mxu0 0.0
    %3805 = vmatpush1.msra.mxu0 0.0
    %3806 = vmatprep.mubr.f32.mxu0 0.0
    %3807 = vmatmul.mubr.f32.gmra.mrb[0].mxu0 %v3717
    %v3808 = vpop.f32.mrb[0].mxu0
    %v3809 = vadd.f32 0.0, %v3808
    %v3810 = vpop.f32.mrb[0].mxu0
    %3811 = vmatprep.mubr.f32.mxu0 0.0
    %3812 = vmatmul.mubr.f32.gmra.mrb[0].mxu0 %v3718
    %v3813 = vpop.f32.mrb[0].mxu0
    %v3814 = vadd.f32 0.0, %v3813
    %v3815 = vpop.f32.mrb[0].mxu0
    %3816 = vmatprep.mubr.f32.mxu0 0.0
    %3817 = vmatmul.mubr.f32.gmra.mrb[0].mxu0 %v3719
    %v3818 = vpop.f32.mrb[0].mxu0
    %v3819 = vadd.f32 0.0, %v3818
    %v3820 = vpop.f32.mrb[0].mxu0
    %3821 = vmatprep.mubr.f32.mxu0 0.0
    %3822 = vmatmul.mubr.f32.gmra.mrb[0].mxu0 %v3720
    %v3823 = vpop.f32.mrb[0].mxu0
    %v3824 = vadd.f32 0.0, %v3823
    %v3825 = vpop.f32.mrb[0].mxu0
    %3826 = vmatprep.mubr.f32.mxu0 0.0
    %3827 = vmatmul.mubr.f32.gmra.mrb[0].mxu0 %v3721
    %v3828 = vpop.f32.mrb[0].mxu0
    %v3829 = vadd.f32 0.0, %v3828
    %v3830 = vpop.f32.mrb[0].mxu0
    %3831 = vmatprep.mubr.f32.mxu0 0.0
    %3832 = vmatmul.mubr.f32.gmra.mrb[0].mxu0 %v3722
    %v3833 = vpop.f32.mrb[0].mxu0
    %v3834 = vadd.f32 0.0, %v3833
    %v3835 = vpop.f32.mrb[0].mxu0
    %3836 = vmatprep.mubr.f32.mxu0 0.0
    %3837 = vmatmul.mubr.f32.gmra.mrb[0].mxu0 %v3723
    %v3838 = vpop.f32.mrb[0].mxu0
    %v3839 = vadd.f32 0.0, %v3838
    %v3840 = vpop.f32.mrb[0].mxu0
    %3841 = vmatprep.mubr.f32.mxu0 0.0
    %3842 = vmatmul.mubr.f32.gmra.mrb[0].mxu0 %v3724
    %v3843 = vpop.f32.mrb[0].mxu0
    %v3844 = vadd.f32 0.0, %v3843
    %v3845 = vpop.f32.mrb[0].mxu0
    %3846 = vdwg.mxu0
    %v3847 = vadd.f32 %v3709, %v3809
    %v3848 = vadd.f32 %v3710, %v3814
    %v3849 = vadd.f32 %v3711, %v3819
    %v3850 = vadd.f32 %v3712, %v3824
    %v3851 = vadd.f32 %v3713, %v3829
    %v3852 = vadd.f32 %v3714, %v3834
    %v3853 = vadd.f32 %v3715, %v3839
    %v3854 = vadd.f32 %v3716, %v3844
    %v3855 = vmax.f32 %v3847, 0.0
    %v3856 = vmax.f32 %v3848, 0.0
    %v3857 = vmax.f32 %v3849, 0.0
    %v3858 = vmax.f32 %v3850, 0.0
    %v3859 = vmax.f32 %v3851, 0.0
    %v3860 = vmax.f32 %v3852, 0.0
    %v3861 = vmax.f32 %v3853, 0.0
    %v3862 = vmax.f32 %v3854, 0.0
    %v3863 = vmax.f32 %v3855, %v3856
    %v3864 = vmax.f32 %v3857, %v3858
    %v3865 = vmax.f32 %v3859, %v3860
    %v3866 = vmax.f32 %v3861, %v3862
    %v3871 = vrot.slane %v3863, 1
    %v3872 = vrot.slane %v3864, 1
    %v3873 = vrot.slane %v3865, 1
    %v3874 = vrot.slane %v3866, 1
    %v3879 = vmax.f32 %v3863, %v3871
    %v3880 = vmax.f32 %v3864, %v3872
    %v3881 = vmax.f32 %v3865, %v3873
    %v3882 = vmax.f32 %v3866, %v3874
    %v3883 = vld [vmem:[%s0 + $0x1] sm:$0x1]
    %v3884 = vlaneseq
    %v3885 = vshrl.u32 %v3884, 7
    %v3886 = vsub.s32 0, %v3885
    %v3887 = vrot.slane %v3883, %v3886
    %3888 = vmatprep.subr.mxu0 0.0
    %3889 = vmatpush1.msra.mxu0 %v163
    %3890 = vmatprep.subr.mxu0 0.0
    %3891 = vmatpush1.msra.mxu0 %v164
    %3892 = vmatprep.subr.mxu0 0.0
    %3893 = vmatpush1.msra.mxu0 %v165
    %3894 = vmatprep.subr.mxu0 0.0
    %3895 = vmatpush1.msra.mxu0 %v166
    %3896 = vmatprep.subr.mxu0 0.0
    %3897 = vmatpush1.msra.mxu0 %v167
    %3898 = vmatprep.subr.mxu0 0.0
    %3899 = vmatpush1.msra.mxu0 %v168
    %3900 = vmatprep.subr.mxu0 0.0
    %3901 = vmatpush1.msra.mxu0 %v169
    %3902 = vmatprep.subr.mxu0 0.0
    %3903 = vmatpush1.msra.mxu0 %v170
    %3904 = vmatprep.subr.mxu0 0.0
    %3905 = vmatpush1.msra.mxu0 %v171
    %3906 = vmatprep.subr.mxu0 0.0
    %3907 = vmatpush1.msra.mxu0 %v172
    %3908 = vmatprep.subr.mxu0 0.0
    %3909 = vmatpush1.msra.mxu0 %v173
    %3910 = vmatprep.subr.mxu0 0.0
    %3911 = vmatpush1.msra.mxu0 %v174
    %3912 = vmatprep.subr.mxu0 0.0
    %3913 = vmatpush1.msra.mxu0 %v175
    %3914 = vmatprep.subr.mxu0 0.0
    %3915 = vmatpush1.msra.mxu0 %v176
    %3916 = vmatprep.subr.mxu0 0.0
    %3917 = vmatpush1.msra.mxu0 %v177
    %3918 = vmatprep.subr.mxu0 0.0
    %3919 = vmatpush1.msra.mxu0 %v178
    %3920 = vmatprep.subr.mxu0 0.0
    %3921 = vmatpush1.msra.mxu0 0.0
    %3922 = vmatprep.subr.mxu0 0.0
    %3923 = vmatpush1.msra.mxu0 0.0
    %3924 = vmatprep.subr.mxu0 0.0
    %3925 = vmatpush1.msra.mxu0 0.0
    %3926 = vmatprep.subr.mxu0 0.0
    %3927 = vmatpush1.msra.mxu0 0.0
    %3928 = vmatprep.subr.mxu0 0.0
    %3929 = vmatpush1.msra.mxu0 0.0
    %3930 = vmatprep.subr.mxu0 0.0
    %3931 = vmatpush1.msra.mxu0 0.0
    %3932 = vmatprep.subr.mxu0 0.0
    %3933 = vmatpush1.msra.mxu0 0.0
    %3934 = vmatprep.subr.mxu0 0.0
    %3935 = vmatpush1.msra.mxu0 0.0
    %3936 = vmatprep.subr.mxu0 0.0
    %3937 = vmatpush1.msra.mxu0 0.0
    %3938 = vmatprep.subr.mxu0 0.0
    %3939 = vmatpush1.msra.mxu0 0.0
    %3940 = vmatprep.subr.mxu0 0.0
    %3941 = vmatpush1.msra.mxu0 0.0
    %3942 = vmatprep.subr.mxu0 0.0
    %3943 = vmatpush1.msra.mxu0 0.0
    %3944 = vmatprep.subr.mxu0 0.0
    %3945 = vmatpush1.msra.mxu0 0.0
    %3946 = vmatprep.subr.mxu0 0.0
    %3947 = vmatpush1.msra.mxu0 0.0
    %3948 = vmatprep.subr.mxu0 0.0
    %3949 = vmatpush1.msra.mxu0 0.0
    %3950 = vmatprep.subr.mxu0 0.0
    %3951 = vmatpush1.msra.mxu0 0.0
    %3952 = vmatprep.mubr.f32.mxu0 0.0
    %3953 = vmatmul.mubr.f32.gmra.mrb[0].mxu0 %v3887
    %v3954 = vpop.f32.mrb[0].mxu0
    %v3955 = vadd.f32 %v196, %v3954
    %v3956 = vpop.f32.mrb[0].mxu0
    %3957 = vmatprep.mubr.f32.mxu0 0.0
    %3958 = vmatmul.mubr.f32.gmra.mrb[0].mxu0 %v3887
    %v3959 = vpop.f32.mrb[0].mxu0
    %v3960 = vadd.f32 %v196, %v3959
    %v3961 = vpop.f32.mrb[0].mxu0
    %3962 = vmatprep.mubr.f32.mxu0 0.0
    %3963 = vmatmul.mubr.f32.gmra.mrb[0].mxu0 %v3887
    %v3964 = vpop.f32.mrb[0].mxu0
    %v3965 = vadd.f32 %v196, %v3964
    %v3966 = vpop.f32.mrb[0].mxu0
    %3967 = vmatprep.mubr.f32.mxu0 0.0
    %3968 = vmatmul.mubr.f32.gmra.mrb[0].mxu0 %v3887
    %v3969 = vpop.f32.mrb[0].mxu0
    %v3970 = vadd.f32 %v196, %v3969
    %v3971 = vpop.f32.mrb[0].mxu0
    %3972 = vmatprep.mubr.f32.mxu0 0.0
    %3973 = vmatmul.mubr.f32.gmra.mrb[0].mxu0 %v3887
    %v3974 = vpop.f32.mrb[0].mxu0
    %v3975 = vadd.f32 %v196, %v3974
    %v3976 = vpop.f32.mrb[0].mxu0
    %3977 = vmatprep.mubr.f32.mxu0 0.0
    %3978 = vmatmul.mubr.f32.gmra.mrb[0].mxu0 %v3887
    %v3979 = vpop.f32.mrb[0].mxu0
    %v3980 = vadd.f32 %v196, %v3979
    %v3981 = vpop.f32.mrb[0].mxu0
    %3982 = vmatprep.mubr.f32.mxu0 0.0
    %3983 = vmatmul.mubr.f32.gmra.mrb[0].mxu0 %v3887
    %v3984 = vpop.f32.mrb[0].mxu0
    %v3985 = vadd.f32 %v196, %v3984
    %v3986 = vpop.f32.mrb[0].mxu0
    %3987 = vmatprep.mubr.f32.mxu0 0.0
    %3988 = vmatmul.mubr.f32.gmra.mrb[0].mxu0 %v3887
    %v3989 = vpop.f32.mrb[0].mxu0
    %v3990 = vadd.f32 %v196, %v3989
    %v3991 = vpop.f32.mrb[0].mxu0
    %3992 = vmatprep.mubr.f32.mxu0 0.0
    %3993 = vmatmul.mubr.f32.gmra.mrb[0].mxu0 %v3887
    %v3994 = vpop.f32.mrb[0].mxu0
    %v3995 = vadd.f32 %v196, %v3994
    %v3996 = vpop.f32.mrb[0].mxu0
    %3997 = vmatprep.mubr.f32.mxu0 0.0
    %3998 = vmatmul.mubr.f32.gmra.mrb[0].mxu0 %v3887
    %v3999 = vpop.f32.mrb[0].mxu0
    %v4000 = vadd.f32 %v196, %v3999
    %v4001 = vpop.f32.mrb[0].mxu0
    %4002 = vmatprep.mubr.f32.mxu0 0.0
    %4003 = vmatmul.mubr.f32.gmra.mrb[0].mxu0 %v3887
    %v4004 = vpop.f32.mrb[0].mxu0
    %v4005 = vadd.f32 %v196, %v4004
    %v4006 = vpop.f32.mrb[0].mxu0
    %4007 = vmatprep.mubr.f32.mxu0 0.0
    %4008 = vmatmul.mubr.f32.gmra.mrb[0].mxu0 %v3887
    %v4009 = vpop.f32.mrb[0].mxu0
    %v4010 = vadd.f32 %v196, %v4009
    %v4011 = vpop.f32.mrb[0].mxu0
    %4012 = vmatprep.mubr.f32.mxu0 0.0
    %4013 = vmatmul.mubr.f32.gmra.mrb[0].mxu0 %v3887
    %v4014 = vpop.f32.mrb[0].mxu0
    %v4015 = vadd.f32 %v196, %v4014
    %v4016 = vpop.f32.mrb[0].mxu0
    %4017 = vmatprep.mubr.f32.mxu0 0.0
    %4018 = vmatmul.mubr.f32.gmra.mrb[0].mxu0 %v3887
    %v4019 = vpop.f32.mrb[0].mxu0
    %v4020 = vadd.f32 %v196, %v4019
    %v4021 = vpop.f32.mrb[0].mxu0
    %4022 = vmatprep.mubr.f32.mxu0 0.0
    %4023 = vmatmul.mubr.f32.gmra.mrb[0].mxu0 %v3887
    %v4024 = vpop.f32.mrb[0].mxu0
    %v4025 = vadd.f32 %v196, %v4024
    %v4026 = vpop.f32.mrb[0].mxu0
    %4027 = vmatprep.mubr.f32.mxu0 0.0
    %4028 = vmatmul.mubr.f32.gmra.mrb[0].mxu0 %v3887
    %v4029 = vpop.f32.mrb[0].mxu0
    %v4030 = vadd.f32 %v196, %v4029
    %v4031 = vpop.f32.mrb[0].mxu0
    %4032 = vmatprep.mubr.f32.mxu0 0.0
    %4033 = vmatmul.mubr.f32.gmra.mrb[0].mxu0 %v3887
    %v4034 = vpop.f32.mrb[0].mxu0
    %v4035 = vadd.f32 %v196, %v4034
    %v4036 = vpop.f32.mrb[0].mxu0
    %4037 = vmatprep.mubr.f32.mxu0 0.0
    %4038 = vmatmul.mubr.f32.gmra.mrb[0].mxu0 %v3887
    %v4039 = vpop.f32.mrb[0].mxu0
    %v4040 = vadd.f32 %v196, %v4039
    %v4041 = vpop.f32.mrb[0].mxu0
    %4042 = vdwg.mxu0
    %v4043 = vmax.f32 %v3955, 0.0
    %v4044 = vmax.f32 %v3960, 0.0
    %v4045 = vmax.f32 %v3965, 0.0
    %v4046 = vmax.f32 %v3970, 0.0
    %v4047 = vmax.f32 %v3975, 0.0
    %v4048 = vmax.f32 %v3980, 0.0
    %v4049 = vmax.f32 %v3985, 0.0
    %v4050 = vmax.f32 %v3990, 0.0
    %v4051 = vmax.f32 %v3995, 0.0
    %v4052 = vmax.f32 %v4000, 0.0
    %v4053 = vmax.f32 %v4005, 0.0
    %v4054 = vmax.f32 %v4010, 0.0
    %v4055 = vmax.f32 %v4015, 0.0
    %v4056 = vmax.f32 %v4020, 0.0
    %v4057 = vmax.f32 %v4025, 0.0
    %v4058 = vmax.f32 %v4030, 0.0
    %v4059 = vmax.f32 %v4035, 0.0
    %v4060 = vmax.f32 %v4040, 0.0
    %s4061 = scalar_lea.vmem [#allocation2], 192
    %4062 = vst [vmem:[%s4061] sm:$0xff] %v4043
    %4063 = vst [vmem:[%s4061 + $0x8] sm:$0xf] %v4044
    %s4064 = scalar_lea.vmem [#allocation2], 208
    %4065 = vst [vmem:[%s4064 - $0x4] sm:$0xf0] %v4044
    %4066 = vst [vmem:[%s4064 + $0x4] sm:$0xff] %v4045
    %s4067 = scalar_lea.vmem [#allocation2], 224
    %4068 = vst [vmem:[%s4067] sm:$0xff] %v4046
    %4069 = vst [vmem:[%s4067 + $0x8] sm:$0xf] %v4047
    %s4070 = scalar_lea.vmem [#allocation2], 240
    %4071 = vst [vmem:[%s4070 - $0x4] sm:$0xf0] %v4047
    %4072 = vst [vmem:[%s4070 + $0x4] sm:$0xff] %v4048
    %s4073 = scalar_lea.vmem [#allocation2], 256
    %4074 = vst [vmem:[%s4073] sm:$0xff] %v4049
    %4075 = vst [vmem:[%s4073 + $0x8] sm:$0xf] %v4050
    %s4076 = scalar_lea.vmem [#allocation2], 272
    %4077 = vst [vmem:[%s4076 - $0x4] sm:$0xf0] %v4050
    %4078 = vst [vmem:[%s4076 + $0x4] sm:$0xff] %v4051
    %s4079 = scalar_lea.vmem [#allocation2], 288
    %4080 = vst [vmem:[%s4079] sm:$0xff] %v4052
    %4081 = vst [vmem:[%s4079 + $0x8] sm:$0xf] %v4053
    %s4082 = scalar_lea.vmem [#allocation2], 304
    %4083 = vst [vmem:[%s4082 - $0x4] sm:$0xf0] %v4053
    %4084 = vst [vmem:[%s4082 + $0x4] sm:$0xff] %v4054
    %s4085 = scalar_lea.vmem [#allocation2], 320
    %4086 = vst [vmem:[%s4085] sm:$0xff] %v4055
    %4087 = vst [vmem:[%s4085 + $0x8] sm:$0xf] %v4056
    %s4088 = scalar_lea.vmem [#allocation2], 336
    %4089 = vst [vmem:[%s4088 - $0x4] sm:$0xf0] %v4056
    %4090 = vst [vmem:[%s4088 + $0x4] sm:$0xff] %v4057
    %s4091 = scalar_lea.vmem [#allocation2], 352
    %4092 = vst [vmem:[%s4091] sm:$0xff] %v4058
    %4093 = vst [vmem:[%s4091 + $0x8] sm:$0xf] %v4059
    %s4094 = scalar_lea.vmem [#allocation2], 368
    %4095 = vst [vmem:[%s4094 - $0x4] sm:$0xf0] %v4059
    %4096 = vst [vmem:[%s4094 + $0x4] sm:$0xff] %v4060
    %v4097 = vld [vmem:[%s4061] sm:$0xff]
    %v4098 = vld [vmem:[%s4061 + $0x10] sm:$0xff]
    %v4099 = vld [vmem:[%s4061 + $0x20] sm:$0xff]
    %v4100 = vld [vmem:[%s4061 + $0x30] sm:$0xff]
    %v4101 = vld [vmem:[%s4061 + $0x40] sm:$0xff]
    %v4102 = vld [vmem:[%s4061 + $0x50] sm:$0xff]
    %v4103 = vld [vmem:[%s4061 + $0x60] sm:$0xff]
    %v4104 = vld [vmem:[%s4061 + $0x70] sm:$0xff]
    %v4105 = vld [vmem:[#allocation8] sm:$0xff]
    %v4106 = vld [vmem:[#allocation8 + $0x8] sm:$0xff]
    %v4107 = vld [vmem:[#allocation8 + $0x10] sm:$0xff]
    %v4108 = vld [vmem:[#allocation8 + $0x18] sm:$0xff]
    %v4109 = vld [vmem:[#allocation8 + $0x20] sm:$0xff]
    %v4110 = vld [vmem:[#allocation8 + $0x28] sm:$0xff]
    %v4111 = vld [vmem:[#allocation8 + $0x30] sm:$0xff]
    %v4112 = vld [vmem:[#allocation8 + $0x38] sm:$0xff]
    %v4113 = vld [vmem:[#allocation8 + $0x40] sm:$0xff]
    %v4114 = vld [vmem:[#allocation8 + $0x48] sm:$0xff]
    %v4115 = vld [vmem:[#allocation8 + $0x50] sm:$0xff]
    %v4116 = vld [vmem:[#allocation8 + $0x58] sm:$0xff]
    %v4117 = vld [vmem:[#allocation8 + $0x60] sm:$0xff]
    %v4118 = vld [vmem:[#allocation8 + $0x68] sm:$0xff]
    %v4119 = vld [vmem:[#allocation8 + $0x70] sm:$0xff]
    %v4120 = vld [vmem:[#allocation8 + $0x78] sm:$0xff]
    %4121 = vmatprep.subr.mxu0 0.0
    %4122 = vmatpush1.msra.mxu0 %v4105
    %4123 = vmatprep.subr.mxu0 0.0
    %4124 = vmatpush1.msra.mxu0 %v4106
    %4125 = vmatprep.subr.mxu0 0.0
    %4126 = vmatpush1.msra.mxu0 %v4107
    %4127 = vmatprep.subr.mxu0 0.0
    %4128 = vmatpush1.msra.mxu0 %v4108
    %4129 = vmatprep.subr.mxu0 0.0
    %4130 = vmatpush1.msra.mxu0 %v4109
    %4131 = vmatprep.subr.mxu0 0.0
    %4132 = vmatpush1.msra.mxu0 %v4110
    %4133 = vmatprep.subr.mxu0 0.0
    %4134 = vmatpush1.msra.mxu0 %v4111
    %4135 = vmatprep.subr.mxu0 0.0
    %4136 = vmatpush1.msra.mxu0 %v4112
    %4137 = vmatprep.subr.mxu0 0.0
    %4138 = vmatpush1.msra.mxu0 %v4113
    %4139 = vmatprep.subr.mxu0 0.0
    %4140 = vmatpush1.msra.mxu0 %v4114
    %4141 = vmatprep.subr.mxu0 0.0
    %4142 = vmatpush1.msra.mxu0 %v4115
    %4143 = vmatprep.subr.mxu0 0.0
    %4144 = vmatpush1.msra.mxu0 %v4116
    %4145 = vmatprep.subr.mxu0 0.0
    %4146 = vmatpush1.msra.mxu0 %v4117
    %4147 = vmatprep.subr.mxu0 0.0
    %4148 = vmatpush1.msra.mxu0 %v4118
    %4149 = vmatprep.subr.mxu0 0.0
    %4150 = vmatpush1.msra.mxu0 %v4119
    %4151 = vmatprep.subr.mxu0 0.0
    %4152 = vmatpush1.msra.mxu0 %v4120
    %4153 = vmatprep.subr.mxu0 0.0
    %4154 = vmatpush1.msra.mxu0 0.0
    %4155 = vmatprep.subr.mxu0 0.0
    %4156 = vmatpush1.msra.mxu0 0.0
    %4157 = vmatprep.subr.mxu0 0.0
    %4158 = vmatpush1.msra.mxu0 0.0
    %4159 = vmatprep.subr.mxu0 0.0
    %4160 = vmatpush1.msra.mxu0 0.0
    %4161 = vmatprep.subr.mxu0 0.0
    %4162 = vmatpush1.msra.mxu0 0.0
    %4163 = vmatprep.subr.mxu0 0.0
    %4164 = vmatpush1.msra.mxu0 0.0
    %4165 = vmatprep.subr.mxu0 0.0
    %4166 = vmatpush1.msra.mxu0 0.0
    %4167 = vmatprep.subr.mxu0 0.0
    %4168 = vmatpush1.msra.mxu0 0.0
    %4169 = vmatprep.subr.mxu0 0.0
    %4170 = vmatpush1.msra.mxu0 0.0
    %4171 = vmatprep.subr.mxu0 0.0
    %4172 = vmatpush1.msra.mxu0 0.0
    %4173 = vmatprep.subr.mxu0 0.0
    %4174 = vmatpush1.msra.mxu0 0.0
    %4175 = vmatprep.subr.mxu0 0.0
    %4176 = vmatpush1.msra.mxu0 0.0
    %4177 = vmatprep.subr.mxu0 0.0
    %4178 = vmatpush1.msra.mxu0 0.0
    %4179 = vmatprep.subr.mxu0 0.0
    %4180 = vmatpush1.msra.mxu0 0.0
    %4181 = vmatprep.subr.mxu0 0.0
    %4182 = vmatpush1.msra.mxu0 0.0
    %4183 = vmatprep.subr.mxu0 0.0
    %4184 = vmatpush1.msra.mxu0 0.0
    %4185 = vmatprep.mubr.f32.mxu0 0.0
    %4186 = vmatmul.mubr.f32.gmra.mrb[0].mxu0 %v4097
    %v4187 = vpop.f32.mrb[0].mxu0
    %v4188 = vadd.f32 0.0, %v4187
    %v4189 = vpop.f32.mrb[0].mxu0
    %4190 = vmatprep.mubr.f32.mxu0 0.0
    %4191 = vmatmul.mubr.f32.gmra.mrb[0].mxu0 %v4098
    %v4192 = vpop.f32.mrb[0].mxu0
    %v4193 = vadd.f32 0.0, %v4192
    %v4194 = vpop.f32.mrb[0].mxu0
    %4195 = vmatprep.mubr.f32.mxu0 0.0
    %4196 = vmatmul.mubr.f32.gmra.mrb[0].mxu0 %v4099
    %v4197 = vpop.f32.mrb[0].mxu0
    %v4198 = vadd.f32 0.0, %v4197
    %v4199 = vpop.f32.mrb[0].mxu0
    %4200 = vmatprep.mubr.f32.mxu0 0.0
    %4201 = vmatmul.mubr.f32.gmra.mrb[0].mxu0 %v4100
    %v4202 = vpop.f32.mrb[0].mxu0
    %v4203 = vadd.f32 0.0, %v4202
    %v4204 = vpop.f32.mrb[0].mxu0
    %4205 = vmatprep.mubr.f32.mxu0 0.0
    %4206 = vmatmul.mubr.f32.gmra.mrb[0].mxu0 %v4101
    %v4207 = vpop.f32.mrb[0].mxu0
    %v4208 = vadd.f32 0.0, %v4207
    %v4209 = vpop.f32.mrb[0].mxu0
    %4210 = vmatprep.mubr.f32.mxu0 0.0
    %4211 = vmatmul.mubr.f32.gmra.mrb[0].mxu0 %v4102
    %v4212 = vpop.f32.mrb[0].mxu0
    %v4213 = vadd.f32 0.0, %v4212
    %v4214 = vpop.f32.mrb[0].mxu0
    %4215 = vmatprep.mubr.f32.mxu0 0.0
    %4216 = vmatmul.mubr.f32.gmra.mrb[0].mxu0 %v4103
    %v4217 = vpop.f32.mrb[0].mxu0
    %v4218 = vadd.f32 0.0, %v4217
    %v4219 = vpop.f32.mrb[0].mxu0
    %4220 = vmatprep.mubr.f32.mxu0 0.0
    %4221 = vmatmul.mubr.f32.gmra.mrb[0].mxu0 %v4104
    %v4222 = vpop.f32.mrb[0].mxu0
    %v4223 = vadd.f32 0.0, %v4222
    %v4224 = vpop.f32.mrb[0].mxu0
    %4225 = vdwg.mxu0
    %v4226 = vadd.f32 %v185, %v4188
    %v4227 = vadd.f32 %v185, %v4193
    %v4228 = vadd.f32 %v185, %v4198
    %v4229 = vadd.f32 %v185, %v4203
    %v4230 = vadd.f32 %v185, %v4208
    %v4231 = vadd.f32 %v185, %v4213
    %v4232 = vadd.f32 %v185, %v4218
    %v4233 = vadd.f32 %v185, %v4223
    %v4234 = vld [vmem:[%s4061 + $0x1] sm:$0xff]
    %v4235 = vld [vmem:[%s4061 + $0x11] sm:$0xff]
    %v4236 = vld [vmem:[%s4061 + $0x21] sm:$0xff]
    %v4237 = vld [vmem:[%s4061 + $0x31] sm:$0xff]
    %v4238 = vld [vmem:[%s4061 + $0x41] sm:$0xff]
    %v4239 = vld [vmem:[%s4061 + $0x51] sm:$0xff]
    %v4240 = vld [vmem:[%s4061 + $0x61] sm:$0xff]
    %v4241 = vld [vmem:[%s4061 + $0x71] sm:$0xff]
    %v4242 = vld [vmem:[%s551] sm:$0xff]
    %v4243 = vld [vmem:[%s551 + $0x8] sm:$0xff]
    %v4244 = vld [vmem:[%s551 + $0x10] sm:$0xff]
    %v4245 = vld [vmem:[%s551 + $0x18] sm:$0xff]
    %v4246 = vld [vmem:[%s551 + $0x20] sm:$0xff]
    %v4247 = vld [vmem:[%s551 + $0x28] sm:$0xff]
    %v4248 = vld [vmem:[%s551 + $0x30] sm:$0xff]
    %v4249 = vld [vmem:[%s551 + $0x38] sm:$0xff]
    %v4250 = vld [vmem:[%s551 + $0x40] sm:$0xff]
    %v4251 = vld [vmem:[%s551 + $0x48] sm:$0xff]
    %v4252 = vld [vmem:[%s551 + $0x50] sm:$0xff]
    %v4253 = vld [vmem:[%s551 + $0x58] sm:$0xff]
    %v4254 = vld [vmem:[%s551 + $0x60] sm:$0xff]
    %v4255 = vld [vmem:[%s551 + $0x68] sm:$0xff]
    %v4256 = vld [vmem:[%s551 + $0x70] sm:$0xff]
    %v4257 = vld [vmem:[%s551 + $0x78] sm:$0xff]
    %4258 = vmatprep.subr.mxu0 0.0
    %4259 = vmatpush1.msra.mxu0 %v4242
    %4260 = vmatprep.subr.mxu0 0.0
    %4261 = vmatpush1.msra.mxu0 %v4243
    %4262 = vmatprep.subr.mxu0 0.0
    %4263 = vmatpush1.msra.mxu0 %v4244
    %4264 = vmatprep.subr.mxu0 0.0
    %4265 = vmatpush1.msra.mxu0 %v4245
    %4266 = vmatprep.subr.mxu0 0.0
    %4267 = vmatpush1.msra.mxu0 %v4246
    %4268 = vmatprep.subr.mxu0 0.0
    %4269 = vmatpush1.msra.mxu0 %v4247
    %4270 = vmatprep.subr.mxu0 0.0
    %4271 = vmatpush1.msra.mxu0 %v4248
    %4272 = vmatprep.subr.mxu0 0.0
    %4273 = vmatpush1.msra.mxu0 %v4249
    %4274 = vmatprep.subr.mxu0 0.0
    %4275 = vmatpush1.msra.mxu0 %v4250
    %4276 = vmatprep.subr.mxu0 0.0
    %4277 = vmatpush1.msra.mxu0 %v4251
    %4278 = vmatprep.subr.mxu0 0.0
    %4279 = vmatpush1.msra.mxu0 %v4252
    %4280 = vmatprep.subr.mxu0 0.0
    %4281 = vmatpush1.msra.mxu0 %v4253
    %4282 = vmatprep.subr.mxu0 0.0
    %4283 = vmatpush1.msra.mxu0 %v4254
    %4284 = vmatprep.subr.mxu0 0.0
    %4285 = vmatpush1.msra.mxu0 %v4255
    %4286 = vmatprep.subr.mxu0 0.0
    %4287 = vmatpush1.msra.mxu0 %v4256
    %4288 = vmatprep.subr.mxu0 0.0
    %4289 = vmatpush1.msra.mxu0 %v4257
    %4290 = vmatprep.subr.mxu0 0.0
    %4291 = vmatpush1.msra.mxu0 0.0
    %4292 = vmatprep.subr.mxu0 0.0
    %4293 = vmatpush1.msra.mxu0 0.0
    %4294 = vmatprep.subr.mxu0 0.0
    %4295 = vmatpush1.msra.mxu0 0.0
    %4296 = vmatprep.subr.mxu0 0.0
    %4297 = vmatpush1.msra.mxu0 0.0
    %4298 = vmatprep.subr.mxu0 0.0
    %4299 = vmatpush1.msra.mxu0 0.0
    %4300 = vmatprep.subr.mxu0 0.0
    %4301 = vmatpush1.msra.mxu0 0.0
    %4302 = vmatprep.subr.mxu0 0.0
    %4303 = vmatpush1.msra.mxu0 0.0
    %4304 = vmatprep.subr.mxu0 0.0
    %4305 = vmatpush1.msra.mxu0 0.0
    %4306 = vmatprep.subr.mxu0 0.0
    %4307 = vmatpush1.msra.mxu0 0.0
    %4308 = vmatprep.subr.mxu0 0.0
    %4309 = vmatpush1.msra.mxu0 0.0
    %4310 = vmatprep.subr.mxu0 0.0
    %4311 = vmatpush1.msra.mxu0 0.0
    %4312 = vmatprep.subr.mxu0 0.0
    %4313 = vmatpush1.msra.mxu0 0.0
    %4314 = vmatprep.subr.mxu0 0.0
    %4315 = vmatpush1.msra.mxu0 0.0
    %4316 = vmatprep.subr.mxu0 0.0
    %4317 = vmatpush1.msra.mxu0 0.0
    %4318 = vmatprep.subr.mxu0 0.0
    %4319 = vmatpush1.msra.mxu0 0.0
    %4320 = vmatprep.subr.mxu0 0.0
    %4321 = vmatpush1.msra.mxu0 0.0
    %4322 = vmatprep.mubr.f32.mxu0 0.0
    %4323 = vmatmul.mubr.f32.gmra.mrb[0].mxu0 %v4234
    %v4324 = vpop.f32.mrb[0].mxu0
    %v4325 = vadd.f32 0.0, %v4324
    %v4326 = vpop.f32.mrb[0].mxu0
    %4327 = vmatprep.mubr.f32.mxu0 0.0
    %4328 = vmatmul.mubr.f32.gmra.mrb[0].mxu0 %v4235
    %v4329 = vpop.f32.mrb[0].mxu0
    %v4330 = vadd.f32 0.0, %v4329
    %v4331 = vpop.f32.mrb[0].mxu0
    %4332 = vmatprep.mubr.f32.mxu0 0.0
    %4333 = vmatmul.mubr.f32.gmra.mrb[0].mxu0 %v4236
    %v4334 = vpop.f32.mrb[0].mxu0
    %v4335 = vadd.f32 0.0, %v4334
    %v4336 = vpop.f32.mrb[0].mxu0
    %4337 = vmatprep.mubr.f32.mxu0 0.0
    %4338 = vmatmul.mubr.f32.gmra.mrb[0].mxu0 %v4237
    %v4339 = vpop.f32.mrb[0].mxu0
    %v4340 = vadd.f32 0.0, %v4339
    %v4341 = vpop.f32.mrb[0].mxu0
    %4342 = vmatprep.mubr.f32.mxu0 0.0
    %4343 = vmatmul.mubr.f32.gmra.mrb[0].mxu0 %v4238
    %v4344 = vpop.f32.mrb[0].mxu0
    %v4345 = vadd.f32 0.0, %v4344
    %v4346 = vpop.f32.mrb[0].mxu0
    %4347 = vmatprep.mubr.f32.mxu0 0.0
    %4348 = vmatmul.mubr.f32.gmra.mrb[0].mxu0 %v4239
    %v4349 = vpop.f32.mrb[0].mxu0
    %v4350 = vadd.f32 0.0, %v4349
    %v4351 = vpop.f32.mrb[0].mxu0
    %4352 = vmatprep.mubr.f32.mxu0 0.0
    %4353 = vmatmul.mubr.f32.gmra.mrb[0].mxu0 %v4240
    %v4354 = vpop.f32.mrb[0].mxu0
    %v4355 = vadd.f32 0.0, %v4354
    %v4356 = vpop.f32.mrb[0].mxu0
    %4357 = vmatprep.mubr.f32.mxu0 0.0
    %4358 = vmatmul.mubr.f32.gmra.mrb[0].mxu0 %v4241
    %v4359 = vpop.f32.mrb[0].mxu0
    %v4360 = vadd.f32 0.0, %v4359
    %v4361 = vpop.f32.mrb[0].mxu0
    %4362 = vdwg.mxu0
    %v4363 = vadd.f32 %v4226, %v4325
    %v4364 = vadd.f32 %v4227, %v4330
    %v4365 = vadd.f32 %v4228, %v4335
    %v4366 = vadd.f32 %v4229, %v4340
    %v4367 = vadd.f32 %v4230, %v4345
    %v4368 = vadd.f32 %v4231, %v4350
    %v4369 = vadd.f32 %v4232, %v4355
    %v4370 = vadd.f32 %v4233, %v4360
    %v4371 = vld [vmem:[%s4061 + $0x2] sm:$0xff]
    %v4372 = vld [vmem:[%s4061 + $0x12] sm:$0xff]
    %v4373 = vld [vmem:[%s4061 + $0x22] sm:$0xff]
    %v4374 = vld [vmem:[%s4061 + $0x32] sm:$0xff]
    %v4375 = vld [vmem:[%s4061 + $0x42] sm:$0xff]
    %v4376 = vld [vmem:[%s4061 + $0x52] sm:$0xff]
    %v4377 = vld [vmem:[%s4061 + $0x62] sm:$0xff]
    %v4378 = vld [vmem:[%s4061 + $0x72] sm:$0xff]
    %v4379 = vld [vmem:[%s689] sm:$0xff]
    %v4380 = vld [vmem:[%s689 + $0x8] sm:$0xff]
    %v4381 = vld [vmem:[%s689 + $0x10] sm:$0xff]
    %v4382 = vld [vmem:[%s689 + $0x18] sm:$0xff]
    %v4383 = vld [vmem:[%s689 + $0x20] sm:$0xff]
    %v4384 = vld [vmem:[%s689 + $0x28] sm:$0xff]
    %v4385 = vld [vmem:[%s689 + $0x30] sm:$0xff]
    %v4386 = vld [vmem:[%s689 + $0x38] sm:$0xff]
    %v4387 = vld [vmem:[%s689 + $0x40] sm:$0xff]
    %v4388 = vld [vmem:[%s689 + $0x48] sm:$0xff]
    %v4389 = vld [vmem:[%s689 + $0x50] sm:$0xff]
    %v4390 = vld [vmem:[%s689 + $0x58] sm:$0xff]
    %v4391 = vld [vmem:[%s689 + $0x60] sm:$0xff]
    %v4392 = vld [vmem:[%s689 + $0x68] sm:$0xff]
    %v4393 = vld [vmem:[%s689 + $0x70] sm:$0xff]
    %v4394 = vld [vmem:[%s689 + $0x78] sm:$0xff]
    %4395 = vmatprep.subr.mxu0 0.0
    %4396 = vmatpush1.msra.mxu0 %v4379
    %4397 = vmatprep.subr.mxu0 0.0
    %4398 = vmatpush1.msra.mxu0 %v4380
    %4399 = vmatprep.subr.mxu0 0.0
    %4400 = vmatpush1.msra.mxu0 %v4381
    %4401 = vmatprep.subr.mxu0 0.0
    %4402 = vmatpush1.msra.mxu0 %v4382
    %4403 = vmatprep.subr.mxu0 0.0
    %4404 = vmatpush1.msra.mxu0 %v4383
    %4405 = vmatprep.subr.mxu0 0.0
    %4406 = vmatpush1.msra.mxu0 %v4384
    %4407 = vmatprep.subr.mxu0 0.0
    %4408 = vmatpush1.msra.mxu0 %v4385
    %4409 = vmatprep.subr.mxu0 0.0
    %4410 = vmatpush1.msra.mxu0 %v4386
    %4411 = vmatprep.subr.mxu0 0.0
    %4412 = vmatpush1.msra.mxu0 %v4387
    %4413 = vmatprep.subr.mxu0 0.0
    %4414 = vmatpush1.msra.mxu0 %v4388
    %4415 = vmatprep.subr.mxu0 0.0
    %4416 = vmatpush1.msra.mxu0 %v4389
    %4417 = vmatprep.subr.mxu0 0.0
    %4418 = vmatpush1.msra.mxu0 %v4390
    %4419 = vmatprep.subr.mxu0 0.0
    %4420 = vmatpush1.msra.mxu0 %v4391
    %4421 = vmatprep.subr.mxu0 0.0
    %4422 = vmatpush1.msra.mxu0 %v4392
    %4423 = vmatprep.subr.mxu0 0.0
    %4424 = vmatpush1.msra.mxu0 %v4393
    %4425 = vmatprep.subr.mxu0 0.0
    %4426 = vmatpush1.msra.mxu0 %v4394
    %4427 = vmatprep.subr.mxu0 0.0
    %4428 = vmatpush1.msra.mxu0 0.0
    %4429 = vmatprep.subr.mxu0 0.0
    %4430 = vmatpush1.msra.mxu0 0.0
    %4431 = vmatprep.subr.mxu0 0.0
    %4432 = vmatpush1.msra.mxu0 0.0
    %4433 = vmatprep.subr.mxu0 0.0
    %4434 = vmatpush1.msra.mxu0 0.0
    %4435 = vmatprep.subr.mxu0 0.0
    %4436 = vmatpush1.msra.mxu0 0.0
    %4437 = vmatprep.subr.mxu0 0.0
    %4438 = vmatpush1.msra.mxu0 0.0
    %4439 = vmatprep.subr.mxu0 0.0
    %4440 = vmatpush1.msra.mxu0 0.0
    %4441 = vmatprep.subr.mxu0 0.0
    %4442 = vmatpush1.msra.mxu0 0.0
    %4443 = vmatprep.subr.mxu0 0.0
    %4444 = vmatpush1.msra.mxu0 0.0
    %4445 = vmatprep.subr.mxu0 0.0
    %4446 = vmatpush1.msra.mxu0 0.0
    %4447 = vmatprep.subr.mxu0 0.0
    %4448 = vmatpush1.msra.mxu0 0.0
    %4449 = vmatprep.subr.mxu0 0.0
    %4450 = vmatpush1.msra.mxu0 0.0
    %4451 = vmatprep.subr.mxu0 0.0
    %4452 = vmatpush1.msra.mxu0 0.0
    %4453 = vmatprep.subr.mxu0 0.0
    %4454 = vmatpush1.msra.mxu0 0.0
    %4455 = vmatprep.subr.mxu0 0.0
    %4456 = vmatpush1.msra.mxu0 0.0
    %4457 = vmatprep.subr.mxu0 0.0
    %4458 = vmatpush1.msra.mxu0 0.0
    %4459 = vmatprep.mubr.f32.mxu0 0.0
    %4460 = vmatmul.mubr.f32.gmra.mrb[0].mxu0 %v4371
    %v4461 = vpop.f32.mrb[0].mxu0
    %v4462 = vadd.f32 0.0, %v4461
    %v4463 = vpop.f32.mrb[0].mxu0
    %4464 = vmatprep.mubr.f32.mxu0 0.0
    %4465 = vmatmul.mubr.f32.gmra.mrb[0].mxu0 %v4372
    %v4466 = vpop.f32.mrb[0].mxu0
    %v4467 = vadd.f32 0.0, %v4466
    %v4468 = vpop.f32.mrb[0].mxu0
    %4469 = vmatprep.mubr.f32.mxu0 0.0
    %4470 = vmatmul.mubr.f32.gmra.mrb[0].mxu0 %v4373
    %v4471 = vpop.f32.mrb[0].mxu0
    %v4472 = vadd.f32 0.0, %v4471
    %v4473 = vpop.f32.mrb[0].mxu0
    %4474 = vmatprep.mubr.f32.mxu0 0.0
    %4475 = vmatmul.mubr.f32.gmra.mrb[0].mxu0 %v4374
    %v4476 = vpop.f32.mrb[0].mxu0
    %v4477 = vadd.f32 0.0, %v4476
    %v4478 = vpop.f32.mrb[0].mxu0
    %4479 = vmatprep.mubr.f32.mxu0 0.0
    %4480 = vmatmul.mubr.f32.gmra.mrb[0].mxu0 %v4375
    %v4481 = vpop.f32.mrb[0].mxu0
    %v4482 = vadd.f32 0.0, %v4481
    %v4483 = vpop.f32.mrb[0].mxu0
    %4484 = vmatprep.mubr.f32.mxu0 0.0
    %4485 = vmatmul.mubr.f32.gmra.mrb[0].mxu0 %v4376
    %v4486 = vpop.f32.mrb[0].mxu0
    %v4487 = vadd.f32 0.0, %v4486
    %v4488 = vpop.f32.mrb[0].mxu0
    %4489 = vmatprep.mubr.f32.mxu0 0.0
    %4490 = vmatmul.mubr.f32.gmra.mrb[0].mxu0 %v4377
    %v4491 = vpop.f32.mrb[0].mxu0
    %v4492 = vadd.f32 0.0, %v4491
    %v4493 = vpop.f32.mrb[0].mxu0
    %4494 = vmatprep.mubr.f32.mxu0 0.0
    %4495 = vmatmul.mubr.f32.gmra.mrb[0].mxu0 %v4378
    %v4496 = vpop.f32.mrb[0].mxu0
    %v4497 = vadd.f32 0.0, %v4496
    %v4498 = vpop.f32.mrb[0].mxu0
    %4499 = vdwg.mxu0
    %v4500 = vadd.f32 %v4363, %v4462
    %v4501 = vadd.f32 %v4364, %v4467
    %v4502 = vadd.f32 %v4365, %v4472
    %v4503 = vadd.f32 %v4366, %v4477
    %v4504 = vadd.f32 %v4367, %v4482
    %v4505 = vadd.f32 %v4368, %v4487
    %v4506 = vadd.f32 %v4369, %v4492
    %v4507 = vadd.f32 %v4370, %v4497
    %v4508 = vld [vmem:[%s4061 + $0x3] sm:$0xff]
    %v4509 = vld [vmem:[%s4061 + $0x13] sm:$0xff]
    %v4510 = vld [vmem:[%s4061 + $0x23] sm:$0xff]
    %v4511 = vld [vmem:[%s4061 + $0x33] sm:$0xff]
    %v4512 = vld [vmem:[%s4061 + $0x43] sm:$0xff]
    %v4513 = vld [vmem:[%s4061 + $0x53] sm:$0xff]
    %v4514 = vld [vmem:[%s4061 + $0x63] sm:$0xff]
    %v4515 = vld [vmem:[%s4061 + $0x73] sm:$0xff]
    %v4516 = vld [vmem:[%s827] sm:$0xff]
    %v4517 = vld [vmem:[%s827 + $0x8] sm:$0xff]
    %v4518 = vld [vmem:[%s827 + $0x10] sm:$0xff]
    %v4519 = vld [vmem:[%s827 + $0x18] sm:$0xff]
    %v4520 = vld [vmem:[%s827 + $0x20] sm:$0xff]
    %v4521 = vld [vmem:[%s827 + $0x28] sm:$0xff]
    %v4522 = vld [vmem:[%s827 + $0x30] sm:$0xff]
    %v4523 = vld [vmem:[%s827 + $0x38] sm:$0xff]
    %v4524 = vld [vmem:[%s827 + $0x40] sm:$0xff]
    %v4525 = vld [vmem:[%s827 + $0x48] sm:$0xff]
    %v4526 = vld [vmem:[%s827 + $0x50] sm:$0xff]
    %v4527 = vld [vmem:[%s827 + $0x58] sm:$0xff]
    %v4528 = vld [vmem:[%s827 + $0x60] sm:$0xff]
    %v4529 = vld [vmem:[%s827 + $0x68] sm:$0xff]
    %v4530 = vld [vmem:[%s827 + $0x70] sm:$0xff]
    %v4531 = vld [vmem:[%s827 + $0x78] sm:$0xff]
    %4532 = vmatprep.subr.mxu0 0.0
    %4533 = vmatpush1.msra.mxu0 %v4516
    %4534 = vmatprep.subr.mxu0 0.0
    %4535 = vmatpush1.msra.mxu0 %v4517
    %4536 = vmatprep.subr.mxu0 0.0
    %4537 = vmatpush1.msra.mxu0 %v4518
    %4538 = vmatprep.subr.mxu0 0.0
    %4539 = vmatpush1.msra.mxu0 %v4519
    %4540 = vmatprep.subr.mxu0 0.0
    %4541 = vmatpush1.msra.mxu0 %v4520
    %4542 = vmatprep.subr.mxu0 0.0
    %4543 = vmatpush1.msra.mxu0 %v4521
    %4544 = vmatprep.subr.mxu0 0.0
    %4545 = vmatpush1.msra.mxu0 %v4522
    %4546 = vmatprep.subr.mxu0 0.0
    %4547 = vmatpush1.msra.mxu0 %v4523
    %4548 = vmatprep.subr.mxu0 0.0
    %4549 = vmatpush1.msra.mxu0 %v4524
    %4550 = vmatprep.subr.mxu0 0.0
    %4551 = vmatpush1.msra.mxu0 %v4525
    %4552 = vmatprep.subr.mxu0 0.0
    %4553 = vmatpush1.msra.mxu0 %v4526
    %4554 = vmatprep.subr.mxu0 0.0
    %4555 = vmatpush1.msra.mxu0 %v4527
    %4556 = vmatprep.subr.mxu0 0.0
    %4557 = vmatpush1.msra.mxu0 %v4528
    %4558 = vmatprep.subr.mxu0 0.0
    %4559 = vmatpush1.msra.mxu0 %v4529
    %4560 = vmatprep.subr.mxu0 0.0
    %4561 = vmatpush1.msra.mxu0 %v4530
    %4562 = vmatprep.subr.mxu0 0.0
    %4563 = vmatpush1.msra.mxu0 %v4531
    %4564 = vmatprep.subr.mxu0 0.0
    %4565 = vmatpush1.msra.mxu0 0.0
    %4566 = vmatprep.subr.mxu0 0.0
    %4567 = vmatpush1.msra.mxu0 0.0
    %4568 = vmatprep.subr.mxu0 0.0
    %4569 = vmatpush1.msra.mxu0 0.0
    %4570 = vmatprep.subr.mxu0 0.0
    %4571 = vmatpush1.msra.mxu0 0.0
    %4572 = vmatprep.subr.mxu0 0.0
    %4573 = vmatpush1.msra.mxu0 0.0
    %4574 = vmatprep.subr.mxu0 0.0
    %4575 = vmatpush1.msra.mxu0 0.0
    %4576 = vmatprep.subr.mxu0 0.0
    %4577 = vmatpush1.msra.mxu0 0.0
    %4578 = vmatprep.subr.mxu0 0.0
    %4579 = vmatpush1.msra.mxu0 0.0
    %4580 = vmatprep.subr.mxu0 0.0
    %4581 = vmatpush1.msra.mxu0 0.0
    %4582 = vmatprep.subr.mxu0 0.0
    %4583 = vmatpush1.msra.mxu0 0.0
    %4584 = vmatprep.subr.mxu0 0.0
    %4585 = vmatpush1.msra.mxu0 0.0
    %4586 = vmatprep.subr.mxu0 0.0
    %4587 = vmatpush1.msra.mxu0 0.0
    %4588 = vmatprep.subr.mxu0 0.0
    %4589 = vmatpush1.msra.mxu0 0.0
    %4590 = vmatprep.subr.mxu0 0.0
    %4591 = vmatpush1.msra.mxu0 0.0
    %4592 = vmatprep.subr.mxu0 0.0
    %4593 = vmatpush1.msra.mxu0 0.0
    %4594 = vmatprep.subr.mxu0 0.0
    %4595 = vmatpush1.msra.mxu0 0.0
    %4596 = vmatprep.mubr.f32.mxu0 0.0
    %4597 = vmatmul.mubr.f32.gmra.mrb[0].mxu0 %v4508
    %v4598 = vpop.f32.mrb[0].mxu0
    %v4599 = vadd.f32 0.0, %v4598
    %v4600 = vpop.f32.mrb[0].mxu0
    %4601 = vmatprep.mubr.f32.mxu0 0.0
    %4602 = vmatmul.mubr.f32.gmra.mrb[0].mxu0 %v4509
    %v4603 = vpop.f32.mrb[0].mxu0
    %v4604 = vadd.f32 0.0, %v4603
    %v4605 = vpop.f32.mrb[0].mxu0
    %4606 = vmatprep.mubr.f32.mxu0 0.0
    %4607 = vmatmul.mubr.f32.gmra.mrb[0].mxu0 %v4510
    %v4608 = vpop.f32.mrb[0].mxu0
    %v4609 = vadd.f32 0.0, %v4608
    %v4610 = vpop.f32.mrb[0].mxu0
    %4611 = vmatprep.mubr.f32.mxu0 0.0
    %4612 = vmatmul.mubr.f32.gmra.mrb[0].mxu0 %v4511
    %v4613 = vpop.f32.mrb[0].mxu0
    %v4614 = vadd.f32 0.0, %v4613
    %v4615 = vpop.f32.mrb[0].mxu0
    %4616 = vmatprep.mubr.f32.mxu0 0.0
    %4617 = vmatmul.mubr.f32.gmra.mrb[0].mxu0 %v4512
    %v4618 = vpop.f32.mrb[0].mxu0
    %v4619 = vadd.f32 0.0, %v4618
    %v4620 = vpop.f32.mrb[0].mxu0
    %4621 = vmatprep.mubr.f32.mxu0 0.0
    %4622 = vmatmul.mubr.f32.gmra.mrb[0].mxu0 %v4513
    %v4623 = vpop.f32.mrb[0].mxu0
    %v4624 = vadd.f32 0.0, %v4623
    %v4625 = vpop.f32.mrb[0].mxu0
    %4626 = vmatprep.mubr.f32.mxu0 0.0
    %4627 = vmatmul.mubr.f32.gmra.mrb[0].mxu0 %v4514
    %v4628 = vpop.f32.mrb[0].mxu0
    %v4629 = vadd.f32 0.0, %v4628
    %v4630 = vpop.f32.mrb[0].mxu0
    %4631 = vmatprep.mubr.f32.mxu0 0.0
    %4632 = vmatmul.mubr.f32.gmra.mrb[0].mxu0 %v4515
    %v4633 = vpop.f32.mrb[0].mxu0
    %v4634 = vadd.f32 0.0, %v4633
    %v4635 = vpop.f32.mrb[0].mxu0
    %4636 = vdwg.mxu0
    %v4637 = vadd.f32 %v4500, %v4599
    %v4638 = vadd.f32 %v4501, %v4604
    %v4639 = vadd.f32 %v4502, %v4609
    %v4640 = vadd.f32 %v4503, %v4614
    %v4641 = vadd.f32 %v4504, %v4619
    %v4642 = vadd.f32 %v4505, %v4624
    %v4643 = vadd.f32 %v4506, %v4629
    %v4644 = vadd.f32 %v4507, %v4634
    %v4645 = vld [vmem:[%s4061 + $0x4] sm:$0xff]
    %v4646 = vld [vmem:[%s4061 + $0x14] sm:$0xff]
    %v4647 = vld [vmem:[%s4061 + $0x24] sm:$0xff]
    %v4648 = vld [vmem:[%s4061 + $0x34] sm:$0xff]
    %v4649 = vld [vmem:[%s4061 + $0x44] sm:$0xff]
    %v4650 = vld [vmem:[%s4061 + $0x54] sm:$0xff]
    %v4651 = vld [vmem:[%s4061 + $0x64] sm:$0xff]
    %v4652 = vld [vmem:[%s4061 + $0x74] sm:$0xff]
    %v4653 = vld [vmem:[%s965] sm:$0xff]
    %v4654 = vld [vmem:[%s965 + $0x8] sm:$0xff]
    %v4655 = vld [vmem:[%s965 + $0x10] sm:$0xff]
    %v4656 = vld [vmem:[%s965 + $0x18] sm:$0xff]
    %v4657 = vld [vmem:[%s965 + $0x20] sm:$0xff]
    %v4658 = vld [vmem:[%s965 + $0x28] sm:$0xff]
    %v4659 = vld [vmem:[%s965 + $0x30] sm:$0xff]
    %v4660 = vld [vmem:[%s965 + $0x38] sm:$0xff]
    %v4661 = vld [vmem:[%s965 + $0x40] sm:$0xff]
    %v4662 = vld [vmem:[%s965 + $0x48] sm:$0xff]
    %v4663 = vld [vmem:[%s965 + $0x50] sm:$0xff]
    %v4664 = vld [vmem:[%s965 + $0x58] sm:$0xff]
    %v4665 = vld [vmem:[%s965 + $0x60] sm:$0xff]
    %v4666 = vld [vmem:[%s965 + $0x68] sm:$0xff]
    %v4667 = vld [vmem:[%s965 + $0x70] sm:$0xff]
    %v4668 = vld [vmem:[%s965 + $0x78] sm:$0xff]
    %4669 = vmatprep.subr.mxu0 0.0
    %4670 = vmatpush1.msra.mxu0 %v4653
    %4671 = vmatprep.subr.mxu0 0.0
    %4672 = vmatpush1.msra.mxu0 %v4654
    %4673 = vmatprep.subr.mxu0 0.0
    %4674 = vmatpush1.msra.mxu0 %v4655
    %4675 = vmatprep.subr.mxu0 0.0
    %4676 = vmatpush1.msra.mxu0 %v4656
    %4677 = vmatprep.subr.mxu0 0.0
    %4678 = vmatpush1.msra.mxu0 %v4657
    %4679 = vmatprep.subr.mxu0 0.0
    %4680 = vmatpush1.msra.mxu0 %v4658
    %4681 = vmatprep.subr.mxu0 0.0
    %4682 = vmatpush1.msra.mxu0 %v4659
    %4683 = vmatprep.subr.mxu0 0.0
    %4684 = vmatpush1.msra.mxu0 %v4660
    %4685 = vmatprep.subr.mxu0 0.0
    %4686 = vmatpush1.msra.mxu0 %v4661
    %4687 = vmatprep.subr.mxu0 0.0
    %4688 = vmatpush1.msra.mxu0 %v4662
    %4689 = vmatprep.subr.mxu0 0.0
    %4690 = vmatpush1.msra.mxu0 %v4663
    %4691 = vmatprep.subr.mxu0 0.0
    %4692 = vmatpush1.msra.mxu0 %v4664
    %4693 = vmatprep.subr.mxu0 0.0
    %4694 = vmatpush1.msra.mxu0 %v4665
    %4695 = vmatprep.subr.mxu0 0.0
    %4696 = vmatpush1.msra.mxu0 %v4666
    %4697 = vmatprep.subr.mxu0 0.0
    %4698 = vmatpush1.msra.mxu0 %v4667
    %4699 = vmatprep.subr.mxu0 0.0
    %4700 = vmatpush1.msra.mxu0 %v4668
    %4701 = vmatprep.subr.mxu0 0.0
    %4702 = vmatpush1.msra.mxu0 0.0
    %4703 = vmatprep.subr.mxu0 0.0
    %4704 = vmatpush1.msra.mxu0 0.0
    %4705 = vmatprep.subr.mxu0 0.0
    %4706 = vmatpush1.msra.mxu0 0.0
    %4707 = vmatprep.subr.mxu0 0.0
    %4708 = vmatpush1.msra.mxu0 0.0
    %4709 = vmatprep.subr.mxu0 0.0
    %4710 = vmatpush1.msra.mxu0 0.0
    %4711 = vmatprep.subr.mxu0 0.0
    %4712 = vmatpush1.msra.mxu0 0.0
    %4713 = vmatprep.subr.mxu0 0.0
    %4714 = vmatpush1.msra.mxu0 0.0
    %4715 = vmatprep.subr.mxu0 0.0
    %4716 = vmatpush1.msra.mxu0 0.0
    %4717 = vmatprep.subr.mxu0 0.0
    %4718 = vmatpush1.msra.mxu0 0.0
    %4719 = vmatprep.subr.mxu0 0.0
    %4720 = vmatpush1.msra.mxu0 0.0
    %4721 = vmatprep.subr.mxu0 0.0
    %4722 = vmatpush1.msra.mxu0 0.0
    %4723 = vmatprep.subr.mxu0 0.0
    %4724 = vmatpush1.msra.mxu0 0.0
    %4725 = vmatprep.subr.mxu0 0.0
    %4726 = vmatpush1.msra.mxu0 0.0
    %4727 = vmatprep.subr.mxu0 0.0
    %4728 = vmatpush1.msra.mxu0 0.0
    %4729 = vmatprep.subr.mxu0 0.0
    %4730 = vmatpush1.msra.mxu0 0.0
    %4731 = vmatprep.subr.mxu0 0.0
    %4732 = vmatpush1.msra.mxu0 0.0
    %4733 = vmatprep.mubr.f32.mxu0 0.0
    %4734 = vmatmul.mubr.f32.gmra.mrb[0].mxu0 %v4645
    %v4735 = vpop.f32.mrb[0].mxu0
    %v4736 = vadd.f32 0.0, %v4735
    %v4737 = vpop.f32.mrb[0].mxu0
    %4738 = vmatprep.mubr.f32.mxu0 0.0
    %4739 = vmatmul.mubr.f32.gmra.mrb[0].mxu0 %v4646
    %v4740 = vpop.f32.mrb[0].mxu0
    %v4741 = vadd.f32 0.0, %v4740
    %v4742 = vpop.f32.mrb[0].mxu0
    %4743 = vmatprep.mubr.f32.mxu0 0.0
    %4744 = vmatmul.mubr.f32.gmra.mrb[0].mxu0 %v4647
    %v4745 = vpop.f32.mrb[0].mxu0
    %v4746 = vadd.f32 0.0, %v4745
    %v4747 = vpop.f32.mrb[0].mxu0
    %4748 = vmatprep.mubr.f32.mxu0 0.0
    %4749 = vmatmul.mubr.f32.gmra.mrb[0].mxu0 %v4648
    %v4750 = vpop.f32.mrb[0].mxu0
    %v4751 = vadd.f32 0.0, %v4750
    %v4752 = vpop.f32.mrb[0].mxu0
    %4753 = vmatprep.mubr.f32.mxu0 0.0
    %4754 = vmatmul.mubr.f32.gmra.mrb[0].mxu0 %v4649
    %v4755 = vpop.f32.mrb[0].mxu0
    %v4756 = vadd.f32 0.0, %v4755
    %v4757 = vpop.f32.mrb[0].mxu0
    %4758 = vmatprep.mubr.f32.mxu0 0.0
    %4759 = vmatmul.mubr.f32.gmra.mrb[0].mxu0 %v4650
    %v4760 = vpop.f32.mrb[0].mxu0
    %v4761 = vadd.f32 0.0, %v4760
    %v4762 = vpop.f32.mrb[0].mxu0
    %4763 = vmatprep.mubr.f32.mxu0 0.0
    %4764 = vmatmul.mubr.f32.gmra.mrb[0].mxu0 %v4651
    %v4765 = vpop.f32.mrb[0].mxu0
    %v4766 = vadd.f32 0.0, %v4765
    %v4767 = vpop.f32.mrb[0].mxu0
    %4768 = vmatprep.mubr.f32.mxu0 0.0
    %4769 = vmatmul.mubr.f32.gmra.mrb[0].mxu0 %v4652
    %v4770 = vpop.f32.mrb[0].mxu0
    %v4771 = vadd.f32 0.0, %v4770
    %v4772 = vpop.f32.mrb[0].mxu0
    %4773 = vdwg.mxu0
    %v4774 = vadd.f32 %v4637, %v4736
    %v4775 = vadd.f32 %v4638, %v4741
    %v4776 = vadd.f32 %v4639, %v4746
    %v4777 = vadd.f32 %v4640, %v4751
    %v4778 = vadd.f32 %v4641, %v4756
    %v4779 = vadd.f32 %v4642, %v4761
    %v4780 = vadd.f32 %v4643, %v4766
    %v4781 = vadd.f32 %v4644, %v4771
    %v4782 = vld [vmem:[%s4064] sm:$0xff]
    %v4783 = vld [vmem:[%s4064 + $0x10] sm:$0xff]
    %v4784 = vld [vmem:[%s4064 + $0x20] sm:$0xff]
    %v4785 = vld [vmem:[%s4064 + $0x30] sm:$0xff]
    %v4786 = vld [vmem:[%s4064 + $0x40] sm:$0xff]
    %v4787 = vld [vmem:[%s4064 + $0x50] sm:$0xff]
    %v4788 = vld [vmem:[%s4064 + $0x60] sm:$0xff]
    %v4789 = vld [vmem:[%s4064 + $0x70] sm:$0xff]
    %v4790 = vld [vmem:[%s1103] sm:$0xff]
    %v4791 = vld [vmem:[%s1103 + $0x8] sm:$0xff]
    %v4792 = vld [vmem:[%s1103 + $0x10] sm:$0xff]
    %v4793 = vld [vmem:[%s1103 + $0x18] sm:$0xff]
    %v4794 = vld [vmem:[%s1103 + $0x20] sm:$0xff]
    %v4795 = vld [vmem:[%s1103 + $0x28] sm:$0xff]
    %v4796 = vld [vmem:[%s1103 + $0x30] sm:$0xff]
    %v4797 = vld [vmem:[%s1103 + $0x38] sm:$0xff]
    %v4798 = vld [vmem:[%s1103 + $0x40] sm:$0xff]
    %v4799 = vld [vmem:[%s1103 + $0x48] sm:$0xff]
    %v4800 = vld [vmem:[%s1103 + $0x50] sm:$0xff]
    %v4801 = vld [vmem:[%s1103 + $0x58] sm:$0xff]
    %v4802 = vld [vmem:[%s1103 + $0x60] sm:$0xff]
    %v4803 = vld [vmem:[%s1103 + $0x68] sm:$0xff]
    %v4804 = vld [vmem:[%s1103 + $0x70] sm:$0xff]
    %v4805 = vld [vmem:[%s1103 + $0x78] sm:$0xff]
    %4806 = vmatprep.subr.mxu0 0.0
    %4807 = vmatpush1.msra.mxu0 %v4790
    %4808 = vmatprep.subr.mxu0 0.0
    %4809 = vmatpush1.msra.mxu0 %v4791
    %4810 = vmatprep.subr.mxu0 0.0
    %4811 = vmatpush1.msra.mxu0 %v4792
    %4812 = vmatprep.subr.mxu0 0.0
    %4813 = vmatpush1.msra.mxu0 %v4793
    %4814 = vmatprep.subr.mxu0 0.0
    %4815 = vmatpush1.msra.mxu0 %v4794
    %4816 = vmatprep.subr.mxu0 0.0
    %4817 = vmatpush1.msra.mxu0 %v4795
    %4818 = vmatprep.subr.mxu0 0.0
    %4819 = vmatpush1.msra.mxu0 %v4796
    %4820 = vmatprep.subr.mxu0 0.0
    %4821 = vmatpush1.msra.mxu0 %v4797
    %4822 = vmatprep.subr.mxu0 0.0
    %4823 = vmatpush1.msra.mxu0 %v4798
    %4824 = vmatprep.subr.mxu0 0.0
    %4825 = vmatpush1.msra.mxu0 %v4799
    %4826 = vmatprep.subr.mxu0 0.0
    %4827 = vmatpush1.msra.mxu0 %v4800
    %4828 = vmatprep.subr.mxu0 0.0
    %4829 = vmatpush1.msra.mxu0 %v4801
    %4830 = vmatprep.subr.mxu0 0.0
    %4831 = vmatpush1.msra.mxu0 %v4802
    %4832 = vmatprep.subr.mxu0 0.0
    %4833 = vmatpush1.msra.mxu0 %v4803
    %4834 = vmatprep.subr.mxu0 0.0
    %4835 = vmatpush1.msra.mxu0 %v4804
    %4836 = vmatprep.subr.mxu0 0.0
    %4837 = vmatpush1.msra.mxu0 %v4805
    %4838 = vmatprep.subr.mxu0 0.0
    %4839 = vmatpush1.msra.mxu0 0.0
    %4840 = vmatprep.subr.mxu0 0.0
    %4841 = vmatpush1.msra.mxu0 0.0
    %4842 = vmatprep.subr.mxu0 0.0
    %4843 = vmatpush1.msra.mxu0 0.0
    %4844 = vmatprep.subr.mxu0 0.0
    %4845 = vmatpush1.msra.mxu0 0.0
    %4846 = vmatprep.subr.mxu0 0.0
    %4847 = vmatpush1.msra.mxu0 0.0
    %4848 = vmatprep.subr.mxu0 0.0
    %4849 = vmatpush1.msra.mxu0 0.0
    %4850 = vmatprep.subr.mxu0 0.0
    %4851 = vmatpush1.msra.mxu0 0.0
    %4852 = vmatprep.subr.mxu0 0.0
    %4853 = vmatpush1.msra.mxu0 0.0
    %4854 = vmatprep.subr.mxu0 0.0
    %4855 = vmatpush1.msra.mxu0 0.0
    %4856 = vmatprep.subr.mxu0 0.0
    %4857 = vmatpush1.msra.mxu0 0.0
    %4858 = vmatprep.subr.mxu0 0.0
    %4859 = vmatpush1.msra.mxu0 0.0
    %4860 = vmatprep.subr.mxu0 0.0
    %4861 = vmatpush1.msra.mxu0 0.0
    %4862 = vmatprep.subr.mxu0 0.0
    %4863 = vmatpush1.msra.mxu0 0.0
    %4864 = vmatprep.subr.mxu0 0.0
    %4865 = vmatpush1.msra.mxu0 0.0
    %4866 = vmatprep.subr.mxu0 0.0
    %4867 = vmatpush1.msra.mxu0 0.0
    %4868 = vmatprep.subr.mxu0 0.0
    %4869 = vmatpush1.msra.mxu0 0.0
    %4870 = vmatprep.mubr.f32.mxu0 0.0
    %4871 = vmatmul.mubr.f32.gmra.mrb[0].mxu0 %v4782
    %v4872 = vpop.f32.mrb[0].mxu0
    %v4873 = vadd.f32 0.0, %v4872
    %v4874 = vpop.f32.mrb[0].mxu0
    %4875 = vmatprep.mubr.f32.mxu0 0.0
    %4876 = vmatmul.mubr.f32.gmra.mrb[0].mxu0 %v4783
    %v4877 = vpop.f32.mrb[0].mxu0
    %v4878 = vadd.f32 0.0, %v4877
    %v4879 = vpop.f32.mrb[0].mxu0
    %4880 = vmatprep.mubr.f32.mxu0 0.0
    %4881 = vmatmul.mubr.f32.gmra.mrb[0].mxu0 %v4784
    %v4882 = vpop.f32.mrb[0].mxu0
    %v4883 = vadd.f32 0.0, %v4882
    %v4884 = vpop.f32.mrb[0].mxu0
    %4885 = vmatprep.mubr.f32.mxu0 0.0
    %4886 = vmatmul.mubr.f32.gmra.mrb[0].mxu0 %v4785
    %v4887 = vpop.f32.mrb[0].mxu0
    %v4888 = vadd.f32 0.0, %v4887
    %v4889 = vpop.f32.mrb[0].mxu0
    %4890 = vmatprep.mubr.f32.mxu0 0.0
    %4891 = vmatmul.mubr.f32.gmra.mrb[0].mxu0 %v4786
    %v4892 = vpop.f32.mrb[0].mxu0
    %v4893 = vadd.f32 0.0, %v4892
    %v4894 = vpop.f32.mrb[0].mxu0
    %4895 = vmatprep.mubr.f32.mxu0 0.0
    %4896 = vmatmul.mubr.f32.gmra.mrb[0].mxu0 %v4787
    %v4897 = vpop.f32.mrb[0].mxu0
    %v4898 = vadd.f32 0.0, %v4897
    %v4899 = vpop.f32.mrb[0].mxu0
    %4900 = vmatprep.mubr.f32.mxu0 0.0
    %4901 = vmatmul.mubr.f32.gmra.mrb[0].mxu0 %v4788
    %v4902 = vpop.f32.mrb[0].mxu0
    %v4903 = vadd.f32 0.0, %v4902
    %v4904 = vpop.f32.mrb[0].mxu0
    %4905 = vmatprep.mubr.f32.mxu0 0.0
    %4906 = vmatmul.mubr.f32.gmra.mrb[0].mxu0 %v4789
    %v4907 = vpop.f32.mrb[0].mxu0
    %v4908 = vadd.f32 0.0, %v4907
    %v4909 = vpop.f32.mrb[0].mxu0
    %4910 = vdwg.mxu0
    %v4911 = vadd.f32 %v4774, %v4873
    %v4912 = vadd.f32 %v4775, %v4878
    %v4913 = vadd.f32 %v4776, %v4883
    %v4914 = vadd.f32 %v4777, %v4888
    %v4915 = vadd.f32 %v4778, %v4893
    %v4916 = vadd.f32 %v4779, %v4898
    %v4917 = vadd.f32 %v4780, %v4903
    %v4918 = vadd.f32 %v4781, %v4908
    %v4919 = vld [vmem:[%s4064 + $0x1] sm:$0xff]
    %v4920 = vld [vmem:[%s4064 + $0x11] sm:$0xff]
    %v4921 = vld [vmem:[%s4064 + $0x21] sm:$0xff]
    %v4922 = vld [vmem:[%s4064 + $0x31] sm:$0xff]
    %v4923 = vld [vmem:[%s4064 + $0x41] sm:$0xff]
    %v4924 = vld [vmem:[%s4064 + $0x51] sm:$0xff]
    %v4925 = vld [vmem:[%s4064 + $0x61] sm:$0xff]
    %v4926 = vld [vmem:[%s4064 + $0x71] sm:$0xff]
    %v4927 = vld [vmem:[%s1241] sm:$0xff]
    %v4928 = vld [vmem:[%s1241 + $0x8] sm:$0xff]
    %v4929 = vld [vmem:[%s1241 + $0x10] sm:$0xff]
    %v4930 = vld [vmem:[%s1241 + $0x18] sm:$0xff]
    %v4931 = vld [vmem:[%s1241 + $0x20] sm:$0xff]
    %v4932 = vld [vmem:[%s1241 + $0x28] sm:$0xff]
    %v4933 = vld [vmem:[%s1241 + $0x30] sm:$0xff]
    %v4934 = vld [vmem:[%s1241 + $0x38] sm:$0xff]
    %v4935 = vld [vmem:[%s1241 + $0x40] sm:$0xff]
    %v4936 = vld [vmem:[%s1241 + $0x48] sm:$0xff]
    %v4937 = vld [vmem:[%s1241 + $0x50] sm:$0xff]
    %v4938 = vld [vmem:[%s1241 + $0x58] sm:$0xff]
    %v4939 = vld [vmem:[%s1241 + $0x60] sm:$0xff]
    %v4940 = vld [vmem:[%s1241 + $0x68] sm:$0xff]
    %v4941 = vld [vmem:[%s1241 + $0x70] sm:$0xff]
    %v4942 = vld [vmem:[%s1241 + $0x78] sm:$0xff]
    %4943 = vmatprep.subr.mxu0 0.0
    %4944 = vmatpush1.msra.mxu0 %v4927
    %4945 = vmatprep.subr.mxu0 0.0
    %4946 = vmatpush1.msra.mxu0 %v4928
    %4947 = vmatprep.subr.mxu0 0.0
    %4948 = vmatpush1.msra.mxu0 %v4929
    %4949 = vmatprep.subr.mxu0 0.0
    %4950 = vmatpush1.msra.mxu0 %v4930
    %4951 = vmatprep.subr.mxu0 0.0
    %4952 = vmatpush1.msra.mxu0 %v4931
    %4953 = vmatprep.subr.mxu0 0.0
    %4954 = vmatpush1.msra.mxu0 %v4932
    %4955 = vmatprep.subr.mxu0 0.0
    %4956 = vmatpush1.msra.mxu0 %v4933
    %4957 = vmatprep.subr.mxu0 0.0
    %4958 = vmatpush1.msra.mxu0 %v4934
    %4959 = vmatprep.subr.mxu0 0.0
    %4960 = vmatpush1.msra.mxu0 %v4935
    %4961 = vmatprep.subr.mxu0 0.0
    %4962 = vmatpush1.msra.mxu0 %v4936
    %4963 = vmatprep.subr.mxu0 0.0
    %4964 = vmatpush1.msra.mxu0 %v4937
    %4965 = vmatprep.subr.mxu0 0.0
    %4966 = vmatpush1.msra.mxu0 %v4938
    %4967 = vmatprep.subr.mxu0 0.0
    %4968 = vmatpush1.msra.mxu0 %v4939
    %4969 = vmatprep.subr.mxu0 0.0
    %4970 = vmatpush1.msra.mxu0 %v4940
    %4971 = vmatprep.subr.mxu0 0.0
    %4972 = vmatpush1.msra.mxu0 %v4941
    %4973 = vmatprep.subr.mxu0 0.0
    %4974 = vmatpush1.msra.mxu0 %v4942
    %4975 = vmatprep.subr.mxu0 0.0
    %4976 = vmatpush1.msra.mxu0 0.0
    %4977 = vmatprep.subr.mxu0 0.0
    %4978 = vmatpush1.msra.mxu0 0.0
    %4979 = vmatprep.subr.mxu0 0.0
    %4980 = vmatpush1.msra.mxu0 0.0
    %4981 = vmatprep.subr.mxu0 0.0
    %4982 = vmatpush1.msra.mxu0 0.0
    %4983 = vmatprep.subr.mxu0 0.0
    %4984 = vmatpush1.msra.mxu0 0.0
    %4985 = vmatprep.subr.mxu0 0.0
    %4986 = vmatpush1.msra.mxu0 0.0
    %4987 = vmatprep.subr.mxu0 0.0
    %4988 = vmatpush1.msra.mxu0 0.0
    %4989 = vmatprep.subr.mxu0 0.0
    %4990 = vmatpush1.msra.mxu0 0.0
    %4991 = vmatprep.subr.mxu0 0.0
    %4992 = vmatpush1.msra.mxu0 0.0
    %4993 = vmatprep.subr.mxu0 0.0
    %4994 = vmatpush1.msra.mxu0 0.0
    %4995 = vmatprep.subr.mxu0 0.0
    %4996 = vmatpush1.msra.mxu0 0.0
    %4997 = vmatprep.subr.mxu0 0.0
    %4998 = vmatpush1.msra.mxu0 0.0
    %4999 = vmatprep.subr.mxu0 0.0
    %5000 = vmatpush1.msra.mxu0 0.0
    %5001 = vmatprep.subr.mxu0 0.0
    %5002 = vmatpush1.msra.mxu0 0.0
    %5003 = vmatprep.subr.mxu0 0.0
    %5004 = vmatpush1.msra.mxu0 0.0
    %5005 = vmatprep.subr.mxu0 0.0
    %5006 = vmatpush1.msra.mxu0 0.0
    %5007 = vmatprep.mubr.f32.mxu0 0.0
    %5008 = vmatmul.mubr.f32.gmra.mrb[0].mxu0 %v4919
    %v5009 = vpop.f32.mrb[0].mxu0
    %v5010 = vadd.f32 0.0, %v5009
    %v5011 = vpop.f32.mrb[0].mxu0
    %5012 = vmatprep.mubr.f32.mxu0 0.0
    %5013 = vmatmul.mubr.f32.gmra.mrb[0].mxu0 %v4920
    %v5014 = vpop.f32.mrb[0].mxu0
    %v5015 = vadd.f32 0.0, %v5014
    %v5016 = vpop.f32.mrb[0].mxu0
    %5017 = vmatprep.mubr.f32.mxu0 0.0
    %5018 = vmatmul.mubr.f32.gmra.mrb[0].mxu0 %v4921
    %v5019 = vpop.f32.mrb[0].mxu0
    %v5020 = vadd.f32 0.0, %v5019
    %v5021 = vpop.f32.mrb[0].mxu0
    %5022 = vmatprep.mubr.f32.mxu0 0.0
    %5023 = vmatmul.mubr.f32.gmra.mrb[0].mxu0 %v4922
    %v5024 = vpop.f32.mrb[0].mxu0
    %v5025 = vadd.f32 0.0, %v5024
    %v5026 = vpop.f32.mrb[0].mxu0
    %5027 = vmatprep.mubr.f32.mxu0 0.0
    %5028 = vmatmul.mubr.f32.gmra.mrb[0].mxu0 %v4923
    %v5029 = vpop.f32.mrb[0].mxu0
    %v5030 = vadd.f32 0.0, %v5029
    %v5031 = vpop.f32.mrb[0].mxu0
    %5032 = vmatprep.mubr.f32.mxu0 0.0
    %5033 = vmatmul.mubr.f32.gmra.mrb[0].mxu0 %v4924
    %v5034 = vpop.f32.mrb[0].mxu0
    %v5035 = vadd.f32 0.0, %v5034
    %v5036 = vpop.f32.mrb[0].mxu0
    %5037 = vmatprep.mubr.f32.mxu0 0.0
    %5038 = vmatmul.mubr.f32.gmra.mrb[0].mxu0 %v4925
    %v5039 = vpop.f32.mrb[0].mxu0
    %v5040 = vadd.f32 0.0, %v5039
    %v5041 = vpop.f32.mrb[0].mxu0
    %5042 = vmatprep.mubr.f32.mxu0 0.0
    %5043 = vmatmul.mubr.f32.gmra.mrb[0].mxu0 %v4926
    %v5044 = vpop.f32.mrb[0].mxu0
    %v5045 = vadd.f32 0.0, %v5044
    %v5046 = vpop.f32.mrb[0].mxu0
    %5047 = vdwg.mxu0
    %v5048 = vadd.f32 %v4911, %v5010
    %v5049 = vadd.f32 %v4912, %v5015
    %v5050 = vadd.f32 %v4913, %v5020
    %v5051 = vadd.f32 %v4914, %v5025
    %v5052 = vadd.f32 %v4915, %v5030
    %v5053 = vadd.f32 %v4916, %v5035
    %v5054 = vadd.f32 %v4917, %v5040
    %v5055 = vadd.f32 %v4918, %v5045
    %v5056 = vld [vmem:[%s4064 + $0x2] sm:$0xff]
    %v5057 = vld [vmem:[%s4064 + $0x12] sm:$0xff]
    %v5058 = vld [vmem:[%s4064 + $0x22] sm:$0xff]
    %v5059 = vld [vmem:[%s4064 + $0x32] sm:$0xff]
    %v5060 = vld [vmem:[%s4064 + $0x42] sm:$0xff]
    %v5061 = vld [vmem:[%s4064 + $0x52] sm:$0xff]
    %v5062 = vld [vmem:[%s4064 + $0x62] sm:$0xff]
    %v5063 = vld [vmem:[%s4064 + $0x72] sm:$0xff]
    %v5064 = vld [vmem:[%s1379] sm:$0xff]
    %v5065 = vld [vmem:[%s1379 + $0x8] sm:$0xff]
    %v5066 = vld [vmem:[%s1379 + $0x10] sm:$0xff]
    %v5067 = vld [vmem:[%s1379 + $0x18] sm:$0xff]
    %v5068 = vld [vmem:[%s1379 + $0x20] sm:$0xff]
    %v5069 = vld [vmem:[%s1379 + $0x28] sm:$0xff]
    %v5070 = vld [vmem:[%s1379 + $0x30] sm:$0xff]
    %v5071 = vld [vmem:[%s1379 + $0x38] sm:$0xff]
    %v5072 = vld [vmem:[%s1379 + $0x40] sm:$0xff]
    %v5073 = vld [vmem:[%s1379 + $0x48] sm:$0xff]
    %v5074 = vld [vmem:[%s1379 + $0x50] sm:$0xff]
    %v5075 = vld [vmem:[%s1379 + $0x58] sm:$0xff]
    %v5076 = vld [vmem:[%s1379 + $0x60] sm:$0xff]
    %v5077 = vld [vmem:[%s1379 + $0x68] sm:$0xff]
    %v5078 = vld [vmem:[%s1379 + $0x70] sm:$0xff]
    %v5079 = vld [vmem:[%s1379 + $0x78] sm:$0xff]
    %5080 = vmatprep.subr.mxu0 0.0
    %5081 = vmatpush1.msra.mxu0 %v5064
    %5082 = vmatprep.subr.mxu0 0.0
    %5083 = vmatpush1.msra.mxu0 %v5065
    %5084 = vmatprep.subr.mxu0 0.0
    %5085 = vmatpush1.msra.mxu0 %v5066
    %5086 = vmatprep.subr.mxu0 0.0
    %5087 = vmatpush1.msra.mxu0 %v5067
    %5088 = vmatprep.subr.mxu0 0.0
    %5089 = vmatpush1.msra.mxu0 %v5068
    %5090 = vmatprep.subr.mxu0 0.0
    %5091 = vmatpush1.msra.mxu0 %v5069
    %5092 = vmatprep.subr.mxu0 0.0
    %5093 = vmatpush1.msra.mxu0 %v5070
    %5094 = vmatprep.subr.mxu0 0.0
    %5095 = vmatpush1.msra.mxu0 %v5071
    %5096 = vmatprep.subr.mxu0 0.0
    %5097 = vmatpush1.msra.mxu0 %v5072
    %5098 = vmatprep.subr.mxu0 0.0
    %5099 = vmatpush1.msra.mxu0 %v5073
    %5100 = vmatprep.subr.mxu0 0.0
    %5101 = vmatpush1.msra.mxu0 %v5074
    %5102 = vmatprep.subr.mxu0 0.0
    %5103 = vmatpush1.msra.mxu0 %v5075
    %5104 = vmatprep.subr.mxu0 0.0
    %5105 = vmatpush1.msra.mxu0 %v5076
    %5106 = vmatprep.subr.mxu0 0.0
    %5107 = vmatpush1.msra.mxu0 %v5077
    %5108 = vmatprep.subr.mxu0 0.0
    %5109 = vmatpush1.msra.mxu0 %v5078
    %5110 = vmatprep.subr.mxu0 0.0
    %5111 = vmatpush1.msra.mxu0 %v5079
    %5112 = vmatprep.subr.mxu0 0.0
    %5113 = vmatpush1.msra.mxu0 0.0
    %5114 = vmatprep.subr.mxu0 0.0
    %5115 = vmatpush1.msra.mxu0 0.0
    %5116 = vmatprep.subr.mxu0 0.0
    %5117 = vmatpush1.msra.mxu0 0.0
    %5118 = vmatprep.subr.mxu0 0.0
    %5119 = vmatpush1.msra.mxu0 0.0
    %5120 = vmatprep.subr.mxu0 0.0
    %5121 = vmatpush1.msra.mxu0 0.0
    %5122 = vmatprep.subr.mxu0 0.0
    %5123 = vmatpush1.msra.mxu0 0.0
    %5124 = vmatprep.subr.mxu0 0.0
    %5125 = vmatpush1.msra.mxu0 0.0
    %5126 = vmatprep.subr.mxu0 0.0
    %5127 = vmatpush1.msra.mxu0 0.0
    %5128 = vmatprep.subr.mxu0 0.0
    %5129 = vmatpush1.msra.mxu0 0.0
    %5130 = vmatprep.subr.mxu0 0.0
    %5131 = vmatpush1.msra.mxu0 0.0
    %5132 = vmatprep.subr.mxu0 0.0
    %5133 = vmatpush1.msra.mxu0 0.0
    %5134 = vmatprep.subr.mxu0 0.0
    %5135 = vmatpush1.msra.mxu0 0.0
    %5136 = vmatprep.subr.mxu0 0.0
    %5137 = vmatpush1.msra.mxu0 0.0
    %5138 = vmatprep.subr.mxu0 0.0
    %5139 = vmatpush1.msra.mxu0 0.0
    %5140 = vmatprep.subr.mxu0 0.0
    %5141 = vmatpush1.msra.mxu0 0.0
    %5142 = vmatprep.subr.mxu0 0.0
    %5143 = vmatpush1.msra.mxu0 0.0
    %5144 = vmatprep.mubr.f32.mxu0 0.0
    %5145 = vmatmul.mubr.f32.gmra.mrb[0].mxu0 %v5056
    %v5146 = vpop.f32.mrb[0].mxu0
    %v5147 = vadd.f32 0.0, %v5146
    %v5148 = vpop.f32.mrb[0].mxu0
    %5149 = vmatprep.mubr.f32.mxu0 0.0
    %5150 = vmatmul.mubr.f32.gmra.mrb[0].mxu0 %v5057
    %v5151 = vpop.f32.mrb[0].mxu0
    %v5152 = vadd.f32 0.0, %v5151
    %v5153 = vpop.f32.mrb[0].mxu0
    %5154 = vmatprep.mubr.f32.mxu0 0.0
    %5155 = vmatmul.mubr.f32.gmra.mrb[0].mxu0 %v5058
    %v5156 = vpop.f32.mrb[0].mxu0
    %v5157 = vadd.f32 0.0, %v5156
    %v5158 = vpop.f32.mrb[0].mxu0
    %5159 = vmatprep.mubr.f32.mxu0 0.0
    %5160 = vmatmul.mubr.f32.gmra.mrb[0].mxu0 %v5059
    %v5161 = vpop.f32.mrb[0].mxu0
    %v5162 = vadd.f32 0.0, %v5161
    %v5163 = vpop.f32.mrb[0].mxu0
    %5164 = vmatprep.mubr.f32.mxu0 0.0
    %5165 = vmatmul.mubr.f32.gmra.mrb[0].mxu0 %v5060
    %v5166 = vpop.f32.mrb[0].mxu0
    %v5167 = vadd.f32 0.0, %v5166
    %v5168 = vpop.f32.mrb[0].mxu0
    %5169 = vmatprep.mubr.f32.mxu0 0.0
    %5170 = vmatmul.mubr.f32.gmra.mrb[0].mxu0 %v5061
    %v5171 = vpop.f32.mrb[0].mxu0
    %v5172 = vadd.f32 0.0, %v5171
    %v5173 = vpop.f32.mrb[0].mxu0
    %5174 = vmatprep.mubr.f32.mxu0 0.0
    %5175 = vmatmul.mubr.f32.gmra.mrb[0].mxu0 %v5062
    %v5176 = vpop.f32.mrb[0].mxu0
    %v5177 = vadd.f32 0.0, %v5176
    %v5178 = vpop.f32.mrb[0].mxu0
    %5179 = vmatprep.mubr.f32.mxu0 0.0
    %5180 = vmatmul.mubr.f32.gmra.mrb[0].mxu0 %v5063
    %v5181 = vpop.f32.mrb[0].mxu0
    %v5182 = vadd.f32 0.0, %v5181
    %v5183 = vpop.f32.mrb[0].mxu0
    %5184 = vdwg.mxu0
    %v5185 = vadd.f32 %v5048, %v5147
    %v5186 = vadd.f32 %v5049, %v5152
    %v5187 = vadd.f32 %v5050, %v5157
    %v5188 = vadd.f32 %v5051, %v5162
    %v5189 = vadd.f32 %v5052, %v5167
    %v5190 = vadd.f32 %v5053, %v5172
    %v5191 = vadd.f32 %v5054, %v5177
    %v5192 = vadd.f32 %v5055, %v5182
    %v5193 = vld [vmem:[%s4064 + $0x3] sm:$0xff]
    %v5194 = vld [vmem:[%s4064 + $0x13] sm:$0xff]
    %v5195 = vld [vmem:[%s4064 + $0x23] sm:$0xff]
    %v5196 = vld [vmem:[%s4064 + $0x33] sm:$0xff]
    %v5197 = vld [vmem:[%s4064 + $0x43] sm:$0xff]
    %v5198 = vld [vmem:[%s4064 + $0x53] sm:$0xff]
    %v5199 = vld [vmem:[%s4064 + $0x63] sm:$0xff]
    %v5200 = vld [vmem:[%s4064 + $0x73] sm:$0xff]
    %v5201 = vld [vmem:[%s1517] sm:$0xff]
    %v5202 = vld [vmem:[%s1517 + $0x8] sm:$0xff]
    %v5203 = vld [vmem:[%s1517 + $0x10] sm:$0xff]
    %v5204 = vld [vmem:[%s1517 + $0x18] sm:$0xff]
    %v5205 = vld [vmem:[%s1517 + $0x20] sm:$0xff]
    %v5206 = vld [vmem:[%s1517 + $0x28] sm:$0xff]
    %v5207 = vld [vmem:[%s1517 + $0x30] sm:$0xff]
    %v5208 = vld [vmem:[%s1517 + $0x38] sm:$0xff]
    %v5209 = vld [vmem:[%s1517 + $0x40] sm:$0xff]
    %v5210 = vld [vmem:[%s1517 + $0x48] sm:$0xff]
    %v5211 = vld [vmem:[%s1517 + $0x50] sm:$0xff]
    %v5212 = vld [vmem:[%s1517 + $0x58] sm:$0xff]
    %v5213 = vld [vmem:[%s1517 + $0x60] sm:$0xff]
    %v5214 = vld [vmem:[%s1517 + $0x68] sm:$0xff]
    %v5215 = vld [vmem:[%s1517 + $0x70] sm:$0xff]
    %v5216 = vld [vmem:[%s1517 + $0x78] sm:$0xff]
    %5217 = vmatprep.subr.mxu0 0.0
    %5218 = vmatpush1.msra.mxu0 %v5201
    %5219 = vmatprep.subr.mxu0 0.0
    %5220 = vmatpush1.msra.mxu0 %v5202
    %5221 = vmatprep.subr.mxu0 0.0
    %5222 = vmatpush1.msra.mxu0 %v5203
    %5223 = vmatprep.subr.mxu0 0.0
    %5224 = vmatpush1.msra.mxu0 %v5204
    %5225 = vmatprep.subr.mxu0 0.0
    %5226 = vmatpush1.msra.mxu0 %v5205
    %5227 = vmatprep.subr.mxu0 0.0
    %5228 = vmatpush1.msra.mxu0 %v5206
    %5229 = vmatprep.subr.mxu0 0.0
    %5230 = vmatpush1.msra.mxu0 %v5207
    %5231 = vmatprep.subr.mxu0 0.0
    %5232 = vmatpush1.msra.mxu0 %v5208
    %5233 = vmatprep.subr.mxu0 0.0
    %5234 = vmatpush1.msra.mxu0 %v5209
    %5235 = vmatprep.subr.mxu0 0.0
    %5236 = vmatpush1.msra.mxu0 %v5210
    %5237 = vmatprep.subr.mxu0 0.0
    %5238 = vmatpush1.msra.mxu0 %v5211
    %5239 = vmatprep.subr.mxu0 0.0
    %5240 = vmatpush1.msra.mxu0 %v5212
    %5241 = vmatprep.subr.mxu0 0.0
    %5242 = vmatpush1.msra.mxu0 %v5213
    %5243 = vmatprep.subr.mxu0 0.0
    %5244 = vmatpush1.msra.mxu0 %v5214
    %5245 = vmatprep.subr.mxu0 0.0
    %5246 = vmatpush1.msra.mxu0 %v5215
    %5247 = vmatprep.subr.mxu0 0.0
    %5248 = vmatpush1.msra.mxu0 %v5216
    %5249 = vmatprep.subr.mxu0 0.0
    %5250 = vmatpush1.msra.mxu0 0.0
    %5251 = vmatprep.subr.mxu0 0.0
    %5252 = vmatpush1.msra.mxu0 0.0
    %5253 = vmatprep.subr.mxu0 0.0
    %5254 = vmatpush1.msra.mxu0 0.0
    %5255 = vmatprep.subr.mxu0 0.0
    %5256 = vmatpush1.msra.mxu0 0.0
    %5257 = vmatprep.subr.mxu0 0.0
    %5258 = vmatpush1.msra.mxu0 0.0
    %5259 = vmatprep.subr.mxu0 0.0
    %5260 = vmatpush1.msra.mxu0 0.0
    %5261 = vmatprep.subr.mxu0 0.0
    %5262 = vmatpush1.msra.mxu0 0.0
    %5263 = vmatprep.subr.mxu0 0.0
    %5264 = vmatpush1.msra.mxu0 0.0
    %5265 = vmatprep.subr.mxu0 0.0
    %5266 = vmatpush1.msra.mxu0 0.0
    %5267 = vmatprep.subr.mxu0 0.0
    %5268 = vmatpush1.msra.mxu0 0.0
    %5269 = vmatprep.subr.mxu0 0.0
    %5270 = vmatpush1.msra.mxu0 0.0
    %5271 = vmatprep.subr.mxu0 0.0
    %5272 = vmatpush1.msra.mxu0 0.0
    %5273 = vmatprep.subr.mxu0 0.0
    %5274 = vmatpush1.msra.mxu0 0.0
    %5275 = vmatprep.subr.mxu0 0.0
    %5276 = vmatpush1.msra.mxu0 0.0
    %5277 = vmatprep.subr.mxu0 0.0
    %5278 = vmatpush1.msra.mxu0 0.0
    %5279 = vmatprep.subr.mxu0 0.0
    %5280 = vmatpush1.msra.mxu0 0.0
    %5281 = vmatprep.mubr.f32.mxu0 0.0
    %5282 = vmatmul.mubr.f32.gmra.mrb[0].mxu0 %v5193
    %v5283 = vpop.f32.mrb[0].mxu0
    %v5284 = vadd.f32 0.0, %v5283
    %v5285 = vpop.f32.mrb[0].mxu0
    %5286 = vmatprep.mubr.f32.mxu0 0.0
    %5287 = vmatmul.mubr.f32.gmra.mrb[0].mxu0 %v5194
    %v5288 = vpop.f32.mrb[0].mxu0
    %v5289 = vadd.f32 0.0, %v5288
    %v5290 = vpop.f32.mrb[0].mxu0
    %5291 = vmatprep.mubr.f32.mxu0 0.0
    %5292 = vmatmul.mubr.f32.gmra.mrb[0].mxu0 %v5195
    %v5293 = vpop.f32.mrb[0].mxu0
    %v5294 = vadd.f32 0.0, %v5293
    %v5295 = vpop.f32.mrb[0].mxu0
    %5296 = vmatprep.mubr.f32.mxu0 0.0
    %5297 = vmatmul.mubr.f32.gmra.mrb[0].mxu0 %v5196
    %v5298 = vpop.f32.mrb[0].mxu0
    %v5299 = vadd.f32 0.0, %v5298
    %v5300 = vpop.f32.mrb[0].mxu0
    %5301 = vmatprep.mubr.f32.mxu0 0.0
    %5302 = vmatmul.mubr.f32.gmra.mrb[0].mxu0 %v5197
    %v5303 = vpop.f32.mrb[0].mxu0
    %v5304 = vadd.f32 0.0, %v5303
    %v5305 = vpop.f32.mrb[0].mxu0
    %5306 = vmatprep.mubr.f32.mxu0 0.0
    %5307 = vmatmul.mubr.f32.gmra.mrb[0].mxu0 %v5198
    %v5308 = vpop.f32.mrb[0].mxu0
    %v5309 = vadd.f32 0.0, %v5308
    %v5310 = vpop.f32.mrb[0].mxu0
    %5311 = vmatprep.mubr.f32.mxu0 0.0
    %5312 = vmatmul.mubr.f32.gmra.mrb[0].mxu0 %v5199
    %v5313 = vpop.f32.mrb[0].mxu0
    %v5314 = vadd.f32 0.0, %v5313
    %v5315 = vpop.f32.mrb[0].mxu0
    %5316 = vmatprep.mubr.f32.mxu0 0.0
    %5317 = vmatmul.mubr.f32.gmra.mrb[0].mxu0 %v5200
    %v5318 = vpop.f32.mrb[0].mxu0
    %v5319 = vadd.f32 0.0, %v5318
    %v5320 = vpop.f32.mrb[0].mxu0
    %5321 = vdwg.mxu0
    %v5322 = vadd.f32 %v5185, %v5284
    %v5323 = vadd.f32 %v5186, %v5289
    %v5324 = vadd.f32 %v5187, %v5294
    %v5325 = vadd.f32 %v5188, %v5299
    %v5326 = vadd.f32 %v5189, %v5304
    %v5327 = vadd.f32 %v5190, %v5309
    %v5328 = vadd.f32 %v5191, %v5314
    %v5329 = vadd.f32 %v5192, %v5319
    %v5330 = vld [vmem:[%s4064 + $0x4] sm:$0xff]
    %v5331 = vld [vmem:[%s4064 + $0x14] sm:$0xff]
    %v5332 = vld [vmem:[%s4064 + $0x24] sm:$0xff]
    %v5333 = vld [vmem:[%s4064 + $0x34] sm:$0xff]
    %v5334 = vld [vmem:[%s4064 + $0x44] sm:$0xff]
    %v5335 = vld [vmem:[%s4064 + $0x54] sm:$0xff]
    %v5336 = vld [vmem:[%s4064 + $0x64] sm:$0xff]
    %v5337 = vld [vmem:[%s4064 + $0x74] sm:$0xff]
    %v5338 = vld [vmem:[%s1655] sm:$0xff]
    %v5339 = vld [vmem:[%s1655 + $0x8] sm:$0xff]
    %v5340 = vld [vmem:[%s1655 + $0x10] sm:$0xff]
    %v5341 = vld [vmem:[%s1655 + $0x18] sm:$0xff]
    %v5342 = vld [vmem:[%s1655 + $0x20] sm:$0xff]
    %v5343 = vld [vmem:[%s1655 + $0x28] sm:$0xff]
    %v5344 = vld [vmem:[%s1655 + $0x30] sm:$0xff]
    %v5345 = vld [vmem:[%s1655 + $0x38] sm:$0xff]
    %v5346 = vld [vmem:[%s1655 + $0x40] sm:$0xff]
    %v5347 = vld [vmem:[%s1655 + $0x48] sm:$0xff]
    %v5348 = vld [vmem:[%s1655 + $0x50] sm:$0xff]
    %v5349 = vld [vmem:[%s1655 + $0x58] sm:$0xff]
    %v5350 = vld [vmem:[%s1655 + $0x60] sm:$0xff]
    %v5351 = vld [vmem:[%s1655 + $0x68] sm:$0xff]
    %v5352 = vld [vmem:[%s1655 + $0x70] sm:$0xff]
    %v5353 = vld [vmem:[%s1655 + $0x78] sm:$0xff]
    %5354 = vmatprep.subr.mxu0 0.0
    %5355 = vmatpush1.msra.mxu0 %v5338
    %5356 = vmatprep.subr.mxu0 0.0
    %5357 = vmatpush1.msra.mxu0 %v5339
    %5358 = vmatprep.subr.mxu0 0.0
    %5359 = vmatpush1.msra.mxu0 %v5340
    %5360 = vmatprep.subr.mxu0 0.0
    %5361 = vmatpush1.msra.mxu0 %v5341
    %5362 = vmatprep.subr.mxu0 0.0
    %5363 = vmatpush1.msra.mxu0 %v5342
    %5364 = vmatprep.subr.mxu0 0.0
    %5365 = vmatpush1.msra.mxu0 %v5343
    %5366 = vmatprep.subr.mxu0 0.0
    %5367 = vmatpush1.msra.mxu0 %v5344
    %5368 = vmatprep.subr.mxu0 0.0
    %5369 = vmatpush1.msra.mxu0 %v5345
    %5370 = vmatprep.subr.mxu0 0.0
    %5371 = vmatpush1.msra.mxu0 %v5346
    %5372 = vmatprep.subr.mxu0 0.0
    %5373 = vmatpush1.msra.mxu0 %v5347
    %5374 = vmatprep.subr.mxu0 0.0
    %5375 = vmatpush1.msra.mxu0 %v5348
    %5376 = vmatprep.subr.mxu0 0.0
    %5377 = vmatpush1.msra.mxu0 %v5349
    %5378 = vmatprep.subr.mxu0 0.0
    %5379 = vmatpush1.msra.mxu0 %v5350
    %5380 = vmatprep.subr.mxu0 0.0
    %5381 = vmatpush1.msra.mxu0 %v5351
    %5382 = vmatprep.subr.mxu0 0.0
    %5383 = vmatpush1.msra.mxu0 %v5352
    %5384 = vmatprep.subr.mxu0 0.0
    %5385 = vmatpush1.msra.mxu0 %v5353
    %5386 = vmatprep.subr.mxu0 0.0
    %5387 = vmatpush1.msra.mxu0 0.0
    %5388 = vmatprep.subr.mxu0 0.0
    %5389 = vmatpush1.msra.mxu0 0.0
    %5390 = vmatprep.subr.mxu0 0.0
    %5391 = vmatpush1.msra.mxu0 0.0
    %5392 = vmatprep.subr.mxu0 0.0
    %5393 = vmatpush1.msra.mxu0 0.0
    %5394 = vmatprep.subr.mxu0 0.0
    %5395 = vmatpush1.msra.mxu0 0.0
    %5396 = vmatprep.subr.mxu0 0.0
    %5397 = vmatpush1.msra.mxu0 0.0
    %5398 = vmatprep.subr.mxu0 0.0
    %5399 = vmatpush1.msra.mxu0 0.0
    %5400 = vmatprep.subr.mxu0 0.0
    %5401 = vmatpush1.msra.mxu0 0.0
    %5402 = vmatprep.subr.mxu0 0.0
    %5403 = vmatpush1.msra.mxu0 0.0
    %5404 = vmatprep.subr.mxu0 0.0
    %5405 = vmatpush1.msra.mxu0 0.0
    %5406 = vmatprep.subr.mxu0 0.0
    %5407 = vmatpush1.msra.mxu0 0.0
    %5408 = vmatprep.subr.mxu0 0.0
    %5409 = vmatpush1.msra.mxu0 0.0
    %5410 = vmatprep.subr.mxu0 0.0
    %5411 = vmatpush1.msra.mxu0 0.0
    %5412 = vmatprep.subr.mxu0 0.0
    %5413 = vmatpush1.msra.mxu0 0.0
    %5414 = vmatprep.subr.mxu0 0.0
    %5415 = vmatpush1.msra.mxu0 0.0
    %5416 = vmatprep.subr.mxu0 0.0
    %5417 = vmatpush1.msra.mxu0 0.0
    %5418 = vmatprep.mubr.f32.mxu0 0.0
    %5419 = vmatmul.mubr.f32.gmra.mrb[0].mxu0 %v5330
    %v5420 = vpop.f32.mrb[0].mxu0
    %v5421 = vadd.f32 0.0, %v5420
    %v5422 = vpop.f32.mrb[0].mxu0
    %5423 = vmatprep.mubr.f32.mxu0 0.0
    %5424 = vmatmul.mubr.f32.gmra.mrb[0].mxu0 %v5331
    %v5425 = vpop.f32.mrb[0].mxu0
    %v5426 = vadd.f32 0.0, %v5425
    %v5427 = vpop.f32.mrb[0].mxu0
    %5428 = vmatprep.mubr.f32.mxu0 0.0
    %5429 = vmatmul.mubr.f32.gmra.mrb[0].mxu0 %v5332
    %v5430 = vpop.f32.mrb[0].mxu0
    %v5431 = vadd.f32 0.0, %v5430
    %v5432 = vpop.f32.mrb[0].mxu0
    %5433 = vmatprep.mubr.f32.mxu0 0.0
    %5434 = vmatmul.mubr.f32.gmra.mrb[0].mxu0 %v5333
    %v5435 = vpop.f32.mrb[0].mxu0
    %v5436 = vadd.f32 0.0, %v5435
    %v5437 = vpop.f32.mrb[0].mxu0
    %5438 = vmatprep.mubr.f32.mxu0 0.0
    %5439 = vmatmul.mubr.f32.gmra.mrb[0].mxu0 %v5334
    %v5440 = vpop.f32.mrb[0].mxu0
    %v5441 = vadd.f32 0.0, %v5440
    %v5442 = vpop.f32.mrb[0].mxu0
    %5443 = vmatprep.mubr.f32.mxu0 0.0
    %5444 = vmatmul.mubr.f32.gmra.mrb[0].mxu0 %v5335
    %v5445 = vpop.f32.mrb[0].mxu0
    %v5446 = vadd.f32 0.0, %v5445
    %v5447 = vpop.f32.mrb[0].mxu0
    %5448 = vmatprep.mubr.f32.mxu0 0.0
    %5449 = vmatmul.mubr.f32.gmra.mrb[0].mxu0 %v5336
    %v5450 = vpop.f32.mrb[0].mxu0
    %v5451 = vadd.f32 0.0, %v5450
    %v5452 = vpop.f32.mrb[0].mxu0
    %5453 = vmatprep.mubr.f32.mxu0 0.0
    %5454 = vmatmul.mubr.f32.gmra.mrb[0].mxu0 %v5337
    %v5455 = vpop.f32.mrb[0].mxu0
    %v5456 = vadd.f32 0.0, %v5455
    %v5457 = vpop.f32.mrb[0].mxu0
    %5458 = vdwg.mxu0
    %v5459 = vadd.f32 %v5322, %v5421
    %v5460 = vadd.f32 %v5323, %v5426
    %v5461 = vadd.f32 %v5324, %v5431
    %v5462 = vadd.f32 %v5325, %v5436
    %v5463 = vadd.f32 %v5326, %v5441
    %v5464 = vadd.f32 %v5327, %v5446
    %v5465 = vadd.f32 %v5328, %v5451
    %v5466 = vadd.f32 %v5329, %v5456
    %v5467 = vld [vmem:[%s4067] sm:$0xff]
    %v5468 = vld [vmem:[%s4067 + $0x10] sm:$0xff]
    %v5469 = vld [vmem:[%s4067 + $0x20] sm:$0xff]
    %v5470 = vld [vmem:[%s4067 + $0x30] sm:$0xff]
    %v5471 = vld [vmem:[%s4067 + $0x40] sm:$0xff]
    %v5472 = vld [vmem:[%s4067 + $0x50] sm:$0xff]
    %v5473 = vld [vmem:[%s4067 + $0x60] sm:$0xff]
    %v5474 = vld [vmem:[%s4067 + $0x70] sm:$0xff]
    %v5475 = vld [vmem:[%s1793] sm:$0xff]
    %v5476 = vld [vmem:[%s1793 + $0x8] sm:$0xff]
    %v5477 = vld [vmem:[%s1793 + $0x10] sm:$0xff]
    %v5478 = vld [vmem:[%s1793 + $0x18] sm:$0xff]
    %v5479 = vld [vmem:[%s1793 + $0x20] sm:$0xff]
    %v5480 = vld [vmem:[%s1793 + $0x28] sm:$0xff]
    %v5481 = vld [vmem:[%s1793 + $0x30] sm:$0xff]
    %v5482 = vld [vmem:[%s1793 + $0x38] sm:$0xff]
    %v5483 = vld [vmem:[%s1793 + $0x40] sm:$0xff]
    %v5484 = vld [vmem:[%s1793 + $0x48] sm:$0xff]
    %v5485 = vld [vmem:[%s1793 + $0x50] sm:$0xff]
    %v5486 = vld [vmem:[%s1793 + $0x58] sm:$0xff]
    %v5487 = vld [vmem:[%s1793 + $0x60] sm:$0xff]
    %v5488 = vld [vmem:[%s1793 + $0x68] sm:$0xff]
    %v5489 = vld [vmem:[%s1793 + $0x70] sm:$0xff]
    %v5490 = vld [vmem:[%s1793 + $0x78] sm:$0xff]
    %5491 = vmatprep.subr.mxu0 0.0
    %5492 = vmatpush1.msra.mxu0 %v5475
    %5493 = vmatprep.subr.mxu0 0.0
    %5494 = vmatpush1.msra.mxu0 %v5476
    %5495 = vmatprep.subr.mxu0 0.0
    %5496 = vmatpush1.msra.mxu0 %v5477
    %5497 = vmatprep.subr.mxu0 0.0
    %5498 = vmatpush1.msra.mxu0 %v5478
    %5499 = vmatprep.subr.mxu0 0.0
    %5500 = vmatpush1.msra.mxu0 %v5479
    %5501 = vmatprep.subr.mxu0 0.0
    %5502 = vmatpush1.msra.mxu0 %v5480
    %5503 = vmatprep.subr.mxu0 0.0
    %5504 = vmatpush1.msra.mxu0 %v5481
    %5505 = vmatprep.subr.mxu0 0.0
    %5506 = vmatpush1.msra.mxu0 %v5482
    %5507 = vmatprep.subr.mxu0 0.0
    %5508 = vmatpush1.msra.mxu0 %v5483
    %5509 = vmatprep.subr.mxu0 0.0
    %5510 = vmatpush1.msra.mxu0 %v5484
    %5511 = vmatprep.subr.mxu0 0.0
    %5512 = vmatpush1.msra.mxu0 %v5485
    %5513 = vmatprep.subr.mxu0 0.0
    %5514 = vmatpush1.msra.mxu0 %v5486
    %5515 = vmatprep.subr.mxu0 0.0
    %5516 = vmatpush1.msra.mxu0 %v5487
    %5517 = vmatprep.subr.mxu0 0.0
    %5518 = vmatpush1.msra.mxu0 %v5488
    %5519 = vmatprep.subr.mxu0 0.0
    %5520 = vmatpush1.msra.mxu0 %v5489
    %5521 = vmatprep.subr.mxu0 0.0
    %5522 = vmatpush1.msra.mxu0 %v5490
    %5523 = vmatprep.subr.mxu0 0.0
    %5524 = vmatpush1.msra.mxu0 0.0
    %5525 = vmatprep.subr.mxu0 0.0
    %5526 = vmatpush1.msra.mxu0 0.0
    %5527 = vmatprep.subr.mxu0 0.0
    %5528 = vmatpush1.msra.mxu0 0.0
    %5529 = vmatprep.subr.mxu0 0.0
    %5530 = vmatpush1.msra.mxu0 0.0
    %5531 = vmatprep.subr.mxu0 0.0
    %5532 = vmatpush1.msra.mxu0 0.0
    %5533 = vmatprep.subr.mxu0 0.0
    %5534 = vmatpush1.msra.mxu0 0.0
    %5535 = vmatprep.subr.mxu0 0.0
    %5536 = vmatpush1.msra.mxu0 0.0
    %5537 = vmatprep.subr.mxu0 0.0
    %5538 = vmatpush1.msra.mxu0 0.0
    %5539 = vmatprep.subr.mxu0 0.0
    %5540 = vmatpush1.msra.mxu0 0.0
    %5541 = vmatprep.subr.mxu0 0.0
    %5542 = vmatpush1.msra.mxu0 0.0
    %5543 = vmatprep.subr.mxu0 0.0
    %5544 = vmatpush1.msra.mxu0 0.0
    %5545 = vmatprep.subr.mxu0 0.0
    %5546 = vmatpush1.msra.mxu0 0.0
    %5547 = vmatprep.subr.mxu0 0.0
    %5548 = vmatpush1.msra.mxu0 0.0
    %5549 = vmatprep.subr.mxu0 0.0
    %5550 = vmatpush1.msra.mxu0 0.0
    %5551 = vmatprep.subr.mxu0 0.0
    %5552 = vmatpush1.msra.mxu0 0.0
    %5553 = vmatprep.subr.mxu0 0.0
    %5554 = vmatpush1.msra.mxu0 0.0
    %5555 = vmatprep.mubr.f32.mxu0 0.0
    %5556 = vmatmul.mubr.f32.gmra.mrb[0].mxu0 %v5467
    %v5557 = vpop.f32.mrb[0].mxu0
    %v5558 = vadd.f32 0.0, %v5557
    %v5559 = vpop.f32.mrb[0].mxu0
    %5560 = vmatprep.mubr.f32.mxu0 0.0
    %5561 = vmatmul.mubr.f32.gmra.mrb[0].mxu0 %v5468
    %v5562 = vpop.f32.mrb[0].mxu0
    %v5563 = vadd.f32 0.0, %v5562
    %v5564 = vpop.f32.mrb[0].mxu0
    %5565 = vmatprep.mubr.f32.mxu0 0.0
    %5566 = vmatmul.mubr.f32.gmra.mrb[0].mxu0 %v5469
    %v5567 = vpop.f32.mrb[0].mxu0
    %v5568 = vadd.f32 0.0, %v5567
    %v5569 = vpop.f32.mrb[0].mxu0
    %5570 = vmatprep.mubr.f32.mxu0 0.0
    %5571 = vmatmul.mubr.f32.gmra.mrb[0].mxu0 %v5470
    %v5572 = vpop.f32.mrb[0].mxu0
    %v5573 = vadd.f32 0.0, %v5572
    %v5574 = vpop.f32.mrb[0].mxu0
    %5575 = vmatprep.mubr.f32.mxu0 0.0
    %5576 = vmatmul.mubr.f32.gmra.mrb[0].mxu0 %v5471
    %v5577 = vpop.f32.mrb[0].mxu0
    %v5578 = vadd.f32 0.0, %v5577
    %v5579 = vpop.f32.mrb[0].mxu0
    %5580 = vmatprep.mubr.f32.mxu0 0.0
    %5581 = vmatmul.mubr.f32.gmra.mrb[0].mxu0 %v5472
    %v5582 = vpop.f32.mrb[0].mxu0
    %v5583 = vadd.f32 0.0, %v5582
    %v5584 = vpop.f32.mrb[0].mxu0
    %5585 = vmatprep.mubr.f32.mxu0 0.0
    %5586 = vmatmul.mubr.f32.gmra.mrb[0].mxu0 %v5473
    %v5587 = vpop.f32.mrb[0].mxu0
    %v5588 = vadd.f32 0.0, %v5587
    %v5589 = vpop.f32.mrb[0].mxu0
    %5590 = vmatprep.mubr.f32.mxu0 0.0
    %5591 = vmatmul.mubr.f32.gmra.mrb[0].mxu0 %v5474
    %v5592 = vpop.f32.mrb[0].mxu0
    %v5593 = vadd.f32 0.0, %v5592
    %v5594 = vpop.f32.mrb[0].mxu0
    %5595 = vdwg.mxu0
    %v5596 = vadd.f32 %v5459, %v5558
    %v5597 = vadd.f32 %v5460, %v5563
    %v5598 = vadd.f32 %v5461, %v5568
    %v5599 = vadd.f32 %v5462, %v5573
    %v5600 = vadd.f32 %v5463, %v5578
    %v5601 = vadd.f32 %v5464, %v5583
    %v5602 = vadd.f32 %v5465, %v5588
    %v5603 = vadd.f32 %v5466, %v5593
    %v5604 = vld [vmem:[%s4067 + $0x1] sm:$0xff]
    %v5605 = vld [vmem:[%s4067 + $0x11] sm:$0xff]
    %v5606 = vld [vmem:[%s4067 + $0x21] sm:$0xff]
    %v5607 = vld [vmem:[%s4067 + $0x31] sm:$0xff]
    %v5608 = vld [vmem:[%s4067 + $0x41] sm:$0xff]
    %v5609 = vld [vmem:[%s4067 + $0x51] sm:$0xff]
    %v5610 = vld [vmem:[%s4067 + $0x61] sm:$0xff]
    %v5611 = vld [vmem:[%s4067 + $0x71] sm:$0xff]
    %v5612 = vld [vmem:[%s1931] sm:$0xff]
    %v5613 = vld [vmem:[%s1931 + $0x8] sm:$0xff]
    %v5614 = vld [vmem:[%s1931 + $0x10] sm:$0xff]
    %v5615 = vld [vmem:[%s1931 + $0x18] sm:$0xff]
    %v5616 = vld [vmem:[%s1931 + $0x20] sm:$0xff]
    %v5617 = vld [vmem:[%s1931 + $0x28] sm:$0xff]
    %v5618 = vld [vmem:[%s1931 + $0x30] sm:$0xff]
    %v5619 = vld [vmem:[%s1931 + $0x38] sm:$0xff]
    %v5620 = vld [vmem:[%s1931 + $0x40] sm:$0xff]
    %v5621 = vld [vmem:[%s1931 + $0x48] sm:$0xff]
    %v5622 = vld [vmem:[%s1931 + $0x50] sm:$0xff]
    %v5623 = vld [vmem:[%s1931 + $0x58] sm:$0xff]
    %v5624 = vld [vmem:[%s1931 + $0x60] sm:$0xff]
    %v5625 = vld [vmem:[%s1931 + $0x68] sm:$0xff]
    %v5626 = vld [vmem:[%s1931 + $0x70] sm:$0xff]
    %v5627 = vld [vmem:[%s1931 + $0x78] sm:$0xff]
    %5628 = vmatprep.subr.mxu0 0.0
    %5629 = vmatpush1.msra.mxu0 %v5612
    %5630 = vmatprep.subr.mxu0 0.0
    %5631 = vmatpush1.msra.mxu0 %v5613
    %5632 = vmatprep.subr.mxu0 0.0
    %5633 = vmatpush1.msra.mxu0 %v5614
    %5634 = vmatprep.subr.mxu0 0.0
    %5635 = vmatpush1.msra.mxu0 %v5615
    %5636 = vmatprep.subr.mxu0 0.0
    %5637 = vmatpush1.msra.mxu0 %v5616
    %5638 = vmatprep.subr.mxu0 0.0
    %5639 = vmatpush1.msra.mxu0 %v5617
    %5640 = vmatprep.subr.mxu0 0.0
    %5641 = vmatpush1.msra.mxu0 %v5618
    %5642 = vmatprep.subr.mxu0 0.0
    %5643 = vmatpush1.msra.mxu0 %v5619
    %5644 = vmatprep.subr.mxu0 0.0
    %5645 = vmatpush1.msra.mxu0 %v5620
    %5646 = vmatprep.subr.mxu0 0.0
    %5647 = vmatpush1.msra.mxu0 %v5621
    %5648 = vmatprep.subr.mxu0 0.0
    %5649 = vmatpush1.msra.mxu0 %v5622
    %5650 = vmatprep.subr.mxu0 0.0
    %5651 = vmatpush1.msra.mxu0 %v5623
    %5652 = vmatprep.subr.mxu0 0.0
    %5653 = vmatpush1.msra.mxu0 %v5624
    %5654 = vmatprep.subr.mxu0 0.0
    %5655 = vmatpush1.msra.mxu0 %v5625
    %5656 = vmatprep.subr.mxu0 0.0
    %5657 = vmatpush1.msra.mxu0 %v5626
    %5658 = vmatprep.subr.mxu0 0.0
    %5659 = vmatpush1.msra.mxu0 %v5627
    %5660 = vmatprep.subr.mxu0 0.0
    %5661 = vmatpush1.msra.mxu0 0.0
    %5662 = vmatprep.subr.mxu0 0.0
    %5663 = vmatpush1.msra.mxu0 0.0
    %5664 = vmatprep.subr.mxu0 0.0
    %5665 = vmatpush1.msra.mxu0 0.0
    %5666 = vmatprep.subr.mxu0 0.0
    %5667 = vmatpush1.msra.mxu0 0.0
    %5668 = vmatprep.subr.mxu0 0.0
    %5669 = vmatpush1.msra.mxu0 0.0
    %5670 = vmatprep.subr.mxu0 0.0
    %5671 = vmatpush1.msra.mxu0 0.0
    %5672 = vmatprep.subr.mxu0 0.0
    %5673 = vmatpush1.msra.mxu0 0.0
    %5674 = vmatprep.subr.mxu0 0.0
    %5675 = vmatpush1.msra.mxu0 0.0
    %5676 = vmatprep.subr.mxu0 0.0
    %5677 = vmatpush1.msra.mxu0 0.0
    %5678 = vmatprep.subr.mxu0 0.0
    %5679 = vmatpush1.msra.mxu0 0.0
    %5680 = vmatprep.subr.mxu0 0.0
    %5681 = vmatpush1.msra.mxu0 0.0
    %5682 = vmatprep.subr.mxu0 0.0
    %5683 = vmatpush1.msra.mxu0 0.0
    %5684 = vmatprep.subr.mxu0 0.0
    %5685 = vmatpush1.msra.mxu0 0.0
    %5686 = vmatprep.subr.mxu0 0.0
    %5687 = vmatpush1.msra.mxu0 0.0
    %5688 = vmatprep.subr.mxu0 0.0
    %5689 = vmatpush1.msra.mxu0 0.0
    %5690 = vmatprep.subr.mxu0 0.0
    %5691 = vmatpush1.msra.mxu0 0.0
    %5692 = vmatprep.mubr.f32.mxu0 0.0
    %5693 = vmatmul.mubr.f32.gmra.mrb[0].mxu0 %v5604
    %v5694 = vpop.f32.mrb[0].mxu0
    %v5695 = vadd.f32 0.0, %v5694
    %v5696 = vpop.f32.mrb[0].mxu0
    %5697 = vmatprep.mubr.f32.mxu0 0.0
    %5698 = vmatmul.mubr.f32.gmra.mrb[0].mxu0 %v5605
    %v5699 = vpop.f32.mrb[0].mxu0
    %v5700 = vadd.f32 0.0, %v5699
    %v5701 = vpop.f32.mrb[0].mxu0
    %5702 = vmatprep.mubr.f32.mxu0 0.0
    %5703 = vmatmul.mubr.f32.gmra.mrb[0].mxu0 %v5606
    %v5704 = vpop.f32.mrb[0].mxu0
    %v5705 = vadd.f32 0.0, %v5704
    %v5706 = vpop.f32.mrb[0].mxu0
    %5707 = vmatprep.mubr.f32.mxu0 0.0
    %5708 = vmatmul.mubr.f32.gmra.mrb[0].mxu0 %v5607
    %v5709 = vpop.f32.mrb[0].mxu0
    %v5710 = vadd.f32 0.0, %v5709
    %v5711 = vpop.f32.mrb[0].mxu0
    %5712 = vmatprep.mubr.f32.mxu0 0.0
    %5713 = vmatmul.mubr.f32.gmra.mrb[0].mxu0 %v5608
    %v5714 = vpop.f32.mrb[0].mxu0
    %v5715 = vadd.f32 0.0, %v5714
    %v5716 = vpop.f32.mrb[0].mxu0
    %5717 = vmatprep.mubr.f32.mxu0 0.0
    %5718 = vmatmul.mubr.f32.gmra.mrb[0].mxu0 %v5609
    %v5719 = vpop.f32.mrb[0].mxu0
    %v5720 = vadd.f32 0.0, %v5719
    %v5721 = vpop.f32.mrb[0].mxu0
    %5722 = vmatprep.mubr.f32.mxu0 0.0
    %5723 = vmatmul.mubr.f32.gmra.mrb[0].mxu0 %v5610
    %v5724 = vpop.f32.mrb[0].mxu0
    %v5725 = vadd.f32 0.0, %v5724
    %v5726 = vpop.f32.mrb[0].mxu0
    %5727 = vmatprep.mubr.f32.mxu0 0.0
    %5728 = vmatmul.mubr.f32.gmra.mrb[0].mxu0 %v5611
    %v5729 = vpop.f32.mrb[0].mxu0
    %v5730 = vadd.f32 0.0, %v5729
    %v5731 = vpop.f32.mrb[0].mxu0
    %5732 = vdwg.mxu0
    %v5733 = vadd.f32 %v5596, %v5695
    %v5734 = vadd.f32 %v5597, %v5700
    %v5735 = vadd.f32 %v5598, %v5705
    %v5736 = vadd.f32 %v5599, %v5710
    %v5737 = vadd.f32 %v5600, %v5715
    %v5738 = vadd.f32 %v5601, %v5720
    %v5739 = vadd.f32 %v5602, %v5725
    %v5740 = vadd.f32 %v5603, %v5730
    %v5741 = vld [vmem:[%s4067 + $0x2] sm:$0xff]
    %v5742 = vld [vmem:[%s4067 + $0x12] sm:$0xff]
    %v5743 = vld [vmem:[%s4067 + $0x22] sm:$0xff]
    %v5744 = vld [vmem:[%s4067 + $0x32] sm:$0xff]
    %v5745 = vld [vmem:[%s4067 + $0x42] sm:$0xff]
    %v5746 = vld [vmem:[%s4067 + $0x52] sm:$0xff]
    %v5747 = vld [vmem:[%s4067 + $0x62] sm:$0xff]
    %v5748 = vld [vmem:[%s4067 + $0x72] sm:$0xff]
    %v5749 = vld [vmem:[%s2069] sm:$0xff]
    %v5750 = vld [vmem:[%s2069 + $0x8] sm:$0xff]
    %v5751 = vld [vmem:[%s2069 + $0x10] sm:$0xff]
    %v5752 = vld [vmem:[%s2069 + $0x18] sm:$0xff]
    %v5753 = vld [vmem:[%s2069 + $0x20] sm:$0xff]
    %v5754 = vld [vmem:[%s2069 + $0x28] sm:$0xff]
    %v5755 = vld [vmem:[%s2069 + $0x30] sm:$0xff]
    %v5756 = vld [vmem:[%s2069 + $0x38] sm:$0xff]
    %v5757 = vld [vmem:[%s2069 + $0x40] sm:$0xff]
    %v5758 = vld [vmem:[%s2069 + $0x48] sm:$0xff]
    %v5759 = vld [vmem:[%s2069 + $0x50] sm:$0xff]
    %v5760 = vld [vmem:[%s2069 + $0x58] sm:$0xff]
    %v5761 = vld [vmem:[%s2069 + $0x60] sm:$0xff]
    %v5762 = vld [vmem:[%s2069 + $0x68] sm:$0xff]
    %v5763 = vld [vmem:[%s2069 + $0x70] sm:$0xff]
    %v5764 = vld [vmem:[%s2069 + $0x78] sm:$0xff]
    %5765 = vmatprep.subr.mxu0 0.0
    %5766 = vmatpush1.msra.mxu0 %v5749
    %5767 = vmatprep.subr.mxu0 0.0
    %5768 = vmatpush1.msra.mxu0 %v5750
    %5769 = vmatprep.subr.mxu0 0.0
    %5770 = vmatpush1.msra.mxu0 %v5751
    %5771 = vmatprep.subr.mxu0 0.0
    %5772 = vmatpush1.msra.mxu0 %v5752
    %5773 = vmatprep.subr.mxu0 0.0
    %5774 = vmatpush1.msra.mxu0 %v5753
    %5775 = vmatprep.subr.mxu0 0.0
    %5776 = vmatpush1.msra.mxu0 %v5754
    %5777 = vmatprep.subr.mxu0 0.0
    %5778 = vmatpush1.msra.mxu0 %v5755
    %5779 = vmatprep.subr.mxu0 0.0
    %5780 = vmatpush1.msra.mxu0 %v5756
    %5781 = vmatprep.subr.mxu0 0.0
    %5782 = vmatpush1.msra.mxu0 %v5757
    %5783 = vmatprep.subr.mxu0 0.0
    %5784 = vmatpush1.msra.mxu0 %v5758
    %5785 = vmatprep.subr.mxu0 0.0
    %5786 = vmatpush1.msra.mxu0 %v5759
    %5787 = vmatprep.subr.mxu0 0.0
    %5788 = vmatpush1.msra.mxu0 %v5760
    %5789 = vmatprep.subr.mxu0 0.0
    %5790 = vmatpush1.msra.mxu0 %v5761
    %5791 = vmatprep.subr.mxu0 0.0
    %5792 = vmatpush1.msra.mxu0 %v5762
    %5793 = vmatprep.subr.mxu0 0.0
    %5794 = vmatpush1.msra.mxu0 %v5763
    %5795 = vmatprep.subr.mxu0 0.0
    %5796 = vmatpush1.msra.mxu0 %v5764
    %5797 = vmatprep.subr.mxu0 0.0
    %5798 = vmatpush1.msra.mxu0 0.0
    %5799 = vmatprep.subr.mxu0 0.0
    %5800 = vmatpush1.msra.mxu0 0.0
    %5801 = vmatprep.subr.mxu0 0.0
    %5802 = vmatpush1.msra.mxu0 0.0
    %5803 = vmatprep.subr.mxu0 0.0
    %5804 = vmatpush1.msra.mxu0 0.0
    %5805 = vmatprep.subr.mxu0 0.0
    %5806 = vmatpush1.msra.mxu0 0.0
    %5807 = vmatprep.subr.mxu0 0.0
    %5808 = vmatpush1.msra.mxu0 0.0
    %5809 = vmatprep.subr.mxu0 0.0
    %5810 = vmatpush1.msra.mxu0 0.0
    %5811 = vmatprep.subr.mxu0 0.0
    %5812 = vmatpush1.msra.mxu0 0.0
    %5813 = vmatprep.subr.mxu0 0.0
    %5814 = vmatpush1.msra.mxu0 0.0
    %5815 = vmatprep.subr.mxu0 0.0
    %5816 = vmatpush1.msra.mxu0 0.0
    %5817 = vmatprep.subr.mxu0 0.0
    %5818 = vmatpush1.msra.mxu0 0.0
    %5819 = vmatprep.subr.mxu0 0.0
    %5820 = vmatpush1.msra.mxu0 0.0
    %5821 = vmatprep.subr.mxu0 0.0
    %5822 = vmatpush1.msra.mxu0 0.0
    %5823 = vmatprep.subr.mxu0 0.0
    %5824 = vmatpush1.msra.mxu0 0.0
    %5825 = vmatprep.subr.mxu0 0.0
    %5826 = vmatpush1.msra.mxu0 0.0
    %5827 = vmatprep.subr.mxu0 0.0
    %5828 = vmatpush1.msra.mxu0 0.0
    %5829 = vmatprep.mubr.f32.mxu0 0.0
    %5830 = vmatmul.mubr.f32.gmra.mrb[0].mxu0 %v5741
    %v5831 = vpop.f32.mrb[0].mxu0
    %v5832 = vadd.f32 0.0, %v5831
    %v5833 = vpop.f32.mrb[0].mxu0
    %5834 = vmatprep.mubr.f32.mxu0 0.0
    %5835 = vmatmul.mubr.f32.gmra.mrb[0].mxu0 %v5742
    %v5836 = vpop.f32.mrb[0].mxu0
    %v5837 = vadd.f32 0.0, %v5836
    %v5838 = vpop.f32.mrb[0].mxu0
    %5839 = vmatprep.mubr.f32.mxu0 0.0
    %5840 = vmatmul.mubr.f32.gmra.mrb[0].mxu0 %v5743
    %v5841 = vpop.f32.mrb[0].mxu0
    %v5842 = vadd.f32 0.0, %v5841
    %v5843 = vpop.f32.mrb[0].mxu0
    %5844 = vmatprep.mubr.f32.mxu0 0.0
    %5845 = vmatmul.mubr.f32.gmra.mrb[0].mxu0 %v5744
    %v5846 = vpop.f32.mrb[0].mxu0
    %v5847 = vadd.f32 0.0, %v5846
    %v5848 = vpop.f32.mrb[0].mxu0
    %5849 = vmatprep.mubr.f32.mxu0 0.0
    %5850 = vmatmul.mubr.f32.gmra.mrb[0].mxu0 %v5745
    %v5851 = vpop.f32.mrb[0].mxu0
    %v5852 = vadd.f32 0.0, %v5851
    %v5853 = vpop.f32.mrb[0].mxu0
    %5854 = vmatprep.mubr.f32.mxu0 0.0
    %5855 = vmatmul.mubr.f32.gmra.mrb[0].mxu0 %v5746
    %v5856 = vpop.f32.mrb[0].mxu0
    %v5857 = vadd.f32 0.0, %v5856
    %v5858 = vpop.f32.mrb[0].mxu0
    %5859 = vmatprep.mubr.f32.mxu0 0.0
    %5860 = vmatmul.mubr.f32.gmra.mrb[0].mxu0 %v5747
    %v5861 = vpop.f32.mrb[0].mxu0
    %v5862 = vadd.f32 0.0, %v5861
    %v5863 = vpop.f32.mrb[0].mxu0
    %5864 = vmatprep.mubr.f32.mxu0 0.0
    %5865 = vmatmul.mubr.f32.gmra.mrb[0].mxu0 %v5748
    %v5866 = vpop.f32.mrb[0].mxu0
    %v5867 = vadd.f32 0.0, %v5866
    %v5868 = vpop.f32.mrb[0].mxu0
    %5869 = vdwg.mxu0
    %v5870 = vadd.f32 %v5733, %v5832
    %v5871 = vadd.f32 %v5734, %v5837
    %v5872 = vadd.f32 %v5735, %v5842
    %v5873 = vadd.f32 %v5736, %v5847
    %v5874 = vadd.f32 %v5737, %v5852
    %v5875 = vadd.f32 %v5738, %v5857
    %v5876 = vadd.f32 %v5739, %v5862
    %v5877 = vadd.f32 %v5740, %v5867
    %v5878 = vld [vmem:[%s4067 + $0x3] sm:$0xff]
    %v5879 = vld [vmem:[%s4067 + $0x13] sm:$0xff]
    %v5880 = vld [vmem:[%s4067 + $0x23] sm:$0xff]
    %v5881 = vld [vmem:[%s4067 + $0x33] sm:$0xff]
    %v5882 = vld [vmem:[%s4067 + $0x43] sm:$0xff]
    %v5883 = vld [vmem:[%s4067 + $0x53] sm:$0xff]
    %v5884 = vld [vmem:[%s4067 + $0x63] sm:$0xff]
    %v5885 = vld [vmem:[%s4067 + $0x73] sm:$0xff]
    %v5886 = vld [vmem:[%s2207] sm:$0xff]
    %v5887 = vld [vmem:[%s2207 + $0x8] sm:$0xff]
    %v5888 = vld [vmem:[%s2207 + $0x10] sm:$0xff]
    %v5889 = vld [vmem:[%s2207 + $0x18] sm:$0xff]
    %v5890 = vld [vmem:[%s2207 + $0x20] sm:$0xff]
    %v5891 = vld [vmem:[%s2207 + $0x28] sm:$0xff]
    %v5892 = vld [vmem:[%s2207 + $0x30] sm:$0xff]
    %v5893 = vld [vmem:[%s2207 + $0x38] sm:$0xff]
    %v5894 = vld [vmem:[%s2207 + $0x40] sm:$0xff]
    %v5895 = vld [vmem:[%s2207 + $0x48] sm:$0xff]
    %v5896 = vld [vmem:[%s2207 + $0x50] sm:$0xff]
    %v5897 = vld [vmem:[%s2207 + $0x58] sm:$0xff]
    %v5898 = vld [vmem:[%s2207 + $0x60] sm:$0xff]
    %v5899 = vld [vmem:[%s2207 + $0x68] sm:$0xff]
    %v5900 = vld [vmem:[%s2207 + $0x70] sm:$0xff]
    %v5901 = vld [vmem:[%s2207 + $0x78] sm:$0xff]
    %5902 = vmatprep.subr.mxu0 0.0
    %5903 = vmatpush1.msra.mxu0 %v5886
    %5904 = vmatprep.subr.mxu0 0.0
    %5905 = vmatpush1.msra.mxu0 %v5887
    %5906 = vmatprep.subr.mxu0 0.0
    %5907 = vmatpush1.msra.mxu0 %v5888
    %5908 = vmatprep.subr.mxu0 0.0
    %5909 = vmatpush1.msra.mxu0 %v5889
    %5910 = vmatprep.subr.mxu0 0.0
    %5911 = vmatpush1.msra.mxu0 %v5890
    %5912 = vmatprep.subr.mxu0 0.0
    %5913 = vmatpush1.msra.mxu0 %v5891
    %5914 = vmatprep.subr.mxu0 0.0
    %5915 = vmatpush1.msra.mxu0 %v5892
    %5916 = vmatprep.subr.mxu0 0.0
    %5917 = vmatpush1.msra.mxu0 %v5893
    %5918 = vmatprep.subr.mxu0 0.0
    %5919 = vmatpush1.msra.mxu0 %v5894
    %5920 = vmatprep.subr.mxu0 0.0
    %5921 = vmatpush1.msra.mxu0 %v5895
    %5922 = vmatprep.subr.mxu0 0.0
    %5923 = vmatpush1.msra.mxu0 %v5896
    %5924 = vmatprep.subr.mxu0 0.0
    %5925 = vmatpush1.msra.mxu0 %v5897
    %5926 = vmatprep.subr.mxu0 0.0
    %5927 = vmatpush1.msra.mxu0 %v5898
    %5928 = vmatprep.subr.mxu0 0.0
    %5929 = vmatpush1.msra.mxu0 %v5899
    %5930 = vmatprep.subr.mxu0 0.0
    %5931 = vmatpush1.msra.mxu0 %v5900
    %5932 = vmatprep.subr.mxu0 0.0
    %5933 = vmatpush1.msra.mxu0 %v5901
    %5934 = vmatprep.subr.mxu0 0.0
    %5935 = vmatpush1.msra.mxu0 0.0
    %5936 = vmatprep.subr.mxu0 0.0
    %5937 = vmatpush1.msra.mxu0 0.0
    %5938 = vmatprep.subr.mxu0 0.0
    %5939 = vmatpush1.msra.mxu0 0.0
    %5940 = vmatprep.subr.mxu0 0.0
    %5941 = vmatpush1.msra.mxu0 0.0
    %5942 = vmatprep.subr.mxu0 0.0
    %5943 = vmatpush1.msra.mxu0 0.0
    %5944 = vmatprep.subr.mxu0 0.0
    %5945 = vmatpush1.msra.mxu0 0.0
    %5946 = vmatprep.subr.mxu0 0.0
    %5947 = vmatpush1.msra.mxu0 0.0
    %5948 = vmatprep.subr.mxu0 0.0
    %5949 = vmatpush1.msra.mxu0 0.0
    %5950 = vmatprep.subr.mxu0 0.0
    %5951 = vmatpush1.msra.mxu0 0.0
    %5952 = vmatprep.subr.mxu0 0.0
    %5953 = vmatpush1.msra.mxu0 0.0
    %5954 = vmatprep.subr.mxu0 0.0
    %5955 = vmatpush1.msra.mxu0 0.0
    %5956 = vmatprep.subr.mxu0 0.0
    %5957 = vmatpush1.msra.mxu0 0.0
    %5958 = vmatprep.subr.mxu0 0.0
    %5959 = vmatpush1.msra.mxu0 0.0
    %5960 = vmatprep.subr.mxu0 0.0
    %5961 = vmatpush1.msra.mxu0 0.0
    %5962 = vmatprep.subr.mxu0 0.0
    %5963 = vmatpush1.msra.mxu0 0.0
    %5964 = vmatprep.subr.mxu0 0.0
    %5965 = vmatpush1.msra.mxu0 0.0
    %5966 = vmatprep.mubr.f32.mxu0 0.0
    %5967 = vmatmul.mubr.f32.gmra.mrb[0].mxu0 %v5878
    %v5968 = vpop.f32.mrb[0].mxu0
    %v5969 = vadd.f32 0.0, %v5968
    %v5970 = vpop.f32.mrb[0].mxu0
    %5971 = vmatprep.mubr.f32.mxu0 0.0
    %5972 = vmatmul.mubr.f32.gmra.mrb[0].mxu0 %v5879
    %v5973 = vpop.f32.mrb[0].mxu0
    %v5974 = vadd.f32 0.0, %v5973
    %v5975 = vpop.f32.mrb[0].mxu0
    %5976 = vmatprep.mubr.f32.mxu0 0.0
    %5977 = vmatmul.mubr.f32.gmra.mrb[0].mxu0 %v5880
    %v5978 = vpop.f32.mrb[0].mxu0
    %v5979 = vadd.f32 0.0, %v5978
    %v5980 = vpop.f32.mrb[0].mxu0
    %5981 = vmatprep.mubr.f32.mxu0 0.0
    %5982 = vmatmul.mubr.f32.gmra.mrb[0].mxu0 %v5881
    %v5983 = vpop.f32.mrb[0].mxu0
    %v5984 = vadd.f32 0.0, %v5983
    %v5985 = vpop.f32.mrb[0].mxu0
    %5986 = vmatprep.mubr.f32.mxu0 0.0
    %5987 = vmatmul.mubr.f32.gmra.mrb[0].mxu0 %v5882
    %v5988 = vpop.f32.mrb[0].mxu0
    %v5989 = vadd.f32 0.0, %v5988
    %v5990 = vpop.f32.mrb[0].mxu0
    %5991 = vmatprep.mubr.f32.mxu0 0.0
    %5992 = vmatmul.mubr.f32.gmra.mrb[0].mxu0 %v5883
    %v5993 = vpop.f32.mrb[0].mxu0
    %v5994 = vadd.f32 0.0, %v5993
    %v5995 = vpop.f32.mrb[0].mxu0
    %5996 = vmatprep.mubr.f32.mxu0 0.0
    %5997 = vmatmul.mubr.f32.gmra.mrb[0].mxu0 %v5884
    %v5998 = vpop.f32.mrb[0].mxu0
    %v5999 = vadd.f32 0.0, %v5998
    %v6000 = vpop.f32.mrb[0].mxu0
    %6001 = vmatprep.mubr.f32.mxu0 0.0
    %6002 = vmatmul.mubr.f32.gmra.mrb[0].mxu0 %v5885
    %v6003 = vpop.f32.mrb[0].mxu0
    %v6004 = vadd.f32 0.0, %v6003
    %v6005 = vpop.f32.mrb[0].mxu0
    %6006 = vdwg.mxu0
    %v6007 = vadd.f32 %v5870, %v5969
    %v6008 = vadd.f32 %v5871, %v5974
    %v6009 = vadd.f32 %v5872, %v5979
    %v6010 = vadd.f32 %v5873, %v5984
    %v6011 = vadd.f32 %v5874, %v5989
    %v6012 = vadd.f32 %v5875, %v5994
    %v6013 = vadd.f32 %v5876, %v5999
    %v6014 = vadd.f32 %v5877, %v6004
    %v6015 = vld [vmem:[%s4067 + $0x4] sm:$0xff]
    %v6016 = vld [vmem:[%s4067 + $0x14] sm:$0xff]
    %v6017 = vld [vmem:[%s4067 + $0x24] sm:$0xff]
    %v6018 = vld [vmem:[%s4067 + $0x34] sm:$0xff]
    %v6019 = vld [vmem:[%s4067 + $0x44] sm:$0xff]
    %v6020 = vld [vmem:[%s4067 + $0x54] sm:$0xff]
    %v6021 = vld [vmem:[%s4067 + $0x64] sm:$0xff]
    %v6022 = vld [vmem:[%s4067 + $0x74] sm:$0xff]
    %v6023 = vld [vmem:[%s2345] sm:$0xff]
    %v6024 = vld [vmem:[%s2345 + $0x8] sm:$0xff]
    %v6025 = vld [vmem:[%s2345 + $0x10] sm:$0xff]
    %v6026 = vld [vmem:[%s2345 + $0x18] sm:$0xff]
    %v6027 = vld [vmem:[%s2345 + $0x20] sm:$0xff]
    %v6028 = vld [vmem:[%s2345 + $0x28] sm:$0xff]
    %v6029 = vld [vmem:[%s2345 + $0x30] sm:$0xff]
    %v6030 = vld [vmem:[%s2345 + $0x38] sm:$0xff]
    %v6031 = vld [vmem:[%s2345 + $0x40] sm:$0xff]
    %v6032 = vld [vmem:[%s2345 + $0x48] sm:$0xff]
    %v6033 = vld [vmem:[%s2345 + $0x50] sm:$0xff]
    %v6034 = vld [vmem:[%s2345 + $0x58] sm:$0xff]
    %v6035 = vld [vmem:[%s2345 + $0x60] sm:$0xff]
    %v6036 = vld [vmem:[%s2345 + $0x68] sm:$0xff]
    %v6037 = vld [vmem:[%s2345 + $0x70] sm:$0xff]
    %v6038 = vld [vmem:[%s2345 + $0x78] sm:$0xff]
    %6039 = vmatprep.subr.mxu0 0.0
    %6040 = vmatpush1.msra.mxu0 %v6023
    %6041 = vmatprep.subr.mxu0 0.0
    %6042 = vmatpush1.msra.mxu0 %v6024
    %6043 = vmatprep.subr.mxu0 0.0
    %6044 = vmatpush1.msra.mxu0 %v6025
    %6045 = vmatprep.subr.mxu0 0.0
    %6046 = vmatpush1.msra.mxu0 %v6026
    %6047 = vmatprep.subr.mxu0 0.0
    %6048 = vmatpush1.msra.mxu0 %v6027
    %6049 = vmatprep.subr.mxu0 0.0
    %6050 = vmatpush1.msra.mxu0 %v6028
    %6051 = vmatprep.subr.mxu0 0.0
    %6052 = vmatpush1.msra.mxu0 %v6029
    %6053 = vmatprep.subr.mxu0 0.0
    %6054 = vmatpush1.msra.mxu0 %v6030
    %6055 = vmatprep.subr.mxu0 0.0
    %6056 = vmatpush1.msra.mxu0 %v6031
    %6057 = vmatprep.subr.mxu0 0.0
    %6058 = vmatpush1.msra.mxu0 %v6032
    %6059 = vmatprep.subr.mxu0 0.0
    %6060 = vmatpush1.msra.mxu0 %v6033
    %6061 = vmatprep.subr.mxu0 0.0
    %6062 = vmatpush1.msra.mxu0 %v6034
    %6063 = vmatprep.subr.mxu0 0.0
    %6064 = vmatpush1.msra.mxu0 %v6035
    %6065 = vmatprep.subr.mxu0 0.0
    %6066 = vmatpush1.msra.mxu0 %v6036
    %6067 = vmatprep.subr.mxu0 0.0
    %6068 = vmatpush1.msra.mxu0 %v6037
    %6069 = vmatprep.subr.mxu0 0.0
    %6070 = vmatpush1.msra.mxu0 %v6038
    %6071 = vmatprep.subr.mxu0 0.0
    %6072 = vmatpush1.msra.mxu0 0.0
    %6073 = vmatprep.subr.mxu0 0.0
    %6074 = vmatpush1.msra.mxu0 0.0
    %6075 = vmatprep.subr.mxu0 0.0
    %6076 = vmatpush1.msra.mxu0 0.0
    %6077 = vmatprep.subr.mxu0 0.0
    %6078 = vmatpush1.msra.mxu0 0.0
    %6079 = vmatprep.subr.mxu0 0.0
    %6080 = vmatpush1.msra.mxu0 0.0
    %6081 = vmatprep.subr.mxu0 0.0
    %6082 = vmatpush1.msra.mxu0 0.0
    %6083 = vmatprep.subr.mxu0 0.0
    %6084 = vmatpush1.msra.mxu0 0.0
    %6085 = vmatprep.subr.mxu0 0.0
    %6086 = vmatpush1.msra.mxu0 0.0
    %6087 = vmatprep.subr.mxu0 0.0
    %6088 = vmatpush1.msra.mxu0 0.0
    %6089 = vmatprep.subr.mxu0 0.0
    %6090 = vmatpush1.msra.mxu0 0.0
    %6091 = vmatprep.subr.mxu0 0.0
    %6092 = vmatpush1.msra.mxu0 0.0
    %6093 = vmatprep.subr.mxu0 0.0
    %6094 = vmatpush1.msra.mxu0 0.0
    %6095 = vmatprep.subr.mxu0 0.0
    %6096 = vmatpush1.msra.mxu0 0.0
    %6097 = vmatprep.subr.mxu0 0.0
    %6098 = vmatpush1.msra.mxu0 0.0
    %6099 = vmatprep.subr.mxu0 0.0
    %6100 = vmatpush1.msra.mxu0 0.0
    %6101 = vmatprep.subr.mxu0 0.0
    %6102 = vmatpush1.msra.mxu0 0.0
    %6103 = vmatprep.mubr.f32.mxu0 0.0
    %6104 = vmatmul.mubr.f32.gmra.mrb[0].mxu0 %v6015
    %v6105 = vpop.f32.mrb[0].mxu0
    %v6106 = vadd.f32 0.0, %v6105
    %v6107 = vpop.f32.mrb[0].mxu0
    %6108 = vmatprep.mubr.f32.mxu0 0.0
    %6109 = vmatmul.mubr.f32.gmra.mrb[0].mxu0 %v6016
    %v6110 = vpop.f32.mrb[0].mxu0
    %v6111 = vadd.f32 0.0, %v6110
    %v6112 = vpop.f32.mrb[0].mxu0
    %6113 = vmatprep.mubr.f32.mxu0 0.0
    %6114 = vmatmul.mubr.f32.gmra.mrb[0].mxu0 %v6017
    %v6115 = vpop.f32.mrb[0].mxu0
    %v6116 = vadd.f32 0.0, %v6115
    %v6117 = vpop.f32.mrb[0].mxu0
    %6118 = vmatprep.mubr.f32.mxu0 0.0
    %6119 = vmatmul.mubr.f32.gmra.mrb[0].mxu0 %v6018
    %v6120 = vpop.f32.mrb[0].mxu0
    %v6121 = vadd.f32 0.0, %v6120
    %v6122 = vpop.f32.mrb[0].mxu0
    %6123 = vmatprep.mubr.f32.mxu0 0.0
    %6124 = vmatmul.mubr.f32.gmra.mrb[0].mxu0 %v6019
    %v6125 = vpop.f32.mrb[0].mxu0
    %v6126 = vadd.f32 0.0, %v6125
    %v6127 = vpop.f32.mrb[0].mxu0
    %6128 = vmatprep.mubr.f32.mxu0 0.0
    %6129 = vmatmul.mubr.f32.gmra.mrb[0].mxu0 %v6020
    %v6130 = vpop.f32.mrb[0].mxu0
    %v6131 = vadd.f32 0.0, %v6130
    %v6132 = vpop.f32.mrb[0].mxu0
    %6133 = vmatprep.mubr.f32.mxu0 0.0
    %6134 = vmatmul.mubr.f32.gmra.mrb[0].mxu0 %v6021
    %v6135 = vpop.f32.mrb[0].mxu0
    %v6136 = vadd.f32 0.0, %v6135
    %v6137 = vpop.f32.mrb[0].mxu0
    %6138 = vmatprep.mubr.f32.mxu0 0.0
    %6139 = vmatmul.mubr.f32.gmra.mrb[0].mxu0 %v6022
    %v6140 = vpop.f32.mrb[0].mxu0
    %v6141 = vadd.f32 0.0, %v6140
    %v6142 = vpop.f32.mrb[0].mxu0
    %6143 = vdwg.mxu0
    %v6144 = vadd.f32 %v6007, %v6106
    %v6145 = vadd.f32 %v6008, %v6111
    %v6146 = vadd.f32 %v6009, %v6116
    %v6147 = vadd.f32 %v6010, %v6121
    %v6148 = vadd.f32 %v6011, %v6126
    %v6149 = vadd.f32 %v6012, %v6131
    %v6150 = vadd.f32 %v6013, %v6136
    %v6151 = vadd.f32 %v6014, %v6141
    %v6152 = vld [vmem:[%s4070] sm:$0xff]
    %v6153 = vld [vmem:[%s4070 + $0x10] sm:$0xff]
    %v6154 = vld [vmem:[%s4070 + $0x20] sm:$0xff]
    %v6155 = vld [vmem:[%s4070 + $0x30] sm:$0xff]
    %v6156 = vld [vmem:[%s4070 + $0x40] sm:$0xff]
    %v6157 = vld [vmem:[%s4070 + $0x50] sm:$0xff]
    %v6158 = vld [vmem:[%s4070 + $0x60] sm:$0xff]
    %v6159 = vld [vmem:[%s4070 + $0x70] sm:$0xff]
    %v6160 = vld [vmem:[%s2483] sm:$0xff]
    %v6161 = vld [vmem:[%s2483 + $0x8] sm:$0xff]
    %v6162 = vld [vmem:[%s2483 + $0x10] sm:$0xff]
    %v6163 = vld [vmem:[%s2483 + $0x18] sm:$0xff]
    %v6164 = vld [vmem:[%s2483 + $0x20] sm:$0xff]
    %v6165 = vld [vmem:[%s2483 + $0x28] sm:$0xff]
    %v6166 = vld [vmem:[%s2483 + $0x30] sm:$0xff]
    %v6167 = vld [vmem:[%s2483 + $0x38] sm:$0xff]
    %v6168 = vld [vmem:[%s2483 + $0x40] sm:$0xff]
    %v6169 = vld [vmem:[%s2483 + $0x48] sm:$0xff]
    %v6170 = vld [vmem:[%s2483 + $0x50] sm:$0xff]
    %v6171 = vld [vmem:[%s2483 + $0x58] sm:$0xff]
    %v6172 = vld [vmem:[%s2483 + $0x60] sm:$0xff]
    %v6173 = vld [vmem:[%s2483 + $0x68] sm:$0xff]
    %v6174 = vld [vmem:[%s2483 + $0x70] sm:$0xff]
    %v6175 = vld [vmem:[%s2483 + $0x78] sm:$0xff]
    %6176 = vmatprep.subr.mxu0 0.0
    %6177 = vmatpush1.msra.mxu0 %v6160
    %6178 = vmatprep.subr.mxu0 0.0
    %6179 = vmatpush1.msra.mxu0 %v6161
    %6180 = vmatprep.subr.mxu0 0.0
    %6181 = vmatpush1.msra.mxu0 %v6162
    %6182 = vmatprep.subr.mxu0 0.0
    %6183 = vmatpush1.msra.mxu0 %v6163
    %6184 = vmatprep.subr.mxu0 0.0
    %6185 = vmatpush1.msra.mxu0 %v6164
    %6186 = vmatprep.subr.mxu0 0.0
    %6187 = vmatpush1.msra.mxu0 %v6165
    %6188 = vmatprep.subr.mxu0 0.0
    %6189 = vmatpush1.msra.mxu0 %v6166
    %6190 = vmatprep.subr.mxu0 0.0
    %6191 = vmatpush1.msra.mxu0 %v6167
    %6192 = vmatprep.subr.mxu0 0.0
    %6193 = vmatpush1.msra.mxu0 %v6168
    %6194 = vmatprep.subr.mxu0 0.0
    %6195 = vmatpush1.msra.mxu0 %v6169
    %6196 = vmatprep.subr.mxu0 0.0
    %6197 = vmatpush1.msra.mxu0 %v6170
    %6198 = vmatprep.subr.mxu0 0.0
    %6199 = vmatpush1.msra.mxu0 %v6171
    %6200 = vmatprep.subr.mxu0 0.0
    %6201 = vmatpush1.msra.mxu0 %v6172
    %6202 = vmatprep.subr.mxu0 0.0
    %6203 = vmatpush1.msra.mxu0 %v6173
    %6204 = vmatprep.subr.mxu0 0.0
    %6205 = vmatpush1.msra.mxu0 %v6174
    %6206 = vmatprep.subr.mxu0 0.0
    %6207 = vmatpush1.msra.mxu0 %v6175
    %6208 = vmatprep.subr.mxu0 0.0
    %6209 = vmatpush1.msra.mxu0 0.0
    %6210 = vmatprep.subr.mxu0 0.0
    %6211 = vmatpush1.msra.mxu0 0.0
    %6212 = vmatprep.subr.mxu0 0.0
    %6213 = vmatpush1.msra.mxu0 0.0
    %6214 = vmatprep.subr.mxu0 0.0
    %6215 = vmatpush1.msra.mxu0 0.0
    %6216 = vmatprep.subr.mxu0 0.0
    %6217 = vmatpush1.msra.mxu0 0.0
    %6218 = vmatprep.subr.mxu0 0.0
    %6219 = vmatpush1.msra.mxu0 0.0
    %6220 = vmatprep.subr.mxu0 0.0
    %6221 = vmatpush1.msra.mxu0 0.0
    %6222 = vmatprep.subr.mxu0 0.0
    %6223 = vmatpush1.msra.mxu0 0.0
    %6224 = vmatprep.subr.mxu0 0.0
    %6225 = vmatpush1.msra.mxu0 0.0
    %6226 = vmatprep.subr.mxu0 0.0
    %6227 = vmatpush1.msra.mxu0 0.0
    %6228 = vmatprep.subr.mxu0 0.0
    %6229 = vmatpush1.msra.mxu0 0.0
    %6230 = vmatprep.subr.mxu0 0.0
    %6231 = vmatpush1.msra.mxu0 0.0
    %6232 = vmatprep.subr.mxu0 0.0
    %6233 = vmatpush1.msra.mxu0 0.0
    %6234 = vmatprep.subr.mxu0 0.0
    %6235 = vmatpush1.msra.mxu0 0.0
    %6236 = vmatprep.subr.mxu0 0.0
    %6237 = vmatpush1.msra.mxu0 0.0
    %6238 = vmatprep.subr.mxu0 0.0
    %6239 = vmatpush1.msra.mxu0 0.0
    %6240 = vmatprep.mubr.f32.mxu0 0.0
    %6241 = vmatmul.mubr.f32.gmra.mrb[0].mxu0 %v6152
    %v6242 = vpop.f32.mrb[0].mxu0
    %v6243 = vadd.f32 0.0, %v6242
    %v6244 = vpop.f32.mrb[0].mxu0
    %6245 = vmatprep.mubr.f32.mxu0 0.0
    %6246 = vmatmul.mubr.f32.gmra.mrb[0].mxu0 %v6153
    %v6247 = vpop.f32.mrb[0].mxu0
    %v6248 = vadd.f32 0.0, %v6247
    %v6249 = vpop.f32.mrb[0].mxu0
    %6250 = vmatprep.mubr.f32.mxu0 0.0
    %6251 = vmatmul.mubr.f32.gmra.mrb[0].mxu0 %v6154
    %v6252 = vpop.f32.mrb[0].mxu0
    %v6253 = vadd.f32 0.0, %v6252
    %v6254 = vpop.f32.mrb[0].mxu0
    %6255 = vmatprep.mubr.f32.mxu0 0.0
    %6256 = vmatmul.mubr.f32.gmra.mrb[0].mxu0 %v6155
    %v6257 = vpop.f32.mrb[0].mxu0
    %v6258 = vadd.f32 0.0, %v6257
    %v6259 = vpop.f32.mrb[0].mxu0
    %6260 = vmatprep.mubr.f32.mxu0 0.0
    %6261 = vmatmul.mubr.f32.gmra.mrb[0].mxu0 %v6156
    %v6262 = vpop.f32.mrb[0].mxu0
    %v6263 = vadd.f32 0.0, %v6262
    %v6264 = vpop.f32.mrb[0].mxu0
    %6265 = vmatprep.mubr.f32.mxu0 0.0
    %6266 = vmatmul.mubr.f32.gmra.mrb[0].mxu0 %v6157
    %v6267 = vpop.f32.mrb[0].mxu0
    %v6268 = vadd.f32 0.0, %v6267
    %v6269 = vpop.f32.mrb[0].mxu0
    %6270 = vmatprep.mubr.f32.mxu0 0.0
    %6271 = vmatmul.mubr.f32.gmra.mrb[0].mxu0 %v6158
    %v6272 = vpop.f32.mrb[0].mxu0
    %v6273 = vadd.f32 0.0, %v6272
    %v6274 = vpop.f32.mrb[0].mxu0
    %6275 = vmatprep.mubr.f32.mxu0 0.0
    %6276 = vmatmul.mubr.f32.gmra.mrb[0].mxu0 %v6159
    %v6277 = vpop.f32.mrb[0].mxu0
    %v6278 = vadd.f32 0.0, %v6277
    %v6279 = vpop.f32.mrb[0].mxu0
    %6280 = vdwg.mxu0
    %v6281 = vadd.f32 %v6144, %v6243
    %v6282 = vadd.f32 %v6145, %v6248
    %v6283 = vadd.f32 %v6146, %v6253
    %v6284 = vadd.f32 %v6147, %v6258
    %v6285 = vadd.f32 %v6148, %v6263
    %v6286 = vadd.f32 %v6149, %v6268
    %v6287 = vadd.f32 %v6150, %v6273
    %v6288 = vadd.f32 %v6151, %v6278
    %v6289 = vld [vmem:[%s4070 + $0x1] sm:$0xff]
    %v6290 = vld [vmem:[%s4070 + $0x11] sm:$0xff]
    %v6291 = vld [vmem:[%s4070 + $0x21] sm:$0xff]
    %v6292 = vld [vmem:[%s4070 + $0x31] sm:$0xff]
    %v6293 = vld [vmem:[%s4070 + $0x41] sm:$0xff]
    %v6294 = vld [vmem:[%s4070 + $0x51] sm:$0xff]
    %v6295 = vld [vmem:[%s4070 + $0x61] sm:$0xff]
    %v6296 = vld [vmem:[%s4070 + $0x71] sm:$0xff]
    %v6297 = vld [vmem:[%s2621] sm:$0xff]
    %v6298 = vld [vmem:[%s2621 + $0x8] sm:$0xff]
    %v6299 = vld [vmem:[%s2621 + $0x10] sm:$0xff]
    %v6300 = vld [vmem:[%s2621 + $0x18] sm:$0xff]
    %v6301 = vld [vmem:[%s2621 + $0x20] sm:$0xff]
    %v6302 = vld [vmem:[%s2621 + $0x28] sm:$0xff]
    %v6303 = vld [vmem:[%s2621 + $0x30] sm:$0xff]
    %v6304 = vld [vmem:[%s2621 + $0x38] sm:$0xff]
    %v6305 = vld [vmem:[%s2621 + $0x40] sm:$0xff]
    %v6306 = vld [vmem:[%s2621 + $0x48] sm:$0xff]
    %v6307 = vld [vmem:[%s2621 + $0x50] sm:$0xff]
    %v6308 = vld [vmem:[%s2621 + $0x58] sm:$0xff]
    %v6309 = vld [vmem:[%s2621 + $0x60] sm:$0xff]
    %v6310 = vld [vmem:[%s2621 + $0x68] sm:$0xff]
    %v6311 = vld [vmem:[%s2621 + $0x70] sm:$0xff]
    %v6312 = vld [vmem:[%s2621 + $0x78] sm:$0xff]
    %6313 = vmatprep.subr.mxu0 0.0
    %6314 = vmatpush1.msra.mxu0 %v6297
    %6315 = vmatprep.subr.mxu0 0.0
    %6316 = vmatpush1.msra.mxu0 %v6298
    %6317 = vmatprep.subr.mxu0 0.0
    %6318 = vmatpush1.msra.mxu0 %v6299
    %6319 = vmatprep.subr.mxu0 0.0
    %6320 = vmatpush1.msra.mxu0 %v6300
    %6321 = vmatprep.subr.mxu0 0.0
    %6322 = vmatpush1.msra.mxu0 %v6301
    %6323 = vmatprep.subr.mxu0 0.0
    %6324 = vmatpush1.msra.mxu0 %v6302
    %6325 = vmatprep.subr.mxu0 0.0
    %6326 = vmatpush1.msra.mxu0 %v6303
    %6327 = vmatprep.subr.mxu0 0.0
    %6328 = vmatpush1.msra.mxu0 %v6304
    %6329 = vmatprep.subr.mxu0 0.0
    %6330 = vmatpush1.msra.mxu0 %v6305
    %6331 = vmatprep.subr.mxu0 0.0
    %6332 = vmatpush1.msra.mxu0 %v6306
    %6333 = vmatprep.subr.mxu0 0.0
    %6334 = vmatpush1.msra.mxu0 %v6307
    %6335 = vmatprep.subr.mxu0 0.0
    %6336 = vmatpush1.msra.mxu0 %v6308
    %6337 = vmatprep.subr.mxu0 0.0
    %6338 = vmatpush1.msra.mxu0 %v6309
    %6339 = vmatprep.subr.mxu0 0.0
    %6340 = vmatpush1.msra.mxu0 %v6310
    %6341 = vmatprep.subr.mxu0 0.0
    %6342 = vmatpush1.msra.mxu0 %v6311
    %6343 = vmatprep.subr.mxu0 0.0
    %6344 = vmatpush1.msra.mxu0 %v6312
    %6345 = vmatprep.subr.mxu0 0.0
    %6346 = vmatpush1.msra.mxu0 0.0
    %6347 = vmatprep.subr.mxu0 0.0
    %6348 = vmatpush1.msra.mxu0 0.0
    %6349 = vmatprep.subr.mxu0 0.0
    %6350 = vmatpush1.msra.mxu0 0.0
    %6351 = vmatprep.subr.mxu0 0.0
    %6352 = vmatpush1.msra.mxu0 0.0
    %6353 = vmatprep.subr.mxu0 0.0
    %6354 = vmatpush1.msra.mxu0 0.0
    %6355 = vmatprep.subr.mxu0 0.0
    %6356 = vmatpush1.msra.mxu0 0.0
    %6357 = vmatprep.subr.mxu0 0.0
    %6358 = vmatpush1.msra.mxu0 0.0
    %6359 = vmatprep.subr.mxu0 0.0
    %6360 = vmatpush1.msra.mxu0 0.0
    %6361 = vmatprep.subr.mxu0 0.0
    %6362 = vmatpush1.msra.mxu0 0.0
    %6363 = vmatprep.subr.mxu0 0.0
    %6364 = vmatpush1.msra.mxu0 0.0
    %6365 = vmatprep.subr.mxu0 0.0
    %6366 = vmatpush1.msra.mxu0 0.0
    %6367 = vmatprep.subr.mxu0 0.0
    %6368 = vmatpush1.msra.mxu0 0.0
    %6369 = vmatprep.subr.mxu0 0.0
    %6370 = vmatpush1.msra.mxu0 0.0
    %6371 = vmatprep.subr.mxu0 0.0
    %6372 = vmatpush1.msra.mxu0 0.0
    %6373 = vmatprep.subr.mxu0 0.0
    %6374 = vmatpush1.msra.mxu0 0.0
    %6375 = vmatprep.subr.mxu0 0.0
    %6376 = vmatpush1.msra.mxu0 0.0
    %6377 = vmatprep.mubr.f32.mxu0 0.0
    %6378 = vmatmul.mubr.f32.gmra.mrb[0].mxu0 %v6289
    %v6379 = vpop.f32.mrb[0].mxu0
    %v6380 = vadd.f32 0.0, %v6379
    %v6381 = vpop.f32.mrb[0].mxu0
    %6382 = vmatprep.mubr.f32.mxu0 0.0
    %6383 = vmatmul.mubr.f32.gmra.mrb[0].mxu0 %v6290
    %v6384 = vpop.f32.mrb[0].mxu0
    %v6385 = vadd.f32 0.0, %v6384
    %v6386 = vpop.f32.mrb[0].mxu0
    %6387 = vmatprep.mubr.f32.mxu0 0.0
    %6388 = vmatmul.mubr.f32.gmra.mrb[0].mxu0 %v6291
    %v6389 = vpop.f32.mrb[0].mxu0
    %v6390 = vadd.f32 0.0, %v6389
    %v6391 = vpop.f32.mrb[0].mxu0
    %6392 = vmatprep.mubr.f32.mxu0 0.0
    %6393 = vmatmul.mubr.f32.gmra.mrb[0].mxu0 %v6292
    %v6394 = vpop.f32.mrb[0].mxu0
    %v6395 = vadd.f32 0.0, %v6394
    %v6396 = vpop.f32.mrb[0].mxu0
    %6397 = vmatprep.mubr.f32.mxu0 0.0
    %6398 = vmatmul.mubr.f32.gmra.mrb[0].mxu0 %v6293
    %v6399 = vpop.f32.mrb[0].mxu0
    %v6400 = vadd.f32 0.0, %v6399
    %v6401 = vpop.f32.mrb[0].mxu0
    %6402 = vmatprep.mubr.f32.mxu0 0.0
    %6403 = vmatmul.mubr.f32.gmra.mrb[0].mxu0 %v6294
    %v6404 = vpop.f32.mrb[0].mxu0
    %v6405 = vadd.f32 0.0, %v6404
    %v6406 = vpop.f32.mrb[0].mxu0
    %6407 = vmatprep.mubr.f32.mxu0 0.0
    %6408 = vmatmul.mubr.f32.gmra.mrb[0].mxu0 %v6295
    %v6409 = vpop.f32.mrb[0].mxu0
    %v6410 = vadd.f32 0.0, %v6409
    %v6411 = vpop.f32.mrb[0].mxu0
    %6412 = vmatprep.mubr.f32.mxu0 0.0
    %6413 = vmatmul.mubr.f32.gmra.mrb[0].mxu0 %v6296
    %v6414 = vpop.f32.mrb[0].mxu0
    %v6415 = vadd.f32 0.0, %v6414
    %v6416 = vpop.f32.mrb[0].mxu0
    %6417 = vdwg.mxu0
    %v6418 = vadd.f32 %v6281, %v6380
    %v6419 = vadd.f32 %v6282, %v6385
    %v6420 = vadd.f32 %v6283, %v6390
    %v6421 = vadd.f32 %v6284, %v6395
    %v6422 = vadd.f32 %v6285, %v6400
    %v6423 = vadd.f32 %v6286, %v6405
    %v6424 = vadd.f32 %v6287, %v6410
    %v6425 = vadd.f32 %v6288, %v6415
    %v6426 = vld [vmem:[%s4070 + $0x2] sm:$0xff]
    %v6427 = vld [vmem:[%s4070 + $0x12] sm:$0xff]
    %v6428 = vld [vmem:[%s4070 + $0x22] sm:$0xff]
    %v6429 = vld [vmem:[%s4070 + $0x32] sm:$0xff]
    %v6430 = vld [vmem:[%s4070 + $0x42] sm:$0xff]
    %v6431 = vld [vmem:[%s4070 + $0x52] sm:$0xff]
    %v6432 = vld [vmem:[%s4070 + $0x62] sm:$0xff]
    %v6433 = vld [vmem:[%s4070 + $0x72] sm:$0xff]
    %v6434 = vld [vmem:[%s2759] sm:$0xff]
    %v6435 = vld [vmem:[%s2759 + $0x8] sm:$0xff]
    %v6436 = vld [vmem:[%s2759 + $0x10] sm:$0xff]
    %v6437 = vld [vmem:[%s2759 + $0x18] sm:$0xff]
    %v6438 = vld [vmem:[%s2759 + $0x20] sm:$0xff]
    %v6439 = vld [vmem:[%s2759 + $0x28] sm:$0xff]
    %v6440 = vld [vmem:[%s2759 + $0x30] sm:$0xff]
    %v6441 = vld [vmem:[%s2759 + $0x38] sm:$0xff]
    %v6442 = vld [vmem:[%s2759 + $0x40] sm:$0xff]
    %v6443 = vld [vmem:[%s2759 + $0x48] sm:$0xff]
    %v6444 = vld [vmem:[%s2759 + $0x50] sm:$0xff]
    %v6445 = vld [vmem:[%s2759 + $0x58] sm:$0xff]
    %v6446 = vld [vmem:[%s2759 + $0x60] sm:$0xff]
    %v6447 = vld [vmem:[%s2759 + $0x68] sm:$0xff]
    %v6448 = vld [vmem:[%s2759 + $0x70] sm:$0xff]
    %v6449 = vld [vmem:[%s2759 + $0x78] sm:$0xff]
    %6450 = vmatprep.subr.mxu0 0.0
    %6451 = vmatpush1.msra.mxu0 %v6434
    %6452 = vmatprep.subr.mxu0 0.0
    %6453 = vmatpush1.msra.mxu0 %v6435
    %6454 = vmatprep.subr.mxu0 0.0
    %6455 = vmatpush1.msra.mxu0 %v6436
    %6456 = vmatprep.subr.mxu0 0.0
    %6457 = vmatpush1.msra.mxu0 %v6437
    %6458 = vmatprep.subr.mxu0 0.0
    %6459 = vmatpush1.msra.mxu0 %v6438
    %6460 = vmatprep.subr.mxu0 0.0
    %6461 = vmatpush1.msra.mxu0 %v6439
    %6462 = vmatprep.subr.mxu0 0.0
    %6463 = vmatpush1.msra.mxu0 %v6440
    %6464 = vmatprep.subr.mxu0 0.0
    %6465 = vmatpush1.msra.mxu0 %v6441
    %6466 = vmatprep.subr.mxu0 0.0
    %6467 = vmatpush1.msra.mxu0 %v6442
    %6468 = vmatprep.subr.mxu0 0.0
    %6469 = vmatpush1.msra.mxu0 %v6443
    %6470 = vmatprep.subr.mxu0 0.0
    %6471 = vmatpush1.msra.mxu0 %v6444
    %6472 = vmatprep.subr.mxu0 0.0
    %6473 = vmatpush1.msra.mxu0 %v6445
    %6474 = vmatprep.subr.mxu0 0.0
    %6475 = vmatpush1.msra.mxu0 %v6446
    %6476 = vmatprep.subr.mxu0 0.0
    %6477 = vmatpush1.msra.mxu0 %v6447
    %6478 = vmatprep.subr.mxu0 0.0
    %6479 = vmatpush1.msra.mxu0 %v6448
    %6480 = vmatprep.subr.mxu0 0.0
    %6481 = vmatpush1.msra.mxu0 %v6449
    %6482 = vmatprep.subr.mxu0 0.0
    %6483 = vmatpush1.msra.mxu0 0.0
    %6484 = vmatprep.subr.mxu0 0.0
    %6485 = vmatpush1.msra.mxu0 0.0
    %6486 = vmatprep.subr.mxu0 0.0
    %6487 = vmatpush1.msra.mxu0 0.0
    %6488 = vmatprep.subr.mxu0 0.0
    %6489 = vmatpush1.msra.mxu0 0.0
    %6490 = vmatprep.subr.mxu0 0.0
    %6491 = vmatpush1.msra.mxu0 0.0
    %6492 = vmatprep.subr.mxu0 0.0
    %6493 = vmatpush1.msra.mxu0 0.0
    %6494 = vmatprep.subr.mxu0 0.0
    %6495 = vmatpush1.msra.mxu0 0.0
    %6496 = vmatprep.subr.mxu0 0.0
    %6497 = vmatpush1.msra.mxu0 0.0
    %6498 = vmatprep.subr.mxu0 0.0
    %6499 = vmatpush1.msra.mxu0 0.0
    %6500 = vmatprep.subr.mxu0 0.0
    %6501 = vmatpush1.msra.mxu0 0.0
    %6502 = vmatprep.subr.mxu0 0.0
    %6503 = vmatpush1.msra.mxu0 0.0
    %6504 = vmatprep.subr.mxu0 0.0
    %6505 = vmatpush1.msra.mxu0 0.0
    %6506 = vmatprep.subr.mxu0 0.0
    %6507 = vmatpush1.msra.mxu0 0.0
    %6508 = vmatprep.subr.mxu0 0.0
    %6509 = vmatpush1.msra.mxu0 0.0
    %6510 = vmatprep.subr.mxu0 0.0
    %6511 = vmatpush1.msra.mxu0 0.0
    %6512 = vmatprep.subr.mxu0 0.0
    %6513 = vmatpush1.msra.mxu0 0.0
    %6514 = vmatprep.mubr.f32.mxu0 0.0
    %6515 = vmatmul.mubr.f32.gmra.mrb[0].mxu0 %v6426
    %v6516 = vpop.f32.mrb[0].mxu0
    %v6517 = vadd.f32 0.0, %v6516
    %v6518 = vpop.f32.mrb[0].mxu0
    %6519 = vmatprep.mubr.f32.mxu0 0.0
    %6520 = vmatmul.mubr.f32.gmra.mrb[0].mxu0 %v6427
    %v6521 = vpop.f32.mrb[0].mxu0
    %v6522 = vadd.f32 0.0, %v6521
    %v6523 = vpop.f32.mrb[0].mxu0
    %6524 = vmatprep.mubr.f32.mxu0 0.0
    %6525 = vmatmul.mubr.f32.gmra.mrb[0].mxu0 %v6428
    %v6526 = vpop.f32.mrb[0].mxu0
    %v6527 = vadd.f32 0.0, %v6526
    %v6528 = vpop.f32.mrb[0].mxu0
    %6529 = vmatprep.mubr.f32.mxu0 0.0
    %6530 = vmatmul.mubr.f32.gmra.mrb[0].mxu0 %v6429
    %v6531 = vpop.f32.mrb[0].mxu0
    %v6532 = vadd.f32 0.0, %v6531
    %v6533 = vpop.f32.mrb[0].mxu0
    %6534 = vmatprep.mubr.f32.mxu0 0.0
    %6535 = vmatmul.mubr.f32.gmra.mrb[0].mxu0 %v6430
    %v6536 = vpop.f32.mrb[0].mxu0
    %v6537 = vadd.f32 0.0, %v6536
    %v6538 = vpop.f32.mrb[0].mxu0
    %6539 = vmatprep.mubr.f32.mxu0 0.0
    %6540 = vmatmul.mubr.f32.gmra.mrb[0].mxu0 %v6431
    %v6541 = vpop.f32.mrb[0].mxu0
    %v6542 = vadd.f32 0.0, %v6541
    %v6543 = vpop.f32.mrb[0].mxu0
    %6544 = vmatprep.mubr.f32.mxu0 0.0
    %6545 = vmatmul.mubr.f32.gmra.mrb[0].mxu0 %v6432
    %v6546 = vpop.f32.mrb[0].mxu0
    %v6547 = vadd.f32 0.0, %v6546
    %v6548 = vpop.f32.mrb[0].mxu0
    %6549 = vmatprep.mubr.f32.mxu0 0.0
    %6550 = vmatmul.mubr.f32.gmra.mrb[0].mxu0 %v6433
    %v6551 = vpop.f32.mrb[0].mxu0
    %v6552 = vadd.f32 0.0, %v6551
    %v6553 = vpop.f32.mrb[0].mxu0
    %6554 = vdwg.mxu0
    %v6555 = vadd.f32 %v6418, %v6517
    %v6556 = vadd.f32 %v6419, %v6522
    %v6557 = vadd.f32 %v6420, %v6527
    %v6558 = vadd.f32 %v6421, %v6532
    %v6559 = vadd.f32 %v6422, %v6537
    %v6560 = vadd.f32 %v6423, %v6542
    %v6561 = vadd.f32 %v6424, %v6547
    %v6562 = vadd.f32 %v6425, %v6552
    %v6563 = vld [vmem:[%s4070 + $0x3] sm:$0xff]
    %v6564 = vld [vmem:[%s4070 + $0x13] sm:$0xff]
    %v6565 = vld [vmem:[%s4070 + $0x23] sm:$0xff]
    %v6566 = vld [vmem:[%s4070 + $0x33] sm:$0xff]
    %v6567 = vld [vmem:[%s4070 + $0x43] sm:$0xff]
    %v6568 = vld [vmem:[%s4070 + $0x53] sm:$0xff]
    %v6569 = vld [vmem:[%s4070 + $0x63] sm:$0xff]
    %v6570 = vld [vmem:[%s4070 + $0x73] sm:$0xff]
    %v6571 = vld [vmem:[%s2897] sm:$0xff]
    %v6572 = vld [vmem:[%s2897 + $0x8] sm:$0xff]
    %v6573 = vld [vmem:[%s2897 + $0x10] sm:$0xff]
    %v6574 = vld [vmem:[%s2897 + $0x18] sm:$0xff]
    %v6575 = vld [vmem:[%s2897 + $0x20] sm:$0xff]
    %v6576 = vld [vmem:[%s2897 + $0x28] sm:$0xff]
    %v6577 = vld [vmem:[%s2897 + $0x30] sm:$0xff]
    %v6578 = vld [vmem:[%s2897 + $0x38] sm:$0xff]
    %v6579 = vld [vmem:[%s2897 + $0x40] sm:$0xff]
    %v6580 = vld [vmem:[%s2897 + $0x48] sm:$0xff]
    %v6581 = vld [vmem:[%s2897 + $0x50] sm:$0xff]
    %v6582 = vld [vmem:[%s2897 + $0x58] sm:$0xff]
    %v6583 = vld [vmem:[%s2897 + $0x60] sm:$0xff]
    %v6584 = vld [vmem:[%s2897 + $0x68] sm:$0xff]
    %v6585 = vld [vmem:[%s2897 + $0x70] sm:$0xff]
    %v6586 = vld [vmem:[%s2897 + $0x78] sm:$0xff]
    %6587 = vmatprep.subr.mxu0 0.0
    %6588 = vmatpush1.msra.mxu0 %v6571
    %6589 = vmatprep.subr.mxu0 0.0
    %6590 = vmatpush1.msra.mxu0 %v6572
    %6591 = vmatprep.subr.mxu0 0.0
    %6592 = vmatpush1.msra.mxu0 %v6573
    %6593 = vmatprep.subr.mxu0 0.0
    %6594 = vmatpush1.msra.mxu0 %v6574
    %6595 = vmatprep.subr.mxu0 0.0
    %6596 = vmatpush1.msra.mxu0 %v6575
    %6597 = vmatprep.subr.mxu0 0.0
    %6598 = vmatpush1.msra.mxu0 %v6576
    %6599 = vmatprep.subr.mxu0 0.0
    %6600 = vmatpush1.msra.mxu0 %v6577
    %6601 = vmatprep.subr.mxu0 0.0
    %6602 = vmatpush1.msra.mxu0 %v6578
    %6603 = vmatprep.subr.mxu0 0.0
    %6604 = vmatpush1.msra.mxu0 %v6579
    %6605 = vmatprep.subr.mxu0 0.0
    %6606 = vmatpush1.msra.mxu0 %v6580
    %6607 = vmatprep.subr.mxu0 0.0
    %6608 = vmatpush1.msra.mxu0 %v6581
    %6609 = vmatprep.subr.mxu0 0.0
    %6610 = vmatpush1.msra.mxu0 %v6582
    %6611 = vmatprep.subr.mxu0 0.0
    %6612 = vmatpush1.msra.mxu0 %v6583
    %6613 = vmatprep.subr.mxu0 0.0
    %6614 = vmatpush1.msra.mxu0 %v6584
    %6615 = vmatprep.subr.mxu0 0.0
    %6616 = vmatpush1.msra.mxu0 %v6585
    %6617 = vmatprep.subr.mxu0 0.0
    %6618 = vmatpush1.msra.mxu0 %v6586
    %6619 = vmatprep.subr.mxu0 0.0
    %6620 = vmatpush1.msra.mxu0 0.0
    %6621 = vmatprep.subr.mxu0 0.0
    %6622 = vmatpush1.msra.mxu0 0.0
    %6623 = vmatprep.subr.mxu0 0.0
    %6624 = vmatpush1.msra.mxu0 0.0
    %6625 = vmatprep.subr.mxu0 0.0
    %6626 = vmatpush1.msra.mxu0 0.0
    %6627 = vmatprep.subr.mxu0 0.0
    %6628 = vmatpush1.msra.mxu0 0.0
    %6629 = vmatprep.subr.mxu0 0.0
    %6630 = vmatpush1.msra.mxu0 0.0
    %6631 = vmatprep.subr.mxu0 0.0
    %6632 = vmatpush1.msra.mxu0 0.0
    %6633 = vmatprep.subr.mxu0 0.0
    %6634 = vmatpush1.msra.mxu0 0.0
    %6635 = vmatprep.subr.mxu0 0.0
    %6636 = vmatpush1.msra.mxu0 0.0
    %6637 = vmatprep.subr.mxu0 0.0
    %6638 = vmatpush1.msra.mxu0 0.0
    %6639 = vmatprep.subr.mxu0 0.0
    %6640 = vmatpush1.msra.mxu0 0.0
    %6641 = vmatprep.subr.mxu0 0.0
    %6642 = vmatpush1.msra.mxu0 0.0
    %6643 = vmatprep.subr.mxu0 0.0
    %6644 = vmatpush1.msra.mxu0 0.0
    %6645 = vmatprep.subr.mxu0 0.0
    %6646 = vmatpush1.msra.mxu0 0.0
    %6647 = vmatprep.subr.mxu0 0.0
    %6648 = vmatpush1.msra.mxu0 0.0
    %6649 = vmatprep.subr.mxu0 0.0
    %6650 = vmatpush1.msra.mxu0 0.0
    %6651 = vmatprep.mubr.f32.mxu0 0.0
    %6652 = vmatmul.mubr.f32.gmra.mrb[0].mxu0 %v6563
    %v6653 = vpop.f32.mrb[0].mxu0
    %v6654 = vadd.f32 0.0, %v6653
    %v6655 = vpop.f32.mrb[0].mxu0
    %6656 = vmatprep.mubr.f32.mxu0 0.0
    %6657 = vmatmul.mubr.f32.gmra.mrb[0].mxu0 %v6564
    %v6658 = vpop.f32.mrb[0].mxu0
    %v6659 = vadd.f32 0.0, %v6658
    %v6660 = vpop.f32.mrb[0].mxu0
    %6661 = vmatprep.mubr.f32.mxu0 0.0
    %6662 = vmatmul.mubr.f32.gmra.mrb[0].mxu0 %v6565
    %v6663 = vpop.f32.mrb[0].mxu0
    %v6664 = vadd.f32 0.0, %v6663
    %v6665 = vpop.f32.mrb[0].mxu0
    %6666 = vmatprep.mubr.f32.mxu0 0.0
    %6667 = vmatmul.mubr.f32.gmra.mrb[0].mxu0 %v6566
    %v6668 = vpop.f32.mrb[0].mxu0
    %v6669 = vadd.f32 0.0, %v6668
    %v6670 = vpop.f32.mrb[0].mxu0
    %6671 = vmatprep.mubr.f32.mxu0 0.0
    %6672 = vmatmul.mubr.f32.gmra.mrb[0].mxu0 %v6567
    %v6673 = vpop.f32.mrb[0].mxu0
    %v6674 = vadd.f32 0.0, %v6673
    %v6675 = vpop.f32.mrb[0].mxu0
    %6676 = vmatprep.mubr.f32.mxu0 0.0
    %6677 = vmatmul.mubr.f32.gmra.mrb[0].mxu0 %v6568
    %v6678 = vpop.f32.mrb[0].mxu0
    %v6679 = vadd.f32 0.0, %v6678
    %v6680 = vpop.f32.mrb[0].mxu0
    %6681 = vmatprep.mubr.f32.mxu0 0.0
    %6682 = vmatmul.mubr.f32.gmra.mrb[0].mxu0 %v6569
    %v6683 = vpop.f32.mrb[0].mxu0
    %v6684 = vadd.f32 0.0, %v6683
    %v6685 = vpop.f32.mrb[0].mxu0
    %6686 = vmatprep.mubr.f32.mxu0 0.0
    %6687 = vmatmul.mubr.f32.gmra.mrb[0].mxu0 %v6570
    %v6688 = vpop.f32.mrb[0].mxu0
    %v6689 = vadd.f32 0.0, %v6688
    %v6690 = vpop.f32.mrb[0].mxu0
    %6691 = vdwg.mxu0
    %v6692 = vadd.f32 %v6555, %v6654
    %v6693 = vadd.f32 %v6556, %v6659
    %v6694 = vadd.f32 %v6557, %v6664
    %v6695 = vadd.f32 %v6558, %v6669
    %v6696 = vadd.f32 %v6559, %v6674
    %v6697 = vadd.f32 %v6560, %v6679
    %v6698 = vadd.f32 %v6561, %v6684
    %v6699 = vadd.f32 %v6562, %v6689
    %v6700 = vld [vmem:[%s4070 + $0x4] sm:$0xff]
    %v6701 = vld [vmem:[%s4070 + $0x14] sm:$0xff]
    %v6702 = vld [vmem:[%s4070 + $0x24] sm:$0xff]
    %v6703 = vld [vmem:[%s4070 + $0x34] sm:$0xff]
    %v6704 = vld [vmem:[%s4070 + $0x44] sm:$0xff]
    %v6705 = vld [vmem:[%s4070 + $0x54] sm:$0xff]
    %v6706 = vld [vmem:[%s4070 + $0x64] sm:$0xff]
    %v6707 = vld [vmem:[%s4070 + $0x74] sm:$0xff]
    %v6708 = vld [vmem:[%s3035] sm:$0xff]
    %v6709 = vld [vmem:[%s3035 + $0x8] sm:$0xff]
    %v6710 = vld [vmem:[%s3035 + $0x10] sm:$0xff]
    %v6711 = vld [vmem:[%s3035 + $0x18] sm:$0xff]
    %v6712 = vld [vmem:[%s3035 + $0x20] sm:$0xff]
    %v6713 = vld [vmem:[%s3035 + $0x28] sm:$0xff]
    %v6714 = vld [vmem:[%s3035 + $0x30] sm:$0xff]
    %v6715 = vld [vmem:[%s3035 + $0x38] sm:$0xff]
    %v6716 = vld [vmem:[%s3035 + $0x40] sm:$0xff]
    %v6717 = vld [vmem:[%s3035 + $0x48] sm:$0xff]
    %v6718 = vld [vmem:[%s3035 + $0x50] sm:$0xff]
    %v6719 = vld [vmem:[%s3035 + $0x58] sm:$0xff]
    %v6720 = vld [vmem:[%s3035 + $0x60] sm:$0xff]
    %v6721 = vld [vmem:[%s3035 + $0x68] sm:$0xff]
    %v6722 = vld [vmem:[%s3035 + $0x70] sm:$0xff]
    %v6723 = vld [vmem:[%s3035 + $0x78] sm:$0xff]
    %6724 = vmatprep.subr.mxu0 0.0
    %6725 = vmatpush1.msra.mxu0 %v6708
    %6726 = vmatprep.subr.mxu0 0.0
    %6727 = vmatpush1.msra.mxu0 %v6709
    %6728 = vmatprep.subr.mxu0 0.0
    %6729 = vmatpush1.msra.mxu0 %v6710
    %6730 = vmatprep.subr.mxu0 0.0
    %6731 = vmatpush1.msra.mxu0 %v6711
    %6732 = vmatprep.subr.mxu0 0.0
    %6733 = vmatpush1.msra.mxu0 %v6712
    %6734 = vmatprep.subr.mxu0 0.0
    %6735 = vmatpush1.msra.mxu0 %v6713
    %6736 = vmatprep.subr.mxu0 0.0
    %6737 = vmatpush1.msra.mxu0 %v6714
    %6738 = vmatprep.subr.mxu0 0.0
    %6739 = vmatpush1.msra.mxu0 %v6715
    %6740 = vmatprep.subr.mxu0 0.0
    %6741 = vmatpush1.msra.mxu0 %v6716
    %6742 = vmatprep.subr.mxu0 0.0
    %6743 = vmatpush1.msra.mxu0 %v6717
    %6744 = vmatprep.subr.mxu0 0.0
    %6745 = vmatpush1.msra.mxu0 %v6718
    %6746 = vmatprep.subr.mxu0 0.0
    %6747 = vmatpush1.msra.mxu0 %v6719
    %6748 = vmatprep.subr.mxu0 0.0
    %6749 = vmatpush1.msra.mxu0 %v6720
    %6750 = vmatprep.subr.mxu0 0.0
    %6751 = vmatpush1.msra.mxu0 %v6721
    %6752 = vmatprep.subr.mxu0 0.0
    %6753 = vmatpush1.msra.mxu0 %v6722
    %6754 = vmatprep.subr.mxu0 0.0
    %6755 = vmatpush1.msra.mxu0 %v6723
    %6756 = vmatprep.subr.mxu0 0.0
    %6757 = vmatpush1.msra.mxu0 0.0
    %6758 = vmatprep.subr.mxu0 0.0
    %6759 = vmatpush1.msra.mxu0 0.0
    %6760 = vmatprep.subr.mxu0 0.0
    %6761 = vmatpush1.msra.mxu0 0.0
    %6762 = vmatprep.subr.mxu0 0.0
    %6763 = vmatpush1.msra.mxu0 0.0
    %6764 = vmatprep.subr.mxu0 0.0
    %6765 = vmatpush1.msra.mxu0 0.0
    %6766 = vmatprep.subr.mxu0 0.0
    %6767 = vmatpush1.msra.mxu0 0.0
    %6768 = vmatprep.subr.mxu0 0.0
    %6769 = vmatpush1.msra.mxu0 0.0
    %6770 = vmatprep.subr.mxu0 0.0
    %6771 = vmatpush1.msra.mxu0 0.0
    %6772 = vmatprep.subr.mxu0 0.0
    %6773 = vmatpush1.msra.mxu0 0.0
    %6774 = vmatprep.subr.mxu0 0.0
    %6775 = vmatpush1.msra.mxu0 0.0
    %6776 = vmatprep.subr.mxu0 0.0
    %6777 = vmatpush1.msra.mxu0 0.0
    %6778 = vmatprep.subr.mxu0 0.0
    %6779 = vmatpush1.msra.mxu0 0.0
    %6780 = vmatprep.subr.mxu0 0.0
    %6781 = vmatpush1.msra.mxu0 0.0
    %6782 = vmatprep.subr.mxu0 0.0
    %6783 = vmatpush1.msra.mxu0 0.0
    %6784 = vmatprep.subr.mxu0 0.0
    %6785 = vmatpush1.msra.mxu0 0.0
    %6786 = vmatprep.subr.mxu0 0.0
    %6787 = vmatpush1.msra.mxu0 0.0
    %6788 = vmatprep.mubr.f32.mxu0 0.0
    %6789 = vmatmul.mubr.f32.gmra.mrb[0].mxu0 %v6700
    %v6790 = vpop.f32.mrb[0].mxu0
    %v6791 = vadd.f32 0.0, %v6790
    %v6792 = vpop.f32.mrb[0].mxu0
    %6793 = vmatprep.mubr.f32.mxu0 0.0
    %6794 = vmatmul.mubr.f32.gmra.mrb[0].mxu0 %v6701
    %v6795 = vpop.f32.mrb[0].mxu0
    %v6796 = vadd.f32 0.0, %v6795
    %v6797 = vpop.f32.mrb[0].mxu0
    %6798 = vmatprep.mubr.f32.mxu0 0.0
    %6799 = vmatmul.mubr.f32.gmra.mrb[0].mxu0 %v6702
    %v6800 = vpop.f32.mrb[0].mxu0
    %v6801 = vadd.f32 0.0, %v6800
    %v6802 = vpop.f32.mrb[0].mxu0
    %6803 = vmatprep.mubr.f32.mxu0 0.0
    %6804 = vmatmul.mubr.f32.gmra.mrb[0].mxu0 %v6703
    %v6805 = vpop.f32.mrb[0].mxu0
    %v6806 = vadd.f32 0.0, %v6805
    %v6807 = vpop.f32.mrb[0].mxu0
    %6808 = vmatprep.mubr.f32.mxu0 0.0
    %6809 = vmatmul.mubr.f32.gmra.mrb[0].mxu0 %v6704
    %v6810 = vpop.f32.mrb[0].mxu0
    %v6811 = vadd.f32 0.0, %v6810
    %v6812 = vpop.f32.mrb[0].mxu0
    %6813 = vmatprep.mubr.f32.mxu0 0.0
    %6814 = vmatmul.mubr.f32.gmra.mrb[0].mxu0 %v6705
    %v6815 = vpop.f32.mrb[0].mxu0
    %v6816 = vadd.f32 0.0, %v6815
    %v6817 = vpop.f32.mrb[0].mxu0
    %6818 = vmatprep.mubr.f32.mxu0 0.0
    %6819 = vmatmul.mubr.f32.gmra.mrb[0].mxu0 %v6706
    %v6820 = vpop.f32.mrb[0].mxu0
    %v6821 = vadd.f32 0.0, %v6820
    %v6822 = vpop.f32.mrb[0].mxu0
    %6823 = vmatprep.mubr.f32.mxu0 0.0
    %6824 = vmatmul.mubr.f32.gmra.mrb[0].mxu0 %v6707
    %v6825 = vpop.f32.mrb[0].mxu0
    %v6826 = vadd.f32 0.0, %v6825
    %v6827 = vpop.f32.mrb[0].mxu0
    %6828 = vdwg.mxu0
    %v6829 = vadd.f32 %v6692, %v6791
    %v6830 = vadd.f32 %v6693, %v6796
    %v6831 = vadd.f32 %v6694, %v6801
    %v6832 = vadd.f32 %v6695, %v6806
    %v6833 = vadd.f32 %v6696, %v6811
    %v6834 = vadd.f32 %v6697, %v6816
    %v6835 = vadd.f32 %v6698, %v6821
    %v6836 = vadd.f32 %v6699, %v6826
    %v6837 = vld [vmem:[%s4073] sm:$0xff]
    %v6838 = vld [vmem:[%s4073 + $0x10] sm:$0xff]
    %v6839 = vld [vmem:[%s4073 + $0x20] sm:$0xff]
    %v6840 = vld [vmem:[%s4073 + $0x30] sm:$0xff]
    %v6841 = vld [vmem:[%s4073 + $0x40] sm:$0xff]
    %v6842 = vld [vmem:[%s4073 + $0x50] sm:$0xff]
    %v6843 = vld [vmem:[%s4073 + $0x60] sm:$0xff]
    %v6844 = vld [vmem:[%s4073 + $0x70] sm:$0xff]
    %v6845 = vld [vmem:[%s3173] sm:$0xff]
    %v6846 = vld [vmem:[%s3173 + $0x8] sm:$0xff]
    %v6847 = vld [vmem:[%s3173 + $0x10] sm:$0xff]
    %v6848 = vld [vmem:[%s3173 + $0x18] sm:$0xff]
    %v6849 = vld [vmem:[%s3173 + $0x20] sm:$0xff]
    %v6850 = vld [vmem:[%s3173 + $0x28] sm:$0xff]
    %v6851 = vld [vmem:[%s3173 + $0x30] sm:$0xff]
    %v6852 = vld [vmem:[%s3173 + $0x38] sm:$0xff]
    %v6853 = vld [vmem:[%s3173 + $0x40] sm:$0xff]
    %v6854 = vld [vmem:[%s3173 + $0x48] sm:$0xff]
    %v6855 = vld [vmem:[%s3173 + $0x50] sm:$0xff]
    %v6856 = vld [vmem:[%s3173 + $0x58] sm:$0xff]
    %v6857 = vld [vmem:[%s3173 + $0x60] sm:$0xff]
    %v6858 = vld [vmem:[%s3173 + $0x68] sm:$0xff]
    %v6859 = vld [vmem:[%s3173 + $0x70] sm:$0xff]
    %v6860 = vld [vmem:[%s3173 + $0x78] sm:$0xff]
    %6861 = vmatprep.subr.mxu0 0.0
    %6862 = vmatpush1.msra.mxu0 %v6845
    %6863 = vmatprep.subr.mxu0 0.0
    %6864 = vmatpush1.msra.mxu0 %v6846
    %6865 = vmatprep.subr.mxu0 0.0
    %6866 = vmatpush1.msra.mxu0 %v6847
    %6867 = vmatprep.subr.mxu0 0.0
    %6868 = vmatpush1.msra.mxu0 %v6848
    %6869 = vmatprep.subr.mxu0 0.0
    %6870 = vmatpush1.msra.mxu0 %v6849
    %6871 = vmatprep.subr.mxu0 0.0
    %6872 = vmatpush1.msra.mxu0 %v6850
    %6873 = vmatprep.subr.mxu0 0.0
    %6874 = vmatpush1.msra.mxu0 %v6851
    %6875 = vmatprep.subr.mxu0 0.0
    %6876 = vmatpush1.msra.mxu0 %v6852
    %6877 = vmatprep.subr.mxu0 0.0
    %6878 = vmatpush1.msra.mxu0 %v6853
    %6879 = vmatprep.subr.mxu0 0.0
    %6880 = vmatpush1.msra.mxu0 %v6854
    %6881 = vmatprep.subr.mxu0 0.0
    %6882 = vmatpush1.msra.mxu0 %v6855
    %6883 = vmatprep.subr.mxu0 0.0
    %6884 = vmatpush1.msra.mxu0 %v6856
    %6885 = vmatprep.subr.mxu0 0.0
    %6886 = vmatpush1.msra.mxu0 %v6857
    %6887 = vmatprep.subr.mxu0 0.0
    %6888 = vmatpush1.msra.mxu0 %v6858
    %6889 = vmatprep.subr.mxu0 0.0
    %6890 = vmatpush1.msra.mxu0 %v6859
    %6891 = vmatprep.subr.mxu0 0.0
    %6892 = vmatpush1.msra.mxu0 %v6860
    %6893 = vmatprep.subr.mxu0 0.0
    %6894 = vmatpush1.msra.mxu0 0.0
    %6895 = vmatprep.subr.mxu0 0.0
    %6896 = vmatpush1.msra.mxu0 0.0
    %6897 = vmatprep.subr.mxu0 0.0
    %6898 = vmatpush1.msra.mxu0 0.0
    %6899 = vmatprep.subr.mxu0 0.0
    %6900 = vmatpush1.msra.mxu0 0.0
    %6901 = vmatprep.subr.mxu0 0.0
    %6902 = vmatpush1.msra.mxu0 0.0
    %6903 = vmatprep.subr.mxu0 0.0
    %6904 = vmatpush1.msra.mxu0 0.0
    %6905 = vmatprep.subr.mxu0 0.0
    %6906 = vmatpush1.msra.mxu0 0.0
    %6907 = vmatprep.subr.mxu0 0.0
    %6908 = vmatpush1.msra.mxu0 0.0
    %6909 = vmatprep.subr.mxu0 0.0
    %6910 = vmatpush1.msra.mxu0 0.0
    %6911 = vmatprep.subr.mxu0 0.0
    %6912 = vmatpush1.msra.mxu0 0.0
    %6913 = vmatprep.subr.mxu0 0.0
    %6914 = vmatpush1.msra.mxu0 0.0
    %6915 = vmatprep.subr.mxu0 0.0
    %6916 = vmatpush1.msra.mxu0 0.0
    %6917 = vmatprep.subr.mxu0 0.0
    %6918 = vmatpush1.msra.mxu0 0.0
    %6919 = vmatprep.subr.mxu0 0.0
    %6920 = vmatpush1.msra.mxu0 0.0
    %6921 = vmatprep.subr.mxu0 0.0
    %6922 = vmatpush1.msra.mxu0 0.0
    %6923 = vmatprep.subr.mxu0 0.0
    %6924 = vmatpush1.msra.mxu0 0.0
    %6925 = vmatprep.mubr.f32.mxu0 0.0
    %6926 = vmatmul.mubr.f32.gmra.mrb[0].mxu0 %v6837
    %v6927 = vpop.f32.mrb[0].mxu0
    %v6928 = vadd.f32 0.0, %v6927
    %v6929 = vpop.f32.mrb[0].mxu0
    %6930 = vmatprep.mubr.f32.mxu0 0.0
    %6931 = vmatmul.mubr.f32.gmra.mrb[0].mxu0 %v6838
    %v6932 = vpop.f32.mrb[0].mxu0
    %v6933 = vadd.f32 0.0, %v6932
    %v6934 = vpop.f32.mrb[0].mxu0
    %6935 = vmatprep.mubr.f32.mxu0 0.0
    %6936 = vmatmul.mubr.f32.gmra.mrb[0].mxu0 %v6839
    %v6937 = vpop.f32.mrb[0].mxu0
    %v6938 = vadd.f32 0.0, %v6937
    %v6939 = vpop.f32.mrb[0].mxu0
    %6940 = vmatprep.mubr.f32.mxu0 0.0
    %6941 = vmatmul.mubr.f32.gmra.mrb[0].mxu0 %v6840
    %v6942 = vpop.f32.mrb[0].mxu0
    %v6943 = vadd.f32 0.0, %v6942
    %v6944 = vpop.f32.mrb[0].mxu0
    %6945 = vmatprep.mubr.f32.mxu0 0.0
    %6946 = vmatmul.mubr.f32.gmra.mrb[0].mxu0 %v6841
    %v6947 = vpop.f32.mrb[0].mxu0
    %v6948 = vadd.f32 0.0, %v6947
    %v6949 = vpop.f32.mrb[0].mxu0
    %6950 = vmatprep.mubr.f32.mxu0 0.0
    %6951 = vmatmul.mubr.f32.gmra.mrb[0].mxu0 %v6842
    %v6952 = vpop.f32.mrb[0].mxu0
    %v6953 = vadd.f32 0.0, %v6952
    %v6954 = vpop.f32.mrb[0].mxu0
    %6955 = vmatprep.mubr.f32.mxu0 0.0
    %6956 = vmatmul.mubr.f32.gmra.mrb[0].mxu0 %v6843
    %v6957 = vpop.f32.mrb[0].mxu0
    %v6958 = vadd.f32 0.0, %v6957
    %v6959 = vpop.f32.mrb[0].mxu0
    %6960 = vmatprep.mubr.f32.mxu0 0.0
    %6961 = vmatmul.mubr.f32.gmra.mrb[0].mxu0 %v6844
    %v6962 = vpop.f32.mrb[0].mxu0
    %v6963 = vadd.f32 0.0, %v6962
    %v6964 = vpop.f32.mrb[0].mxu0
    %6965 = vdwg.mxu0
    %v6966 = vadd.f32 %v6829, %v6928
    %v6967 = vadd.f32 %v6830, %v6933
    %v6968 = vadd.f32 %v6831, %v6938
    %v6969 = vadd.f32 %v6832, %v6943
    %v6970 = vadd.f32 %v6833, %v6948
    %v6971 = vadd.f32 %v6834, %v6953
    %v6972 = vadd.f32 %v6835, %v6958
    %v6973 = vadd.f32 %v6836, %v6963
    %v6974 = vld [vmem:[%s4073 + $0x1] sm:$0xff]
    %v6975 = vld [vmem:[%s4073 + $0x11] sm:$0xff]
    %v6976 = vld [vmem:[%s4073 + $0x21] sm:$0xff]
    %v6977 = vld [vmem:[%s4073 + $0x31] sm:$0xff]
    %v6978 = vld [vmem:[%s4073 + $0x41] sm:$0xff]
    %v6979 = vld [vmem:[%s4073 + $0x51] sm:$0xff]
    %v6980 = vld [vmem:[%s4073 + $0x61] sm:$0xff]
    %v6981 = vld [vmem:[%s4073 + $0x71] sm:$0xff]
    %v6982 = vld [vmem:[%s3311] sm:$0xff]
    %v6983 = vld [vmem:[%s3311 + $0x8] sm:$0xff]
    %v6984 = vld [vmem:[%s3311 + $0x10] sm:$0xff]
    %v6985 = vld [vmem:[%s3311 + $0x18] sm:$0xff]
    %v6986 = vld [vmem:[%s3311 + $0x20] sm:$0xff]
    %v6987 = vld [vmem:[%s3311 + $0x28] sm:$0xff]
    %v6988 = vld [vmem:[%s3311 + $0x30] sm:$0xff]
    %v6989 = vld [vmem:[%s3311 + $0x38] sm:$0xff]
    %v6990 = vld [vmem:[%s3311 + $0x40] sm:$0xff]
    %v6991 = vld [vmem:[%s3311 + $0x48] sm:$0xff]
    %v6992 = vld [vmem:[%s3311 + $0x50] sm:$0xff]
    %v6993 = vld [vmem:[%s3311 + $0x58] sm:$0xff]
    %v6994 = vld [vmem:[%s3311 + $0x60] sm:$0xff]
    %v6995 = vld [vmem:[%s3311 + $0x68] sm:$0xff]
    %v6996 = vld [vmem:[%s3311 + $0x70] sm:$0xff]
    %v6997 = vld [vmem:[%s3311 + $0x78] sm:$0xff]
    %6998 = vmatprep.subr.mxu0 0.0
    %6999 = vmatpush1.msra.mxu0 %v6982
    %7000 = vmatprep.subr.mxu0 0.0
    %7001 = vmatpush1.msra.mxu0 %v6983
    %7002 = vmatprep.subr.mxu0 0.0
    %7003 = vmatpush1.msra.mxu0 %v6984
    %7004 = vmatprep.subr.mxu0 0.0
    %7005 = vmatpush1.msra.mxu0 %v6985
    %7006 = vmatprep.subr.mxu0 0.0
    %7007 = vmatpush1.msra.mxu0 %v6986
    %7008 = vmatprep.subr.mxu0 0.0
    %7009 = vmatpush1.msra.mxu0 %v6987
    %7010 = vmatprep.subr.mxu0 0.0
    %7011 = vmatpush1.msra.mxu0 %v6988
    %7012 = vmatprep.subr.mxu0 0.0
    %7013 = vmatpush1.msra.mxu0 %v6989
    %7014 = vmatprep.subr.mxu0 0.0
    %7015 = vmatpush1.msra.mxu0 %v6990
    %7016 = vmatprep.subr.mxu0 0.0
    %7017 = vmatpush1.msra.mxu0 %v6991
    %7018 = vmatprep.subr.mxu0 0.0
    %7019 = vmatpush1.msra.mxu0 %v6992
    %7020 = vmatprep.subr.mxu0 0.0
    %7021 = vmatpush1.msra.mxu0 %v6993
    %7022 = vmatprep.subr.mxu0 0.0
    %7023 = vmatpush1.msra.mxu0 %v6994
    %7024 = vmatprep.subr.mxu0 0.0
    %7025 = vmatpush1.msra.mxu0 %v6995
    %7026 = vmatprep.subr.mxu0 0.0
    %7027 = vmatpush1.msra.mxu0 %v6996
    %7028 = vmatprep.subr.mxu0 0.0
    %7029 = vmatpush1.msra.mxu0 %v6997
    %7030 = vmatprep.subr.mxu0 0.0
    %7031 = vmatpush1.msra.mxu0 0.0
    %7032 = vmatprep.subr.mxu0 0.0
    %7033 = vmatpush1.msra.mxu0 0.0
    %7034 = vmatprep.subr.mxu0 0.0
    %7035 = vmatpush1.msra.mxu0 0.0
    %7036 = vmatprep.subr.mxu0 0.0
    %7037 = vmatpush1.msra.mxu0 0.0
    %7038 = vmatprep.subr.mxu0 0.0
    %7039 = vmatpush1.msra.mxu0 0.0
    %7040 = vmatprep.subr.mxu0 0.0
    %7041 = vmatpush1.msra.mxu0 0.0
    %7042 = vmatprep.subr.mxu0 0.0
    %7043 = vmatpush1.msra.mxu0 0.0
    %7044 = vmatprep.subr.mxu0 0.0
    %7045 = vmatpush1.msra.mxu0 0.0
    %7046 = vmatprep.subr.mxu0 0.0
    %7047 = vmatpush1.msra.mxu0 0.0
    %7048 = vmatprep.subr.mxu0 0.0
    %7049 = vmatpush1.msra.mxu0 0.0
    %7050 = vmatprep.subr.mxu0 0.0
    %7051 = vmatpush1.msra.mxu0 0.0
    %7052 = vmatprep.subr.mxu0 0.0
    %7053 = vmatpush1.msra.mxu0 0.0
    %7054 = vmatprep.subr.mxu0 0.0
    %7055 = vmatpush1.msra.mxu0 0.0
    %7056 = vmatprep.subr.mxu0 0.0
    %7057 = vmatpush1.msra.mxu0 0.0
    %7058 = vmatprep.subr.mxu0 0.0
    %7059 = vmatpush1.msra.mxu0 0.0
    %7060 = vmatprep.subr.mxu0 0.0
    %7061 = vmatpush1.msra.mxu0 0.0
    %7062 = vmatprep.mubr.f32.mxu0 0.0
    %7063 = vmatmul.mubr.f32.gmra.mrb[0].mxu0 %v6974
    %v7064 = vpop.f32.mrb[0].mxu0
    %v7065 = vadd.f32 0.0, %v7064
    %v7066 = vpop.f32.mrb[0].mxu0
    %7067 = vmatprep.mubr.f32.mxu0 0.0
    %7068 = vmatmul.mubr.f32.gmra.mrb[0].mxu0 %v6975
    %v7069 = vpop.f32.mrb[0].mxu0
    %v7070 = vadd.f32 0.0, %v7069
    %v7071 = vpop.f32.mrb[0].mxu0
    %7072 = vmatprep.mubr.f32.mxu0 0.0
    %7073 = vmatmul.mubr.f32.gmra.mrb[0].mxu0 %v6976
    %v7074 = vpop.f32.mrb[0].mxu0
    %v7075 = vadd.f32 0.0, %v7074
    %v7076 = vpop.f32.mrb[0].mxu0
    %7077 = vmatprep.mubr.f32.mxu0 0.0
    %7078 = vmatmul.mubr.f32.gmra.mrb[0].mxu0 %v6977
    %v7079 = vpop.f32.mrb[0].mxu0
    %v7080 = vadd.f32 0.0, %v7079
    %v7081 = vpop.f32.mrb[0].mxu0
    %7082 = vmatprep.mubr.f32.mxu0 0.0
    %7083 = vmatmul.mubr.f32.gmra.mrb[0].mxu0 %v6978
    %v7084 = vpop.f32.mrb[0].mxu0
    %v7085 = vadd.f32 0.0, %v7084
    %v7086 = vpop.f32.mrb[0].mxu0
    %7087 = vmatprep.mubr.f32.mxu0 0.0
    %7088 = vmatmul.mubr.f32.gmra.mrb[0].mxu0 %v6979
    %v7089 = vpop.f32.mrb[0].mxu0
    %v7090 = vadd.f32 0.0, %v7089
    %v7091 = vpop.f32.mrb[0].mxu0
    %7092 = vmatprep.mubr.f32.mxu0 0.0
    %7093 = vmatmul.mubr.f32.gmra.mrb[0].mxu0 %v6980
    %v7094 = vpop.f32.mrb[0].mxu0
    %v7095 = vadd.f32 0.0, %v7094
    %v7096 = vpop.f32.mrb[0].mxu0
    %7097 = vmatprep.mubr.f32.mxu0 0.0
    %7098 = vmatmul.mubr.f32.gmra.mrb[0].mxu0 %v6981
    %v7099 = vpop.f32.mrb[0].mxu0
    %v7100 = vadd.f32 0.0, %v7099
    %v7101 = vpop.f32.mrb[0].mxu0
    %7102 = vdwg.mxu0
    %v7103 = vadd.f32 %v6966, %v7065
    %v7104 = vadd.f32 %v6967, %v7070
    %v7105 = vadd.f32 %v6968, %v7075
    %v7106 = vadd.f32 %v6969, %v7080
    %v7107 = vadd.f32 %v6970, %v7085
    %v7108 = vadd.f32 %v6971, %v7090
    %v7109 = vadd.f32 %v6972, %v7095
    %v7110 = vadd.f32 %v6973, %v7100
    %v7111 = vld [vmem:[%s4073 + $0x2] sm:$0xff]
    %v7112 = vld [vmem:[%s4073 + $0x12] sm:$0xff]
    %v7113 = vld [vmem:[%s4073 + $0x22] sm:$0xff]
    %v7114 = vld [vmem:[%s4073 + $0x32] sm:$0xff]
    %v7115 = vld [vmem:[%s4073 + $0x42] sm:$0xff]
    %v7116 = vld [vmem:[%s4073 + $0x52] sm:$0xff]
    %v7117 = vld [vmem:[%s4073 + $0x62] sm:$0xff]
    %v7118 = vld [vmem:[%s4073 + $0x72] sm:$0xff]
    %v7119 = vld [vmem:[%s3449] sm:$0xff]
    %v7120 = vld [vmem:[%s3449 + $0x8] sm:$0xff]
    %v7121 = vld [vmem:[%s3449 + $0x10] sm:$0xff]
    %v7122 = vld [vmem:[%s3449 + $0x18] sm:$0xff]
    %v7123 = vld [vmem:[%s3449 + $0x20] sm:$0xff]
    %v7124 = vld [vmem:[%s3449 + $0x28] sm:$0xff]
    %v7125 = vld [vmem:[%s3449 + $0x30] sm:$0xff]
    %v7126 = vld [vmem:[%s3449 + $0x38] sm:$0xff]
    %v7127 = vld [vmem:[%s3449 + $0x40] sm:$0xff]
    %v7128 = vld [vmem:[%s3449 + $0x48] sm:$0xff]
    %v7129 = vld [vmem:[%s3449 + $0x50] sm:$0xff]
    %v7130 = vld [vmem:[%s3449 + $0x58] sm:$0xff]
    %v7131 = vld [vmem:[%s3449 + $0x60] sm:$0xff]
    %v7132 = vld [vmem:[%s3449 + $0x68] sm:$0xff]
    %v7133 = vld [vmem:[%s3449 + $0x70] sm:$0xff]
    %v7134 = vld [vmem:[%s3449 + $0x78] sm:$0xff]
    %7135 = vmatprep.subr.mxu0 0.0
    %7136 = vmatpush1.msra.mxu0 %v7119
    %7137 = vmatprep.subr.mxu0 0.0
    %7138 = vmatpush1.msra.mxu0 %v7120
    %7139 = vmatprep.subr.mxu0 0.0
    %7140 = vmatpush1.msra.mxu0 %v7121
    %7141 = vmatprep.subr.mxu0 0.0
    %7142 = vmatpush1.msra.mxu0 %v7122
    %7143 = vmatprep.subr.mxu0 0.0
    %7144 = vmatpush1.msra.mxu0 %v7123
    %7145 = vmatprep.subr.mxu0 0.0
    %7146 = vmatpush1.msra.mxu0 %v7124
    %7147 = vmatprep.subr.mxu0 0.0
    %7148 = vmatpush1.msra.mxu0 %v7125
    %7149 = vmatprep.subr.mxu0 0.0
    %7150 = vmatpush1.msra.mxu0 %v7126
    %7151 = vmatprep.subr.mxu0 0.0
    %7152 = vmatpush1.msra.mxu0 %v7127
    %7153 = vmatprep.subr.mxu0 0.0
    %7154 = vmatpush1.msra.mxu0 %v7128
    %7155 = vmatprep.subr.mxu0 0.0
    %7156 = vmatpush1.msra.mxu0 %v7129
    %7157 = vmatprep.subr.mxu0 0.0
    %7158 = vmatpush1.msra.mxu0 %v7130
    %7159 = vmatprep.subr.mxu0 0.0
    %7160 = vmatpush1.msra.mxu0 %v7131
    %7161 = vmatprep.subr.mxu0 0.0
    %7162 = vmatpush1.msra.mxu0 %v7132
    %7163 = vmatprep.subr.mxu0 0.0
    %7164 = vmatpush1.msra.mxu0 %v7133
    %7165 = vmatprep.subr.mxu0 0.0
    %7166 = vmatpush1.msra.mxu0 %v7134
    %7167 = vmatprep.subr.mxu0 0.0
    %7168 = vmatpush1.msra.mxu0 0.0
    %7169 = vmatprep.subr.mxu0 0.0
    %7170 = vmatpush1.msra.mxu0 0.0
    %7171 = vmatprep.subr.mxu0 0.0
    %7172 = vmatpush1.msra.mxu0 0.0
    %7173 = vmatprep.subr.mxu0 0.0
    %7174 = vmatpush1.msra.mxu0 0.0
    %7175 = vmatprep.subr.mxu0 0.0
    %7176 = vmatpush1.msra.mxu0 0.0
    %7177 = vmatprep.subr.mxu0 0.0
    %7178 = vmatpush1.msra.mxu0 0.0
    %7179 = vmatprep.subr.mxu0 0.0
    %7180 = vmatpush1.msra.mxu0 0.0
    %7181 = vmatprep.subr.mxu0 0.0
    %7182 = vmatpush1.msra.mxu0 0.0
    %7183 = vmatprep.subr.mxu0 0.0
    %7184 = vmatpush1.msra.mxu0 0.0
    %7185 = vmatprep.subr.mxu0 0.0
    %7186 = vmatpush1.msra.mxu0 0.0
    %7187 = vmatprep.subr.mxu0 0.0
    %7188 = vmatpush1.msra.mxu0 0.0
    %7189 = vmatprep.subr.mxu0 0.0
    %7190 = vmatpush1.msra.mxu0 0.0
    %7191 = vmatprep.subr.mxu0 0.0
    %7192 = vmatpush1.msra.mxu0 0.0
    %7193 = vmatprep.subr.mxu0 0.0
    %7194 = vmatpush1.msra.mxu0 0.0
    %7195 = vmatprep.subr.mxu0 0.0
    %7196 = vmatpush1.msra.mxu0 0.0
    %7197 = vmatprep.subr.mxu0 0.0
    %7198 = vmatpush1.msra.mxu0 0.0
    %7199 = vmatprep.mubr.f32.mxu0 0.0
    %7200 = vmatmul.mubr.f32.gmra.mrb[0].mxu0 %v7111
    %v7201 = vpop.f32.mrb[0].mxu0
    %v7202 = vadd.f32 0.0, %v7201
    %v7203 = vpop.f32.mrb[0].mxu0
    %7204 = vmatprep.mubr.f32.mxu0 0.0
    %7205 = vmatmul.mubr.f32.gmra.mrb[0].mxu0 %v7112
    %v7206 = vpop.f32.mrb[0].mxu0
    %v7207 = vadd.f32 0.0, %v7206
    %v7208 = vpop.f32.mrb[0].mxu0
    %7209 = vmatprep.mubr.f32.mxu0 0.0
    %7210 = vmatmul.mubr.f32.gmra.mrb[0].mxu0 %v7113
    %v7211 = vpop.f32.mrb[0].mxu0
    %v7212 = vadd.f32 0.0, %v7211
    %v7213 = vpop.f32.mrb[0].mxu0
    %7214 = vmatprep.mubr.f32.mxu0 0.0
    %7215 = vmatmul.mubr.f32.gmra.mrb[0].mxu0 %v7114
    %v7216 = vpop.f32.mrb[0].mxu0
    %v7217 = vadd.f32 0.0, %v7216
    %v7218 = vpop.f32.mrb[0].mxu0
    %7219 = vmatprep.mubr.f32.mxu0 0.0
    %7220 = vmatmul.mubr.f32.gmra.mrb[0].mxu0 %v7115
    %v7221 = vpop.f32.mrb[0].mxu0
    %v7222 = vadd.f32 0.0, %v7221
    %v7223 = vpop.f32.mrb[0].mxu0
    %7224 = vmatprep.mubr.f32.mxu0 0.0
    %7225 = vmatmul.mubr.f32.gmra.mrb[0].mxu0 %v7116
    %v7226 = vpop.f32.mrb[0].mxu0
    %v7227 = vadd.f32 0.0, %v7226
    %v7228 = vpop.f32.mrb[0].mxu0
    %7229 = vmatprep.mubr.f32.mxu0 0.0
    %7230 = vmatmul.mubr.f32.gmra.mrb[0].mxu0 %v7117
    %v7231 = vpop.f32.mrb[0].mxu0
    %v7232 = vadd.f32 0.0, %v7231
    %v7233 = vpop.f32.mrb[0].mxu0
    %7234 = vmatprep.mubr.f32.mxu0 0.0
    %7235 = vmatmul.mubr.f32.gmra.mrb[0].mxu0 %v7118
    %v7236 = vpop.f32.mrb[0].mxu0
    %v7237 = vadd.f32 0.0, %v7236
    %v7238 = vpop.f32.mrb[0].mxu0
    %7239 = vdwg.mxu0
    %v7240 = vadd.f32 %v7103, %v7202
    %v7241 = vadd.f32 %v7104, %v7207
    %v7242 = vadd.f32 %v7105, %v7212
    %v7243 = vadd.f32 %v7106, %v7217
    %v7244 = vadd.f32 %v7107, %v7222
    %v7245 = vadd.f32 %v7108, %v7227
    %v7246 = vadd.f32 %v7109, %v7232
    %v7247 = vadd.f32 %v7110, %v7237
    %v7248 = vld [vmem:[%s4073 + $0x3] sm:$0xff]
    %v7249 = vld [vmem:[%s4073 + $0x13] sm:$0xff]
    %v7250 = vld [vmem:[%s4073 + $0x23] sm:$0xff]
    %v7251 = vld [vmem:[%s4073 + $0x33] sm:$0xff]
    %v7252 = vld [vmem:[%s4073 + $0x43] sm:$0xff]
    %v7253 = vld [vmem:[%s4073 + $0x53] sm:$0xff]
    %v7254 = vld [vmem:[%s4073 + $0x63] sm:$0xff]
    %v7255 = vld [vmem:[%s4073 + $0x73] sm:$0xff]
    %v7256 = vld [vmem:[%s3587] sm:$0xff]
    %v7257 = vld [vmem:[%s3587 + $0x8] sm:$0xff]
    %v7258 = vld [vmem:[%s3587 + $0x10] sm:$0xff]
    %v7259 = vld [vmem:[%s3587 + $0x18] sm:$0xff]
    %v7260 = vld [vmem:[%s3587 + $0x20] sm:$0xff]
    %v7261 = vld [vmem:[%s3587 + $0x28] sm:$0xff]
    %v7262 = vld [vmem:[%s3587 + $0x30] sm:$0xff]
    %v7263 = vld [vmem:[%s3587 + $0x38] sm:$0xff]
    %v7264 = vld [vmem:[%s3587 + $0x40] sm:$0xff]
    %v7265 = vld [vmem:[%s3587 + $0x48] sm:$0xff]
    %v7266 = vld [vmem:[%s3587 + $0x50] sm:$0xff]
    %v7267 = vld [vmem:[%s3587 + $0x58] sm:$0xff]
    %v7268 = vld [vmem:[%s3587 + $0x60] sm:$0xff]
    %v7269 = vld [vmem:[%s3587 + $0x68] sm:$0xff]
    %v7270 = vld [vmem:[%s3587 + $0x70] sm:$0xff]
    %v7271 = vld [vmem:[%s3587 + $0x78] sm:$0xff]
    %7272 = vmatprep.subr.mxu0 0.0
    %7273 = vmatpush1.msra.mxu0 %v7256
    %7274 = vmatprep.subr.mxu0 0.0
    %7275 = vmatpush1.msra.mxu0 %v7257
    %7276 = vmatprep.subr.mxu0 0.0
    %7277 = vmatpush1.msra.mxu0 %v7258
    %7278 = vmatprep.subr.mxu0 0.0
    %7279 = vmatpush1.msra.mxu0 %v7259
    %7280 = vmatprep.subr.mxu0 0.0
    %7281 = vmatpush1.msra.mxu0 %v7260
    %7282 = vmatprep.subr.mxu0 0.0
    %7283 = vmatpush1.msra.mxu0 %v7261
    %7284 = vmatprep.subr.mxu0 0.0
    %7285 = vmatpush1.msra.mxu0 %v7262
    %7286 = vmatprep.subr.mxu0 0.0
    %7287 = vmatpush1.msra.mxu0 %v7263
    %7288 = vmatprep.subr.mxu0 0.0
    %7289 = vmatpush1.msra.mxu0 %v7264
    %7290 = vmatprep.subr.mxu0 0.0
    %7291 = vmatpush1.msra.mxu0 %v7265
    %7292 = vmatprep.subr.mxu0 0.0
    %7293 = vmatpush1.msra.mxu0 %v7266
    %7294 = vmatprep.subr.mxu0 0.0
    %7295 = vmatpush1.msra.mxu0 %v7267
    %7296 = vmatprep.subr.mxu0 0.0
    %7297 = vmatpush1.msra.mxu0 %v7268
    %7298 = vmatprep.subr.mxu0 0.0
    %7299 = vmatpush1.msra.mxu0 %v7269
    %7300 = vmatprep.subr.mxu0 0.0
    %7301 = vmatpush1.msra.mxu0 %v7270
    %7302 = vmatprep.subr.mxu0 0.0
    %7303 = vmatpush1.msra.mxu0 %v7271
    %7304 = vmatprep.subr.mxu0 0.0
    %7305 = vmatpush1.msra.mxu0 0.0
    %7306 = vmatprep.subr.mxu0 0.0
    %7307 = vmatpush1.msra.mxu0 0.0
    %7308 = vmatprep.subr.mxu0 0.0
    %7309 = vmatpush1.msra.mxu0 0.0
    %7310 = vmatprep.subr.mxu0 0.0
    %7311 = vmatpush1.msra.mxu0 0.0
    %7312 = vmatprep.subr.mxu0 0.0
    %7313 = vmatpush1.msra.mxu0 0.0
    %7314 = vmatprep.subr.mxu0 0.0
    %7315 = vmatpush1.msra.mxu0 0.0
    %7316 = vmatprep.subr.mxu0 0.0
    %7317 = vmatpush1.msra.mxu0 0.0
    %7318 = vmatprep.subr.mxu0 0.0
    %7319 = vmatpush1.msra.mxu0 0.0
    %7320 = vmatprep.subr.mxu0 0.0
    %7321 = vmatpush1.msra.mxu0 0.0
    %7322 = vmatprep.subr.mxu0 0.0
    %7323 = vmatpush1.msra.mxu0 0.0
    %7324 = vmatprep.subr.mxu0 0.0
    %7325 = vmatpush1.msra.mxu0 0.0
    %7326 = vmatprep.subr.mxu0 0.0
    %7327 = vmatpush1.msra.mxu0 0.0
    %7328 = vmatprep.subr.mxu0 0.0
    %7329 = vmatpush1.msra.mxu0 0.0
    %7330 = vmatprep.subr.mxu0 0.0
    %7331 = vmatpush1.msra.mxu0 0.0
    %7332 = vmatprep.subr.mxu0 0.0
    %7333 = vmatpush1.msra.mxu0 0.0
    %7334 = vmatprep.subr.mxu0 0.0
    %7335 = vmatpush1.msra.mxu0 0.0
    %7336 = vmatprep.mubr.f32.mxu0 0.0
    %7337 = vmatmul.mubr.f32.gmra.mrb[0].mxu0 %v7248
    %v7338 = vpop.f32.mrb[0].mxu0
    %v7339 = vadd.f32 0.0, %v7338
    %v7340 = vpop.f32.mrb[0].mxu0
    %7341 = vmatprep.mubr.f32.mxu0 0.0
    %7342 = vmatmul.mubr.f32.gmra.mrb[0].mxu0 %v7249
    %v7343 = vpop.f32.mrb[0].mxu0
    %v7344 = vadd.f32 0.0, %v7343
    %v7345 = vpop.f32.mrb[0].mxu0
    %7346 = vmatprep.mubr.f32.mxu0 0.0
    %7347 = vmatmul.mubr.f32.gmra.mrb[0].mxu0 %v7250
    %v7348 = vpop.f32.mrb[0].mxu0
    %v7349 = vadd.f32 0.0, %v7348
    %v7350 = vpop.f32.mrb[0].mxu0
    %7351 = vmatprep.mubr.f32.mxu0 0.0
    %7352 = vmatmul.mubr.f32.gmra.mrb[0].mxu0 %v7251
    %v7353 = vpop.f32.mrb[0].mxu0
    %v7354 = vadd.f32 0.0, %v7353
    %v7355 = vpop.f32.mrb[0].mxu0
    %7356 = vmatprep.mubr.f32.mxu0 0.0
    %7357 = vmatmul.mubr.f32.gmra.mrb[0].mxu0 %v7252
    %v7358 = vpop.f32.mrb[0].mxu0
    %v7359 = vadd.f32 0.0, %v7358
    %v7360 = vpop.f32.mrb[0].mxu0
    %7361 = vmatprep.mubr.f32.mxu0 0.0
    %7362 = vmatmul.mubr.f32.gmra.mrb[0].mxu0 %v7253
    %v7363 = vpop.f32.mrb[0].mxu0
    %v7364 = vadd.f32 0.0, %v7363
    %v7365 = vpop.f32.mrb[0].mxu0
    %7366 = vmatprep.mubr.f32.mxu0 0.0
    %7367 = vmatmul.mubr.f32.gmra.mrb[0].mxu0 %v7254
    %v7368 = vpop.f32.mrb[0].mxu0
    %v7369 = vadd.f32 0.0, %v7368
    %v7370 = vpop.f32.mrb[0].mxu0
    %7371 = vmatprep.mubr.f32.mxu0 0.0
    %7372 = vmatmul.mubr.f32.gmra.mrb[0].mxu0 %v7255
    %v7373 = vpop.f32.mrb[0].mxu0
    %v7374 = vadd.f32 0.0, %v7373
    %v7375 = vpop.f32.mrb[0].mxu0
    %7376 = vdwg.mxu0
    %v7377 = vadd.f32 %v7240, %v7339
    %v7378 = vadd.f32 %v7241, %v7344
    %v7379 = vadd.f32 %v7242, %v7349
    %v7380 = vadd.f32 %v7243, %v7354
    %v7381 = vadd.f32 %v7244, %v7359
    %v7382 = vadd.f32 %v7245, %v7364
    %v7383 = vadd.f32 %v7246, %v7369
    %v7384 = vadd.f32 %v7247, %v7374
    %v7385 = vld [vmem:[%s4073 + $0x4] sm:$0xff]
    %v7386 = vld [vmem:[%s4073 + $0x14] sm:$0xff]
    %v7387 = vld [vmem:[%s4073 + $0x24] sm:$0xff]
    %v7388 = vld [vmem:[%s4073 + $0x34] sm:$0xff]
    %v7389 = vld [vmem:[%s4073 + $0x44] sm:$0xff]
    %v7390 = vld [vmem:[%s4073 + $0x54] sm:$0xff]
    %v7391 = vld [vmem:[%s4073 + $0x64] sm:$0xff]
    %v7392 = vld [vmem:[%s4073 + $0x74] sm:$0xff]
    %v7393 = vld [vmem:[%s3725] sm:$0xff]
    %v7394 = vld [vmem:[%s3725 + $0x8] sm:$0xff]
    %v7395 = vld [vmem:[%s3725 + $0x10] sm:$0xff]
    %v7396 = vld [vmem:[%s3725 + $0x18] sm:$0xff]
    %v7397 = vld [vmem:[%s3725 + $0x20] sm:$0xff]
    %v7398 = vld [vmem:[%s3725 + $0x28] sm:$0xff]
    %v7399 = vld [vmem:[%s3725 + $0x30] sm:$0xff]
    %v7400 = vld [vmem:[%s3725 + $0x38] sm:$0xff]
    %v7401 = vld [vmem:[%s3725 + $0x40] sm:$0xff]
    %v7402 = vld [vmem:[%s3725 + $0x48] sm:$0xff]
    %v7403 = vld [vmem:[%s3725 + $0x50] sm:$0xff]
    %v7404 = vld [vmem:[%s3725 + $0x58] sm:$0xff]
    %v7405 = vld [vmem:[%s3725 + $0x60] sm:$0xff]
    %v7406 = vld [vmem:[%s3725 + $0x68] sm:$0xff]
    %v7407 = vld [vmem:[%s3725 + $0x70] sm:$0xff]
    %v7408 = vld [vmem:[%s3725 + $0x78] sm:$0xff]
    %7409 = vmatprep.subr.mxu0 0.0
    %7410 = vmatpush1.msra.mxu0 %v7393
    %7411 = vmatprep.subr.mxu0 0.0
    %7412 = vmatpush1.msra.mxu0 %v7394
    %7413 = vmatprep.subr.mxu0 0.0
    %7414 = vmatpush1.msra.mxu0 %v7395
    %7415 = vmatprep.subr.mxu0 0.0
    %7416 = vmatpush1.msra.mxu0 %v7396
    %7417 = vmatprep.subr.mxu0 0.0
    %7418 = vmatpush1.msra.mxu0 %v7397
    %7419 = vmatprep.subr.mxu0 0.0
    %7420 = vmatpush1.msra.mxu0 %v7398
    %7421 = vmatprep.subr.mxu0 0.0
    %7422 = vmatpush1.msra.mxu0 %v7399
    %7423 = vmatprep.subr.mxu0 0.0
    %7424 = vmatpush1.msra.mxu0 %v7400
    %7425 = vmatprep.subr.mxu0 0.0
    %7426 = vmatpush1.msra.mxu0 %v7401
    %7427 = vmatprep.subr.mxu0 0.0
    %7428 = vmatpush1.msra.mxu0 %v7402
    %7429 = vmatprep.subr.mxu0 0.0
    %7430 = vmatpush1.msra.mxu0 %v7403
    %7431 = vmatprep.subr.mxu0 0.0
    %7432 = vmatpush1.msra.mxu0 %v7404
    %7433 = vmatprep.subr.mxu0 0.0
    %7434 = vmatpush1.msra.mxu0 %v7405
    %7435 = vmatprep.subr.mxu0 0.0
    %7436 = vmatpush1.msra.mxu0 %v7406
    %7437 = vmatprep.subr.mxu0 0.0
    %7438 = vmatpush1.msra.mxu0 %v7407
    %7439 = vmatprep.subr.mxu0 0.0
    %7440 = vmatpush1.msra.mxu0 %v7408
    %7441 = vmatprep.subr.mxu0 0.0
    %7442 = vmatpush1.msra.mxu0 0.0
    %7443 = vmatprep.subr.mxu0 0.0
    %7444 = vmatpush1.msra.mxu0 0.0
    %7445 = vmatprep.subr.mxu0 0.0
    %7446 = vmatpush1.msra.mxu0 0.0
    %7447 = vmatprep.subr.mxu0 0.0
    %7448 = vmatpush1.msra.mxu0 0.0
    %7449 = vmatprep.subr.mxu0 0.0
    %7450 = vmatpush1.msra.mxu0 0.0
    %7451 = vmatprep.subr.mxu0 0.0
    %7452 = vmatpush1.msra.mxu0 0.0
    %7453 = vmatprep.subr.mxu0 0.0
    %7454 = vmatpush1.msra.mxu0 0.0
    %7455 = vmatprep.subr.mxu0 0.0
    %7456 = vmatpush1.msra.mxu0 0.0
    %7457 = vmatprep.subr.mxu0 0.0
    %7458 = vmatpush1.msra.mxu0 0.0
    %7459 = vmatprep.subr.mxu0 0.0
    %7460 = vmatpush1.msra.mxu0 0.0
    %7461 = vmatprep.subr.mxu0 0.0
    %7462 = vmatpush1.msra.mxu0 0.0
    %7463 = vmatprep.subr.mxu0 0.0
    %7464 = vmatpush1.msra.mxu0 0.0
    %7465 = vmatprep.subr.mxu0 0.0
    %7466 = vmatpush1.msra.mxu0 0.0
    %7467 = vmatprep.subr.mxu0 0.0
    %7468 = vmatpush1.msra.mxu0 0.0
    %7469 = vmatprep.subr.mxu0 0.0
    %7470 = vmatpush1.msra.mxu0 0.0
    %7471 = vmatprep.subr.mxu0 0.0
    %7472 = vmatpush1.msra.mxu0 0.0
    %7473 = vmatprep.mubr.f32.mxu0 0.0
    %7474 = vmatmul.mubr.f32.gmra.mrb[0].mxu0 %v7385
    %v7475 = vpop.f32.mrb[0].mxu0
    %v7476 = vadd.f32 0.0, %v7475
    %v7477 = vpop.f32.mrb[0].mxu0
    %7478 = vmatprep.mubr.f32.mxu0 0.0
    %7479 = vmatmul.mubr.f32.gmra.mrb[0].mxu0 %v7386
    %v7480 = vpop.f32.mrb[0].mxu0
    %v7481 = vadd.f32 0.0, %v7480
    %v7482 = vpop.f32.mrb[0].mxu0
    %7483 = vmatprep.mubr.f32.mxu0 0.0
    %7484 = vmatmul.mubr.f32.gmra.mrb[0].mxu0 %v7387
    %v7485 = vpop.f32.mrb[0].mxu0
    %v7486 = vadd.f32 0.0, %v7485
    %v7487 = vpop.f32.mrb[0].mxu0
    %7488 = vmatprep.mubr.f32.mxu0 0.0
    %7489 = vmatmul.mubr.f32.gmra.mrb[0].mxu0 %v7388
    %v7490 = vpop.f32.mrb[0].mxu0
    %v7491 = vadd.f32 0.0, %v7490
    %v7492 = vpop.f32.mrb[0].mxu0
    %7493 = vmatprep.mubr.f32.mxu0 0.0
    %7494 = vmatmul.mubr.f32.gmra.mrb[0].mxu0 %v7389
    %v7495 = vpop.f32.mrb[0].mxu0
    %v7496 = vadd.f32 0.0, %v7495
    %v7497 = vpop.f32.mrb[0].mxu0
    %7498 = vmatprep.mubr.f32.mxu0 0.0
    %7499 = vmatmul.mubr.f32.gmra.mrb[0].mxu0 %v7390
    %v7500 = vpop.f32.mrb[0].mxu0
    %v7501 = vadd.f32 0.0, %v7500
    %v7502 = vpop.f32.mrb[0].mxu0
    %7503 = vmatprep.mubr.f32.mxu0 0.0
    %7504 = vmatmul.mubr.f32.gmra.mrb[0].mxu0 %v7391
    %v7505 = vpop.f32.mrb[0].mxu0
    %v7506 = vadd.f32 0.0, %v7505
    %v7507 = vpop.f32.mrb[0].mxu0
    %7508 = vmatprep.mubr.f32.mxu0 0.0
    %7509 = vmatmul.mubr.f32.gmra.mrb[0].mxu0 %v7392
    %v7510 = vpop.f32.mrb[0].mxu0
    %v7511 = vadd.f32 0.0, %v7510
    %v7512 = vpop.f32.mrb[0].mxu0
    %7513 = vdwg.mxu0
    %v7514 = vadd.f32 %v7377, %v7476
    %v7515 = vadd.f32 %v7378, %v7481
    %v7516 = vadd.f32 %v7379, %v7486
    %v7517 = vadd.f32 %v7380, %v7491
    %v7518 = vadd.f32 %v7381, %v7496
    %v7519 = vadd.f32 %v7382, %v7501
    %v7520 = vadd.f32 %v7383, %v7506
    %v7521 = vadd.f32 %v7384, %v7511
    %v7522 = vmax.f32 %v7514, 0.0
    %v7523 = vmax.f32 %v7515, 0.0
    %v7524 = vmax.f32 %v7516, 0.0
    %v7525 = vmax.f32 %v7517, 0.0
    %v7526 = vmax.f32 %v7518, 0.0
    %v7527 = vmax.f32 %v7519, 0.0
    %v7528 = vmax.f32 %v7520, 0.0
    %v7529 = vmax.f32 %v7521, 0.0
    %v7530 = vmax.f32 %v7522, %v7523
    %v7531 = vmax.f32 %v7524, %v7525
    %v7532 = vmax.f32 %v7526, %v7527
    %v7533 = vmax.f32 %v7528, %v7529
    %v7538 = vrot.slane %v7530, 1
    %v7539 = vrot.slane %v7531, 1
    %v7540 = vrot.slane %v7532, 1
    %v7541 = vrot.slane %v7533, 1
    %v7546 = vmax.f32 %v7530, %v7538
    %v7547 = vmax.f32 %v7531, %v7539
    %v7548 = vmax.f32 %v7532, %v7540
    %v7549 = vmax.f32 %v7533, %v7541
    %v7550 = vld [vmem:[#allocation12] sm:$0x1]
    %v7552 = vlaneseq
    %v7553 = vshrl.u32 %v7552, 7
    %v7554 = vsub.s32 0, %v7553
    %v7555 = vrot.slane %v7550, %v7554
    %v7557 = vld [vmem:[#allocation11] sm:$0xff]
    %v7558 = vld [vmem:[#allocation11 + $0x8] sm:$0xff]
    %v7559 = vld [vmem:[#allocation11 + $0x10] sm:$0xff]
    %v7560 = vld [vmem:[#allocation11 + $0x18] sm:$0xff]
    %v7561 = vld [vmem:[#allocation11 + $0x20] sm:$0xff]
    %v7562 = vld [vmem:[#allocation11 + $0x28] sm:$0xff]
    %v7563 = vld [vmem:[#allocation11 + $0x30] sm:$0xff]
    %v7564 = vld [vmem:[#allocation11 + $0x38] sm:$0xff]
    %v7565 = vld [vmem:[#allocation11 + $0x40] sm:$0xff]
    %v7566 = vld [vmem:[#allocation11 + $0x48] sm:$0xff]
    %v7567 = vld [vmem:[#allocation11 + $0x50] sm:$0xff]
    %v7568 = vld [vmem:[#allocation11 + $0x58] sm:$0xff]
    %v7569 = vld [vmem:[#allocation11 + $0x60] sm:$0xff]
    %v7570 = vld [vmem:[#allocation11 + $0x68] sm:$0xff]
    %v7571 = vld [vmem:[#allocation11 + $0x70] sm:$0xff]
    %v7572 = vld [vmem:[#allocation11 + $0x78] sm:$0xff]
    %v7575 = vrot.slane %v7546, 7
    %vm7576 = vcmask 1041409
    %v7577 = vsel %vm7576, %v7575, %v3879
    %7579 = vmatprep.subr.mxu0 0.0
    %7580 = vmatpush1.msra.mxu0 %v7557
    %7581 = vmatprep.subr.mxu0 0.0
    %7582 = vmatpush1.msra.mxu0 %v7558
    %7583 = vmatprep.subr.mxu0 0.0
    %7584 = vmatpush1.msra.mxu0 %v7559
    %7585 = vmatprep.subr.mxu0 0.0
    %7586 = vmatpush1.msra.mxu0 %v7560
    %7587 = vmatprep.subr.mxu0 0.0
    %7588 = vmatpush1.msra.mxu0 %v7561
    %7589 = vmatprep.subr.mxu0 0.0
    %7590 = vmatpush1.msra.mxu0 %v7562
    %7591 = vmatprep.subr.mxu0 0.0
    %7592 = vmatpush1.msra.mxu0 %v7563
    %7593 = vmatprep.subr.mxu0 0.0
    %7594 = vmatpush1.msra.mxu0 %v7564
    %7595 = vmatprep.subr.mxu0 0.0
    %7596 = vmatpush1.msra.mxu0 %v7565
    %7597 = vmatprep.subr.mxu0 0.0
    %7598 = vmatpush1.msra.mxu0 %v7566
    %7599 = vmatprep.subr.mxu0 0.0
    %7600 = vmatpush1.msra.mxu0 %v7567
    %7601 = vmatprep.subr.mxu0 0.0
    %7602 = vmatpush1.msra.mxu0 %v7568
    %7603 = vmatprep.subr.mxu0 0.0
    %7604 = vmatpush1.msra.mxu0 %v7569
    %7605 = vmatprep.subr.mxu0 0.0
    %7606 = vmatpush1.msra.mxu0 %v7570
    %7607 = vmatprep.subr.mxu0 0.0
    %7608 = vmatpush1.msra.mxu0 %v7571
    %7609 = vmatprep.subr.mxu0 0.0
    %7610 = vmatpush1.msra.mxu0 %v7572
    %7611 = vmatprep.subr.mxu0 0.0
    %7612 = vmatpush1.msra.mxu0 0.0
    %7613 = vmatprep.subr.mxu0 0.0
    %7614 = vmatpush1.msra.mxu0 0.0
    %7615 = vmatprep.subr.mxu0 0.0
    %7616 = vmatpush1.msra.mxu0 0.0
    %7617 = vmatprep.subr.mxu0 0.0
    %7618 = vmatpush1.msra.mxu0 0.0
    %7619 = vmatprep.subr.mxu0 0.0
    %7620 = vmatpush1.msra.mxu0 0.0
    %7621 = vmatprep.subr.mxu0 0.0
    %7622 = vmatpush1.msra.mxu0 0.0
    %7623 = vmatprep.subr.mxu0 0.0
    %7624 = vmatpush1.msra.mxu0 0.0
    %7625 = vmatprep.subr.mxu0 0.0
    %7626 = vmatpush1.msra.mxu0 0.0
    %7627 = vmatprep.subr.mxu0 0.0
    %7628 = vmatpush1.msra.mxu0 0.0
    %7629 = vmatprep.subr.mxu0 0.0
    %7630 = vmatpush1.msra.mxu0 0.0
    %7631 = vmatprep.subr.mxu0 0.0
    %7632 = vmatpush1.msra.mxu0 0.0
    %7633 = vmatprep.subr.mxu0 0.0
    %7634 = vmatpush1.msra.mxu0 0.0
    %7635 = vmatprep.subr.mxu0 0.0
    %7636 = vmatpush1.msra.mxu0 0.0
    %7637 = vmatprep.subr.mxu0 0.0
    %7638 = vmatpush1.msra.mxu0 0.0
    %7639 = vmatprep.subr.mxu0 0.0
    %7640 = vmatpush1.msra.mxu0 0.0
    %7641 = vmatprep.subr.mxu0 0.0
    %7642 = vmatpush1.msra.mxu0 0.0
    %7643 = vmatprep.mubr.f32.mxu0 0.0
    %7644 = vmatmul.mubr.f32.gmra.mrb[0].mxu0 %v7577
    %v7645 = vpop.f32.mrb[0].mxu0
    %v7646 = vadd.f32 0.0, %v7645
    %v7647 = vpop.f32.mrb[0].mxu0
    %7648 = vdwg.mxu0
    %v7649 = vadd.f32 %v7555, %v7646
    %s7650 = scalar_lea.vmem [#allocation11], 128
    %v7651 = vld [vmem:[%s7650] sm:$0xff]
    %v7652 = vld [vmem:[%s7650 + $0x8] sm:$0xff]
    %v7653 = vld [vmem:[%s7650 + $0x10] sm:$0xff]
    %v7654 = vld [vmem:[%s7650 + $0x18] sm:$0xff]
    %v7655 = vld [vmem:[%s7650 + $0x20] sm:$0xff]
    %v7656 = vld [vmem:[%s7650 + $0x28] sm:$0xff]
    %v7657 = vld [vmem:[%s7650 + $0x30] sm:$0xff]
    %v7658 = vld [vmem:[%s7650 + $0x38] sm:$0xff]
    %v7659 = vld [vmem:[%s7650 + $0x40] sm:$0xff]
    %v7660 = vld [vmem:[%s7650 + $0x48] sm:$0xff]
    %v7661 = vld [vmem:[%s7650 + $0x50] sm:$0xff]
    %v7662 = vld [vmem:[%s7650 + $0x58] sm:$0xff]
    %v7663 = vld [vmem:[%s7650 + $0x60] sm:$0xff]
    %v7664 = vld [vmem:[%s7650 + $0x68] sm:$0xff]
    %v7665 = vld [vmem:[%s7650 + $0x70] sm:$0xff]
    %v7666 = vld [vmem:[%s7650 + $0x78] sm:$0xff]
    %v7667 = vrot.slane %v3879, 2
    %v7668 = vrot.slane %v7546, 1
    %v7669 = vsel %vm7576, %v7668, %v7667
    %7671 = vmatprep.subr.mxu0 0.0
    %7672 = vmatpush1.msra.mxu0 %v7651
    %7673 = vmatprep.subr.mxu0 0.0
    %7674 = vmatpush1.msra.mxu0 %v7652
    %7675 = vmatprep.subr.mxu0 0.0
    %7676 = vmatpush1.msra.mxu0 %v7653
    %7677 = vmatprep.subr.mxu0 0.0
    %7678 = vmatpush1.msra.mxu0 %v7654
    %7679 = vmatprep.subr.mxu0 0.0
    %7680 = vmatpush1.msra.mxu0 %v7655
    %7681 = vmatprep.subr.mxu0 0.0
    %7682 = vmatpush1.msra.mxu0 %v7656
    %7683 = vmatprep.subr.mxu0 0.0
    %7684 = vmatpush1.msra.mxu0 %v7657
    %7685 = vmatprep.subr.mxu0 0.0
    %7686 = vmatpush1.msra.mxu0 %v7658
    %7687 = vmatprep.subr.mxu0 0.0
    %7688 = vmatpush1.msra.mxu0 %v7659
    %7689 = vmatprep.subr.mxu0 0.0
    %7690 = vmatpush1.msra.mxu0 %v7660
    %7691 = vmatprep.subr.mxu0 0.0
    %7692 = vmatpush1.msra.mxu0 %v7661
    %7693 = vmatprep.subr.mxu0 0.0
    %7694 = vmatpush1.msra.mxu0 %v7662
    %7695 = vmatprep.subr.mxu0 0.0
    %7696 = vmatpush1.msra.mxu0 %v7663
    %7697 = vmatprep.subr.mxu0 0.0
    %7698 = vmatpush1.msra.mxu0 %v7664
    %7699 = vmatprep.subr.mxu0 0.0
    %7700 = vmatpush1.msra.mxu0 %v7665
    %7701 = vmatprep.subr.mxu0 0.0
    %7702 = vmatpush1.msra.mxu0 %v7666
    %7703 = vmatprep.subr.mxu0 0.0
    %7704 = vmatpush1.msra.mxu0 0.0
    %7705 = vmatprep.subr.mxu0 0.0
    %7706 = vmatpush1.msra.mxu0 0.0
    %7707 = vmatprep.subr.mxu0 0.0
    %7708 = vmatpush1.msra.mxu0 0.0
    %7709 = vmatprep.subr.mxu0 0.0
    %7710 = vmatpush1.msra.mxu0 0.0
    %7711 = vmatprep.subr.mxu0 0.0
    %7712 = vmatpush1.msra.mxu0 0.0
    %7713 = vmatprep.subr.mxu0 0.0
    %7714 = vmatpush1.msra.mxu0 0.0
    %7715 = vmatprep.subr.mxu0 0.0
    %7716 = vmatpush1.msra.mxu0 0.0
    %7717 = vmatprep.subr.mxu0 0.0
    %7718 = vmatpush1.msra.mxu0 0.0
    %7719 = vmatprep.subr.mxu0 0.0
    %7720 = vmatpush1.msra.mxu0 0.0
    %7721 = vmatprep.subr.mxu0 0.0
    %7722 = vmatpush1.msra.mxu0 0.0
    %7723 = vmatprep.subr.mxu0 0.0
    %7724 = vmatpush1.msra.mxu0 0.0
    %7725 = vmatprep.subr.mxu0 0.0
    %7726 = vmatpush1.msra.mxu0 0.0
    %7727 = vmatprep.subr.mxu0 0.0
    %7728 = vmatpush1.msra.mxu0 0.0
    %7729 = vmatprep.subr.mxu0 0.0
    %7730 = vmatpush1.msra.mxu0 0.0
    %7731 = vmatprep.subr.mxu0 0.0
    %7732 = vmatpush1.msra.mxu0 0.0
    %7733 = vmatprep.subr.mxu0 0.0
    %7734 = vmatpush1.msra.mxu0 0.0
    %7735 = vmatprep.mubr.f32.mxu0 0.0
    %7736 = vmatmul.mubr.f32.gmra.mrb[0].mxu0 %v7669
    %v7737 = vpop.f32.mrb[0].mxu0
    %v7738 = vadd.f32 0.0, %v7737
    %v7739 = vpop.f32.mrb[0].mxu0
    %7740 = vdwg.mxu0
    %v7741 = vadd.f32 %v7649, %v7738
    %s7742 = scalar_lea.vmem [#allocation11], 256
    %v7743 = vld [vmem:[%s7742] sm:$0xff]
    %v7744 = vld [vmem:[%s7742 + $0x8] sm:$0xff]
    %v7745 = vld [vmem:[%s7742 + $0x10] sm:$0xff]
    %v7746 = vld [vmem:[%s7742 + $0x18] sm:$0xff]
    %v7747 = vld [vmem:[%s7742 + $0x20] sm:$0xff]
    %v7748 = vld [vmem:[%s7742 + $0x28] sm:$0xff]
    %v7749 = vld [vmem:[%s7742 + $0x30] sm:$0xff]
    %v7750 = vld [vmem:[%s7742 + $0x38] sm:$0xff]
    %v7751 = vld [vmem:[%s7742 + $0x40] sm:$0xff]
    %v7752 = vld [vmem:[%s7742 + $0x48] sm:$0xff]
    %v7753 = vld [vmem:[%s7742 + $0x50] sm:$0xff]
    %v7754 = vld [vmem:[%s7742 + $0x58] sm:$0xff]
    %v7755 = vld [vmem:[%s7742 + $0x60] sm:$0xff]
    %v7756 = vld [vmem:[%s7742 + $0x68] sm:$0xff]
    %v7757 = vld [vmem:[%s7742 + $0x70] sm:$0xff]
    %v7758 = vld [vmem:[%s7742 + $0x78] sm:$0xff]
    %v7759 = vrot.slane %v3879, 4
    %v7760 = vrot.slane %v7546, 3
    %v7761 = vsel %vm7576, %v7760, %v7759
    %7763 = vmatprep.subr.mxu0 0.0
    %7764 = vmatpush1.msra.mxu0 %v7743
    %7765 = vmatprep.subr.mxu0 0.0
    %7766 = vmatpush1.msra.mxu0 %v7744
    %7767 = vmatprep.subr.mxu0 0.0
    %7768 = vmatpush1.msra.mxu0 %v7745
    %7769 = vmatprep.subr.mxu0 0.0
    %7770 = vmatpush1.msra.mxu0 %v7746
    %7771 = vmatprep.subr.mxu0 0.0
    %7772 = vmatpush1.msra.mxu0 %v7747
    %7773 = vmatprep.subr.mxu0 0.0
    %7774 = vmatpush1.msra.mxu0 %v7748
    %7775 = vmatprep.subr.mxu0 0.0
    %7776 = vmatpush1.msra.mxu0 %v7749
    %7777 = vmatprep.subr.mxu0 0.0
    %7778 = vmatpush1.msra.mxu0 %v7750
    %7779 = vmatprep.subr.mxu0 0.0
    %7780 = vmatpush1.msra.mxu0 %v7751
    %7781 = vmatprep.subr.mxu0 0.0
    %7782 = vmatpush1.msra.mxu0 %v7752
    %7783 = vmatprep.subr.mxu0 0.0
    %7784 = vmatpush1.msra.mxu0 %v7753
    %7785 = vmatprep.subr.mxu0 0.0
    %7786 = vmatpush1.msra.mxu0 %v7754
    %7787 = vmatprep.subr.mxu0 0.0
    %7788 = vmatpush1.msra.mxu0 %v7755
    %7789 = vmatprep.subr.mxu0 0.0
    %7790 = vmatpush1.msra.mxu0 %v7756
    %7791 = vmatprep.subr.mxu0 0.0
    %7792 = vmatpush1.msra.mxu0 %v7757
    %7793 = vmatprep.subr.mxu0 0.0
    %7794 = vmatpush1.msra.mxu0 %v7758
    %7795 = vmatprep.subr.mxu0 0.0
    %7796 = vmatpush1.msra.mxu0 0.0
    %7797 = vmatprep.subr.mxu0 0.0
    %7798 = vmatpush1.msra.mxu0 0.0
    %7799 = vmatprep.subr.mxu0 0.0
    %7800 = vmatpush1.msra.mxu0 0.0
    %7801 = vmatprep.subr.mxu0 0.0
    %7802 = vmatpush1.msra.mxu0 0.0
    %7803 = vmatprep.subr.mxu0 0.0
    %7804 = vmatpush1.msra.mxu0 0.0
    %7805 = vmatprep.subr.mxu0 0.0
    %7806 = vmatpush1.msra.mxu0 0.0
    %7807 = vmatprep.subr.mxu0 0.0
    %7808 = vmatpush1.msra.mxu0 0.0
    %7809 = vmatprep.subr.mxu0 0.0
    %7810 = vmatpush1.msra.mxu0 0.0
    %7811 = vmatprep.subr.mxu0 0.0
    %7812 = vmatpush1.msra.mxu0 0.0
    %7813 = vmatprep.subr.mxu0 0.0
    %7814 = vmatpush1.msra.mxu0 0.0
    %7815 = vmatprep.subr.mxu0 0.0
    %7816 = vmatpush1.msra.mxu0 0.0
    %7817 = vmatprep.subr.mxu0 0.0
    %7818 = vmatpush1.msra.mxu0 0.0
    %7819 = vmatprep.subr.mxu0 0.0
    %7820 = vmatpush1.msra.mxu0 0.0
    %7821 = vmatprep.subr.mxu0 0.0
    %7822 = vmatpush1.msra.mxu0 0.0
    %7823 = vmatprep.subr.mxu0 0.0
    %7824 = vmatpush1.msra.mxu0 0.0
    %7825 = vmatprep.subr.mxu0 0.0
    %7826 = vmatpush1.msra.mxu0 0.0
    %7827 = vmatprep.mubr.f32.mxu0 0.0
    %7828 = vmatmul.mubr.f32.gmra.mrb[0].mxu0 %v7761
    %v7829 = vpop.f32.mrb[0].mxu0
    %v7830 = vadd.f32 0.0, %v7829
    %v7831 = vpop.f32.mrb[0].mxu0
    %7832 = vdwg.mxu0
    %v7833 = vadd.f32 %v7741, %v7830
    %s7834 = scalar_lea.vmem [#allocation11], 384
    %v7835 = vld [vmem:[%s7834] sm:$0xff]
    %v7836 = vld [vmem:[%s7834 + $0x8] sm:$0xff]
    %v7837 = vld [vmem:[%s7834 + $0x10] sm:$0xff]
    %v7838 = vld [vmem:[%s7834 + $0x18] sm:$0xff]
    %v7839 = vld [vmem:[%s7834 + $0x20] sm:$0xff]
    %v7840 = vld [vmem:[%s7834 + $0x28] sm:$0xff]
    %v7841 = vld [vmem:[%s7834 + $0x30] sm:$0xff]
    %v7842 = vld [vmem:[%s7834 + $0x38] sm:$0xff]
    %v7843 = vld [vmem:[%s7834 + $0x40] sm:$0xff]
    %v7844 = vld [vmem:[%s7834 + $0x48] sm:$0xff]
    %v7845 = vld [vmem:[%s7834 + $0x50] sm:$0xff]
    %v7846 = vld [vmem:[%s7834 + $0x58] sm:$0xff]
    %v7847 = vld [vmem:[%s7834 + $0x60] sm:$0xff]
    %v7848 = vld [vmem:[%s7834 + $0x68] sm:$0xff]
    %v7849 = vld [vmem:[%s7834 + $0x70] sm:$0xff]
    %v7850 = vld [vmem:[%s7834 + $0x78] sm:$0xff]
    %v7851 = vrot.slane %v3879, 6
    %v7852 = vrot.slane %v7546, 5
    %v7853 = vsel %vm7576, %v7852, %v7851
    %7855 = vmatprep.subr.mxu0 0.0
    %7856 = vmatpush1.msra.mxu0 %v7835
    %7857 = vmatprep.subr.mxu0 0.0
    %7858 = vmatpush1.msra.mxu0 %v7836
    %7859 = vmatprep.subr.mxu0 0.0
    %7860 = vmatpush1.msra.mxu0 %v7837
    %7861 = vmatprep.subr.mxu0 0.0
    %7862 = vmatpush1.msra.mxu0 %v7838
    %7863 = vmatprep.subr.mxu0 0.0
    %7864 = vmatpush1.msra.mxu0 %v7839
    %7865 = vmatprep.subr.mxu0 0.0
    %7866 = vmatpush1.msra.mxu0 %v7840
    %7867 = vmatprep.subr.mxu0 0.0
    %7868 = vmatpush1.msra.mxu0 %v7841
    %7869 = vmatprep.subr.mxu0 0.0
    %7870 = vmatpush1.msra.mxu0 %v7842
    %7871 = vmatprep.subr.mxu0 0.0
    %7872 = vmatpush1.msra.mxu0 %v7843
    %7873 = vmatprep.subr.mxu0 0.0
    %7874 = vmatpush1.msra.mxu0 %v7844
    %7875 = vmatprep.subr.mxu0 0.0
    %7876 = vmatpush1.msra.mxu0 %v7845
    %7877 = vmatprep.subr.mxu0 0.0
    %7878 = vmatpush1.msra.mxu0 %v7846
    %7879 = vmatprep.subr.mxu0 0.0
    %7880 = vmatpush1.msra.mxu0 %v7847
    %7881 = vmatprep.subr.mxu0 0.0
    %7882 = vmatpush1.msra.mxu0 %v7848
    %7883 = vmatprep.subr.mxu0 0.0
    %7884 = vmatpush1.msra.mxu0 %v7849
    %7885 = vmatprep.subr.mxu0 0.0
    %7886 = vmatpush1.msra.mxu0 %v7850
    %7887 = vmatprep.subr.mxu0 0.0
    %7888 = vmatpush1.msra.mxu0 0.0
    %7889 = vmatprep.subr.mxu0 0.0
    %7890 = vmatpush1.msra.mxu0 0.0
    %7891 = vmatprep.subr.mxu0 0.0
    %7892 = vmatpush1.msra.mxu0 0.0
    %7893 = vmatprep.subr.mxu0 0.0
    %7894 = vmatpush1.msra.mxu0 0.0
    %7895 = vmatprep.subr.mxu0 0.0
    %7896 = vmatpush1.msra.mxu0 0.0
    %7897 = vmatprep.subr.mxu0 0.0
    %7898 = vmatpush1.msra.mxu0 0.0
    %7899 = vmatprep.subr.mxu0 0.0
    %7900 = vmatpush1.msra.mxu0 0.0
    %7901 = vmatprep.subr.mxu0 0.0
    %7902 = vmatpush1.msra.mxu0 0.0
    %7903 = vmatprep.subr.mxu0 0.0
    %7904 = vmatpush1.msra.mxu0 0.0
    %7905 = vmatprep.subr.mxu0 0.0
    %7906 = vmatpush1.msra.mxu0 0.0
    %7907 = vmatprep.subr.mxu0 0.0
    %7908 = vmatpush1.msra.mxu0 0.0
    %7909 = vmatprep.subr.mxu0 0.0
    %7910 = vmatpush1.msra.mxu0 0.0
    %7911 = vmatprep.subr.mxu0 0.0
    %7912 = vmatpush1.msra.mxu0 0.0
    %7913 = vmatprep.subr.mxu0 0.0
    %7914 = vmatpush1.msra.mxu0 0.0
    %7915 = vmatprep.subr.mxu0 0.0
    %7916 = vmatpush1.msra.mxu0 0.0
    %7917 = vmatprep.subr.mxu0 0.0
    %7918 = vmatpush1.msra.mxu0 0.0
    %7919 = vmatprep.mubr.f32.mxu0 0.0
    %7920 = vmatmul.mubr.f32.gmra.mrb[0].mxu0 %v7853
    %v7921 = vpop.f32.mrb[0].mxu0
    %v7922 = vadd.f32 0.0, %v7921
    %v7923 = vpop.f32.mrb[0].mxu0
    %7924 = vdwg.mxu0
    %v7925 = vadd.f32 %v7833, %v7922
    %s7926 = scalar_lea.vmem [#allocation11], 512
    %v7927 = vld [vmem:[%s7926] sm:$0xff]
    %v7928 = vld [vmem:[%s7926 + $0x8] sm:$0xff]
    %v7929 = vld [vmem:[%s7926 + $0x10] sm:$0xff]
    %v7930 = vld [vmem:[%s7926 + $0x18] sm:$0xff]
    %v7931 = vld [vmem:[%s7926 + $0x20] sm:$0xff]
    %v7932 = vld [vmem:[%s7926 + $0x28] sm:$0xff]
    %v7933 = vld [vmem:[%s7926 + $0x30] sm:$0xff]
    %v7934 = vld [vmem:[%s7926 + $0x38] sm:$0xff]
    %v7935 = vld [vmem:[%s7926 + $0x40] sm:$0xff]
    %v7936 = vld [vmem:[%s7926 + $0x48] sm:$0xff]
    %v7937 = vld [vmem:[%s7926 + $0x50] sm:$0xff]
    %v7938 = vld [vmem:[%s7926 + $0x58] sm:$0xff]
    %v7939 = vld [vmem:[%s7926 + $0x60] sm:$0xff]
    %v7940 = vld [vmem:[%s7926 + $0x68] sm:$0xff]
    %v7941 = vld [vmem:[%s7926 + $0x70] sm:$0xff]
    %v7942 = vld [vmem:[%s7926 + $0x78] sm:$0xff]
    %v7945 = vrot.slane %v7547, 7
    %v7946 = vsel %vm7576, %v7945, %v3880
    %7948 = vmatprep.subr.mxu0 0.0
    %7949 = vmatpush1.msra.mxu0 %v7927
    %7950 = vmatprep.subr.mxu0 0.0
    %7951 = vmatpush1.msra.mxu0 %v7928
    %7952 = vmatprep.subr.mxu0 0.0
    %7953 = vmatpush1.msra.mxu0 %v7929
    %7954 = vmatprep.subr.mxu0 0.0
    %7955 = vmatpush1.msra.mxu0 %v7930
    %7956 = vmatprep.subr.mxu0 0.0
    %7957 = vmatpush1.msra.mxu0 %v7931
    %7958 = vmatprep.subr.mxu0 0.0
    %7959 = vmatpush1.msra.mxu0 %v7932
    %7960 = vmatprep.subr.mxu0 0.0
    %7961 = vmatpush1.msra.mxu0 %v7933
    %7962 = vmatprep.subr.mxu0 0.0
    %7963 = vmatpush1.msra.mxu0 %v7934
    %7964 = vmatprep.subr.mxu0 0.0
    %7965 = vmatpush1.msra.mxu0 %v7935
    %7966 = vmatprep.subr.mxu0 0.0
    %7967 = vmatpush1.msra.mxu0 %v7936
    %7968 = vmatprep.subr.mxu0 0.0
    %7969 = vmatpush1.msra.mxu0 %v7937
    %7970 = vmatprep.subr.mxu0 0.0
    %7971 = vmatpush1.msra.mxu0 %v7938
    %7972 = vmatprep.subr.mxu0 0.0
    %7973 = vmatpush1.msra.mxu0 %v7939
    %7974 = vmatprep.subr.mxu0 0.0
    %7975 = vmatpush1.msra.mxu0 %v7940
    %7976 = vmatprep.subr.mxu0 0.0
    %7977 = vmatpush1.msra.mxu0 %v7941
    %7978 = vmatprep.subr.mxu0 0.0
    %7979 = vmatpush1.msra.mxu0 %v7942
    %7980 = vmatprep.subr.mxu0 0.0
    %7981 = vmatpush1.msra.mxu0 0.0
    %7982 = vmatprep.subr.mxu0 0.0
    %7983 = vmatpush1.msra.mxu0 0.0
    %7984 = vmatprep.subr.mxu0 0.0
    %7985 = vmatpush1.msra.mxu0 0.0
    %7986 = vmatprep.subr.mxu0 0.0
    %7987 = vmatpush1.msra.mxu0 0.0
    %7988 = vmatprep.subr.mxu0 0.0
    %7989 = vmatpush1.msra.mxu0 0.0
    %7990 = vmatprep.subr.mxu0 0.0
    %7991 = vmatpush1.msra.mxu0 0.0
    %7992 = vmatprep.subr.mxu0 0.0
    %7993 = vmatpush1.msra.mxu0 0.0
    %7994 = vmatprep.subr.mxu0 0.0
    %7995 = vmatpush1.msra.mxu0 0.0
    %7996 = vmatprep.subr.mxu0 0.0
    %7997 = vmatpush1.msra.mxu0 0.0
    %7998 = vmatprep.subr.mxu0 0.0
    %7999 = vmatpush1.msra.mxu0 0.0
    %8000 = vmatprep.subr.mxu0 0.0
    %8001 = vmatpush1.msra.mxu0 0.0
    %8002 = vmatprep.subr.mxu0 0.0
    %8003 = vmatpush1.msra.mxu0 0.0
    %8004 = vmatprep.subr.mxu0 0.0
    %8005 = vmatpush1.msra.mxu0 0.0
    %8006 = vmatprep.subr.mxu0 0.0
    %8007 = vmatpush1.msra.mxu0 0.0
    %8008 = vmatprep.subr.mxu0 0.0
    %8009 = vmatpush1.msra.mxu0 0.0
    %8010 = vmatprep.subr.mxu0 0.0
    %8011 = vmatpush1.msra.mxu0 0.0
    %8012 = vmatprep.mubr.f32.mxu0 0.0
    %8013 = vmatmul.mubr.f32.gmra.mrb[0].mxu0 %v7946
    %v8014 = vpop.f32.mrb[0].mxu0
    %v8015 = vadd.f32 0.0, %v8014
    %v8016 = vpop.f32.mrb[0].mxu0
    %8017 = vdwg.mxu0
    %v8018 = vadd.f32 %v7925, %v8015
    %s8019 = scalar_lea.vmem [#allocation11], 640
    %v8020 = vld [vmem:[%s8019] sm:$0xff]
    %v8021 = vld [vmem:[%s8019 + $0x8] sm:$0xff]
    %v8022 = vld [vmem:[%s8019 + $0x10] sm:$0xff]
    %v8023 = vld [vmem:[%s8019 + $0x18] sm:$0xff]
    %v8024 = vld [vmem:[%s8019 + $0x20] sm:$0xff]
    %v8025 = vld [vmem:[%s8019 + $0x28] sm:$0xff]
    %v8026 = vld [vmem:[%s8019 + $0x30] sm:$0xff]
    %v8027 = vld [vmem:[%s8019 + $0x38] sm:$0xff]
    %v8028 = vld [vmem:[%s8019 + $0x40] sm:$0xff]
    %v8029 = vld [vmem:[%s8019 + $0x48] sm:$0xff]
    %v8030 = vld [vmem:[%s8019 + $0x50] sm:$0xff]
    %v8031 = vld [vmem:[%s8019 + $0x58] sm:$0xff]
    %v8032 = vld [vmem:[%s8019 + $0x60] sm:$0xff]
    %v8033 = vld [vmem:[%s8019 + $0x68] sm:$0xff]
    %v8034 = vld [vmem:[%s8019 + $0x70] sm:$0xff]
    %v8035 = vld [vmem:[%s8019 + $0x78] sm:$0xff]
    %v8036 = vrot.slane %v3880, 2
    %v8037 = vrot.slane %v7547, 1
    %v8038 = vsel %vm7576, %v8037, %v8036
    %8040 = vmatprep.subr.mxu0 0.0
    %8041 = vmatpush1.msra.mxu0 %v8020
    %8042 = vmatprep.subr.mxu0 0.0
    %8043 = vmatpush1.msra.mxu0 %v8021
    %8044 = vmatprep.subr.mxu0 0.0
    %8045 = vmatpush1.msra.mxu0 %v8022
    %8046 = vmatprep.subr.mxu0 0.0
    %8047 = vmatpush1.msra.mxu0 %v8023
    %8048 = vmatprep.subr.mxu0 0.0
    %8049 = vmatpush1.msra.mxu0 %v8024
    %8050 = vmatprep.subr.mxu0 0.0
    %8051 = vmatpush1.msra.mxu0 %v8025
    %8052 = vmatprep.subr.mxu0 0.0
    %8053 = vmatpush1.msra.mxu0 %v8026
    %8054 = vmatprep.subr.mxu0 0.0
    %8055 = vmatpush1.msra.mxu0 %v8027
    %8056 = vmatprep.subr.mxu0 0.0
    %8057 = vmatpush1.msra.mxu0 %v8028
    %8058 = vmatprep.subr.mxu0 0.0
    %8059 = vmatpush1.msra.mxu0 %v8029
    %8060 = vmatprep.subr.mxu0 0.0
    %8061 = vmatpush1.msra.mxu0 %v8030
    %8062 = vmatprep.subr.mxu0 0.0
    %8063 = vmatpush1.msra.mxu0 %v8031
    %8064 = vmatprep.subr.mxu0 0.0
    %8065 = vmatpush1.msra.mxu0 %v8032
    %8066 = vmatprep.subr.mxu0 0.0
    %8067 = vmatpush1.msra.mxu0 %v8033
    %8068 = vmatprep.subr.mxu0 0.0
    %8069 = vmatpush1.msra.mxu0 %v8034
    %8070 = vmatprep.subr.mxu0 0.0
    %8071 = vmatpush1.msra.mxu0 %v8035
    %8072 = vmatprep.subr.mxu0 0.0
    %8073 = vmatpush1.msra.mxu0 0.0
    %8074 = vmatprep.subr.mxu0 0.0
    %8075 = vmatpush1.msra.mxu0 0.0
    %8076 = vmatprep.subr.mxu0 0.0
    %8077 = vmatpush1.msra.mxu0 0.0
    %8078 = vmatprep.subr.mxu0 0.0
    %8079 = vmatpush1.msra.mxu0 0.0
    %8080 = vmatprep.subr.mxu0 0.0
    %8081 = vmatpush1.msra.mxu0 0.0
    %8082 = vmatprep.subr.mxu0 0.0
    %8083 = vmatpush1.msra.mxu0 0.0
    %8084 = vmatprep.subr.mxu0 0.0
    %8085 = vmatpush1.msra.mxu0 0.0
    %8086 = vmatprep.subr.mxu0 0.0
    %8087 = vmatpush1.msra.mxu0 0.0
    %8088 = vmatprep.subr.mxu0 0.0
    %8089 = vmatpush1.msra.mxu0 0.0
    %8090 = vmatprep.subr.mxu0 0.0
    %8091 = vmatpush1.msra.mxu0 0.0
    %8092 = vmatprep.subr.mxu0 0.0
    %8093 = vmatpush1.msra.mxu0 0.0
    %8094 = vmatprep.subr.mxu0 0.0
    %8095 = vmatpush1.msra.mxu0 0.0
    %8096 = vmatprep.subr.mxu0 0.0
    %8097 = vmatpush1.msra.mxu0 0.0
    %8098 = vmatprep.subr.mxu0 0.0
    %8099 = vmatpush1.msra.mxu0 0.0
    %8100 = vmatprep.subr.mxu0 0.0
    %8101 = vmatpush1.msra.mxu0 0.0
    %8102 = vmatprep.subr.mxu0 0.0
    %8103 = vmatpush1.msra.mxu0 0.0
    %8104 = vmatprep.mubr.f32.mxu0 0.0
    %8105 = vmatmul.mubr.f32.gmra.mrb[0].mxu0 %v8038
    %v8106 = vpop.f32.mrb[0].mxu0
    %v8107 = vadd.f32 0.0, %v8106
    %v8108 = vpop.f32.mrb[0].mxu0
    %8109 = vdwg.mxu0
    %v8110 = vadd.f32 %v8018, %v8107
    %s8111 = scalar_lea.vmem [#allocation11], 768
    %v8112 = vld [vmem:[%s8111] sm:$0xff]
    %v8113 = vld [vmem:[%s8111 + $0x8] sm:$0xff]
    %v8114 = vld [vmem:[%s8111 + $0x10] sm:$0xff]
    %v8115 = vld [vmem:[%s8111 + $0x18] sm:$0xff]
    %v8116 = vld [vmem:[%s8111 + $0x20] sm:$0xff]
    %v8117 = vld [vmem:[%s8111 + $0x28] sm:$0xff]
    %v8118 = vld [vmem:[%s8111 + $0x30] sm:$0xff]
    %v8119 = vld [vmem:[%s8111 + $0x38] sm:$0xff]
    %v8120 = vld [vmem:[%s8111 + $0x40] sm:$0xff]
    %v8121 = vld [vmem:[%s8111 + $0x48] sm:$0xff]
    %v8122 = vld [vmem:[%s8111 + $0x50] sm:$0xff]
    %v8123 = vld [vmem:[%s8111 + $0x58] sm:$0xff]
    %v8124 = vld [vmem:[%s8111 + $0x60] sm:$0xff]
    %v8125 = vld [vmem:[%s8111 + $0x68] sm:$0xff]
    %v8126 = vld [vmem:[%s8111 + $0x70] sm:$0xff]
    %v8127 = vld [vmem:[%s8111 + $0x78] sm:$0xff]
    %v8128 = vrot.slane %v3880, 4
    %v8129 = vrot.slane %v7547, 3
    %v8130 = vsel %vm7576, %v8129, %v8128
    %8132 = vmatprep.subr.mxu0 0.0
    %8133 = vmatpush1.msra.mxu0 %v8112
    %8134 = vmatprep.subr.mxu0 0.0
    %8135 = vmatpush1.msra.mxu0 %v8113
    %8136 = vmatprep.subr.mxu0 0.0
    %8137 = vmatpush1.msra.mxu0 %v8114
    %8138 = vmatprep.subr.mxu0 0.0
    %8139 = vmatpush1.msra.mxu0 %v8115
    %8140 = vmatprep.subr.mxu0 0.0
    %8141 = vmatpush1.msra.mxu0 %v8116
    %8142 = vmatprep.subr.mxu0 0.0
    %8143 = vmatpush1.msra.mxu0 %v8117
    %8144 = vmatprep.subr.mxu0 0.0
    %8145 = vmatpush1.msra.mxu0 %v8118
    %8146 = vmatprep.subr.mxu0 0.0
    %8147 = vmatpush1.msra.mxu0 %v8119
    %8148 = vmatprep.subr.mxu0 0.0
    %8149 = vmatpush1.msra.mxu0 %v8120
    %8150 = vmatprep.subr.mxu0 0.0
    %8151 = vmatpush1.msra.mxu0 %v8121
    %8152 = vmatprep.subr.mxu0 0.0
    %8153 = vmatpush1.msra.mxu0 %v8122
    %8154 = vmatprep.subr.mxu0 0.0
    %8155 = vmatpush1.msra.mxu0 %v8123
    %8156 = vmatprep.subr.mxu0 0.0
    %8157 = vmatpush1.msra.mxu0 %v8124
    %8158 = vmatprep.subr.mxu0 0.0
    %8159 = vmatpush1.msra.mxu0 %v8125
    %8160 = vmatprep.subr.mxu0 0.0
    %8161 = vmatpush1.msra.mxu0 %v8126
    %8162 = vmatprep.subr.mxu0 0.0
    %8163 = vmatpush1.msra.mxu0 %v8127
    %8164 = vmatprep.subr.mxu0 0.0
    %8165 = vmatpush1.msra.mxu0 0.0
    %8166 = vmatprep.subr.mxu0 0.0
    %8167 = vmatpush1.msra.mxu0 0.0
    %8168 = vmatprep.subr.mxu0 0.0
    %8169 = vmatpush1.msra.mxu0 0.0
    %8170 = vmatprep.subr.mxu0 0.0
    %8171 = vmatpush1.msra.mxu0 0.0
    %8172 = vmatprep.subr.mxu0 0.0
    %8173 = vmatpush1.msra.mxu0 0.0
    %8174 = vmatprep.subr.mxu0 0.0
    %8175 = vmatpush1.msra.mxu0 0.0
    %8176 = vmatprep.subr.mxu0 0.0
    %8177 = vmatpush1.msra.mxu0 0.0
    %8178 = vmatprep.subr.mxu0 0.0
    %8179 = vmatpush1.msra.mxu0 0.0
    %8180 = vmatprep.subr.mxu0 0.0
    %8181 = vmatpush1.msra.mxu0 0.0
    %8182 = vmatprep.subr.mxu0 0.0
    %8183 = vmatpush1.msra.mxu0 0.0
    %8184 = vmatprep.subr.mxu0 0.0
    %8185 = vmatpush1.msra.mxu0 0.0
    %8186 = vmatprep.subr.mxu0 0.0
    %8187 = vmatpush1.msra.mxu0 0.0
    %8188 = vmatprep.subr.mxu0 0.0
    %8189 = vmatpush1.msra.mxu0 0.0
    %8190 = vmatprep.subr.mxu0 0.0
    %8191 = vmatpush1.msra.mxu0 0.0
    %8192 = vmatprep.subr.mxu0 0.0
    %8193 = vmatpush1.msra.mxu0 0.0
    %8194 = vmatprep.subr.mxu0 0.0
    %8195 = vmatpush1.msra.mxu0 0.0
    %8196 = vmatprep.mubr.f32.mxu0 0.0
    %8197 = vmatmul.mubr.f32.gmra.mrb[0].mxu0 %v8130
    %v8198 = vpop.f32.mrb[0].mxu0
    %v8199 = vadd.f32 0.0, %v8198
    %v8200 = vpop.f32.mrb[0].mxu0
    %8201 = vdwg.mxu0
    %v8202 = vadd.f32 %v8110, %v8199
    %s8203 = scalar_lea.vmem [#allocation11], 896
    %v8204 = vld [vmem:[%s8203] sm:$0xff]
    %v8205 = vld [vmem:[%s8203 + $0x8] sm:$0xff]
    %v8206 = vld [vmem:[%s8203 + $0x10] sm:$0xff]
    %v8207 = vld [vmem:[%s8203 + $0x18] sm:$0xff]
    %v8208 = vld [vmem:[%s8203 + $0x20] sm:$0xff]
    %v8209 = vld [vmem:[%s8203 + $0x28] sm:$0xff]
    %v8210 = vld [vmem:[%s8203 + $0x30] sm:$0xff]
    %v8211 = vld [vmem:[%s8203 + $0x38] sm:$0xff]
    %v8212 = vld [vmem:[%s8203 + $0x40] sm:$0xff]
    %v8213 = vld [vmem:[%s8203 + $0x48] sm:$0xff]
    %v8214 = vld [vmem:[%s8203 + $0x50] sm:$0xff]
    %v8215 = vld [vmem:[%s8203 + $0x58] sm:$0xff]
    %v8216 = vld [vmem:[%s8203 + $0x60] sm:$0xff]
    %v8217 = vld [vmem:[%s8203 + $0x68] sm:$0xff]
    %v8218 = vld [vmem:[%s8203 + $0x70] sm:$0xff]
    %v8219 = vld [vmem:[%s8203 + $0x78] sm:$0xff]
    %v8220 = vrot.slane %v3880, 6
    %v8221 = vrot.slane %v7547, 5
    %v8222 = vsel %vm7576, %v8221, %v8220
    %8224 = vmatprep.subr.mxu0 0.0
    %8225 = vmatpush1.msra.mxu0 %v8204
    %8226 = vmatprep.subr.mxu0 0.0
    %8227 = vmatpush1.msra.mxu0 %v8205
    %8228 = vmatprep.subr.mxu0 0.0
    %8229 = vmatpush1.msra.mxu0 %v8206
    %8230 = vmatprep.subr.mxu0 0.0
    %8231 = vmatpush1.msra.mxu0 %v8207
    %8232 = vmatprep.subr.mxu0 0.0
    %8233 = vmatpush1.msra.mxu0 %v8208
    %8234 = vmatprep.subr.mxu0 0.0
    %8235 = vmatpush1.msra.mxu0 %v8209
    %8236 = vmatprep.subr.mxu0 0.0
    %8237 = vmatpush1.msra.mxu0 %v8210
    %8238 = vmatprep.subr.mxu0 0.0
    %8239 = vmatpush1.msra.mxu0 %v8211
    %8240 = vmatprep.subr.mxu0 0.0
    %8241 = vmatpush1.msra.mxu0 %v8212
    %8242 = vmatprep.subr.mxu0 0.0
    %8243 = vmatpush1.msra.mxu0 %v8213
    %8244 = vmatprep.subr.mxu0 0.0
    %8245 = vmatpush1.msra.mxu0 %v8214
    %8246 = vmatprep.subr.mxu0 0.0
    %8247 = vmatpush1.msra.mxu0 %v8215
    %8248 = vmatprep.subr.mxu0 0.0
    %8249 = vmatpush1.msra.mxu0 %v8216
    %8250 = vmatprep.subr.mxu0 0.0
    %8251 = vmatpush1.msra.mxu0 %v8217
    %8252 = vmatprep.subr.mxu0 0.0
    %8253 = vmatpush1.msra.mxu0 %v8218
    %8254 = vmatprep.subr.mxu0 0.0
    %8255 = vmatpush1.msra.mxu0 %v8219
    %8256 = vmatprep.subr.mxu0 0.0
    %8257 = vmatpush1.msra.mxu0 0.0
    %8258 = vmatprep.subr.mxu0 0.0
    %8259 = vmatpush1.msra.mxu0 0.0
    %8260 = vmatprep.subr.mxu0 0.0
    %8261 = vmatpush1.msra.mxu0 0.0
    %8262 = vmatprep.subr.mxu0 0.0
    %8263 = vmatpush1.msra.mxu0 0.0
    %8264 = vmatprep.subr.mxu0 0.0
    %8265 = vmatpush1.msra.mxu0 0.0
    %8266 = vmatprep.subr.mxu0 0.0
    %8267 = vmatpush1.msra.mxu0 0.0
    %8268 = vmatprep.subr.mxu0 0.0
    %8269 = vmatpush1.msra.mxu0 0.0
    %8270 = vmatprep.subr.mxu0 0.0
    %8271 = vmatpush1.msra.mxu0 0.0
    %8272 = vmatprep.subr.mxu0 0.0
    %8273 = vmatpush1.msra.mxu0 0.0
    %8274 = vmatprep.subr.mxu0 0.0
    %8275 = vmatpush1.msra.mxu0 0.0
    %8276 = vmatprep.subr.mxu0 0.0
    %8277 = vmatpush1.msra.mxu0 0.0
    %8278 = vmatprep.subr.mxu0 0.0
    %8279 = vmatpush1.msra.mxu0 0.0
    %8280 = vmatprep.subr.mxu0 0.0
    %8281 = vmatpush1.msra.mxu0 0.0
    %8282 = vmatprep.subr.mxu0 0.0
    %8283 = vmatpush1.msra.mxu0 0.0
    %8284 = vmatprep.subr.mxu0 0.0
    %8285 = vmatpush1.msra.mxu0 0.0
    %8286 = vmatprep.subr.mxu0 0.0
    %8287 = vmatpush1.msra.mxu0 0.0
    %8288 = vmatprep.mubr.f32.mxu0 0.0
    %8289 = vmatmul.mubr.f32.gmra.mrb[0].mxu0 %v8222
    %v8290 = vpop.f32.mrb[0].mxu0
    %v8291 = vadd.f32 0.0, %v8290
    %v8292 = vpop.f32.mrb[0].mxu0
    %8293 = vdwg.mxu0
    %v8294 = vadd.f32 %v8202, %v8291
    %s8295 = scalar_lea.vmem [#allocation11], 1024
    %v8296 = vld [vmem:[%s8295] sm:$0xff]
    %v8297 = vld [vmem:[%s8295 + $0x8] sm:$0xff]
    %v8298 = vld [vmem:[%s8295 + $0x10] sm:$0xff]
    %v8299 = vld [vmem:[%s8295 + $0x18] sm:$0xff]
    %v8300 = vld [vmem:[%s8295 + $0x20] sm:$0xff]
    %v8301 = vld [vmem:[%s8295 + $0x28] sm:$0xff]
    %v8302 = vld [vmem:[%s8295 + $0x30] sm:$0xff]
    %v8303 = vld [vmem:[%s8295 + $0x38] sm:$0xff]
    %v8304 = vld [vmem:[%s8295 + $0x40] sm:$0xff]
    %v8305 = vld [vmem:[%s8295 + $0x48] sm:$0xff]
    %v8306 = vld [vmem:[%s8295 + $0x50] sm:$0xff]
    %v8307 = vld [vmem:[%s8295 + $0x58] sm:$0xff]
    %v8308 = vld [vmem:[%s8295 + $0x60] sm:$0xff]
    %v8309 = vld [vmem:[%s8295 + $0x68] sm:$0xff]
    %v8310 = vld [vmem:[%s8295 + $0x70] sm:$0xff]
    %v8311 = vld [vmem:[%s8295 + $0x78] sm:$0xff]
    %v8314 = vrot.slane %v7548, 7
    %v8315 = vsel %vm7576, %v8314, %v3881
    %8317 = vmatprep.subr.mxu0 0.0
    %8318 = vmatpush1.msra.mxu0 %v8296
    %8319 = vmatprep.subr.mxu0 0.0
    %8320 = vmatpush1.msra.mxu0 %v8297
    %8321 = vmatprep.subr.mxu0 0.0
    %8322 = vmatpush1.msra.mxu0 %v8298
    %8323 = vmatprep.subr.mxu0 0.0
    %8324 = vmatpush1.msra.mxu0 %v8299
    %8325 = vmatprep.subr.mxu0 0.0
    %8326 = vmatpush1.msra.mxu0 %v8300
    %8327 = vmatprep.subr.mxu0 0.0
    %8328 = vmatpush1.msra.mxu0 %v8301
    %8329 = vmatprep.subr.mxu0 0.0
    %8330 = vmatpush1.msra.mxu0 %v8302
    %8331 = vmatprep.subr.mxu0 0.0
    %8332 = vmatpush1.msra.mxu0 %v8303
    %8333 = vmatprep.subr.mxu0 0.0
    %8334 = vmatpush1.msra.mxu0 %v8304
    %8335 = vmatprep.subr.mxu0 0.0
    %8336 = vmatpush1.msra.mxu0 %v8305
    %8337 = vmatprep.subr.mxu0 0.0
    %8338 = vmatpush1.msra.mxu0 %v8306
    %8339 = vmatprep.subr.mxu0 0.0
    %8340 = vmatpush1.msra.mxu0 %v8307
    %8341 = vmatprep.subr.mxu0 0.0
    %8342 = vmatpush1.msra.mxu0 %v8308
    %8343 = vmatprep.subr.mxu0 0.0
    %8344 = vmatpush1.msra.mxu0 %v8309
    %8345 = vmatprep.subr.mxu0 0.0
    %8346 = vmatpush1.msra.mxu0 %v8310
    %8347 = vmatprep.subr.mxu0 0.0
    %8348 = vmatpush1.msra.mxu0 %v8311
    %8349 = vmatprep.subr.mxu0 0.0
    %8350 = vmatpush1.msra.mxu0 0.0
    %8351 = vmatprep.subr.mxu0 0.0
    %8352 = vmatpush1.msra.mxu0 0.0
    %8353 = vmatprep.subr.mxu0 0.0
    %8354 = vmatpush1.msra.mxu0 0.0
    %8355 = vmatprep.subr.mxu0 0.0
    %8356 = vmatpush1.msra.mxu0 0.0
    %8357 = vmatprep.subr.mxu0 0.0
    %8358 = vmatpush1.msra.mxu0 0.0
    %8359 = vmatprep.subr.mxu0 0.0
    %8360 = vmatpush1.msra.mxu0 0.0
    %8361 = vmatprep.subr.mxu0 0.0
    %8362 = vmatpush1.msra.mxu0 0.0
    %8363 = vmatprep.subr.mxu0 0.0
    %8364 = vmatpush1.msra.mxu0 0.0
    %8365 = vmatprep.subr.mxu0 0.0
    %8366 = vmatpush1.msra.mxu0 0.0
    %8367 = vmatprep.subr.mxu0 0.0
    %8368 = vmatpush1.msra.mxu0 0.0
    %8369 = vmatprep.subr.mxu0 0.0
    %8370 = vmatpush1.msra.mxu0 0.0
    %8371 = vmatprep.subr.mxu0 0.0
    %8372 = vmatpush1.msra.mxu0 0.0
    %8373 = vmatprep.subr.mxu0 0.0
    %8374 = vmatpush1.msra.mxu0 0.0
    %8375 = vmatprep.subr.mxu0 0.0
    %8376 = vmatpush1.msra.mxu0 0.0
    %8377 = vmatprep.subr.mxu0 0.0
    %8378 = vmatpush1.msra.mxu0 0.0
    %8379 = vmatprep.subr.mxu0 0.0
    %8380 = vmatpush1.msra.mxu0 0.0
    %8381 = vmatprep.mubr.f32.mxu0 0.0
    %8382 = vmatmul.mubr.f32.gmra.mrb[0].mxu0 %v8315
    %v8383 = vpop.f32.mrb[0].mxu0
    %v8384 = vadd.f32 0.0, %v8383
    %v8385 = vpop.f32.mrb[0].mxu0
    %8386 = vdwg.mxu0
    %v8387 = vadd.f32 %v8294, %v8384
    %s8388 = scalar_lea.vmem [#allocation11], 1152
    %v8389 = vld [vmem:[%s8388] sm:$0xff]
    %v8390 = vld [vmem:[%s8388 + $0x8] sm:$0xff]
    %v8391 = vld [vmem:[%s8388 + $0x10] sm:$0xff]
    %v8392 = vld [vmem:[%s8388 + $0x18] sm:$0xff]
    %v8393 = vld [vmem:[%s8388 + $0x20] sm:$0xff]
    %v8394 = vld [vmem:[%s8388 + $0x28] sm:$0xff]
    %v8395 = vld [vmem:[%s8388 + $0x30] sm:$0xff]
    %v8396 = vld [vmem:[%s8388 + $0x38] sm:$0xff]
    %v8397 = vld [vmem:[%s8388 + $0x40] sm:$0xff]
    %v8398 = vld [vmem:[%s8388 + $0x48] sm:$0xff]
    %v8399 = vld [vmem:[%s8388 + $0x50] sm:$0xff]
    %v8400 = vld [vmem:[%s8388 + $0x58] sm:$0xff]
    %v8401 = vld [vmem:[%s8388 + $0x60] sm:$0xff]
    %v8402 = vld [vmem:[%s8388 + $0x68] sm:$0xff]
    %v8403 = vld [vmem:[%s8388 + $0x70] sm:$0xff]
    %v8404 = vld [vmem:[%s8388 + $0x78] sm:$0xff]
    %v8405 = vrot.slane %v3881, 2
    %v8406 = vrot.slane %v7548, 1
    %v8407 = vsel %vm7576, %v8406, %v8405
    %8409 = vmatprep.subr.mxu0 0.0
    %8410 = vmatpush1.msra.mxu0 %v8389
    %8411 = vmatprep.subr.mxu0 0.0
    %8412 = vmatpush1.msra.mxu0 %v8390
    %8413 = vmatprep.subr.mxu0 0.0
    %8414 = vmatpush1.msra.mxu0 %v8391
    %8415 = vmatprep.subr.mxu0 0.0
    %8416 = vmatpush1.msra.mxu0 %v8392
    %8417 = vmatprep.subr.mxu0 0.0
    %8418 = vmatpush1.msra.mxu0 %v8393
    %8419 = vmatprep.subr.mxu0 0.0
    %8420 = vmatpush1.msra.mxu0 %v8394
    %8421 = vmatprep.subr.mxu0 0.0
    %8422 = vmatpush1.msra.mxu0 %v8395
    %8423 = vmatprep.subr.mxu0 0.0
    %8424 = vmatpush1.msra.mxu0 %v8396
    %8425 = vmatprep.subr.mxu0 0.0
    %8426 = vmatpush1.msra.mxu0 %v8397
    %8427 = vmatprep.subr.mxu0 0.0
    %8428 = vmatpush1.msra.mxu0 %v8398
    %8429 = vmatprep.subr.mxu0 0.0
    %8430 = vmatpush1.msra.mxu0 %v8399
    %8431 = vmatprep.subr.mxu0 0.0
    %8432 = vmatpush1.msra.mxu0 %v8400
    %8433 = vmatprep.subr.mxu0 0.0
    %8434 = vmatpush1.msra.mxu0 %v8401
    %8435 = vmatprep.subr.mxu0 0.0
    %8436 = vmatpush1.msra.mxu0 %v8402
    %8437 = vmatprep.subr.mxu0 0.0
    %8438 = vmatpush1.msra.mxu0 %v8403
    %8439 = vmatprep.subr.mxu0 0.0
    %8440 = vmatpush1.msra.mxu0 %v8404
    %8441 = vmatprep.subr.mxu0 0.0
    %8442 = vmatpush1.msra.mxu0 0.0
    %8443 = vmatprep.subr.mxu0 0.0
    %8444 = vmatpush1.msra.mxu0 0.0
    %8445 = vmatprep.subr.mxu0 0.0
    %8446 = vmatpush1.msra.mxu0 0.0
    %8447 = vmatprep.subr.mxu0 0.0
    %8448 = vmatpush1.msra.mxu0 0.0
    %8449 = vmatprep.subr.mxu0 0.0
    %8450 = vmatpush1.msra.mxu0 0.0
    %8451 = vmatprep.subr.mxu0 0.0
    %8452 = vmatpush1.msra.mxu0 0.0
    %8453 = vmatprep.subr.mxu0 0.0
    %8454 = vmatpush1.msra.mxu0 0.0
    %8455 = vmatprep.subr.mxu0 0.0
    %8456 = vmatpush1.msra.mxu0 0.0
    %8457 = vmatprep.subr.mxu0 0.0
    %8458 = vmatpush1.msra.mxu0 0.0
    %8459 = vmatprep.subr.mxu0 0.0
    %8460 = vmatpush1.msra.mxu0 0.0
    %8461 = vmatprep.subr.mxu0 0.0
    %8462 = vmatpush1.msra.mxu0 0.0
    %8463 = vmatprep.subr.mxu0 0.0
    %8464 = vmatpush1.msra.mxu0 0.0
    %8465 = vmatprep.subr.mxu0 0.0
    %8466 = vmatpush1.msra.mxu0 0.0
    %8467 = vmatprep.subr.mxu0 0.0
    %8468 = vmatpush1.msra.mxu0 0.0
    %8469 = vmatprep.subr.mxu0 0.0
    %8470 = vmatpush1.msra.mxu0 0.0
    %8471 = vmatprep.subr.mxu0 0.0
    %8472 = vmatpush1.msra.mxu0 0.0
    %8473 = vmatprep.mubr.f32.mxu0 0.0
    %8474 = vmatmul.mubr.f32.gmra.mrb[0].mxu0 %v8407
    %v8475 = vpop.f32.mrb[0].mxu0
    %v8476 = vadd.f32 0.0, %v8475
    %v8477 = vpop.f32.mrb[0].mxu0
    %8478 = vdwg.mxu0
    %v8479 = vadd.f32 %v8387, %v8476
    %s8480 = scalar_lea.vmem [#allocation11], 1280
    %v8481 = vld [vmem:[%s8480] sm:$0xff]
    %v8482 = vld [vmem:[%s8480 + $0x8] sm:$0xff]
    %v8483 = vld [vmem:[%s8480 + $0x10] sm:$0xff]
    %v8484 = vld [vmem:[%s8480 + $0x18] sm:$0xff]
    %v8485 = vld [vmem:[%s8480 + $0x20] sm:$0xff]
    %v8486 = vld [vmem:[%s8480 + $0x28] sm:$0xff]
    %v8487 = vld [vmem:[%s8480 + $0x30] sm:$0xff]
    %v8488 = vld [vmem:[%s8480 + $0x38] sm:$0xff]
    %v8489 = vld [vmem:[%s8480 + $0x40] sm:$0xff]
    %v8490 = vld [vmem:[%s8480 + $0x48] sm:$0xff]
    %v8491 = vld [vmem:[%s8480 + $0x50] sm:$0xff]
    %v8492 = vld [vmem:[%s8480 + $0x58] sm:$0xff]
    %v8493 = vld [vmem:[%s8480 + $0x60] sm:$0xff]
    %v8494 = vld [vmem:[%s8480 + $0x68] sm:$0xff]
    %v8495 = vld [vmem:[%s8480 + $0x70] sm:$0xff]
    %v8496 = vld [vmem:[%s8480 + $0x78] sm:$0xff]
    %v8497 = vrot.slane %v3881, 4
    %v8498 = vrot.slane %v7548, 3
    %v8499 = vsel %vm7576, %v8498, %v8497
    %8501 = vmatprep.subr.mxu0 0.0
    %8502 = vmatpush1.msra.mxu0 %v8481
    %8503 = vmatprep.subr.mxu0 0.0
    %8504 = vmatpush1.msra.mxu0 %v8482
    %8505 = vmatprep.subr.mxu0 0.0
    %8506 = vmatpush1.msra.mxu0 %v8483
    %8507 = vmatprep.subr.mxu0 0.0
    %8508 = vmatpush1.msra.mxu0 %v8484
    %8509 = vmatprep.subr.mxu0 0.0
    %8510 = vmatpush1.msra.mxu0 %v8485
    %8511 = vmatprep.subr.mxu0 0.0
    %8512 = vmatpush1.msra.mxu0 %v8486
    %8513 = vmatprep.subr.mxu0 0.0
    %8514 = vmatpush1.msra.mxu0 %v8487
    %8515 = vmatprep.subr.mxu0 0.0
    %8516 = vmatpush1.msra.mxu0 %v8488
    %8517 = vmatprep.subr.mxu0 0.0
    %8518 = vmatpush1.msra.mxu0 %v8489
    %8519 = vmatprep.subr.mxu0 0.0
    %8520 = vmatpush1.msra.mxu0 %v8490
    %8521 = vmatprep.subr.mxu0 0.0
    %8522 = vmatpush1.msra.mxu0 %v8491
    %8523 = vmatprep.subr.mxu0 0.0
    %8524 = vmatpush1.msra.mxu0 %v8492
    %8525 = vmatprep.subr.mxu0 0.0
    %8526 = vmatpush1.msra.mxu0 %v8493
    %8527 = vmatprep.subr.mxu0 0.0
    %8528 = vmatpush1.msra.mxu0 %v8494
    %8529 = vmatprep.subr.mxu0 0.0
    %8530 = vmatpush1.msra.mxu0 %v8495
    %8531 = vmatprep.subr.mxu0 0.0
    %8532 = vmatpush1.msra.mxu0 %v8496
    %8533 = vmatprep.subr.mxu0 0.0
    %8534 = vmatpush1.msra.mxu0 0.0
    %8535 = vmatprep.subr.mxu0 0.0
    %8536 = vmatpush1.msra.mxu0 0.0
    %8537 = vmatprep.subr.mxu0 0.0
    %8538 = vmatpush1.msra.mxu0 0.0
    %8539 = vmatprep.subr.mxu0 0.0
    %8540 = vmatpush1.msra.mxu0 0.0
    %8541 = vmatprep.subr.mxu0 0.0
    %8542 = vmatpush1.msra.mxu0 0.0
    %8543 = vmatprep.subr.mxu0 0.0
    %8544 = vmatpush1.msra.mxu0 0.0
    %8545 = vmatprep.subr.mxu0 0.0
    %8546 = vmatpush1.msra.mxu0 0.0
    %8547 = vmatprep.subr.mxu0 0.0
    %8548 = vmatpush1.msra.mxu0 0.0
    %8549 = vmatprep.subr.mxu0 0.0
    %8550 = vmatpush1.msra.mxu0 0.0
    %8551 = vmatprep.subr.mxu0 0.0
    %8552 = vmatpush1.msra.mxu0 0.0
    %8553 = vmatprep.subr.mxu0 0.0
    %8554 = vmatpush1.msra.mxu0 0.0
    %8555 = vmatprep.subr.mxu0 0.0
    %8556 = vmatpush1.msra.mxu0 0.0
    %8557 = vmatprep.subr.mxu0 0.0
    %8558 = vmatpush1.msra.mxu0 0.0
    %8559 = vmatprep.subr.mxu0 0.0
    %8560 = vmatpush1.msra.mxu0 0.0
    %8561 = vmatprep.subr.mxu0 0.0
    %8562 = vmatpush1.msra.mxu0 0.0
    %8563 = vmatprep.subr.mxu0 0.0
    %8564 = vmatpush1.msra.mxu0 0.0
    %8565 = vmatprep.mubr.f32.mxu0 0.0
    %8566 = vmatmul.mubr.f32.gmra.mrb[0].mxu0 %v8499
    %v8567 = vpop.f32.mrb[0].mxu0
    %v8568 = vadd.f32 0.0, %v8567
    %v8569 = vpop.f32.mrb[0].mxu0
    %8570 = vdwg.mxu0
    %v8571 = vadd.f32 %v8479, %v8568
    %s8572 = scalar_lea.vmem [#allocation11], 1408
    %v8573 = vld [vmem:[%s8572] sm:$0xff]
    %v8574 = vld [vmem:[%s8572 + $0x8] sm:$0xff]
    %v8575 = vld [vmem:[%s8572 + $0x10] sm:$0xff]
    %v8576 = vld [vmem:[%s8572 + $0x18] sm:$0xff]
    %v8577 = vld [vmem:[%s8572 + $0x20] sm:$0xff]
    %v8578 = vld [vmem:[%s8572 + $0x28] sm:$0xff]
    %v8579 = vld [vmem:[%s8572 + $0x30] sm:$0xff]
    %v8580 = vld [vmem:[%s8572 + $0x38] sm:$0xff]
    %v8581 = vld [vmem:[%s8572 + $0x40] sm:$0xff]
    %v8582 = vld [vmem:[%s8572 + $0x48] sm:$0xff]
    %v8583 = vld [vmem:[%s8572 + $0x50] sm:$0xff]
    %v8584 = vld [vmem:[%s8572 + $0x58] sm:$0xff]
    %v8585 = vld [vmem:[%s8572 + $0x60] sm:$0xff]
    %v8586 = vld [vmem:[%s8572 + $0x68] sm:$0xff]
    %v8587 = vld [vmem:[%s8572 + $0x70] sm:$0xff]
    %v8588 = vld [vmem:[%s8572 + $0x78] sm:$0xff]
    %v8589 = vrot.slane %v3881, 6
    %v8590 = vrot.slane %v7548, 5
    %v8591 = vsel %vm7576, %v8590, %v8589
    %8593 = vmatprep.subr.mxu0 0.0
    %8594 = vmatpush1.msra.mxu0 %v8573
    %8595 = vmatprep.subr.mxu0 0.0
    %8596 = vmatpush1.msra.mxu0 %v8574
    %8597 = vmatprep.subr.mxu0 0.0
    %8598 = vmatpush1.msra.mxu0 %v8575
    %8599 = vmatprep.subr.mxu0 0.0
    %8600 = vmatpush1.msra.mxu0 %v8576
    %8601 = vmatprep.subr.mxu0 0.0
    %8602 = vmatpush1.msra.mxu0 %v8577
    %8603 = vmatprep.subr.mxu0 0.0
    %8604 = vmatpush1.msra.mxu0 %v8578
    %8605 = vmatprep.subr.mxu0 0.0
    %8606 = vmatpush1.msra.mxu0 %v8579
    %8607 = vmatprep.subr.mxu0 0.0
    %8608 = vmatpush1.msra.mxu0 %v8580
    %8609 = vmatprep.subr.mxu0 0.0
    %8610 = vmatpush1.msra.mxu0 %v8581
    %8611 = vmatprep.subr.mxu0 0.0
    %8612 = vmatpush1.msra.mxu0 %v8582
    %8613 = vmatprep.subr.mxu0 0.0
    %8614 = vmatpush1.msra.mxu0 %v8583
    %8615 = vmatprep.subr.mxu0 0.0
    %8616 = vmatpush1.msra.mxu0 %v8584
    %8617 = vmatprep.subr.mxu0 0.0
    %8618 = vmatpush1.msra.mxu0 %v8585
    %8619 = vmatprep.subr.mxu0 0.0
    %8620 = vmatpush1.msra.mxu0 %v8586
    %8621 = vmatprep.subr.mxu0 0.0
    %8622 = vmatpush1.msra.mxu0 %v8587
    %8623 = vmatprep.subr.mxu0 0.0
    %8624 = vmatpush1.msra.mxu0 %v8588
    %8625 = vmatprep.subr.mxu0 0.0
    %8626 = vmatpush1.msra.mxu0 0.0
    %8627 = vmatprep.subr.mxu0 0.0
    %8628 = vmatpush1.msra.mxu0 0.0
    %8629 = vmatprep.subr.mxu0 0.0
    %8630 = vmatpush1.msra.mxu0 0.0
    %8631 = vmatprep.subr.mxu0 0.0
    %8632 = vmatpush1.msra.mxu0 0.0
    %8633 = vmatprep.subr.mxu0 0.0
    %8634 = vmatpush1.msra.mxu0 0.0
    %8635 = vmatprep.subr.mxu0 0.0
    %8636 = vmatpush1.msra.mxu0 0.0
    %8637 = vmatprep.subr.mxu0 0.0
    %8638 = vmatpush1.msra.mxu0 0.0
    %8639 = vmatprep.subr.mxu0 0.0
    %8640 = vmatpush1.msra.mxu0 0.0
    %8641 = vmatprep.subr.mxu0 0.0
    %8642 = vmatpush1.msra.mxu0 0.0
    %8643 = vmatprep.subr.mxu0 0.0
    %8644 = vmatpush1.msra.mxu0 0.0
    %8645 = vmatprep.subr.mxu0 0.0
    %8646 = vmatpush1.msra.mxu0 0.0
    %8647 = vmatprep.subr.mxu0 0.0
    %8648 = vmatpush1.msra.mxu0 0.0
    %8649 = vmatprep.subr.mxu0 0.0
    %8650 = vmatpush1.msra.mxu0 0.0
    %8651 = vmatprep.subr.mxu0 0.0
    %8652 = vmatpush1.msra.mxu0 0.0
    %8653 = vmatprep.subr.mxu0 0.0
    %8654 = vmatpush1.msra.mxu0 0.0
    %8655 = vmatprep.subr.mxu0 0.0
    %8656 = vmatpush1.msra.mxu0 0.0
    %8657 = vmatprep.mubr.f32.mxu0 0.0
    %8658 = vmatmul.mubr.f32.gmra.mrb[0].mxu0 %v8591
    %v8659 = vpop.f32.mrb[0].mxu0
    %v8660 = vadd.f32 0.0, %v8659
    %v8661 = vpop.f32.mrb[0].mxu0
    %8662 = vdwg.mxu0
    %v8663 = vadd.f32 %v8571, %v8660
    %s8664 = scalar_lea.vmem [#allocation11], 1536
    %v8665 = vld [vmem:[%s8664] sm:$0xff]
    %v8666 = vld [vmem:[%s8664 + $0x8] sm:$0xff]
    %v8667 = vld [vmem:[%s8664 + $0x10] sm:$0xff]
    %v8668 = vld [vmem:[%s8664 + $0x18] sm:$0xff]
    %v8669 = vld [vmem:[%s8664 + $0x20] sm:$0xff]
    %v8670 = vld [vmem:[%s8664 + $0x28] sm:$0xff]
    %v8671 = vld [vmem:[%s8664 + $0x30] sm:$0xff]
    %v8672 = vld [vmem:[%s8664 + $0x38] sm:$0xff]
    %v8673 = vld [vmem:[%s8664 + $0x40] sm:$0xff]
    %v8674 = vld [vmem:[%s8664 + $0x48] sm:$0xff]
    %v8675 = vld [vmem:[%s8664 + $0x50] sm:$0xff]
    %v8676 = vld [vmem:[%s8664 + $0x58] sm:$0xff]
    %v8677 = vld [vmem:[%s8664 + $0x60] sm:$0xff]
    %v8678 = vld [vmem:[%s8664 + $0x68] sm:$0xff]
    %v8679 = vld [vmem:[%s8664 + $0x70] sm:$0xff]
    %v8680 = vld [vmem:[%s8664 + $0x78] sm:$0xff]
    %v8683 = vrot.slane %v7549, 7
    %v8684 = vsel %vm7576, %v8683, %v3882
    %8686 = vmatprep.subr.mxu0 0.0
    %8687 = vmatpush1.msra.mxu0 %v8665
    %8688 = vmatprep.subr.mxu0 0.0
    %8689 = vmatpush1.msra.mxu0 %v8666
    %8690 = vmatprep.subr.mxu0 0.0
    %8691 = vmatpush1.msra.mxu0 %v8667
    %8692 = vmatprep.subr.mxu0 0.0
    %8693 = vmatpush1.msra.mxu0 %v8668
    %8694 = vmatprep.subr.mxu0 0.0
    %8695 = vmatpush1.msra.mxu0 %v8669
    %8696 = vmatprep.subr.mxu0 0.0
    %8697 = vmatpush1.msra.mxu0 %v8670
    %8698 = vmatprep.subr.mxu0 0.0
    %8699 = vmatpush1.msra.mxu0 %v8671
    %8700 = vmatprep.subr.mxu0 0.0
    %8701 = vmatpush1.msra.mxu0 %v8672
    %8702 = vmatprep.subr.mxu0 0.0
    %8703 = vmatpush1.msra.mxu0 %v8673
    %8704 = vmatprep.subr.mxu0 0.0
    %8705 = vmatpush1.msra.mxu0 %v8674
    %8706 = vmatprep.subr.mxu0 0.0
    %8707 = vmatpush1.msra.mxu0 %v8675
    %8708 = vmatprep.subr.mxu0 0.0
    %8709 = vmatpush1.msra.mxu0 %v8676
    %8710 = vmatprep.subr.mxu0 0.0
    %8711 = vmatpush1.msra.mxu0 %v8677
    %8712 = vmatprep.subr.mxu0 0.0
    %8713 = vmatpush1.msra.mxu0 %v8678
    %8714 = vmatprep.subr.mxu0 0.0
    %8715 = vmatpush1.msra.mxu0 %v8679
    %8716 = vmatprep.subr.mxu0 0.0
    %8717 = vmatpush1.msra.mxu0 %v8680
    %8718 = vmatprep.subr.mxu0 0.0
    %8719 = vmatpush1.msra.mxu0 0.0
    %8720 = vmatprep.subr.mxu0 0.0
    %8721 = vmatpush1.msra.mxu0 0.0
    %8722 = vmatprep.subr.mxu0 0.0
    %8723 = vmatpush1.msra.mxu0 0.0
    %8724 = vmatprep.subr.mxu0 0.0
    %8725 = vmatpush1.msra.mxu0 0.0
    %8726 = vmatprep.subr.mxu0 0.0
    %8727 = vmatpush1.msra.mxu0 0.0
    %8728 = vmatprep.subr.mxu0 0.0
    %8729 = vmatpush1.msra.mxu0 0.0
    %8730 = vmatprep.subr.mxu0 0.0
    %8731 = vmatpush1.msra.mxu0 0.0
    %8732 = vmatprep.subr.mxu0 0.0
    %8733 = vmatpush1.msra.mxu0 0.0
    %8734 = vmatprep.subr.mxu0 0.0
    %8735 = vmatpush1.msra.mxu0 0.0
    %8736 = vmatprep.subr.mxu0 0.0
    %8737 = vmatpush1.msra.mxu0 0.0
    %8738 = vmatprep.subr.mxu0 0.0
    %8739 = vmatpush1.msra.mxu0 0.0
    %8740 = vmatprep.subr.mxu0 0.0
    %8741 = vmatpush1.msra.mxu0 0.0
    %8742 = vmatprep.subr.mxu0 0.0
    %8743 = vmatpush1.msra.mxu0 0.0
    %8744 = vmatprep.subr.mxu0 0.0
    %8745 = vmatpush1.msra.mxu0 0.0
    %8746 = vmatprep.subr.mxu0 0.0
    %8747 = vmatpush1.msra.mxu0 0.0
    %8748 = vmatprep.subr.mxu0 0.0
    %8749 = vmatpush1.msra.mxu0 0.0
    %8750 = vmatprep.mubr.f32.mxu0 0.0
    %8751 = vmatmul.mubr.f32.gmra.mrb[0].mxu0 %v8684
    %v8752 = vpop.f32.mrb[0].mxu0
    %v8753 = vadd.f32 0.0, %v8752
    %v8754 = vpop.f32.mrb[0].mxu0
    %8755 = vdwg.mxu0
    %v8756 = vadd.f32 %v8663, %v8753
    %s8757 = scalar_lea.vmem [#allocation11], 1664
    %v8758 = vld [vmem:[%s8757] sm:$0xff]
    %v8759 = vld [vmem:[%s8757 + $0x8] sm:$0xff]
    %v8760 = vld [vmem:[%s8757 + $0x10] sm:$0xff]
    %v8761 = vld [vmem:[%s8757 + $0x18] sm:$0xff]
    %v8762 = vld [vmem:[%s8757 + $0x20] sm:$0xff]
    %v8763 = vld [vmem:[%s8757 + $0x28] sm:$0xff]
    %v8764 = vld [vmem:[%s8757 + $0x30] sm:$0xff]
    %v8765 = vld [vmem:[%s8757 + $0x38] sm:$0xff]
    %v8766 = vld [vmem:[%s8757 + $0x40] sm:$0xff]
    %v8767 = vld [vmem:[%s8757 + $0x48] sm:$0xff]
    %v8768 = vld [vmem:[%s8757 + $0x50] sm:$0xff]
    %v8769 = vld [vmem:[%s8757 + $0x58] sm:$0xff]
    %v8770 = vld [vmem:[%s8757 + $0x60] sm:$0xff]
    %v8771 = vld [vmem:[%s8757 + $0x68] sm:$0xff]
    %v8772 = vld [vmem:[%s8757 + $0x70] sm:$0xff]
    %v8773 = vld [vmem:[%s8757 + $0x78] sm:$0xff]
    %v8774 = vrot.slane %v3882, 2
    %v8775 = vrot.slane %v7549, 1
    %v8776 = vsel %vm7576, %v8775, %v8774
    %8778 = vmatprep.subr.mxu0 0.0
    %8779 = vmatpush1.msra.mxu0 %v8758
    %8780 = vmatprep.subr.mxu0 0.0
    %8781 = vmatpush1.msra.mxu0 %v8759
    %8782 = vmatprep.subr.mxu0 0.0
    %8783 = vmatpush1.msra.mxu0 %v8760
    %8784 = vmatprep.subr.mxu0 0.0
    %8785 = vmatpush1.msra.mxu0 %v8761
    %8786 = vmatprep.subr.mxu0 0.0
    %8787 = vmatpush1.msra.mxu0 %v8762
    %8788 = vmatprep.subr.mxu0 0.0
    %8789 = vmatpush1.msra.mxu0 %v8763
    %8790 = vmatprep.subr.mxu0 0.0
    %8791 = vmatpush1.msra.mxu0 %v8764
    %8792 = vmatprep.subr.mxu0 0.0
    %8793 = vmatpush1.msra.mxu0 %v8765
    %8794 = vmatprep.subr.mxu0 0.0
    %8795 = vmatpush1.msra.mxu0 %v8766
    %8796 = vmatprep.subr.mxu0 0.0
    %8797 = vmatpush1.msra.mxu0 %v8767
    %8798 = vmatprep.subr.mxu0 0.0
    %8799 = vmatpush1.msra.mxu0 %v8768
    %8800 = vmatprep.subr.mxu0 0.0
    %8801 = vmatpush1.msra.mxu0 %v8769
    %8802 = vmatprep.subr.mxu0 0.0
    %8803 = vmatpush1.msra.mxu0 %v8770
    %8804 = vmatprep.subr.mxu0 0.0
    %8805 = vmatpush1.msra.mxu0 %v8771
    %8806 = vmatprep.subr.mxu0 0.0
    %8807 = vmatpush1.msra.mxu0 %v8772
    %8808 = vmatprep.subr.mxu0 0.0
    %8809 = vmatpush1.msra.mxu0 %v8773
    %8810 = vmatprep.subr.mxu0 0.0
    %8811 = vmatpush1.msra.mxu0 0.0
    %8812 = vmatprep.subr.mxu0 0.0
    %8813 = vmatpush1.msra.mxu0 0.0
    %8814 = vmatprep.subr.mxu0 0.0
    %8815 = vmatpush1.msra.mxu0 0.0
    %8816 = vmatprep.subr.mxu0 0.0
    %8817 = vmatpush1.msra.mxu0 0.0
    %8818 = vmatprep.subr.mxu0 0.0
    %8819 = vmatpush1.msra.mxu0 0.0
    %8820 = vmatprep.subr.mxu0 0.0
    %8821 = vmatpush1.msra.mxu0 0.0
    %8822 = vmatprep.subr.mxu0 0.0
    %8823 = vmatpush1.msra.mxu0 0.0
    %8824 = vmatprep.subr.mxu0 0.0
    %8825 = vmatpush1.msra.mxu0 0.0
    %8826 = vmatprep.subr.mxu0 0.0
    %8827 = vmatpush1.msra.mxu0 0.0
    %8828 = vmatprep.subr.mxu0 0.0
    %8829 = vmatpush1.msra.mxu0 0.0
    %8830 = vmatprep.subr.mxu0 0.0
    %8831 = vmatpush1.msra.mxu0 0.0
    %8832 = vmatprep.subr.mxu0 0.0
    %8833 = vmatpush1.msra.mxu0 0.0
    %8834 = vmatprep.subr.mxu0 0.0
    %8835 = vmatpush1.msra.mxu0 0.0
    %8836 = vmatprep.subr.mxu0 0.0
    %8837 = vmatpush1.msra.mxu0 0.0
    %8838 = vmatprep.subr.mxu0 0.0
    %8839 = vmatpush1.msra.mxu0 0.0
    %8840 = vmatprep.subr.mxu0 0.0
    %8841 = vmatpush1.msra.mxu0 0.0
    %8842 = vmatprep.mubr.f32.mxu0 0.0
    %8843 = vmatmul.mubr.f32.gmra.mrb[0].mxu0 %v8776
    %v8844 = vpop.f32.mrb[0].mxu0
    %v8845 = vadd.f32 0.0, %v8844
    %v8846 = vpop.f32.mrb[0].mxu0
    %8847 = vdwg.mxu0
    %v8848 = vadd.f32 %v8756, %v8845
    %s8849 = scalar_lea.vmem [#allocation11], 1792
    %v8850 = vld [vmem:[%s8849] sm:$0xff]
    %v8851 = vld [vmem:[%s8849 + $0x8] sm:$0xff]
    %v8852 = vld [vmem:[%s8849 + $0x10] sm:$0xff]
    %v8853 = vld [vmem:[%s8849 + $0x18] sm:$0xff]
    %v8854 = vld [vmem:[%s8849 + $0x20] sm:$0xff]
    %v8855 = vld [vmem:[%s8849 + $0x28] sm:$0xff]
    %v8856 = vld [vmem:[%s8849 + $0x30] sm:$0xff]
    %v8857 = vld [vmem:[%s8849 + $0x38] sm:$0xff]
    %v8858 = vld [vmem:[%s8849 + $0x40] sm:$0xff]
    %v8859 = vld [vmem:[%s8849 + $0x48] sm:$0xff]
    %v8860 = vld [vmem:[%s8849 + $0x50] sm:$0xff]
    %v8861 = vld [vmem:[%s8849 + $0x58] sm:$0xff]
    %v8862 = vld [vmem:[%s8849 + $0x60] sm:$0xff]
    %v8863 = vld [vmem:[%s8849 + $0x68] sm:$0xff]
    %v8864 = vld [vmem:[%s8849 + $0x70] sm:$0xff]
    %v8865 = vld [vmem:[%s8849 + $0x78] sm:$0xff]
    %v8866 = vrot.slane %v3882, 4
    %v8867 = vrot.slane %v7549, 3
    %v8868 = vsel %vm7576, %v8867, %v8866
    %8870 = vmatprep.subr.mxu0 0.0
    %8871 = vmatpush1.msra.mxu0 %v8850
    %8872 = vmatprep.subr.mxu0 0.0
    %8873 = vmatpush1.msra.mxu0 %v8851
    %8874 = vmatprep.subr.mxu0 0.0
    %8875 = vmatpush1.msra.mxu0 %v8852
    %8876 = vmatprep.subr.mxu0 0.0
    %8877 = vmatpush1.msra.mxu0 %v8853
    %8878 = vmatprep.subr.mxu0 0.0
    %8879 = vmatpush1.msra.mxu0 %v8854
    %8880 = vmatprep.subr.mxu0 0.0
    %8881 = vmatpush1.msra.mxu0 %v8855
    %8882 = vmatprep.subr.mxu0 0.0
    %8883 = vmatpush1.msra.mxu0 %v8856
    %8884 = vmatprep.subr.mxu0 0.0
    %8885 = vmatpush1.msra.mxu0 %v8857
    %8886 = vmatprep.subr.mxu0 0.0
    %8887 = vmatpush1.msra.mxu0 %v8858
    %8888 = vmatprep.subr.mxu0 0.0
    %8889 = vmatpush1.msra.mxu0 %v8859
    %8890 = vmatprep.subr.mxu0 0.0
    %8891 = vmatpush1.msra.mxu0 %v8860
    %8892 = vmatprep.subr.mxu0 0.0
    %8893 = vmatpush1.msra.mxu0 %v8861
    %8894 = vmatprep.subr.mxu0 0.0
    %8895 = vmatpush1.msra.mxu0 %v8862
    %8896 = vmatprep.subr.mxu0 0.0
    %8897 = vmatpush1.msra.mxu0 %v8863
    %8898 = vmatprep.subr.mxu0 0.0
    %8899 = vmatpush1.msra.mxu0 %v8864
    %8900 = vmatprep.subr.mxu0 0.0
    %8901 = vmatpush1.msra.mxu0 %v8865
    %8902 = vmatprep.subr.mxu0 0.0
    %8903 = vmatpush1.msra.mxu0 0.0
    %8904 = vmatprep.subr.mxu0 0.0
    %8905 = vmatpush1.msra.mxu0 0.0
    %8906 = vmatprep.subr.mxu0 0.0
    %8907 = vmatpush1.msra.mxu0 0.0
    %8908 = vmatprep.subr.mxu0 0.0
    %8909 = vmatpush1.msra.mxu0 0.0
    %8910 = vmatprep.subr.mxu0 0.0
    %8911 = vmatpush1.msra.mxu0 0.0
    %8912 = vmatprep.subr.mxu0 0.0
    %8913 = vmatpush1.msra.mxu0 0.0
    %8914 = vmatprep.subr.mxu0 0.0
    %8915 = vmatpush1.msra.mxu0 0.0
    %8916 = vmatprep.subr.mxu0 0.0
    %8917 = vmatpush1.msra.mxu0 0.0
    %8918 = vmatprep.subr.mxu0 0.0
    %8919 = vmatpush1.msra.mxu0 0.0
    %8920 = vmatprep.subr.mxu0 0.0
    %8921 = vmatpush1.msra.mxu0 0.0
    %8922 = vmatprep.subr.mxu0 0.0
    %8923 = vmatpush1.msra.mxu0 0.0
    %8924 = vmatprep.subr.mxu0 0.0
    %8925 = vmatpush1.msra.mxu0 0.0
    %8926 = vmatprep.subr.mxu0 0.0
    %8927 = vmatpush1.msra.mxu0 0.0
    %8928 = vmatprep.subr.mxu0 0.0
    %8929 = vmatpush1.msra.mxu0 0.0
    %8930 = vmatprep.subr.mxu0 0.0
    %8931 = vmatpush1.msra.mxu0 0.0
    %8932 = vmatprep.subr.mxu0 0.0
    %8933 = vmatpush1.msra.mxu0 0.0
    %8934 = vmatprep.mubr.f32.mxu0 0.0
    %8935 = vmatmul.mubr.f32.gmra.mrb[0].mxu0 %v8868
    %v8936 = vpop.f32.mrb[0].mxu0
    %v8937 = vadd.f32 0.0, %v8936
    %v8938 = vpop.f32.mrb[0].mxu0
    %8939 = vdwg.mxu0
    %v8940 = vadd.f32 %v8848, %v8937
    %s8941 = scalar_lea.vmem [#allocation11], 1920
    %v8942 = vld [vmem:[%s8941] sm:$0xff]
    %v8943 = vld [vmem:[%s8941 + $0x8] sm:$0xff]
    %v8944 = vld [vmem:[%s8941 + $0x10] sm:$0xff]
    %v8945 = vld [vmem:[%s8941 + $0x18] sm:$0xff]
    %v8946 = vld [vmem:[%s8941 + $0x20] sm:$0xff]
    %v8947 = vld [vmem:[%s8941 + $0x28] sm:$0xff]
    %v8948 = vld [vmem:[%s8941 + $0x30] sm:$0xff]
    %v8949 = vld [vmem:[%s8941 + $0x38] sm:$0xff]
    %v8950 = vld [vmem:[%s8941 + $0x40] sm:$0xff]
    %v8951 = vld [vmem:[%s8941 + $0x48] sm:$0xff]
    %v8952 = vld [vmem:[%s8941 + $0x50] sm:$0xff]
    %v8953 = vld [vmem:[%s8941 + $0x58] sm:$0xff]
    %v8954 = vld [vmem:[%s8941 + $0x60] sm:$0xff]
    %v8955 = vld [vmem:[%s8941 + $0x68] sm:$0xff]
    %v8956 = vld [vmem:[%s8941 + $0x70] sm:$0xff]
    %v8957 = vld [vmem:[%s8941 + $0x78] sm:$0xff]
    %v8958 = vrot.slane %v3882, 6
    %v8959 = vrot.slane %v7549, 5
    %v8960 = vsel %vm7576, %v8959, %v8958
    %8962 = vmatprep.subr.mxu0 0.0
    %8963 = vmatpush1.msra.mxu0 %v8942
    %8964 = vmatprep.subr.mxu0 0.0
    %8965 = vmatpush1.msra.mxu0 %v8943
    %8966 = vmatprep.subr.mxu0 0.0
    %8967 = vmatpush1.msra.mxu0 %v8944
    %8968 = vmatprep.subr.mxu0 0.0
    %8969 = vmatpush1.msra.mxu0 %v8945
    %8970 = vmatprep.subr.mxu0 0.0
    %8971 = vmatpush1.msra.mxu0 %v8946
    %8972 = vmatprep.subr.mxu0 0.0
    %8973 = vmatpush1.msra.mxu0 %v8947
    %8974 = vmatprep.subr.mxu0 0.0
    %8975 = vmatpush1.msra.mxu0 %v8948
    %8976 = vmatprep.subr.mxu0 0.0
    %8977 = vmatpush1.msra.mxu0 %v8949
    %8978 = vmatprep.subr.mxu0 0.0
    %8979 = vmatpush1.msra.mxu0 %v8950
    %8980 = vmatprep.subr.mxu0 0.0
    %8981 = vmatpush1.msra.mxu0 %v8951
    %8982 = vmatprep.subr.mxu0 0.0
    %8983 = vmatpush1.msra.mxu0 %v8952
    %8984 = vmatprep.subr.mxu0 0.0
    %8985 = vmatpush1.msra.mxu0 %v8953
    %8986 = vmatprep.subr.mxu0 0.0
    %8987 = vmatpush1.msra.mxu0 %v8954
    %8988 = vmatprep.subr.mxu0 0.0
    %8989 = vmatpush1.msra.mxu0 %v8955
    %8990 = vmatprep.subr.mxu0 0.0
    %8991 = vmatpush1.msra.mxu0 %v8956
    %8992 = vmatprep.subr.mxu0 0.0
    %8993 = vmatpush1.msra.mxu0 %v8957
    %8994 = vmatprep.subr.mxu0 0.0
    %8995 = vmatpush1.msra.mxu0 0.0
    %8996 = vmatprep.subr.mxu0 0.0
    %8997 = vmatpush1.msra.mxu0 0.0
    %8998 = vmatprep.subr.mxu0 0.0
    %8999 = vmatpush1.msra.mxu0 0.0
    %9000 = vmatprep.subr.mxu0 0.0
    %9001 = vmatpush1.msra.mxu0 0.0
    %9002 = vmatprep.subr.mxu0 0.0
    %9003 = vmatpush1.msra.mxu0 0.0
    %9004 = vmatprep.subr.mxu0 0.0
    %9005 = vmatpush1.msra.mxu0 0.0
    %9006 = vmatprep.subr.mxu0 0.0
    %9007 = vmatpush1.msra.mxu0 0.0
    %9008 = vmatprep.subr.mxu0 0.0
    %9009 = vmatpush1.msra.mxu0 0.0
    %9010 = vmatprep.subr.mxu0 0.0
    %9011 = vmatpush1.msra.mxu0 0.0
    %9012 = vmatprep.subr.mxu0 0.0
    %9013 = vmatpush1.msra.mxu0 0.0
    %9014 = vmatprep.subr.mxu0 0.0
    %9015 = vmatpush1.msra.mxu0 0.0
    %9016 = vmatprep.subr.mxu0 0.0
    %9017 = vmatpush1.msra.mxu0 0.0
    %9018 = vmatprep.subr.mxu0 0.0
    %9019 = vmatpush1.msra.mxu0 0.0
    %9020 = vmatprep.subr.mxu0 0.0
    %9021 = vmatpush1.msra.mxu0 0.0
    %9022 = vmatprep.subr.mxu0 0.0
    %9023 = vmatpush1.msra.mxu0 0.0
    %9024 = vmatprep.subr.mxu0 0.0
    %9025 = vmatpush1.msra.mxu0 0.0
    %9026 = vmatprep.mubr.f32.mxu0 0.0
    %9027 = vmatmul.mubr.f32.gmra.mrb[0].mxu0 %v8960
    %v9028 = vpop.f32.mrb[0].mxu0
    %v9029 = vadd.f32 0.0, %v9028
    %v9030 = vpop.f32.mrb[0].mxu0
    %9031 = vdwg.mxu0
    %v9032 = vadd.f32 %v8940, %v9029
    %vm9033 = vcmask 1041408
    %v9034 = vsel %vm9033, %v9032, 0.0
    %v9035 = vrot.slane %v9034, 4
    %v9036 = vadd.f32 %v9034, %v9035
    %v9037 = vrot.slane %v9036, 2
    %v9038 = vadd.f32 %v9036, %v9037
    %v9039 = vrot.slane %v9038, 1
    %v9040 = vadd.f32 %v9038, %v9039
    %v9041 = vrcp.pop 2.0
    %v9042 = vmul.f32 %v9040, %v9041
    %v9043 = vsub.f32 %v9032, %v9042
    %v9044 = vmul.f32 %v9043, %v9043
    %v9045 = vsel %vm9033, %v9044, 0.0
    %v9046 = vrot.slane %v9045, 4
    %v9047 = vadd.f32 %v9045, %v9046
    %v9048 = vrot.slane %v9047, 2
    %v9049 = vadd.f32 %v9047, %v9048
    %v9050 = vrot.slane %v9049, 1
    %v9051 = vadd.f32 %v9049, %v9050
    %v9052 = vmul.f32 %v9051, %v9041
    %v9053 = vadd.f32 %v9052, 1e-05
    %v9054 = vrsqrt.pop %v9053
    %v9055 = vmul.f32 %v9043, %v9054
    %v9056 = vld [vmem:[#allocation14] sm:$0x1]
    %v9058 = vlaneseq
    %v9059 = vshrl.u32 %v9058, 7
    %v9060 = vsub.s32 0, %v9059
    %v9061 = vrot.slane %v9056, %v9060
    %v9063 = vmul.f32 %v9055, %v9061
    %v9064 = vld [vmem:[#allocation15] sm:$0x1]
    %v9066 = vlaneseq
    %v9067 = vshrl.u32 %v9066, 7
    %v9068 = vsub.s32 0, %v9067
    %v9069 = vrot.slane %v9064, %v9068
    %v9071 = vadd.f32 %v9063, %v9069
    %v9072 = vmax.f32 %v9071, 0.0
    %v9073 = vld [vmem:[#allocation17] sm:$0xff]
    %v9074 = vld [vmem:[#allocation17 + $0x8] sm:$0xff]
    %v9075 = vld [vmem:[#allocation17 + $0x10] sm:$0xff]
    %v9076 = vld [vmem:[#allocation17 + $0x18] sm:$0xff]
    %v9077 = vld [vmem:[#allocation17 + $0x20] sm:$0xff]
    %v9078 = vld [vmem:[#allocation17 + $0x28] sm:$0xff]
    %v9079 = vld [vmem:[#allocation17 + $0x30] sm:$0xff]
    %v9080 = vld [vmem:[#allocation17 + $0x38] sm:$0xff]
    %v9081 = vld [vmem:[#allocation17 + $0x40] sm:$0xff]
    %v9082 = vld [vmem:[#allocation17 + $0x48] sm:$0xff]
    %v9083 = vld [vmem:[#allocation17 + $0x50] sm:$0xff]
    %v9084 = vld [vmem:[#allocation17 + $0x58] sm:$0xff]
    %v9085 = vld [vmem:[#allocation17 + $0x60] sm:$0xff]
    %v9086 = vld [vmem:[#allocation17 + $0x68] sm:$0xff]
    %v9087 = vld [vmem:[#allocation17 + $0x70] sm:$0xff]
    %v9088 = vld [vmem:[#allocation17 + $0x78] sm:$0xff]
    %v9089 = vld [vmem:[#allocation18] sm:$0x1]
    %v9091 = vlaneseq
    %v9092 = vshrl.u32 %v9091, 7
    %v9093 = vsub.s32 0, %v9092
    %v9094 = vrot.slane %v9089, %v9093
    %9096 = vmatprep.subr.mxu0 0.0
    %9097 = vmatpush1.msra.mxu0 %v9073
    %9098 = vmatprep.subr.mxu0 0.0
    %9099 = vmatpush1.msra.mxu0 %v9074
    %9100 = vmatprep.subr.mxu0 0.0
    %9101 = vmatpush1.msra.mxu0 %v9075
    %9102 = vmatprep.subr.mxu0 0.0
    %9103 = vmatpush1.msra.mxu0 %v9076
    %9104 = vmatprep.subr.mxu0 0.0
    %9105 = vmatpush1.msra.mxu0 %v9077
    %9106 = vmatprep.subr.mxu0 0.0
    %9107 = vmatpush1.msra.mxu0 %v9078
    %9108 = vmatprep.subr.mxu0 0.0
    %9109 = vmatpush1.msra.mxu0 %v9079
    %9110 = vmatprep.subr.mxu0 0.0
    %9111 = vmatpush1.msra.mxu0 %v9080
    %9112 = vmatprep.subr.mxu0 0.0
    %9113 = vmatpush1.msra.mxu0 %v9081
    %9114 = vmatprep.subr.mxu0 0.0
    %9115 = vmatpush1.msra.mxu0 %v9082
    %9116 = vmatprep.subr.mxu0 0.0
    %9117 = vmatpush1.msra.mxu0 %v9083
    %9118 = vmatprep.subr.mxu0 0.0
    %9119 = vmatpush1.msra.mxu0 %v9084
    %9120 = vmatprep.subr.mxu0 0.0
    %9121 = vmatpush1.msra.mxu0 %v9085
    %9122 = vmatprep.subr.mxu0 0.0
    %9123 = vmatpush1.msra.mxu0 %v9086
    %9124 = vmatprep.subr.mxu0 0.0
    %9125 = vmatpush1.msra.mxu0 %v9087
    %9126 = vmatprep.subr.mxu0 0.0
    %9127 = vmatpush1.msra.mxu0 %v9088
    %9128 = vmatprep.subr.mxu0 0.0
    %9129 = vmatpush1.msra.mxu0 0.0
    %9130 = vmatprep.subr.mxu0 0.0
    %9131 = vmatpush1.msra.mxu0 0.0
    %9132 = vmatprep.subr.mxu0 0.0
    %9133 = vmatpush1.msra.mxu0 0.0
    %9134 = vmatprep.subr.mxu0 0.0
    %9135 = vmatpush1.msra.mxu0 0.0
    %9136 = vmatprep.subr.mxu0 0.0
    %9137 = vmatpush1.msra.mxu0 0.0
    %9138 = vmatprep.subr.mxu0 0.0
    %9139 = vmatpush1.msra.mxu0 0.0
    %9140 = vmatprep.subr.mxu0 0.0
    %9141 = vmatpush1.msra.mxu0 0.0
    %9142 = vmatprep.subr.mxu0 0.0
    %9143 = vmatpush1.msra.mxu0 0.0
    %9144 = vmatprep.subr.mxu0 0.0
    %9145 = vmatpush1.msra.mxu0 0.0
    %9146 = vmatprep.subr.mxu0 0.0
    %9147 = vmatpush1.msra.mxu0 0.0
    %9148 = vmatprep.subr.mxu0 0.0
    %9149 = vmatpush1.msra.mxu0 0.0
    %9150 = vmatprep.subr.mxu0 0.0
    %9151 = vmatpush1.msra.mxu0 0.0
    %9152 = vmatprep.subr.mxu0 0.0
    %9153 = vmatpush1.msra.mxu0 0.0
    %9154 = vmatprep.subr.mxu0 0.0
    %9155 = vmatpush1.msra.mxu0 0.0
    %9156 = vmatprep.subr.mxu0 0.0
    %9157 = vmatpush1.msra.mxu0 0.0
    %9158 = vmatprep.subr.mxu0 0.0
    %9159 = vmatpush1.msra.mxu0 0.0
    %9160 = vmatprep.mubr.f32.mxu0 0.0
    %9161 = vmatmul.mubr.f32.gmra.mrb[0].mxu0 %v9072
    %v9162 = vpop.f32.mrb[0].mxu0
    %v9163 = vadd.f32 %v9094, %v9162
    %v9164 = vpop.f32.mrb[0].mxu0
    %9165 = vdwg.mxu0
    %9166 = vst [vmem:[#allocation20] sm:$0x3] %v9163
    // Predicated region
    $region86: #{cnn2d_spectral_forward.1} parent=1 // pred_check
      _
    $region87: #{cnn2d_spectral_forward.1} parent=1 // pred_check_branch
      %9168 = sbr.rel (0) target = $region89
    $region88: #{cnn2d_spectral_forward.1} parent=1 // pred_region
      %s9170 = ssub.s32 32, 32
      %9171 = vsyncadd [#allocation5], %s9170
      %s9173 = sshll.u32 [#allocation20], 4
      %s9174 = int_to_ptr.vmem [resolvable:$true] %s9173
      %9176 = dma.vmem_to_hbm [thread:$0]  %s9174, 32, %s11, [#allocation5]
    $region89: #{cnn2d_spectral_forward.1} parent=1 // pred_fallthru
      _
    // Predicated region
    $region90: #{cnn2d_spectral_forward.1} parent=1 // pred_check
      _
    $region91: #{cnn2d_spectral_forward.1} parent=1 // pred_check_branch
      %9178 = sbr.rel (0) target = $region93
    $region92: #{cnn2d_spectral_forward.1} parent=1 // pred_region
      %9179 = dma.done [#allocation5], 32
    $region93: #{cnn2d_spectral_forward.1} parent=1 // pred_fallthru
      _
    %9180 = vsyncpa [#allocation4], 1
    %9181 = vsyncpa [#allocation7], 1
    %9182 = vsyncpa [#allocation10], 1
    %9183 = vsyncpa [#allocation13], 1
    %9184 = vsyncpa [#allocation16], 1
    %9185 = vsyncpa [#allocation19], 1
    %9186 = vsyncpa [#allocation5], 1

</llo_original>
